<compile_context>
chip_gen: v5e
topology: v5e:2x2
jax: 0.10.0
libtpu: 0.0.40
codegen_flags: <defaults>
</compile_context>

<pallas_src>
import functools
import math

import jax
import jax.numpy as jnp
from jax import lax
from jax.experimental import pallas as pl
from jax.experimental.pallas import tpu as pltpu

EPS = 1e-5                      # PyTorch LayerNorm default
MATMUL_DTYPE = jnp.bfloat16     # MXU input dtype (accumulation stays f32)


# ----------------------------------------------------------------------------
# In-kernel helpers (operate on loaded values / weight refs)
# ----------------------------------------------------------------------------
def _layer_norm(z, g, b):
    """LayerNorm over the last dim; g/b are (1, D) f32."""
    mu = jnp.mean(z, axis=-1, keepdims=True)
    var = jnp.mean(jnp.square(z - mu), axis=-1, keepdims=True)
    return (z - mu) * lax.rsqrt(var + EPS) * g + b


def _mha(xq, xkv, wqkv_ref, bqkv_ref, wo_ref, bo_ref, *, nhead, mask):
    """Multi-head attention for one batch element.

    xq: (Sq, D) f32, xkv: (Sk, D) f32.
    wqkv_ref: (3, H, D, dh) bf16, bqkv_ref: (3, H, 1, dh) f32,
    wo_ref: (H, dh, D) bf16, bo_ref: (1, D) f32.
    mask: optional (Sq, Sk) additive f32 mask (compile-time optional).
    """
    sq, d = xq.shape
    dh = d // nhead
    scale = 1.0 / math.sqrt(dh)

    xq_b = jnp.broadcast_to(xq.astype(MATMUL_DTYPE)[None], (nhead, sq, d))
    if xkv is xq:
        xkv_b = xq_b
    else:
        sk = xkv.shape[0]
        xkv_b = jnp.broadcast_to(xkv.astype(MATMUL_DTYPE)[None], (nhead, sk, d))

    # Head-batched projections (bf16 MXU, f32 accumulate), biases in f32.
    q = jnp.einsum('hsd,hde->hse', xq_b, wqkv_ref[0],
                   preferred_element_type=jnp.float32) + bqkv_ref[0]
    k = jnp.einsum('hsd,hde->hse', xkv_b, wqkv_ref[1],
                   preferred_element_type=jnp.float32) + bqkv_ref[1]
    v = jnp.einsum('hsd,hde->hse', xkv_b, wqkv_ref[2],
                   preferred_element_type=jnp.float32) + bqkv_ref[2]

    # Scores + softmax in f32.
    s = jnp.einsum('hqe,hke->hqk', q, k,
                   preferred_element_type=jnp.float32) * scale
    if mask is not None:
        s = s + mask[None]
    s = s - jnp.max(s, axis=-1, keepdims=True)
    p = jnp.exp(s)
    p = p * pl.reciprocal(jnp.sum(p, axis=-1, keepdims=True), approx=True)

    o = jnp.einsum('hqk,hke->hqe', p, v, preferred_element_type=jnp.float32)
    per_head = jnp.einsum('hqe,hed->hqd', o.astype(MATMUL_DTYPE), wo_ref[...],
                          preferred_element_type=jnp.float32)
    return jnp.sum(per_head, axis=0) + bo_ref[...]        # (Sq, D) f32


def _ffn(x, w1_ref, b1_ref, w2_ref, b2_ref):
    """relu(x @ W1 + b1) @ W2 + b2 with bf16 matmul inputs, f32 accumulate."""
    h = jnp.dot(x.astype(MATMUL_DTYPE), w1_ref[...],
                preferred_element_type=jnp.float32) + b1_ref[...]
    h = jnp.maximum(h, 0.0)
    return jnp.dot(h.astype(MATMUL_DTYPE), w2_ref[...],
                   preferred_element_type=jnp.float32) + b2_ref[...]


# ----------------------------------------------------------------------------
# Fused layer kernels (one pallas_call per transformer layer)
# ----------------------------------------------------------------------------
def _encoder_layer_kernel(x_ref, wqkv_ref, bqkv_ref, wo_ref, bo_ref,
                          w1_ref, b1_ref, w2_ref, b2_ref, g_ref, beta_ref,
                          out_ref, *, nhead):
    x = x_ref[0]                                           # (S, D) f32
    sa = _mha(x, x, wqkv_ref, bqkv_ref, wo_ref, bo_ref, nhead=nhead, mask=None)
    x1 = _layer_norm(x + sa, g_ref[0], beta_ref[0])
    ff = _ffn(x1, w1_ref, b1_ref, w2_ref, b2_ref)
    out_ref[0] = _layer_norm(x1 + ff, g_ref[1], beta_ref[1])


def _decoder_layer_kernel(*args, nhead, has_mask, with_head):
    idx = 0

    def nxt():
        nonlocal idx
        r = args[idx]
        idx += 1
        return r

    x_ref = nxt()
    mem_ref = nxt()
    mask_ref = nxt() if has_mask else None
    wqkv_s, bqkv_s, wo_s, bo_s = nxt(), nxt(), nxt(), nxt()
    wqkv_c, bqkv_c, wo_c, bo_c = nxt(), nxt(), nxt(), nxt()
    w1_ref, b1_ref, w2_ref, b2_ref = nxt(), nxt(), nxt(), nxt()
    g_ref, beta_ref = nxt(), nxt()
    if with_head:
        wout_ref, bout_ref = nxt(), nxt()
    out_ref = nxt()
    if with_head:
        y_ref = nxt()

    x = x_ref[0]                                           # (T, D) f32
    mem = mem_ref[0]                                       # (S, D) f32
    mask = mask_ref[...] if has_mask else None

    sa = _mha(x, x, wqkv_s, bqkv_s, wo_s, bo_s, nhead=nhead, mask=mask)
    x1 = _layer_norm(x + sa, g_ref[0], beta_ref[0])
    ca = _mha(x1, mem, wqkv_c, bqkv_c, wo_c, bo_c, nhead=nhead, mask=None)
    x2 = _layer_norm(x1 + ca, g_ref[1], beta_ref[1])
    ff = _ffn(x2, w1_ref, b1_ref, w2_ref, b2_ref)
    x3 = _layer_norm(x2 + ff, g_ref[2], beta_ref[2])
    out_ref[0] = x3
    if with_head:
        # Final Linear(d_model, 1): lane-reduce instead of an N=1 matmul.
        y_ref[0] = (jnp.sum(x3 * wout_ref[...], axis=-1, keepdims=True)
                    + bout_ref[...])


# ----------------------------------------------------------------------------
# Pallas wrappers
# ----------------------------------------------------------------------------
def _attn_specs(H, D, dh):
    return [pl.BlockSpec((3, H, D, dh), lambda b: (0, 0, 0, 0)),
            pl.BlockSpec((3, H, 1, dh), lambda b: (0, 0, 0, 0)),
            pl.BlockSpec((H, dh, D), lambda b: (0, 0, 0)),
            pl.BlockSpec((1, D), lambda b: (0, 0))]


def encoder_layer(x, p, nhead):
    """x: (B, S, D) f32 -> (B, S, D) f32."""
    B, S, D = x.shape
    dff = p['w1'].shape[1]
    H, dh = nhead, D // nhead
    kernel = functools.partial(_encoder_layer_kernel, nhead=nhead)
    in_specs = ([pl.BlockSpec((1, S, D), lambda b: (b, 0, 0))]
                + _attn_specs(H, D, dh)
                + [pl.BlockSpec((D, dff), lambda b: (0, 0)),
                   pl.BlockSpec((1, dff), lambda b: (0, 0)),
                   pl.BlockSpec((dff, D), lambda b: (0, 0)),
                   pl.BlockSpec((1, D), lambda b: (0, 0)),
                   pl.BlockSpec((2, 1, D), lambda b: (0, 0, 0)),
                   pl.BlockSpec((2, 1, D), lambda b: (0, 0, 0))])
    return pl.pallas_call(
        kernel,
        out_shape=jax.ShapeDtypeStruct((B, S, D), jnp.float32),
        grid=(B,),
        in_specs=in_specs,
        out_specs=pl.BlockSpec((1, S, D), lambda b: (b, 0, 0)),
        compiler_params=pltpu.CompilerParams(dimension_semantics=("parallel",)),
    )(x, p['attn']['wqkv'], p['attn']['bqkv'], p['attn']['wo'], p['attn']['bo'],
      p['w1'], p['b1'], p['w2'], p['b2'], p['ln_g'], p['ln_b'])


def decoder_layer(x, mem, p, nhead, tgt_mask=None, head=None):
    """x: (B, T, D), mem: (B, S, D).  head = (w_out (1,D), b_out (1,1)) or None.

    Returns x_out, or (x_out, y) when `head` is given (final linear fused in).
    """
    B, T, D = x.shape
    S = mem.shape[1]
    dff = p['w1'].shape[1]
    H, dh = nhead, D // nhead
    has_mask = tgt_mask is not None
    with_head = head is not None

    kernel = functools.partial(_decoder_layer_kernel, nhead=nhead,
                               has_mask=has_mask, with_head=with_head)

    in_specs = [pl.BlockSpec((1, T, D), lambda b: (b, 0, 0)),
                pl.BlockSpec((1, S, D), lambda b: (b, 0, 0))]
    inputs = [x, mem]
    if has_mask:
        in_specs.append(pl.BlockSpec((T, T), lambda b: (0, 0)))
        inputs.append(tgt_mask)
    in_specs += _attn_specs(H, D, dh) + _attn_specs(H, D, dh)
    inputs += [p['self_attn']['wqkv'], p['self_attn']['bqkv'],
               p['self_attn']['wo'], p['self_attn']['bo'],
               p['cross_attn']['wqkv'], p['cross_attn']['bqkv'],
               p['cross_attn']['wo'], p['cross_attn']['bo']]
    in_specs += [pl.BlockSpec((D, dff), lambda b: (0, 0)),
                 pl.BlockSpec((1, dff), lambda b: (0, 0)),
                 pl.BlockSpec((dff, D), lambda b: (0, 0)),
                 pl.BlockSpec((1, D), lambda b: (0, 0)),
                 pl.BlockSpec((3, 1, D), lambda b: (0, 0, 0)),
                 pl.BlockSpec((3, 1, D), lambda b: (0, 0, 0))]
    inputs += [p['w1'], p['b1'], p['w2'], p['b2'], p['ln_g'], p['ln_b']]
    if with_head:
        in_specs += [pl.BlockSpec((1, D), lambda b: (0, 0)),
                     pl.BlockSpec((1, 1), lambda b: (0, 0))]
        inputs += [head[0], head[1]]

    if with_head:
        out_shape = (jax.ShapeDtypeStruct((B, T, D), jnp.float32),
                     jax.ShapeDtypeStruct((B, T, 1), jnp.float32))
        out_specs = (pl.BlockSpec((1, T, D), lambda b: (b, 0, 0)),
                     pl.BlockSpec((1, T, 1), lambda b: (b, 0, 0)))
    else:
        out_shape = jax.ShapeDtypeStruct((B, T, D), jnp.float32)
        out_specs = pl.BlockSpec((1, T, D), lambda b: (b, 0, 0))

    return pl.pallas_call(
        kernel, out_shape=out_shape, grid=(B,),
        in_specs=in_specs, out_specs=out_specs,
        compiler_params=pltpu.CompilerParams(dimension_semantics=("parallel",)),
    )(*inputs)


# ----------------------------------------------------------------------------
# Parameter init (deterministic, synthetic — shapes/layout match the module)
# ----------------------------------------------------------------------------
def _uniform(key, shape, fan_in):
    bound = 1.0 / math.sqrt(fan_in)
    return jax.random.uniform(key, shape, jnp.float32, -bound, bound)


def init_mha(key, d_model, nhead):
    dh = d_model // nhead
    ks = jax.random.split(key, 8)

    def proj_w(k):
        # stored pre-transposed (d_in, d_out) so kernels compute x @ W,
        # then split the output (head) dim: (D, D) -> (H, D, dh)
        w = _uniform(k, (d_model, d_model), d_model)
        return w.reshape(d_model, nhead, dh).transpose(1, 0, 2)

    def proj_b(k):
        return _uniform(k, (d_model,), d_model).reshape(nhead, 1, dh)

    wqkv = jnp.stack([proj_w(ks[0]), proj_w(ks[1]), proj_w(ks[2])],
                     axis=0).astype(MATMUL_DTYPE)            # (3, H, D, dh)
    bqkv = jnp.stack([proj_b(ks[3]), proj_b(ks[4]), proj_b(ks[5])],
                     axis=0)                                  # (3, H, 1, dh) f32
    wo = _uniform(ks[6], (d_model, d_model), d_model)
    wo = wo.reshape(nhead, dh, d_model).astype(MATMUL_DTYPE)  # (H, dh, D)
    bo = _uniform(ks[7], (1, d_model), d_model)
    return dict(wqkv=wqkv, bqkv=bqkv, wo=wo, bo=bo)


def _init_ffn(p, key, d_model, d_ff):
    k1, k2, k3, k4 = jax.random.split(key, 4)
    p['w1'] = _uniform(k1, (d_model, d_ff), d_model).astype(MATMUL_DTYPE)
    p['b1'] = _uniform(k2, (1, d_ff), d_model)
    p['w2'] = _uniform(k3, (d_ff, d_model), d_ff).astype(MATMUL_DTYPE)
    p['b2'] = _uniform(k4, (1, d_model), d_ff)


def init_encoder_layer(key, d_model, nhead, d_ff):
    k1, k2 = jax.random.split(key)
    p = dict(attn=init_mha(k1, d_model, nhead))
    _init_ffn(p, k2, d_model, d_ff)
    p['ln_g'] = jnp.ones((2, 1, d_model), jnp.float32)
    p['ln_b'] = jnp.zeros((2, 1, d_model), jnp.float32)
    return p


def init_decoder_layer(key, d_model, nhead, d_ff):
    k1, k2, k3 = jax.random.split(key, 3)
    p = dict(self_attn=init_mha(k1, d_model, nhead),
             cross_attn=init_mha(k2, d_model, nhead))
    _init_ffn(p, k3, d_model, d_ff)
    p['ln_g'] = jnp.ones((3, 1, d_model), jnp.float32)
    p['ln_b'] = jnp.zeros((3, 1, d_model), jnp.float32)
    return p


# ----------------------------------------------------------------------------
# Model forward
# ----------------------------------------------------------------------------
def transformer_forward(src, tgt, tgt_mask, params, nhead):
    """src: (S, B, D), tgt: (T, B, D) — PyTorch batch_first=False layout."""
    # TODO(synk): dropout layers are stochastic in train mode; implemented as
    # eval-mode identity (deterministic forward).
    mem = jnp.transpose(src, (1, 0, 2))        # (B, S, D) canonical layout
    for p in params['encoder']:
        mem = encoder_layer(mem, p, nhead)

    x = jnp.transpose(tgt, (1, 0, 2))          # (B, T, D)
    head = (params['out_w'], params['out_b'])
    n_dec = len(params['decoder'])
    y = None
    for i, p in enumerate(params['decoder']):
        last = (i == n_dec - 1)
        res = decoder_layer(x, mem, p, nhead, tgt_mask=tgt_mask,
                            head=head if last else None)
        if last:
            x, y = res
        else:
            x = res
    return jnp.transpose(y, (1, 0, 2))         # (T, B, 1)


# ----------------------------------------------------------------------------
if __name__ == "__main__":
    d_model, nhead = 32, 4
    num_encoder_layers, num_decoder_layers = 2, 2
    d_ff = 2048                     # PyTorch default dim_feedforward
    S_src, S_tgt, B = 8, 8, 2

    key = jax.random.PRNGKey(0)
    k_enc, k_dec, k_out, k_src, k_tgt = jax.random.split(key, 5)

    params = {
        'encoder': [init_encoder_layer(k, d_model, nhead, d_ff)
                    for k in jax.random.split(k_enc, num_encoder_layers)],
        'decoder': [init_decoder_layer(k, d_model, nhead, d_ff)
                    for k in jax.random.split(k_dec, num_decoder_layers)],
    }
    kw, kb = jax.random.split(k_out)
    params['out_w'] = _uniform(kw, (1, d_model), d_model)   # row vector: y = sum(x*w)+b
    params['out_b'] = _uniform(kb, (1, 1), d_model)

    src = jax.random.normal(k_src, (S_src, B, d_model), jnp.float32)
    tgt = jax.random.normal(k_tgt, (S_tgt, B, d_model), jnp.float32)
    # causal mask a la nn.Transformer.generate_square_subsequent_mask
    tgt_mask = jnp.where(jnp.triu(jnp.ones((S_tgt, S_tgt)), k=1) > 0,
                         -1e9, 0.0).astype(jnp.float32)

    fwd = jax.jit(functools.partial(transformer_forward, nhead=nhead))
    out = fwd(src, tgt, tgt_mask, params)
    out = jax.block_until_ready(out)
    assert out.shape == (S_tgt, B, 1), out.shape
    assert bool(jnp.all(jnp.isfinite(out)))
    print("KERNEL_OK")
</pallas_src>

<mosaic_0001>
module attributes {stable_mosaic.version = 11 : i64} {
  func.func @_encoder_layer_kernel(%arg0: i32, %arg1: memref<1x8x32xf32, #tpu.memory_space<vmem>>, %arg2: memref<3x4x32x8xbf16, #tpu.memory_space<vmem>>, %arg3: memref<3x4x1x8xf32, #tpu.memory_space<vmem>>, %arg4: memref<4x8x32xbf16, #tpu.memory_space<vmem>>, %arg5: memref<1x32xf32, #tpu.memory_space<vmem>>, %arg6: memref<32x2048xbf16, #tpu.memory_space<vmem>>, %arg7: memref<1x2048xf32, #tpu.memory_space<vmem>>, %arg8: memref<2048x32xbf16, #tpu.memory_space<vmem>>, %arg9: memref<1x32xf32, #tpu.memory_space<vmem>>, %arg10: memref<2x1x32xf32, #tpu.memory_space<vmem>>, %arg11: memref<2x1x32xf32, #tpu.memory_space<vmem>>, %arg12: memref<1x8x32xf32, #tpu.memory_space<vmem>>) attributes {dimension_semantics = [#tpu.dimension_semantics<parallel>], iteration_bounds = array<i64: 2>, scalar_prefetch = 0 : i64, scratch_operands = 0 : i64, tpu.core_type = #tpu.core_type<tc>, window_params = [{transform_indices = @transform_0, window_bounds = array<i64: 1, 8, 32>}, {pipeline_mode = #tpu.pipeline_mode<synchronous>, transform_indices = @transform_1, window_bounds = array<i64: 3, 4, 32, 8>}, {pipeline_mode = #tpu.pipeline_mode<synchronous>, transform_indices = @transform_2, window_bounds = array<i64: 3, 4, 1, 8>}, {pipeline_mode = #tpu.pipeline_mode<synchronous>, transform_indices = @transform_3, window_bounds = array<i64: 4, 8, 32>}, {pipeline_mode = #tpu.pipeline_mode<synchronous>, transform_indices = @transform_4, window_bounds = array<i64: 1, 32>}, {pipeline_mode = #tpu.pipeline_mode<synchronous>, transform_indices = @transform_5, window_bounds = array<i64: 32, 2048>}, {pipeline_mode = #tpu.pipeline_mode<synchronous>, transform_indices = @transform_6, window_bounds = array<i64: 1, 2048>}, {pipeline_mode = #tpu.pipeline_mode<synchronous>, transform_indices = @transform_7, window_bounds = array<i64: 2048, 32>}, {pipeline_mode = #tpu.pipeline_mode<synchronous>, transform_indices = @transform_8, window_bounds = array<i64: 1, 32>}, {pipeline_mode = #tpu.pipeline_mode<synchronous>, transform_indices = @transform_9, window_bounds = array<i64: 2, 1, 32>}, {pipeline_mode = #tpu.pipeline_mode<synchronous>, transform_indices = @transform_10, window_bounds = array<i64: 2, 1, 32>}, {transform_indices = @transform_11, window_bounds = array<i64: 1, 8, 32>}]} {
    %c0 = arith.constant 0 : index
    %c0_0 = arith.constant 0 : index
    %c0_1 = arith.constant 0 : index
    %0 = vector.load %arg1[%c0, %c0_0, %c0_1] : memref<1x8x32xf32, #tpu.memory_space<vmem>>, vector<1x8x32xf32>
    %1 = vector.shape_cast %0 : vector<1x8x32xf32> to vector<8x32xf32>
    %2 = arith.truncf %1 : vector<8x32xf32> to vector<8x32xbf16>
    %3 = vector.shape_cast %2 : vector<8x32xbf16> to vector<1x8x32xbf16>
    %4 = vector.shape_cast %3 : vector<1x8x32xbf16> to vector<1x8x32xbf16>
    %5 = vector.broadcast %4 : vector<1x8x32xbf16> to vector<4x8x32xbf16>
    %c0_2 = arith.constant 0 : index
    %c0_3 = arith.constant 0 : index
    %c0_4 = arith.constant 0 : index
    %c0_5 = arith.constant 0 : index
    %6 = vector.load %arg2[%c0_2, %c0_3, %c0_4, %c0_5] : memref<3x4x32x8xbf16, #tpu.memory_space<vmem>>, vector<1x4x32x8xbf16>
    %7 = vector.shape_cast %6 : vector<1x4x32x8xbf16> to vector<4x32x8xbf16>
    "tpu.trace_start"() <{level = 10 : i32, message = "hsd,hde->hse"}> : () -> ()
    %cst = arith.constant dense<0.000000e+00> : vector<4x8x8xf32>
    %8 = tpu.matmul %5, %7, %cst {dimension_numbers = #tpu.dot_dimension_numbers<[2], [1], [1], [2], [0, 0, 0, 1, 1, 2], [0], [0]>} : vector<4x8x32xbf16>, vector<4x32x8xbf16>, vector<4x8x8xf32> -> vector<4x8x8xf32>
    "tpu.trace_stop"() : () -> ()
    %c0_6 = arith.constant 0 : index
    %c0_7 = arith.constant 0 : index
    %c0_8 = arith.constant 0 : index
    %c0_9 = arith.constant 0 : index
    %9 = vector.load %arg3[%c0_6, %c0_7, %c0_8, %c0_9] : memref<3x4x1x8xf32, #tpu.memory_space<vmem>>, vector<1x4x1x8xf32>
    %10 = vector.shape_cast %9 : vector<1x4x1x8xf32> to vector<4x1x8xf32>
    %11 = vector.broadcast %10 : vector<4x1x8xf32> to vector<4x8x8xf32>
    %12 = arith.addf %8, %11 : vector<4x8x8xf32>
    %c1 = arith.constant 1 : index
    %c0_10 = arith.constant 0 : index
    %c0_11 = arith.constant 0 : index
    %c0_12 = arith.constant 0 : index
    %13 = vector.load %arg2[%c1, %c0_10, %c0_11, %c0_12] : memref<3x4x32x8xbf16, #tpu.memory_space<vmem>>, vector<1x4x32x8xbf16>
    %14 = vector.shape_cast %13 : vector<1x4x32x8xbf16> to vector<4x32x8xbf16>
    "tpu.trace_start"() <{level = 10 : i32, message = "hsd,hde->hse"}> : () -> ()
    %cst_13 = arith.constant dense<0.000000e+00> : vector<4x8x8xf32>
    %15 = tpu.matmul %5, %14, %cst_13 {dimension_numbers = #tpu.dot_dimension_numbers<[2], [1], [1], [2], [0, 0, 0, 1, 1, 2], [0], [0]>} : vector<4x8x32xbf16>, vector<4x32x8xbf16>, vector<4x8x8xf32> -> vector<4x8x8xf32>
    "tpu.trace_stop"() : () -> ()
    %c1_14 = arith.constant 1 : index
    %c0_15 = arith.constant 0 : index
    %c0_16 = arith.constant 0 : index
    %c0_17 = arith.constant 0 : index
    %16 = vector.load %arg3[%c1_14, %c0_15, %c0_16, %c0_17] : memref<3x4x1x8xf32, #tpu.memory_space<vmem>>, vector<1x4x1x8xf32>
    %17 = vector.shape_cast %16 : vector<1x4x1x8xf32> to vector<4x1x8xf32>
    %18 = vector.broadcast %17 : vector<4x1x8xf32> to vector<4x8x8xf32>
    %19 = arith.addf %15, %18 : vector<4x8x8xf32>
    %c2 = arith.constant 2 : index
    %c0_18 = arith.constant 0 : index
    %c0_19 = arith.constant 0 : index
    %c0_20 = arith.constant 0 : index
    %20 = vector.load %arg2[%c2, %c0_18, %c0_19, %c0_20] : memref<3x4x32x8xbf16, #tpu.memory_space<vmem>>, vector<1x4x32x8xbf16>
    %21 = vector.shape_cast %20 : vector<1x4x32x8xbf16> to vector<4x32x8xbf16>
    "tpu.trace_start"() <{level = 10 : i32, message = "hsd,hde->hse"}> : () -> ()
    %cst_21 = arith.constant dense<0.000000e+00> : vector<4x8x8xf32>
    %22 = tpu.matmul %5, %21, %cst_21 {dimension_numbers = #tpu.dot_dimension_numbers<[2], [1], [1], [2], [0, 0, 0, 1, 1, 2], [0], [0]>} : vector<4x8x32xbf16>, vector<4x32x8xbf16>, vector<4x8x8xf32> -> vector<4x8x8xf32>
    "tpu.trace_stop"() : () -> ()
    %c2_22 = arith.constant 2 : index
    %c0_23 = arith.constant 0 : index
    %c0_24 = arith.constant 0 : index
    %c0_25 = arith.constant 0 : index
    %23 = vector.load %arg3[%c2_22, %c0_23, %c0_24, %c0_25] : memref<3x4x1x8xf32, #tpu.memory_space<vmem>>, vector<1x4x1x8xf32>
    %24 = vector.shape_cast %23 : vector<1x4x1x8xf32> to vector<4x1x8xf32>
    %25 = vector.broadcast %24 : vector<4x1x8xf32> to vector<4x8x8xf32>
    %26 = arith.addf %22, %25 : vector<4x8x8xf32>
    "tpu.trace_start"() <{level = 10 : i32, message = "hqe,hke->hqk"}> : () -> ()
    %cst_26 = arith.constant dense<0.000000e+00> : vector<4x8x8xf32>
    %27 = tpu.matmul %12, %19, %cst_26 {dimension_numbers = #tpu.dot_dimension_numbers<[2], [2], [1], [1], [0, 0, 0, 1, 1, 1], [0], [0]>} : vector<4x8x8xf32>, vector<4x8x8xf32>, vector<4x8x8xf32> -> vector<4x8x8xf32>
    "tpu.trace_stop"() : () -> ()
    %cst_27 = arith.constant 0.353553385 : f32
    %28 = vector.broadcast %cst_27 : f32 to vector<4x8x8xf32>
    %29 = arith.mulf %27, %28 : vector<4x8x8xf32>
    %cst_28 = arith.constant dense<0xFF800000> : vector<4x8xf32>
    %30 = vector.multi_reduction <maximumf>, %29, %cst_28 [2] : vector<4x8x8xf32> to vector<4x8xf32>
    %31 = vector.shape_cast %30 : vector<4x8xf32> to vector<4x8x1xf32>
    %32 = vector.broadcast %31 : vector<4x8x1xf32> to vector<4x8x8xf32>
    %33 = arith.subf %29, %32 : vector<4x8x8xf32>
    %34 = math.exp %33 : vector<4x8x8xf32>
    %cst_29 = arith.constant dense<0.000000e+00> : vector<4x8xf32>
    %35 = vector.multi_reduction <add>, %34, %cst_29 [2] : vector<4x8x8xf32> to vector<4x8xf32>
    %36 = vector.shape_cast %35 : vector<4x8xf32> to vector<4x8x1xf32>
    %37 = tpu.reciprocal %36 {approx = true} : vector<4x8x1xf32> -> vector<4x8x1xf32>
    %38 = vector.broadcast %37 : vector<4x8x1xf32> to vector<4x8x8xf32>
    %39 = arith.mulf %34, %38 : vector<4x8x8xf32>
    "tpu.trace_start"() <{level = 10 : i32, message = "hqk,hke->hqe"}> : () -> ()
    %cst_30 = arith.constant dense<0.000000e+00> : vector<4x8x8xf32>
    %40 = tpu.matmul %39, %26, %cst_30 {dimension_numbers = #tpu.dot_dimension_numbers<[2], [1], [1], [2], [0, 0, 0, 1, 1, 2], [0], [0]>} : vector<4x8x8xf32>, vector<4x8x8xf32>, vector<4x8x8xf32> -> vector<4x8x8xf32>
    "tpu.trace_stop"() : () -> ()
    %41 = arith.truncf %40 : vector<4x8x8xf32> to vector<4x8x8xbf16>
    %c0_31 = arith.constant 0 : index
    %c0_32 = arith.constant 0 : index
    %c0_33 = arith.constant 0 : index
    %42 = vector.load %arg4[%c0_31, %c0_32, %c0_33] : memref<4x8x32xbf16, #tpu.memory_space<vmem>>, vector<4x8x32xbf16>
    "tpu.trace_start"() <{level = 10 : i32, message = "hqe,hed->hqd"}> : () -> ()
    %cst_34 = arith.constant dense<0.000000e+00> : vector<4x8x32xf32>
    %43 = tpu.matmul %41, %42, %cst_34 {dimension_numbers = #tpu.dot_dimension_numbers<[2], [1], [1], [2], [0, 0, 0, 1, 1, 2], [0], [0]>} : vector<4x8x8xbf16>, vector<4x8x32xbf16>, vector<4x8x32xf32> -> vector<4x8x32xf32>
    "tpu.trace_stop"() : () -> ()
    %cst_35 = arith.constant dense<0.000000e+00> : vector<8x32xf32>
    %44 = vector.multi_reduction <add>, %43, %cst_35 [0] : vector<4x8x32xf32> to vector<8x32xf32>
    %c0_36 = arith.constant 0 : index
    %c0_37 = arith.constant 0 : index
    %45 = vector.load %arg5[%c0_36, %c0_37] : memref<1x32xf32, #tpu.memory_space<vmem>>, vector<1x32xf32>
    %46 = vector.broadcast %45 : vector<1x32xf32> to vector<8x32xf32>
    %47 = arith.addf %44, %46 : vector<8x32xf32>
    %48 = arith.addf %1, %47 : vector<8x32xf32>
    %c0_38 = arith.constant 0 : index
    %c0_39 = arith.constant 0 : index
    %c0_40 = arith.constant 0 : index
    %49 = vector.load %arg10[%c0_38, %c0_39, %c0_40] : memref<2x1x32xf32, #tpu.memory_space<vmem>>, vector<1x1x32xf32>
    %50 = vector.shape_cast %49 : vector<1x1x32xf32> to vector<1x32xf32>
    %c0_41 = arith.constant 0 : index
    %c0_42 = arith.constant 0 : index
    %c0_43 = arith.constant 0 : index
    %51 = vector.load %arg11[%c0_41, %c0_42, %c0_43] : memref<2x1x32xf32, #tpu.memory_space<vmem>>, vector<1x1x32xf32>
    %52 = vector.shape_cast %51 : vector<1x1x32xf32> to vector<1x32xf32>
    %cst_44 = arith.constant dense<0.000000e+00> : vector<8xf32>
    %53 = vector.multi_reduction <add>, %48, %cst_44 [1] : vector<8x32xf32> to vector<8xf32>
    %54 = vector.shape_cast %53 : vector<8xf32> to vector<8x1xf32>
    %cst_45 = arith.constant 3.200000e+01 : f32
    %55 = vector.broadcast %cst_45 : f32 to vector<8x1xf32>
    %56 = arith.divf %54, %55 : vector<8x1xf32>
    %57 = vector.broadcast %56 : vector<8x1xf32> to vector<8x32xf32>
    %58 = arith.subf %48, %57 : vector<8x32xf32>
    %59 = arith.mulf %58, %58 : vector<8x32xf32>
    %cst_46 = arith.constant dense<0.000000e+00> : vector<8xf32>
    %60 = vector.multi_reduction <add>, %59, %cst_46 [1] : vector<8x32xf32> to vector<8xf32>
    %61 = vector.shape_cast %60 : vector<8xf32> to vector<8x1xf32>
    %cst_47 = arith.constant 3.200000e+01 : f32
    %62 = vector.broadcast %cst_47 : f32 to vector<8x1xf32>
    %63 = arith.divf %61, %62 : vector<8x1xf32>
    %64 = vector.broadcast %56 : vector<8x1xf32> to vector<8x32xf32>
    %65 = arith.subf %48, %64 : vector<8x32xf32>
    %cst_48 = arith.constant 9.99999974E-6 : f32
    %66 = vector.broadcast %cst_48 : f32 to vector<8x1xf32>
    %67 = arith.addf %63, %66 : vector<8x1xf32>
    %68 = math.rsqrt %67 : vector<8x1xf32>
    %69 = vector.broadcast %68 : vector<8x1xf32> to vector<8x32xf32>
    %70 = arith.mulf %65, %69 : vector<8x32xf32>
    %71 = vector.broadcast %50 : vector<1x32xf32> to vector<8x32xf32>
    %72 = arith.mulf %70, %71 : vector<8x32xf32>
    %73 = vector.broadcast %52 : vector<1x32xf32> to vector<8x32xf32>
    %74 = arith.addf %72, %73 : vector<8x32xf32>
    %75 = arith.truncf %74 : vector<8x32xf32> to vector<8x32xbf16>
    %c0_49 = arith.constant 0 : index
    %c0_50 = arith.constant 0 : index
    %76 = vector.load %arg6[%c0_49, %c0_50] : memref<32x2048xbf16, #tpu.memory_space<vmem>>, vector<32x2048xbf16>
    %cst_51 = arith.constant dense<0.000000e+00> : vector<8x2048xf32>
    %77 = tpu.matmul %75, %76, %cst_51 {dimension_numbers = #tpu.dot_dimension_numbers<[1], [0], [0], [1], [0, 0, 1, 1], [], []>} : vector<8x32xbf16>, vector<32x2048xbf16>, vector<8x2048xf32> -> vector<8x2048xf32>
    %c0_52 = arith.constant 0 : index
    %c0_53 = arith.constant 0 : index
    %78 = vector.load %arg7[%c0_52, %c0_53] : memref<1x2048xf32, #tpu.memory_space<vmem>>, vector<1x2048xf32>
    %79 = vector.broadcast %78 : vector<1x2048xf32> to vector<8x2048xf32>
    %80 = arith.addf %77, %79 : vector<8x2048xf32>
    %cst_54 = arith.constant 0.000000e+00 : f32
    %81 = vector.broadcast %cst_54 : f32 to vector<8x2048xf32>
    %82 = arith.maximumf %80, %81 : vector<8x2048xf32>
    %83 = arith.truncf %82 : vector<8x2048xf32> to vector<8x2048xbf16>
    %c0_55 = arith.constant 0 : index
    %c0_56 = arith.constant 0 : index
    %84 = vector.load %arg8[%c0_55, %c0_56] : memref<2048x32xbf16, #tpu.memory_space<vmem>>, vector<2048x32xbf16>
    %cst_57 = arith.constant dense<0.000000e+00> : vector<8x32xf32>
    %85 = tpu.matmul %83, %84, %cst_57 {dimension_numbers = #tpu.dot_dimension_numbers<[1], [0], [0], [1], [0, 0, 1, 1], [], []>} : vector<8x2048xbf16>, vector<2048x32xbf16>, vector<8x32xf32> -> vector<8x32xf32>
    %c0_58 = arith.constant 0 : index
    %c0_59 = arith.constant 0 : index
    %86 = vector.load %arg9[%c0_58, %c0_59] : memref<1x32xf32, #tpu.memory_space<vmem>>, vector<1x32xf32>
    %87 = vector.broadcast %86 : vector<1x32xf32> to vector<8x32xf32>
    %88 = arith.addf %85, %87 : vector<8x32xf32>
    %89 = arith.addf %74, %88 : vector<8x32xf32>
    %c1_60 = arith.constant 1 : index
    %c0_61 = arith.constant 0 : index
    %c0_62 = arith.constant 0 : index
    %90 = vector.load %arg10[%c1_60, %c0_61, %c0_62] : memref<2x1x32xf32, #tpu.memory_space<vmem>>, vector<1x1x32xf32>
    %91 = vector.shape_cast %90 : vector<1x1x32xf32> to vector<1x32xf32>
    %c1_63 = arith.constant 1 : index
    %c0_64 = arith.constant 0 : index
    %c0_65 = arith.constant 0 : index
    %92 = vector.load %arg11[%c1_63, %c0_64, %c0_65] : memref<2x1x32xf32, #tpu.memory_space<vmem>>, vector<1x1x32xf32>
    %93 = vector.shape_cast %92 : vector<1x1x32xf32> to vector<1x32xf32>
    %cst_66 = arith.constant dense<0.000000e+00> : vector<8xf32>
    %94 = vector.multi_reduction <add>, %89, %cst_66 [1] : vector<8x32xf32> to vector<8xf32>
    %95 = vector.shape_cast %94 : vector<8xf32> to vector<8x1xf32>
    %cst_67 = arith.constant 3.200000e+01 : f32
    %96 = vector.broadcast %cst_67 : f32 to vector<8x1xf32>
    %97 = arith.divf %95, %96 : vector<8x1xf32>
    %98 = vector.broadcast %97 : vector<8x1xf32> to vector<8x32xf32>
    %99 = arith.subf %89, %98 : vector<8x32xf32>
    %100 = arith.mulf %99, %99 : vector<8x32xf32>
    %cst_68 = arith.constant dense<0.000000e+00> : vector<8xf32>
    %101 = vector.multi_reduction <add>, %100, %cst_68 [1] : vector<8x32xf32> to vector<8xf32>
    %102 = vector.shape_cast %101 : vector<8xf32> to vector<8x1xf32>
    %cst_69 = arith.constant 3.200000e+01 : f32
    %103 = vector.broadcast %cst_69 : f32 to vector<8x1xf32>
    %104 = arith.divf %102, %103 : vector<8x1xf32>
    %105 = vector.broadcast %97 : vector<8x1xf32> to vector<8x32xf32>
    %106 = arith.subf %89, %105 : vector<8x32xf32>
    %cst_70 = arith.constant 9.99999974E-6 : f32
    %107 = vector.broadcast %cst_70 : f32 to vector<8x1xf32>
    %108 = arith.addf %104, %107 : vector<8x1xf32>
    %109 = math.rsqrt %108 : vector<8x1xf32>
    %110 = vector.broadcast %109 : vector<8x1xf32> to vector<8x32xf32>
    %111 = arith.mulf %106, %110 : vector<8x32xf32>
    %112 = vector.broadcast %91 : vector<1x32xf32> to vector<8x32xf32>
    %113 = arith.mulf %111, %112 : vector<8x32xf32>
    %114 = vector.broadcast %93 : vector<1x32xf32> to vector<8x32xf32>
    %115 = arith.addf %113, %114 : vector<8x32xf32>
    %c0_71 = arith.constant 0 : index
    %c0_72 = arith.constant 0 : index
    %c0_73 = arith.constant 0 : index
    %116 = vector.load %arg12[%c0_71, %c0_72, %c0_73] : memref<1x8x32xf32, #tpu.memory_space<vmem>>, vector<1x8x32xf32>
    %117 = vector.shape_cast %116 : vector<1x8x32xf32> to vector<8x32xf32>
    %118 = vector.shape_cast %115 : vector<8x32xf32> to vector<1x8x32xf32>
    tpu.vector_store %arg12[%c0_71, %c0_72, %c0_73], %118 {strides = array<i32>} : memref<1x8x32xf32, #tpu.memory_space<vmem>>, vector<1x8x32xf32>,
    return
  }
  func.func @transform_0(%arg0: i32) -> (i32, i32, i32) {
    %c0_i32 = arith.constant 0 : i32
    %c0_i32_0 = arith.constant 0 : i32
    %c0_i32_1 = arith.constant 0 : i32
    return %arg0, %c0_i32, %c0_i32_0 : i32, i32, i32
  }
  func.func @transform_1(%arg0: i32) -> (i32, i32, i32, i32) {
    %c0_i32 = arith.constant 0 : i32
    %c0_i32_0 = arith.constant 0 : i32
    %c0_i32_1 = arith.constant 0 : i32
    %c0_i32_2 = arith.constant 0 : i32
    %c0_i32_3 = arith.constant 0 : i32
    return %c0_i32, %c0_i32_0, %c0_i32_1, %c0_i32_2 : i32, i32, i32, i32
  }
  func.func @transform_2(%arg0: i32) -> (i32, i32, i32, i32) {
    %c0_i32 = arith.constant 0 : i32
    %c0_i32_0 = arith.constant 0 : i32
    %c0_i32_1 = arith.constant 0 : i32
    %c0_i32_2 = arith.constant 0 : i32
    %c0_i32_3 = arith.constant 0 : i32
    return %c0_i32, %c0_i32_0, %c0_i32_1, %c0_i32_2 : i32, i32, i32, i32
  }
  func.func @transform_3(%arg0: i32) -> (i32, i32, i32) {
    %c0_i32 = arith.constant 0 : i32
    %c0_i32_0 = arith.constant 0 : i32
    %c0_i32_1 = arith.constant 0 : i32
    %c0_i32_2 = arith.constant 0 : i32
    return %c0_i32, %c0_i32_0, %c0_i32_1 : i32, i32, i32
  }
  func.func @transform_4(%arg0: i32) -> (i32, i32) {
    %c0_i32 = arith.constant 0 : i32
    %c0_i32_0 = arith.constant 0 : i32
    %c0_i32_1 = arith.constant 0 : i32
    return %c0_i32, %c0_i32_0 : i32, i32
  }
  func.func @transform_5(%arg0: i32) -> (i32, i32) {
    %c0_i32 = arith.constant 0 : i32
    %c0_i32_0 = arith.constant 0 : i32
    %c0_i32_1 = arith.constant 0 : i32
    return %c0_i32, %c0_i32_0 : i32, i32
  }
  func.func @transform_6(%arg0: i32) -> (i32, i32) {
    %c0_i32 = arith.constant 0 : i32
    %c0_i32_0 = arith.constant 0 : i32
    %c0_i32_1 = arith.constant 0 : i32
    return %c0_i32, %c0_i32_0 : i32, i32
  }
  func.func @transform_7(%arg0: i32) -> (i32, i32) {
    %c0_i32 = arith.constant 0 : i32
    %c0_i32_0 = arith.constant 0 : i32
    %c0_i32_1 = arith.constant 0 : i32
    return %c0_i32, %c0_i32_0 : i32, i32
  }
  func.func @transform_8(%arg0: i32) -> (i32, i32) {
    %c0_i32 = arith.constant 0 : i32
    %c0_i32_0 = arith.constant 0 : i32
    %c0_i32_1 = arith.constant 0 : i32
    return %c0_i32, %c0_i32_0 : i32, i32
  }
  func.func @transform_9(%arg0: i32) -> (i32, i32, i32) {
    %c0_i32 = arith.constant 0 : i32
    %c0_i32_0 = arith.constant 0 : i32
    %c0_i32_1 = arith.constant 0 : i32
    %c0_i32_2 = arith.constant 0 : i32
    return %c0_i32, %c0_i32_0, %c0_i32_1 : i32, i32, i32
  }
  func.func @transform_10(%arg0: i32) -> (i32, i32, i32) {
    %c0_i32 = arith.constant 0 : i32
    %c0_i32_0 = arith.constant 0 : i32
    %c0_i32_1 = arith.constant 0 : i32
    %c0_i32_2 = arith.constant 0 : i32
    return %c0_i32, %c0_i32_0, %c0_i32_1 : i32, i32, i32
  }
  func.func @transform_11(%arg0: i32) -> (i32, i32, i32) {
    %c0_i32 = arith.constant 0 : i32
    %c0_i32_0 = arith.constant 0 : i32
    %c0_i32_1 = arith.constant 0 : i32
    return %arg0, %c0_i32, %c0_i32_0 : i32, i32, i32
  }
}

module attributes {stable_mosaic.version = 11 : i64} {
  func.func @_decoder_layer_kernel(%arg0: i32, %arg1: memref<1x8x32xf32, #tpu.memory_space<vmem>>, %arg2: memref<1x8x32xf32, #tpu.memory_space<vmem>>, %arg3: memref<8x8xf32, #tpu.memory_space<vmem>>, %arg4: memref<3x4x32x8xbf16, #tpu.memory_space<vmem>>, %arg5: memref<3x4x1x8xf32, #tpu.memory_space<vmem>>, %arg6: memref<4x8x32xbf16, #tpu.memory_space<vmem>>, %arg7: memref<1x32xf32, #tpu.memory_space<vmem>>, %arg8: memref<3x4x32x8xbf16, #tpu.memory_space<vmem>>, %arg9: memref<3x4x1x8xf32, #tpu.memory_space<vmem>>, %arg10: memref<4x8x32xbf16, #tpu.memory_space<vmem>>, %arg11: memref<1x32xf32, #tpu.memory_space<vmem>>, %arg12: memref<32x2048xbf16, #tpu.memory_space<vmem>>, %arg13: memref<1x2048xf32, #tpu.memory_space<vmem>>, %arg14: memref<2048x32xbf16, #tpu.memory_space<vmem>>, %arg15: memref<1x32xf32, #tpu.memory_space<vmem>>, %arg16: memref<3x1x32xf32, #tpu.memory_space<vmem>>, %arg17: memref<3x1x32xf32, #tpu.memory_space<vmem>>, %arg18: memref<1x8x32xf32, #tpu.memory_space<vmem>>) attributes {dimension_semantics = [#tpu.dimension_semantics<parallel>], iteration_bounds = array<i64: 2>, scalar_prefetch = 0 : i64, scratch_operands = 0 : i64, tpu.core_type = #tpu.core_type<tc>, window_params = [{transform_indices = @transform_0, window_bounds = array<i64: 1, 8, 32>}, {transform_indices = @transform_1, window_bounds = array<i64: 1, 8, 32>}, {pipeline_mode = #tpu.pipeline_mode<synchronous>, transform_indices = @transform_2, window_bounds = array<i64: 8, 8>}, {pipeline_mode = #tpu.pipeline_mode<synchronous>, transform_indices = @transform_3, window_bounds = array<i64: 3, 4, 32, 8>}, {pipeline_mode = #tpu.pipeline_mode<synchronous>, transform_indices = @transform_4, window_bounds = array<i64: 3, 4, 1, 8>}, {pipeline_mode = #tpu.pipeline_mode<synchronous>, transform_indices = @transform_5, window_bounds = array<i64: 4, 8, 32>}, {pipeline_mode = #tpu.pipeline_mode<synchronous>, transform_indices = @transform_6, window_bounds = array<i64: 1, 32>}, {pipeline_mode = #tpu.pipeline_mode<synchronous>, transform_indices = @transform_7, window_bounds = array<i64: 3, 4, 32, 8>}, {pipeline_mode = #tpu.pipeline_mode<synchronous>, transform_indices = @transform_8, window_bounds = array<i64: 3, 4, 1, 8>}, {pipeline_mode = #tpu.pipeline_mode<synchronous>, transform_indices = @transform_9, window_bounds = array<i64: 4, 8, 32>}, {pipeline_mode = #tpu.pipeline_mode<synchronous>, transform_indices = @transform_10, window_bounds = array<i64: 1, 32>}, {pipeline_mode = #tpu.pipeline_mode<synchronous>, transform_indices = @transform_11, window_bounds = array<i64: 32, 2048>}, {pipeline_mode = #tpu.pipeline_mode<synchronous>, transform_indices = @transform_12, window_bounds = array<i64: 1, 2048>}, {pipeline_mode = #tpu.pipeline_mode<synchronous>, transform_indices = @transform_13, window_bounds = array<i64: 2048, 32>}, {pipeline_mode = #tpu.pipeline_mode<synchronous>, transform_indices = @transform_14, window_bounds = array<i64: 1, 32>}, {pipeline_mode = #tpu.pipeline_mode<synchronous>, transform_indices = @transform_15, window_bounds = array<i64: 3, 1, 32>}, {pipeline_mode = #tpu.pipeline_mode<synchronous>, transform_indices = @transform_16, window_bounds = array<i64: 3, 1, 32>}, {transform_indices = @transform_17, window_bounds = array<i64: 1, 8, 32>}]} {
    %c0 = arith.constant 0 : index
    %c0_0 = arith.constant 0 : index
    %c0_1 = arith.constant 0 : index
    %0 = vector.load %arg1[%c0, %c0_0, %c0_1] : memref<1x8x32xf32, #tpu.memory_space<vmem>>, vector<1x8x32xf32>
    %1 = vector.shape_cast %0 : vector<1x8x32xf32> to vector<8x32xf32>
    %c0_2 = arith.constant 0 : index
    %c0_3 = arith.constant 0 : index
    %c0_4 = arith.constant 0 : index
    %2 = vector.load %arg2[%c0_2, %c0_3, %c0_4] : memref<1x8x32xf32, #tpu.memory_space<vmem>>, vector<1x8x32xf32>
    %3 = vector.shape_cast %2 : vector<1x8x32xf32> to vector<8x32xf32>
    %c0_5 = arith.constant 0 : index
    %c0_6 = arith.constant 0 : index
    %4 = vector.load %arg3[%c0_5, %c0_6] : memref<8x8xf32, #tpu.memory_space<vmem>>, vector<8x8xf32>
    %5 = arith.truncf %1 : vector<8x32xf32> to vector<8x32xbf16>
    %6 = vector.shape_cast %5 : vector<8x32xbf16> to vector<1x8x32xbf16>
    %7 = vector.shape_cast %6 : vector<1x8x32xbf16> to vector<1x8x32xbf16>
    %8 = vector.broadcast %7 : vector<1x8x32xbf16> to vector<4x8x32xbf16>
    %c0_7 = arith.constant 0 : index
    %c0_8 = arith.constant 0 : index
    %c0_9 = arith.constant 0 : index
    %c0_10 = arith.constant 0 : index
    %9 = vector.load %arg4[%c0_7, %c0_8, %c0_9, %c0_10] : memref<3x4x32x8xbf16, #tpu.memory_space<vmem>>, vector<1x4x32x8xbf16>
    %10 = vector.shape_cast %9 : vector<1x4x32x8xbf16> to vector<4x32x8xbf16>
    "tpu.trace_start"() <{level = 10 : i32, message = "hsd,hde->hse"}> : () -> ()
    %cst = arith.constant dense<0.000000e+00> : vector<4x8x8xf32>
    %11 = tpu.matmul %8, %10, %cst {dimension_numbers = #tpu.dot_dimension_numbers<[2], [1], [1], [2], [0, 0, 0, 1, 1, 2], [0], [0]>} : vector<4x8x32xbf16>, vector<4x32x8xbf16>, vector<4x8x8xf32> -> vector<4x8x8xf32>
    "tpu.trace_stop"() : () -> ()
    %c0_11 = arith.constant 0 : index
    %c0_12 = arith.constant 0 : index
    %c0_13 = arith.constant 0 : index
    %c0_14 = arith.constant 0 : index
    %12 = vector.load %arg5[%c0_11, %c0_12, %c0_13, %c0_14] : memref<3x4x1x8xf32, #tpu.memory_space<vmem>>, vector<1x4x1x8xf32>
    %13 = vector.shape_cast %12 : vector<1x4x1x8xf32> to vector<4x1x8xf32>
    %14 = vector.broadcast %13 : vector<4x1x8xf32> to vector<4x8x8xf32>
    %15 = arith.addf %11, %14 : vector<4x8x8xf32>
    %c1 = arith.constant 1 : index
    %c0_15 = arith.constant 0 : index
    %c0_16 = arith.constant 0 : index
    %c0_17 = arith.constant 0 : index
    %16 = vector.load %arg4[%c1, %c0_15, %c0_16, %c0_17] : memref<3x4x32x8xbf16, #tpu.memory_space<vmem>>, vector<1x4x32x8xbf16>
    %17 = vector.shape_cast %16 : vector<1x4x32x8xbf16> to vector<4x32x8xbf16>
    "tpu.trace_start"() <{level = 10 : i32, message = "hsd,hde->hse"}> : () -> ()
    %cst_18 = arith.constant dense<0.000000e+00> : vector<4x8x8xf32>
    %18 = tpu.matmul %8, %17, %cst_18 {dimension_numbers = #tpu.dot_dimension_numbers<[2], [1], [1], [2], [0, 0, 0, 1, 1, 2], [0], [0]>} : vector<4x8x32xbf16>, vector<4x32x8xbf16>, vector<4x8x8xf32> -> vector<4x8x8xf32>
    "tpu.trace_stop"() : () -> ()
    %c1_19 = arith.constant 1 : index
    %c0_20 = arith.constant 0 : index
    %c0_21 = arith.constant 0 : index
    %c0_22 = arith.constant 0 : index
    %19 = vector.load %arg5[%c1_19, %c0_20, %c0_21, %c0_22] : memref<3x4x1x8xf32, #tpu.memory_space<vmem>>, vector<1x4x1x8xf32>
    %20 = vector.shape_cast %19 : vector<1x4x1x8xf32> to vector<4x1x8xf32>
    %21 = vector.broadcast %20 : vector<4x1x8xf32> to vector<4x8x8xf32>
    %22 = arith.addf %18, %21 : vector<4x8x8xf32>
    %c2 = arith.constant 2 : index
    %c0_23 = arith.constant 0 : index
    %c0_24 = arith.constant 0 : index
    %c0_25 = arith.constant 0 : index
    %23 = vector.load %arg4[%c2, %c0_23, %c0_24, %c0_25] : memref<3x4x32x8xbf16, #tpu.memory_space<vmem>>, vector<1x4x32x8xbf16>
    %24 = vector.shape_cast %23 : vector<1x4x32x8xbf16> to vector<4x32x8xbf16>
    "tpu.trace_start"() <{level = 10 : i32, message = "hsd,hde->hse"}> : () -> ()
    %cst_26 = arith.constant dense<0.000000e+00> : vector<4x8x8xf32>
    %25 = tpu.matmul %8, %24, %cst_26 {dimension_numbers = #tpu.dot_dimension_numbers<[2], [1], [1], [2], [0, 0, 0, 1, 1, 2], [0], [0]>} : vector<4x8x32xbf16>, vector<4x32x8xbf16>, vector<4x8x8xf32> -> vector<4x8x8xf32>
    "tpu.trace_stop"() : () -> ()
    %c2_27 = arith.constant 2 : index
    %c0_28 = arith.constant 0 : index
    %c0_29 = arith.constant 0 : index
    %c0_30 = arith.constant 0 : index
    %26 = vector.load %arg5[%c2_27, %c0_28, %c0_29, %c0_30] : memref<3x4x1x8xf32, #tpu.memory_space<vmem>>, vector<1x4x1x8xf32>
    %27 = vector.shape_cast %26 : vector<1x4x1x8xf32> to vector<4x1x8xf32>
    %28 = vector.broadcast %27 : vector<4x1x8xf32> to vector<4x8x8xf32>
    %29 = arith.addf %25, %28 : vector<4x8x8xf32>
    "tpu.trace_start"() <{level = 10 : i32, message = "hqe,hke->hqk"}> : () -> ()
    %cst_31 = arith.constant dense<0.000000e+00> : vector<4x8x8xf32>
    %30 = tpu.matmul %15, %22, %cst_31 {dimension_numbers = #tpu.dot_dimension_numbers<[2], [2], [1], [1], [0, 0, 0, 1, 1, 1], [0], [0]>} : vector<4x8x8xf32>, vector<4x8x8xf32>, vector<4x8x8xf32> -> vector<4x8x8xf32>
    "tpu.trace_stop"() : () -> ()
    %cst_32 = arith.constant 0.353553385 : f32
    %31 = vector.broadcast %cst_32 : f32 to vector<4x8x8xf32>
    %32 = arith.mulf %30, %31 : vector<4x8x8xf32>
    %33 = vector.shape_cast %4 : vector<8x8xf32> to vector<1x8x8xf32>
    %34 = vector.broadcast %33 : vector<1x8x8xf32> to vector<4x8x8xf32>
    %35 = arith.addf %32, %34 : vector<4x8x8xf32>
    %cst_33 = arith.constant dense<0xFF800000> : vector<4x8xf32>
    %36 = vector.multi_reduction <maximumf>, %35, %cst_33 [2] : vector<4x8x8xf32> to vector<4x8xf32>
    %37 = vector.shape_cast %36 : vector<4x8xf32> to vector<4x8x1xf32>
    %38 = vector.broadcast %37 : vector<4x8x1xf32> to vector<4x8x8xf32>
    %39 = arith.subf %35, %38 : vector<4x8x8xf32>
    %40 = math.exp %39 : vector<4x8x8xf32>
    %cst_34 = arith.constant dense<0.000000e+00> : vector<4x8xf32>
    %41 = vector.multi_reduction <add>, %40, %cst_34 [2] : vector<4x8x8xf32> to vector<4x8xf32>
    %42 = vector.shape_cast %41 : vector<4x8xf32> to vector<4x8x1xf32>
    %43 = tpu.reciprocal %42 {approx = true} : vector<4x8x1xf32> -> vector<4x8x1xf32>
    %44 = vector.broadcast %43 : vector<4x8x1xf32> to vector<4x8x8xf32>
    %45 = arith.mulf %40, %44 : vector<4x8x8xf32>
    "tpu.trace_start"() <{level = 10 : i32, message = "hqk,hke->hqe"}> : () -> ()
    %cst_35 = arith.constant dense<0.000000e+00> : vector<4x8x8xf32>
    %46 = tpu.matmul %45, %29, %cst_35 {dimension_numbers = #tpu.dot_dimension_numbers<[2], [1], [1], [2], [0, 0, 0, 1, 1, 2], [0], [0]>} : vector<4x8x8xf32>, vector<4x8x8xf32>, vector<4x8x8xf32> -> vector<4x8x8xf32>
    "tpu.trace_stop"() : () -> ()
    %47 = arith.truncf %46 : vector<4x8x8xf32> to vector<4x8x8xbf16>
    %c0_36 = arith.constant 0 : index
    %c0_37 = arith.constant 0 : index
    %c0_38 = arith.constant 0 : index
    %48 = vector.load %arg6[%c0_36, %c0_37, %c0_38] : memref<4x8x32xbf16, #tpu.memory_space<vmem>>, vector<4x8x32xbf16>
    "tpu.trace_start"() <{level = 10 : i32, message = "hqe,hed->hqd"}> : () -> ()
    %cst_39 = arith.constant dense<0.000000e+00> : vector<4x8x32xf32>
    %49 = tpu.matmul %47, %48, %cst_39 {dimension_numbers = #tpu.dot_dimension_numbers<[2], [1], [1], [2], [0, 0, 0, 1, 1, 2], [0], [0]>} : vector<4x8x8xbf16>, vector<4x8x32xbf16>, vector<4x8x32xf32> -> vector<4x8x32xf32>
    "tpu.trace_stop"() : () -> ()
    %cst_40 = arith.constant dense<0.000000e+00> : vector<8x32xf32>
    %50 = vector.multi_reduction <add>, %49, %cst_40 [0] : vector<4x8x32xf32> to vector<8x32xf32>
    %c0_41 = arith.constant 0 : index
    %c0_42 = arith.constant 0 : index
    %51 = vector.load %arg7[%c0_41, %c0_42] : memref<1x32xf32, #tpu.memory_space<vmem>>, vector<1x32xf32>
    %52 = vector.broadcast %51 : vector<1x32xf32> to vector<8x32xf32>
    %53 = arith.addf %50, %52 : vector<8x32xf32>
    %54 = arith.addf %1, %53 : vector<8x32xf32>
    %c0_43 = arith.constant 0 : index
    %c0_44 = arith.constant 0 : index
    %c0_45 = arith.constant 0 : index
    %55 = vector.load %arg16[%c0_43, %c0_44, %c0_45] : memref<3x1x32xf32, #tpu.memory_space<vmem>>, vector<1x1x32xf32>
    %56 = vector.shape_cast %55 : vector<1x1x32xf32> to vector<1x32xf32>
    %c0_46 = arith.constant 0 : index
    %c0_47 = arith.constant 0 : index
    %c0_48 = arith.constant 0 : index
    %57 = vector.load %arg17[%c0_46, %c0_47, %c0_48] : memref<3x1x32xf32, #tpu.memory_space<vmem>>, vector<1x1x32xf32>
    %58 = vector.shape_cast %57 : vector<1x1x32xf32> to vector<1x32xf32>
    %cst_49 = arith.constant dense<0.000000e+00> : vector<8xf32>
    %59 = vector.multi_reduction <add>, %54, %cst_49 [1] : vector<8x32xf32> to vector<8xf32>
    %60 = vector.shape_cast %59 : vector<8xf32> to vector<8x1xf32>
    %cst_50 = arith.constant 3.200000e+01 : f32
    %61 = vector.broadcast %cst_50 : f32 to vector<8x1xf32>
    %62 = arith.divf %60, %61 : vector<8x1xf32>
    %63 = vector.broadcast %62 : vector<8x1xf32> to vector<8x32xf32>
    %64 = arith.subf %54, %63 : vector<8x32xf32>
    %65 = arith.mulf %64, %64 : vector<8x32xf32>
    %cst_51 = arith.constant dense<0.000000e+00> : vector<8xf32>
    %66 = vector.multi_reduction <add>, %65, %cst_51 [1] : vector<8x32xf32> to vector<8xf32>
    %67 = vector.shape_cast %66 : vector<8xf32> to vector<8x1xf32>
    %cst_52 = arith.constant 3.200000e+01 : f32
    %68 = vector.broadcast %cst_52 : f32 to vector<8x1xf32>
    %69 = arith.divf %67, %68 : vector<8x1xf32>
    %70 = vector.broadcast %62 : vector<8x1xf32> to vector<8x32xf32>
    %71 = arith.subf %54, %70 : vector<8x32xf32>
    %cst_53 = arith.constant 9.99999974E-6 : f32
    %72 = vector.broadcast %cst_53 : f32 to vector<8x1xf32>
    %73 = arith.addf %69, %72 : vector<8x1xf32>
    %74 = math.rsqrt %73 : vector<8x1xf32>
    %75 = vector.broadcast %74 : vector<8x1xf32> to vector<8x32xf32>
    %76 = arith.mulf %71, %75 : vector<8x32xf32>
    %77 = vector.broadcast %56 : vector<1x32xf32> to vector<8x32xf32>
    %78 = arith.mulf %76, %77 : vector<8x32xf32>
    %79 = vector.broadcast %58 : vector<1x32xf32> to vector<8x32xf32>
    %80 = arith.addf %78, %79 : vector<8x32xf32>
    %81 = arith.truncf %80 : vector<8x32xf32> to vector<8x32xbf16>
    %82 = vector.shape_cast %81 : vector<8x32xbf16> to vector<1x8x32xbf16>
    %83 = vector.shape_cast %82 : vector<1x8x32xbf16> to vector<1x8x32xbf16>
    %84 = vector.broadcast %83 : vector<1x8x32xbf16> to vector<4x8x32xbf16>
    %85 = arith.truncf %3 : vector<8x32xf32> to vector<8x32xbf16>
    %86 = vector.shape_cast %85 : vector<8x32xbf16> to vector<1x8x32xbf16>
    %87 = vector.shape_cast %86 : vector<1x8x32xbf16> to vector<1x8x32xbf16>
    %88 = vector.broadcast %87 : vector<1x8x32xbf16> to vector<4x8x32xbf16>
    %c0_54 = arith.constant 0 : index
    %c0_55 = arith.constant 0 : index
    %c0_56 = arith.constant 0 : index
    %c0_57 = arith.constant 0 : index
    %89 = vector.load %arg8[%c0_54, %c0_55, %c0_56, %c0_57] : memref<3x4x32x8xbf16, #tpu.memory_space<vmem>>, vector<1x4x32x8xbf16>
    %90 = vector.shape_cast %89 : vector<1x4x32x8xbf16> to vector<4x32x8xbf16>
    "tpu.trace_start"() <{level = 10 : i32, message = "hsd,hde->hse"}> : () -> ()
    %cst_58 = arith.constant dense<0.000000e+00> : vector<4x8x8xf32>
    %91 = tpu.matmul %84, %90, %cst_58 {dimension_numbers = #tpu.dot_dimension_numbers<[2], [1], [1], [2], [0, 0, 0, 1, 1, 2], [0], [0]>} : vector<4x8x32xbf16>, vector<4x32x8xbf16>, vector<4x8x8xf32> -> vector<4x8x8xf32>
    "tpu.trace_stop"() : () -> ()
    %c0_59 = arith.constant 0 : index
    %c0_60 = arith.constant 0 : index
    %c0_61 = arith.constant 0 : index
    %c0_62 = arith.constant 0 : index
    %92 = vector.load %arg9[%c0_59, %c0_60, %c0_61, %c0_62] : memref<3x4x1x8xf32, #tpu.memory_space<vmem>>, vector<1x4x1x8xf32>
    %93 = vector.shape_cast %92 : vector<1x4x1x8xf32> to vector<4x1x8xf32>
    %94 = vector.broadcast %93 : vector<4x1x8xf32> to vector<4x8x8xf32>
    %95 = arith.addf %91, %94 : vector<4x8x8xf32>
    %c1_63 = arith.constant 1 : index
    %c0_64 = arith.constant 0 : index
    %c0_65 = arith.constant 0 : index
    %c0_66 = arith.constant 0 : index
    %96 = vector.load %arg8[%c1_63, %c0_64, %c0_65, %c0_66] : memref<3x4x32x8xbf16, #tpu.memory_space<vmem>>, vector<1x4x32x8xbf16>
    %97 = vector.shape_cast %96 : vector<1x4x32x8xbf16> to vector<4x32x8xbf16>
    "tpu.trace_start"() <{level = 10 : i32, message = "hsd,hde->hse"}> : () -> ()
    %cst_67 = arith.constant dense<0.000000e+00> : vector<4x8x8xf32>
    %98 = tpu.matmul %88, %97, %cst_67 {dimension_numbers = #tpu.dot_dimension_numbers<[2], [1], [1], [2], [0, 0, 0, 1, 1, 2], [0], [0]>} : vector<4x8x32xbf16>, vector<4x32x8xbf16>, vector<4x8x8xf32> -> vector<4x8x8xf32>
    "tpu.trace_stop"() : () -> ()
    %c1_68 = arith.constant 1 : index
    %c0_69 = arith.constant 0 : index
    %c0_70 = arith.constant 0 : index
    %c0_71 = arith.constant 0 : index
    %99 = vector.load %arg9[%c1_68, %c0_69, %c0_70, %c0_71] : memref<3x4x1x8xf32, #tpu.memory_space<vmem>>, vector<1x4x1x8xf32>
    %100 = vector.shape_cast %99 : vector<1x4x1x8xf32> to vector<4x1x8xf32>
    %101 = vector.broadcast %100 : vector<4x1x8xf32> to vector<4x8x8xf32>
    %102 = arith.addf %98, %101 : vector<4x8x8xf32>
    %c2_72 = arith.constant 2 : index
    %c0_73 = arith.constant 0 : index
    %c0_74 = arith.constant 0 : index
    %c0_75 = arith.constant 0 : index
    %103 = vector.load %arg8[%c2_72, %c0_73, %c0_74, %c0_75] : memref<3x4x32x8xbf16, #tpu.memory_space<vmem>>, vector<1x4x32x8xbf16>
    %104 = vector.shape_cast %103 : vector<1x4x32x8xbf16> to vector<4x32x8xbf16>
    "tpu.trace_start"() <{level = 10 : i32, message = "hsd,hde->hse"}> : () -> ()
    %cst_76 = arith.constant dense<0.000000e+00> : vector<4x8x8xf32>
    %105 = tpu.matmul %88, %104, %cst_76 {dimension_numbers = #tpu.dot_dimension_numbers<[2], [1], [1], [2], [0, 0, 0, 1, 1, 2], [0], [0]>} : vector<4x8x32xbf16>, vector<4x32x8xbf16>, vector<4x8x8xf32> -> vector<4x8x8xf32>
    "tpu.trace_stop"() : () -> ()
    %c2_77 = arith.constant 2 : index
    %c0_78 = arith.constant 0 : index
    %c0_79 = arith.constant 0 : index
    %c0_80 = arith.constant 0 : index
    %106 = vector.load %arg9[%c2_77, %c0_78, %c0_79, %c0_80] : memref<3x4x1x8xf32, #tpu.memory_space<vmem>>, vector<1x4x1x8xf32>
    %107 = vector.shape_cast %106 : vector<1x4x1x8xf32> to vector<4x1x8xf32>
    %108 = vector.broadcast %107 : vector<4x1x8xf32> to vector<4x8x8xf32>
    %109 = arith.addf %105, %108 : vector<4x8x8xf32>
    "tpu.trace_start"() <{level = 10 : i32, message = "hqe,hke->hqk"}> : () -> ()
    %cst_81 = arith.constant dense<0.000000e+00> : vector<4x8x8xf32>
    %110 = tpu.matmul %95, %102, %cst_81 {dimension_numbers = #tpu.dot_dimension_numbers<[2], [2], [1], [1], [0, 0, 0, 1, 1, 1], [0], [0]>} : vector<4x8x8xf32>, vector<4x8x8xf32>, vector<4x8x8xf32> -> vector<4x8x8xf32>
    "tpu.trace_stop"() : () -> ()
    %cst_82 = arith.constant 0.353553385 : f32
    %111 = vector.broadcast %cst_82 : f32 to vector<4x8x8xf32>
    %112 = arith.mulf %110, %111 : vector<4x8x8xf32>
    %cst_83 = arith.constant dense<0xFF800000> : vector<4x8xf32>
    %113 = vector.multi_reduction <maximumf>, %112, %cst_83 [2] : vector<4x8x8xf32> to vector<4x8xf32>
    %114 = vector.shape_cast %113 : vector<4x8xf32> to vector<4x8x1xf32>
    %115 = vector.broadcast %114 : vector<4x8x1xf32> to vector<4x8x8xf32>
    %116 = arith.subf %112, %115 : vector<4x8x8xf32>
    %117 = math.exp %116 : vector<4x8x8xf32>
    %cst_84 = arith.constant dense<0.000000e+00> : vector<4x8xf32>
    %118 = vector.multi_reduction <add>, %117, %cst_84 [2] : vector<4x8x8xf32> to vector<4x8xf32>
    %119 = vector.shape_cast %118 : vector<4x8xf32> to vector<4x8x1xf32>
    %120 = tpu.reciprocal %119 {approx = true} : vector<4x8x1xf32> -> vector<4x8x1xf32>
    %121 = vector.broadcast %120 : vector<4x8x1xf32> to vector<4x8x8xf32>
    %122 = arith.mulf %117, %121 : vector<4x8x8xf32>
    "tpu.trace_start"() <{level = 10 : i32, message = "hqk,hke->hqe"}> : () -> ()
    %cst_85 = arith.constant dense<0.000000e+00> : vector<4x8x8xf32>
    %123 = tpu.matmul %122, %109, %cst_85 {dimension_numbers = #tpu.dot_dimension_numbers<[2], [1], [1], [2], [0, 0, 0, 1, 1, 2], [0], [0]>} : vector<4x8x8xf32>, vector<4x8x8xf32>, vector<4x8x8xf32> -> vector<4x8x8xf32>
    "tpu.trace_stop"() : () -> ()
    %124 = arith.truncf %123 : vector<4x8x8xf32> to vector<4x8x8xbf16>
    %c0_86 = arith.constant 0 : index
    %c0_87 = arith.constant 0 : index
    %c0_88 = arith.constant 0 : index
    %125 = vector.load %arg10[%c0_86, %c0_87, %c0_88] : memref<4x8x32xbf16, #tpu.memory_space<vmem>>, vector<4x8x32xbf16>
    "tpu.trace_start"() <{level = 10 : i32, message = "hqe,hed->hqd"}> : () -> ()
    %cst_89 = arith.constant dense<0.000000e+00> : vector<4x8x32xf32>
    %126 = tpu.matmul %124, %125, %cst_89 {dimension_numbers = #tpu.dot_dimension_numbers<[2], [1], [1], [2], [0, 0, 0, 1, 1, 2], [0], [0]>} : vector<4x8x8xbf16>, vector<4x8x32xbf16>, vector<4x8x32xf32> -> vector<4x8x32xf32>
    "tpu.trace_stop"() : () -> ()
    %cst_90 = arith.constant dense<0.000000e+00> : vector<8x32xf32>
    %127 = vector.multi_reduction <add>, %126, %cst_90 [0] : vector<4x8x32xf32> to vector<8x32xf32>
    %c0_91 = arith.constant 0 : index
    %c0_92 = arith.constant 0 : index
    %128 = vector.load %arg11[%c0_91, %c0_92] : memref<1x32xf32, #tpu.memory_space<vmem>>, vector<1x32xf32>
    %129 = vector.broadcast %128 : vector<1x32xf32> to vector<8x32xf32>
    %130 = arith.addf %127, %129 : vector<8x32xf32>
    %131 = arith.addf %80, %130 : vector<8x32xf32>
    %c1_93 = arith.constant 1 : index
    %c0_94 = arith.constant 0 : index
    %c0_95 = arith.constant 0 : index
    %132 = vector.load %arg16[%c1_93, %c0_94, %c0_95] : memref<3x1x32xf32, #tpu.memory_space<vmem>>, vector<1x1x32xf32>
    %133 = vector.shape_cast %132 : vector<1x1x32xf32> to vector<1x32xf32>
    %c1_96 = arith.constant 1 : index
    %c0_97 = arith.constant 0 : index
    %c0_98 = arith.constant 0 : index
    %134 = vector.load %arg17[%c1_96, %c0_97, %c0_98] : memref<3x1x32xf32, #tpu.memory_space<vmem>>, vector<1x1x32xf32>
    %135 = vector.shape_cast %134 : vector<1x1x32xf32> to vector<1x32xf32>
    %cst_99 = arith.constant dense<0.000000e+00> : vector<8xf32>
    %136 = vector.multi_reduction <add>, %131, %cst_99 [1] : vector<8x32xf32> to vector<8xf32>
    %137 = vector.shape_cast %136 : vector<8xf32> to vector<8x1xf32>
    %cst_100 = arith.constant 3.200000e+01 : f32
    %138 = vector.broadcast %cst_100 : f32 to vector<8x1xf32>
    %139 = arith.divf %137, %138 : vector<8x1xf32>
    %140 = vector.broadcast %139 : vector<8x1xf32> to vector<8x32xf32>
    %141 = arith.subf %131, %140 : vector<8x32xf32>
    %142 = arith.mulf %141, %141 : vector<8x32xf32>
    %cst_101 = arith.constant dense<0.000000e+00> : vector<8xf32>
    %143 = vector.multi_reduction <add>, %142, %cst_101 [1] : vector<8x32xf32> to vector<8xf32>
    %144 = vector.shape_cast %143 : vector<8xf32> to vector<8x1xf32>
    %cst_102 = arith.constant 3.200000e+01 : f32
    %145 = vector.broadcast %cst_102 : f32 to vector<8x1xf32>
    %146 = arith.divf %144, %145 : vector<8x1xf32>
    %147 = vector.broadcast %139 : vector<8x1xf32> to vector<8x32xf32>
    %148 = arith.subf %131, %147 : vector<8x32xf32>
    %cst_103 = arith.constant 9.99999974E-6 : f32
    %149 = vector.broadcast %cst_103 : f32 to vector<8x1xf32>
    %150 = arith.addf %146, %149 : vector<8x1xf32>
    %151 = math.rsqrt %150 : vector<8x1xf32>
    %152 = vector.broadcast %151 : vector<8x1xf32> to vector<8x32xf32>
    %153 = arith.mulf %148, %152 : vector<8x32xf32>
    %154 = vector.broadcast %133 : vector<1x32xf32> to vector<8x32xf32>
    %155 = arith.mulf %153, %154 : vector<8x32xf32>
    %156 = vector.broadcast %135 : vector<1x32xf32> to vector<8x32xf32>
    %157 = arith.addf %155, %156 : vector<8x32xf32>
    %158 = arith.truncf %157 : vector<8x32xf32> to vector<8x32xbf16>
    %c0_104 = arith.constant 0 : index
    %c0_105 = arith.constant 0 : index
    %159 = vector.load %arg12[%c0_104, %c0_105] : memref<32x2048xbf16, #tpu.memory_space<vmem>>, vector<32x2048xbf16>
    %cst_106 = arith.constant dense<0.000000e+00> : vector<8x2048xf32>
    %160 = tpu.matmul %158, %159, %cst_106 {dimension_numbers = #tpu.dot_dimension_numbers<[1], [0], [0], [1], [0, 0, 1, 1], [], []>} : vector<8x32xbf16>, vector<32x2048xbf16>, vector<8x2048xf32> -> vector<8x2048xf32>
    %c0_107 = arith.constant 0 : index
    %c0_108 = arith.constant 0 : index
    %161 = vector.load %arg13[%c0_107, %c0_108] : memref<1x2048xf32, #tpu.memory_space<vmem>>, vector<1x2048xf32>
    %162 = vector.broadcast %161 : vector<1x2048xf32> to vector<8x2048xf32>
    %163 = arith.addf %160, %162 : vector<8x2048xf32>
    %cst_109 = arith.constant 0.000000e+00 : f32
    %164 = vector.broadcast %cst_109 : f32 to vector<8x2048xf32>
    %165 = arith.maximumf %163, %164 : vector<8x2048xf32>
    %166 = arith.truncf %165 : vector<8x2048xf32> to vector<8x2048xbf16>
    %c0_110 = arith.constant 0 : index
    %c0_111 = arith.constant 0 : index
    %167 = vector.load %arg14[%c0_110, %c0_111] : memref<2048x32xbf16, #tpu.memory_space<vmem>>, vector<2048x32xbf16>
    %cst_112 = arith.constant dense<0.000000e+00> : vector<8x32xf32>
    %168 = tpu.matmul %166, %167, %cst_112 {dimension_numbers = #tpu.dot_dimension_numbers<[1], [0], [0], [1], [0, 0, 1, 1], [], []>} : vector<8x2048xbf16>, vector<2048x32xbf16>, vector<8x32xf32> -> vector<8x32xf32>
    %c0_113 = arith.constant 0 : index
    %c0_114 = arith.constant 0 : index
    %169 = vector.load %arg15[%c0_113, %c0_114] : memref<1x32xf32, #tpu.memory_space<vmem>>, vector<1x32xf32>
    %170 = vector.broadcast %169 : vector<1x32xf32> to vector<8x32xf32>
    %171 = arith.addf %168, %170 : vector<8x32xf32>
    %172 = arith.addf %157, %171 : vector<8x32xf32>
    %c2_115 = arith.constant 2 : index
    %c0_116 = arith.constant 0 : index
    %c0_117 = arith.constant 0 : index
    %173 = vector.load %arg16[%c2_115, %c0_116, %c0_117] : memref<3x1x32xf32, #tpu.memory_space<vmem>>, vector<1x1x32xf32>
    %174 = vector.shape_cast %173 : vector<1x1x32xf32> to vector<1x32xf32>
    %c2_118 = arith.constant 2 : index
    %c0_119 = arith.constant 0 : index
    %c0_120 = arith.constant 0 : index
    %175 = vector.load %arg17[%c2_118, %c0_119, %c0_120] : memref<3x1x32xf32, #tpu.memory_space<vmem>>, vector<1x1x32xf32>
    %176 = vector.shape_cast %175 : vector<1x1x32xf32> to vector<1x32xf32>
    %cst_121 = arith.constant dense<0.000000e+00> : vector<8xf32>
    %177 = vector.multi_reduction <add>, %172, %cst_121 [1] : vector<8x32xf32> to vector<8xf32>
    %178 = vector.shape_cast %177 : vector<8xf32> to vector<8x1xf32>
    %cst_122 = arith.constant 3.200000e+01 : f32
    %179 = vector.broadcast %cst_122 : f32 to vector<8x1xf32>
    %180 = arith.divf %178, %179 : vector<8x1xf32>
    %181 = vector.broadcast %180 : vector<8x1xf32> to vector<8x32xf32>
    %182 = arith.subf %172, %181 : vector<8x32xf32>
    %183 = arith.mulf %182, %182 : vector<8x32xf32>
    %cst_123 = arith.constant dense<0.000000e+00> : vector<8xf32>
    %184 = vector.multi_reduction <add>, %183, %cst_123 [1] : vector<8x32xf32> to vector<8xf32>
    %185 = vector.shape_cast %184 : vector<8xf32> to vector<8x1xf32>
    %cst_124 = arith.constant 3.200000e+01 : f32
    %186 = vector.broadcast %cst_124 : f32 to vector<8x1xf32>
    %187 = arith.divf %185, %186 : vector<8x1xf32>
    %188 = vector.broadcast %180 : vector<8x1xf32> to vector<8x32xf32>
    %189 = arith.subf %172, %188 : vector<8x32xf32>
    %cst_125 = arith.constant 9.99999974E-6 : f32
    %190 = vector.broadcast %cst_125 : f32 to vector<8x1xf32>
    %191 = arith.addf %187, %190 : vector<8x1xf32>
    %192 = math.rsqrt %191 : vector<8x1xf32>
    %193 = vector.broadcast %192 : vector<8x1xf32> to vector<8x32xf32>
    %194 = arith.mulf %189, %193 : vector<8x32xf32>
    %195 = vector.broadcast %174 : vector<1x32xf32> to vector<8x32xf32>
    %196 = arith.mulf %194, %195 : vector<8x32xf32>
    %197 = vector.broadcast %176 : vector<1x32xf32> to vector<8x32xf32>
    %198 = arith.addf %196, %197 : vector<8x32xf32>
    %c0_126 = arith.constant 0 : index
    %c0_127 = arith.constant 0 : index
    %c0_128 = arith.constant 0 : index
    %199 = vector.load %arg18[%c0_126, %c0_127, %c0_128] : memref<1x8x32xf32, #tpu.memory_space<vmem>>, vector<1x8x32xf32>
    %200 = vector.shape_cast %199 : vector<1x8x32xf32> to vector<8x32xf32>
    %201 = vector.shape_cast %198 : vector<8x32xf32> to vector<1x8x32xf32>
    tpu.vector_store %arg18[%c0_126, %c0_127, %c0_128], %201 {strides = array<i32>} : memref<1x8x32xf32, #tpu.memory_space<vmem>>, vector<1x8x32xf32>,
    return
  }
  func.func @transform_0(%arg0: i32) -> (i32, i32, i32) {
    %c0_i32 = arith.constant 0 : i32
    %c0_i32_0 = arith.constant 0 : i32
    %c0_i32_1 = arith.constant 0 : i32
    return %arg0, %c0_i32, %c0_i32_0 : i32, i32, i32
  }
  func.func @transform_1(%arg0: i32) -> (i32, i32, i32) {
    %c0_i32 = arith.constant 0 : i32
    %c0_i32_0 = arith.constant 0 : i32
    %c0_i32_1 = arith.constant 0 : i32
    return %arg0, %c0_i32, %c0_i32_0 : i32, i32, i32
  }
  func.func @transform_2(%arg0: i32) -> (i32, i32) {
    %c0_i32 = arith.constant 0 : i32
    %c0_i32_0 = arith.constant 0 : i32
    %c0_i32_1 = arith.constant 0 : i32
    return %c0_i32, %c0_i32_0 : i32, i32
  }
  func.func @transform_3(%arg0: i32) -> (i32, i32, i32, i32) {
    %c0_i32 = arith.constant 0 : i32
    %c0_i32_0 = arith.constant 0 : i32
    %c0_i32_1 = arith.constant 0 : i32
    %c0_i32_2 = arith.constant 0 : i32
    %c0_i32_3 = arith.constant 0 : i32
    return %c0_i32, %c0_i32_0, %c0_i32_1, %c0_i32_2 : i32, i32, i32, i32
  }
  func.func @transform_4(%arg0: i32) -> (i32, i32, i32, i32) {
    %c0_i32 = arith.constant 0 : i32
    %c0_i32_0 = arith.constant 0 : i32
    %c0_i32_1 = arith.constant 0 : i32
    %c0_i32_2 = arith.constant 0 : i32
    %c0_i32_3 = arith.constant 0 : i32
    return %c0_i32, %c0_i32_0, %c0_i32_1, %c0_i32_2 : i32, i32, i32, i32
  }
  func.func @transform_5(%arg0: i32) -> (i32, i32, i32) {
    %c0_i32 = arith.constant 0 : i32
    %c0_i32_0 = arith.constant 0 : i32
    %c0_i32_1 = arith.constant 0 : i32
    %c0_i32_2 = arith.constant 0 : i32
    return %c0_i32, %c0_i32_0, %c0_i32_1 : i32, i32, i32
  }
  func.func @transform_6(%arg0: i32) -> (i32, i32) {
    %c0_i32 = arith.constant 0 : i32
    %c0_i32_0 = arith.constant 0 : i32
    %c0_i32_1 = arith.constant 0 : i32
    return %c0_i32, %c0_i32_0 : i32, i32
  }
  func.func @transform_7(%arg0: i32) -> (i32, i32, i32, i32) {
    %c0_i32 = arith.constant 0 : i32
    %c0_i32_0 = arith.constant 0 : i32
    %c0_i32_1 = arith.constant 0 : i32
    %c0_i32_2 = arith.constant 0 : i32
    %c0_i32_3 = arith.constant 0 : i32
    return %c0_i32, %c0_i32_0, %c0_i32_1, %c0_i32_2 : i32, i32, i32, i32
  }
  func.func @transform_8(%arg0: i32) -> (i32, i32, i32, i32) {
    %c0_i32 = arith.constant 0 : i32
    %c0_i32_0 = arith.constant 0 : i32
    %c0_i32_1 = arith.constant 0 : i32
    %c0_i32_2 = arith.constant 0 : i32
    %c0_i32_3 = arith.constant 0 : i32
    return %c0_i32, %c0_i32_0, %c0_i32_1, %c0_i32_2 : i32, i32, i32, i32
  }
  func.func @transform_9(%arg0: i32) -> (i32, i32, i32) {
    %c0_i32 = arith.constant 0 : i32
    %c0_i32_0 = arith.constant 0 : i32
    %c0_i32_1 = arith.constant 0 : i32
    %c0_i32_2 = arith.constant 0 : i32
    return %c0_i32, %c0_i32_0, %c0_i32_1 : i32, i32, i32
  }
  func.func @transform_10(%arg0: i32) -> (i32, i32) {
    %c0_i32 = arith.constant 0 : i32
    %c0_i32_0 = arith.constant 0 : i32
    %c0_i32_1 = arith.constant 0 : i32
    return %c0_i32, %c0_i32_0 : i32, i32
  }
  func.func @transform_11(%arg0: i32) -> (i32, i32) {
    %c0_i32 = arith.constant 0 : i32
    %c0_i32_0 = arith.constant 0 : i32
    %c0_i32_1 = arith.constant 0 : i32
    return %c0_i32, %c0_i32_0 : i32, i32
  }
  func.func @transform_12(%arg0: i32) -> (i32, i32) {
    %c0_i32 = arith.constant 0 : i32
    %c0_i32_0 = arith.constant 0 : i32
    %c0_i32_1 = arith.constant 0 : i32
    return %c0_i32, %c0_i32_0 : i32, i32
  }
  func.func @transform_13(%arg0: i32) -> (i32, i32) {
    %c0_i32 = arith.constant 0 : i32
    %c0_i32_0 = arith.constant 0 : i32
    %c0_i32_1 = arith.constant 0 : i32
    return %c0_i32, %c0_i32_0 : i32, i32
  }
  func.func @transform_14(%arg0: i32) -> (i32, i32) {
    %c0_i32 = arith.constant 0 : i32
    %c0_i32_0 = arith.constant 0 : i32
    %c0_i32_1 = arith.constant 0 : i32
    return %c0_i32, %c0_i32_0 : i32, i32
  }
  func.func @transform_15(%arg0: i32) -> (i32, i32, i32) {
    %c0_i32 = arith.constant 0 : i32
    %c0_i32_0 = arith.constant 0 : i32
    %c0_i32_1 = arith.constant 0 : i32
    %c0_i32_2 = arith.constant 0 : i32
    return %c0_i32, %c0_i32_0, %c0_i32_1 : i32, i32, i32
  }
  func.func @transform_16(%arg0: i32) -> (i32, i32, i32) {
    %c0_i32 = arith.constant 0 : i32
    %c0_i32_0 = arith.constant 0 : i32
    %c0_i32_1 = arith.constant 0 : i32
    %c0_i32_2 = arith.constant 0 : i32
    return %c0_i32, %c0_i32_0, %c0_i32_1 : i32, i32, i32
  }
  func.func @transform_17(%arg0: i32) -> (i32, i32, i32) {
    %c0_i32 = arith.constant 0 : i32
    %c0_i32_0 = arith.constant 0 : i32
    %c0_i32_1 = arith.constant 0 : i32
    return %arg0, %c0_i32, %c0_i32_0 : i32, i32, i32
  }
}

module attributes {stable_mosaic.version = 11 : i64} {
  func.func @_decoder_layer_kernel(%arg0: i32, %arg1: memref<1x8x32xf32, #tpu.memory_space<vmem>>, %arg2: memref<1x8x32xf32, #tpu.memory_space<vmem>>, %arg3: memref<8x8xf32, #tpu.memory_space<vmem>>, %arg4: memref<3x4x32x8xbf16, #tpu.memory_space<vmem>>, %arg5: memref<3x4x1x8xf32, #tpu.memory_space<vmem>>, %arg6: memref<4x8x32xbf16, #tpu.memory_space<vmem>>, %arg7: memref<1x32xf32, #tpu.memory_space<vmem>>, %arg8: memref<3x4x32x8xbf16, #tpu.memory_space<vmem>>, %arg9: memref<3x4x1x8xf32, #tpu.memory_space<vmem>>, %arg10: memref<4x8x32xbf16, #tpu.memory_space<vmem>>, %arg11: memref<1x32xf32, #tpu.memory_space<vmem>>, %arg12: memref<32x2048xbf16, #tpu.memory_space<vmem>>, %arg13: memref<1x2048xf32, #tpu.memory_space<vmem>>, %arg14: memref<2048x32xbf16, #tpu.memory_space<vmem>>, %arg15: memref<1x32xf32, #tpu.memory_space<vmem>>, %arg16: memref<3x1x32xf32, #tpu.memory_space<vmem>>, %arg17: memref<3x1x32xf32, #tpu.memory_space<vmem>>, %arg18: memref<1x32xf32, #tpu.memory_space<vmem>>, %arg19: memref<1x1xf32, #tpu.memory_space<vmem>>, %arg20: memref<1x8x32xf32, #tpu.memory_space<vmem>>, %arg21: memref<1x8x1xf32, #tpu.memory_space<vmem>>) attributes {dimension_semantics = [#tpu.dimension_semantics<parallel>], iteration_bounds = array<i64: 2>, scalar_prefetch = 0 : i64, scratch_operands = 0 : i64, tpu.core_type = #tpu.core_type<tc>, window_params = [{transform_indices = @transform_0, window_bounds = array<i64: 1, 8, 32>}, {transform_indices = @transform_1, window_bounds = array<i64: 1, 8, 32>}, {pipeline_mode = #tpu.pipeline_mode<synchronous>, transform_indices = @transform_2, window_bounds = array<i64: 8, 8>}, {pipeline_mode = #tpu.pipeline_mode<synchronous>, transform_indices = @transform_3, window_bounds = array<i64: 3, 4, 32, 8>}, {pipeline_mode = #tpu.pipeline_mode<synchronous>, transform_indices = @transform_4, window_bounds = array<i64: 3, 4, 1, 8>}, {pipeline_mode = #tpu.pipeline_mode<synchronous>, transform_indices = @transform_5, window_bounds = array<i64: 4, 8, 32>}, {pipeline_mode = #tpu.pipeline_mode<synchronous>, transform_indices = @transform_6, window_bounds = array<i64: 1, 32>}, {pipeline_mode = #tpu.pipeline_mode<synchronous>, transform_indices = @transform_7, window_bounds = array<i64: 3, 4, 32, 8>}, {pipeline_mode = #tpu.pipeline_mode<synchronous>, transform_indices = @transform_8, window_bounds = array<i64: 3, 4, 1, 8>}, {pipeline_mode = #tpu.pipeline_mode<synchronous>, transform_indices = @transform_9, window_bounds = array<i64: 4, 8, 32>}, {pipeline_mode = #tpu.pipeline_mode<synchronous>, transform_indices = @transform_10, window_bounds = array<i64: 1, 32>}, {pipeline_mode = #tpu.pipeline_mode<synchronous>, transform_indices = @transform_11, window_bounds = array<i64: 32, 2048>}, {pipeline_mode = #tpu.pipeline_mode<synchronous>, transform_indices = @transform_12, window_bounds = array<i64: 1, 2048>}, {pipeline_mode = #tpu.pipeline_mode<synchronous>, transform_indices = @transform_13, window_bounds = array<i64: 2048, 32>}, {pipeline_mode = #tpu.pipeline_mode<synchronous>, transform_indices = @transform_14, window_bounds = array<i64: 1, 32>}, {pipeline_mode = #tpu.pipeline_mode<synchronous>, transform_indices = @transform_15, window_bounds = array<i64: 3, 1, 32>}, {pipeline_mode = #tpu.pipeline_mode<synchronous>, transform_indices = @transform_16, window_bounds = array<i64: 3, 1, 32>}, {pipeline_mode = #tpu.pipeline_mode<synchronous>, transform_indices = @transform_17, window_bounds = array<i64: 1, 32>}, {pipeline_mode = #tpu.pipeline_mode<synchronous>, transform_indices = @transform_18, window_bounds = array<i64: 1, 1>}, {transform_indices = @transform_19, window_bounds = array<i64: 1, 8, 32>}, {transform_indices = @transform_20, window_bounds = array<i64: 1, 8, 1>}]} {
    %c0 = arith.constant 0 : index
    %c0_0 = arith.constant 0 : index
    %c0_1 = arith.constant 0 : index
    %0 = vector.load %arg1[%c0, %c0_0, %c0_1] : memref<1x8x32xf32, #tpu.memory_space<vmem>>, vector<1x8x32xf32>
    %1 = vector.shape_cast %0 : vector<1x8x32xf32> to vector<8x32xf32>
    %c0_2 = arith.constant 0 : index
    %c0_3 = arith.constant 0 : index
    %c0_4 = arith.constant 0 : index
    %2 = vector.load %arg2[%c0_2, %c0_3, %c0_4] : memref<1x8x32xf32, #tpu.memory_space<vmem>>, vector<1x8x32xf32>
    %3 = vector.shape_cast %2 : vector<1x8x32xf32> to vector<8x32xf32>
    %c0_5 = arith.constant 0 : index
    %c0_6 = arith.constant 0 : index
    %4 = vector.load %arg3[%c0_5, %c0_6] : memref<8x8xf32, #tpu.memory_space<vmem>>, vector<8x8xf32>
    %5 = arith.truncf %1 : vector<8x32xf32> to vector<8x32xbf16>
    %6 = vector.shape_cast %5 : vector<8x32xbf16> to vector<1x8x32xbf16>
    %7 = vector.shape_cast %6 : vector<1x8x32xbf16> to vector<1x8x32xbf16>
    %8 = vector.broadcast %7 : vector<1x8x32xbf16> to vector<4x8x32xbf16>
    %c0_7 = arith.constant 0 : index
    %c0_8 = arith.constant 0 : index
    %c0_9 = arith.constant 0 : index
    %c0_10 = arith.constant 0 : index
    %9 = vector.load %arg4[%c0_7, %c0_8, %c0_9, %c0_10] : memref<3x4x32x8xbf16, #tpu.memory_space<vmem>>, vector<1x4x32x8xbf16>
    %10 = vector.shape_cast %9 : vector<1x4x32x8xbf16> to vector<4x32x8xbf16>
    "tpu.trace_start"() <{level = 10 : i32, message = "hsd,hde->hse"}> : () -> ()
    %cst = arith.constant dense<0.000000e+00> : vector<4x8x8xf32>
    %11 = tpu.matmul %8, %10, %cst {dimension_numbers = #tpu.dot_dimension_numbers<[2], [1], [1], [2], [0, 0, 0, 1, 1, 2], [0], [0]>} : vector<4x8x32xbf16>, vector<4x32x8xbf16>, vector<4x8x8xf32> -> vector<4x8x8xf32>
    "tpu.trace_stop"() : () -> ()
    %c0_11 = arith.constant 0 : index
    %c0_12 = arith.constant 0 : index
    %c0_13 = arith.constant 0 : index
    %c0_14 = arith.constant 0 : index
    %12 = vector.load %arg5[%c0_11, %c0_12, %c0_13, %c0_14] : memref<3x4x1x8xf32, #tpu.memory_space<vmem>>, vector<1x4x1x8xf32>
    %13 = vector.shape_cast %12 : vector<1x4x1x8xf32> to vector<4x1x8xf32>
    %14 = vector.broadcast %13 : vector<4x1x8xf32> to vector<4x8x8xf32>
    %15 = arith.addf %11, %14 : vector<4x8x8xf32>
    %c1 = arith.constant 1 : index
    %c0_15 = arith.constant 0 : index
    %c0_16 = arith.constant 0 : index
    %c0_17 = arith.constant 0 : index
    %16 = vector.load %arg4[%c1, %c0_15, %c0_16, %c0_17] : memref<3x4x32x8xbf16, #tpu.memory_space<vmem>>, vector<1x4x32x8xbf16>
    %17 = vector.shape_cast %16 : vector<1x4x32x8xbf16> to vector<4x32x8xbf16>
    "tpu.trace_start"() <{level = 10 : i32, message = "hsd,hde->hse"}> : () -> ()
    %cst_18 = arith.constant dense<0.000000e+00> : vector<4x8x8xf32>
    %18 = tpu.matmul %8, %17, %cst_18 {dimension_numbers = #tpu.dot_dimension_numbers<[2], [1], [1], [2], [0, 0, 0, 1, 1, 2], [0], [0]>} : vector<4x8x32xbf16>, vector<4x32x8xbf16>, vector<4x8x8xf32> -> vector<4x8x8xf32>
    "tpu.trace_stop"() : () -> ()
    %c1_19 = arith.constant 1 : index
    %c0_20 = arith.constant 0 : index
    %c0_21 = arith.constant 0 : index
    %c0_22 = arith.constant 0 : index
    %19 = vector.load %arg5[%c1_19, %c0_20, %c0_21, %c0_22] : memref<3x4x1x8xf32, #tpu.memory_space<vmem>>, vector<1x4x1x8xf32>
    %20 = vector.shape_cast %19 : vector<1x4x1x8xf32> to vector<4x1x8xf32>
    %21 = vector.broadcast %20 : vector<4x1x8xf32> to vector<4x8x8xf32>
    %22 = arith.addf %18, %21 : vector<4x8x8xf32>
    %c2 = arith.constant 2 : index
    %c0_23 = arith.constant 0 : index
    %c0_24 = arith.constant 0 : index
    %c0_25 = arith.constant 0 : index
    %23 = vector.load %arg4[%c2, %c0_23, %c0_24, %c0_25] : memref<3x4x32x8xbf16, #tpu.memory_space<vmem>>, vector<1x4x32x8xbf16>
    %24 = vector.shape_cast %23 : vector<1x4x32x8xbf16> to vector<4x32x8xbf16>
    "tpu.trace_start"() <{level = 10 : i32, message = "hsd,hde->hse"}> : () -> ()
    %cst_26 = arith.constant dense<0.000000e+00> : vector<4x8x8xf32>
    %25 = tpu.matmul %8, %24, %cst_26 {dimension_numbers = #tpu.dot_dimension_numbers<[2], [1], [1], [2], [0, 0, 0, 1, 1, 2], [0], [0]>} : vector<4x8x32xbf16>, vector<4x32x8xbf16>, vector<4x8x8xf32> -> vector<4x8x8xf32>
    "tpu.trace_stop"() : () -> ()
    %c2_27 = arith.constant 2 : index
    %c0_28 = arith.constant 0 : index
    %c0_29 = arith.constant 0 : index
    %c0_30 = arith.constant 0 : index
    %26 = vector.load %arg5[%c2_27, %c0_28, %c0_29, %c0_30] : memref<3x4x1x8xf32, #tpu.memory_space<vmem>>, vector<1x4x1x8xf32>
    %27 = vector.shape_cast %26 : vector<1x4x1x8xf32> to vector<4x1x8xf32>
    %28 = vector.broadcast %27 : vector<4x1x8xf32> to vector<4x8x8xf32>
    %29 = arith.addf %25, %28 : vector<4x8x8xf32>
    "tpu.trace_start"() <{level = 10 : i32, message = "hqe,hke->hqk"}> : () -> ()
    %cst_31 = arith.constant dense<0.000000e+00> : vector<4x8x8xf32>
    %30 = tpu.matmul %15, %22, %cst_31 {dimension_numbers = #tpu.dot_dimension_numbers<[2], [2], [1], [1], [0, 0, 0, 1, 1, 1], [0], [0]>} : vector<4x8x8xf32>, vector<4x8x8xf32>, vector<4x8x8xf32> -> vector<4x8x8xf32>
    "tpu.trace_stop"() : () -> ()
    %cst_32 = arith.constant 0.353553385 : f32
    %31 = vector.broadcast %cst_32 : f32 to vector<4x8x8xf32>
    %32 = arith.mulf %30, %31 : vector<4x8x8xf32>
    %33 = vector.shape_cast %4 : vector<8x8xf32> to vector<1x8x8xf32>
    %34 = vector.broadcast %33 : vector<1x8x8xf32> to vector<4x8x8xf32>
    %35 = arith.addf %32, %34 : vector<4x8x8xf32>
    %cst_33 = arith.constant dense<0xFF800000> : vector<4x8xf32>
    %36 = vector.multi_reduction <maximumf>, %35, %cst_33 [2] : vector<4x8x8xf32> to vector<4x8xf32>
    %37 = vector.shape_cast %36 : vector<4x8xf32> to vector<4x8x1xf32>
    %38 = vector.broadcast %37 : vector<4x8x1xf32> to vector<4x8x8xf32>
    %39 = arith.subf %35, %38 : vector<4x8x8xf32>
    %40 = math.exp %39 : vector<4x8x8xf32>
    %cst_34 = arith.constant dense<0.000000e+00> : vector<4x8xf32>
    %41 = vector.multi_reduction <add>, %40, %cst_34 [2] : vector<4x8x8xf32> to vector<4x8xf32>
    %42 = vector.shape_cast %41 : vector<4x8xf32> to vector<4x8x1xf32>
    %43 = tpu.reciprocal %42 {approx = true} : vector<4x8x1xf32> -> vector<4x8x1xf32>
    %44 = vector.broadcast %43 : vector<4x8x1xf32> to vector<4x8x8xf32>
    %45 = arith.mulf %40, %44 : vector<4x8x8xf32>
    "tpu.trace_start"() <{level = 10 : i32, message = "hqk,hke->hqe"}> : () -> ()
    %cst_35 = arith.constant dense<0.000000e+00> : vector<4x8x8xf32>
    %46 = tpu.matmul %45, %29, %cst_35 {dimension_numbers = #tpu.dot_dimension_numbers<[2], [1], [1], [2], [0, 0, 0, 1, 1, 2], [0], [0]>} : vector<4x8x8xf32>, vector<4x8x8xf32>, vector<4x8x8xf32> -> vector<4x8x8xf32>
    "tpu.trace_stop"() : () -> ()
    %47 = arith.truncf %46 : vector<4x8x8xf32> to vector<4x8x8xbf16>
    %c0_36 = arith.constant 0 : index
    %c0_37 = arith.constant 0 : index
    %c0_38 = arith.constant 0 : index
    %48 = vector.load %arg6[%c0_36, %c0_37, %c0_38] : memref<4x8x32xbf16, #tpu.memory_space<vmem>>, vector<4x8x32xbf16>
    "tpu.trace_start"() <{level = 10 : i32, message = "hqe,hed->hqd"}> : () -> ()
    %cst_39 = arith.constant dense<0.000000e+00> : vector<4x8x32xf32>
    %49 = tpu.matmul %47, %48, %cst_39 {dimension_numbers = #tpu.dot_dimension_numbers<[2], [1], [1], [2], [0, 0, 0, 1, 1, 2], [0], [0]>} : vector<4x8x8xbf16>, vector<4x8x32xbf16>, vector<4x8x32xf32> -> vector<4x8x32xf32>
    "tpu.trace_stop"() : () -> ()
    %cst_40 = arith.constant dense<0.000000e+00> : vector<8x32xf32>
    %50 = vector.multi_reduction <add>, %49, %cst_40 [0] : vector<4x8x32xf32> to vector<8x32xf32>
    %c0_41 = arith.constant 0 : index
    %c0_42 = arith.constant 0 : index
    %51 = vector.load %arg7[%c0_41, %c0_42] : memref<1x32xf32, #tpu.memory_space<vmem>>, vector<1x32xf32>
    %52 = vector.broadcast %51 : vector<1x32xf32> to vector<8x32xf32>
    %53 = arith.addf %50, %52 : vector<8x32xf32>
    %54 = arith.addf %1, %53 : vector<8x32xf32>
    %c0_43 = arith.constant 0 : index
    %c0_44 = arith.constant 0 : index
    %c0_45 = arith.constant 0 : index
    %55 = vector.load %arg16[%c0_43, %c0_44, %c0_45] : memref<3x1x32xf32, #tpu.memory_space<vmem>>, vector<1x1x32xf32>
    %56 = vector.shape_cast %55 : vector<1x1x32xf32> to vector<1x32xf32>
    %c0_46 = arith.constant 0 : index
    %c0_47 = arith.constant 0 : index
    %c0_48 = arith.constant 0 : index
    %57 = vector.load %arg17[%c0_46, %c0_47, %c0_48] : memref<3x1x32xf32, #tpu.memory_space<vmem>>, vector<1x1x32xf32>
    %58 = vector.shape_cast %57 : vector<1x1x32xf32> to vector<1x32xf32>
    %cst_49 = arith.constant dense<0.000000e+00> : vector<8xf32>
    %59 = vector.multi_reduction <add>, %54, %cst_49 [1] : vector<8x32xf32> to vector<8xf32>
    %60 = vector.shape_cast %59 : vector<8xf32> to vector<8x1xf32>
    %cst_50 = arith.constant 3.200000e+01 : f32
    %61 = vector.broadcast %cst_50 : f32 to vector<8x1xf32>
    %62 = arith.divf %60, %61 : vector<8x1xf32>
    %63 = vector.broadcast %62 : vector<8x1xf32> to vector<8x32xf32>
    %64 = arith.subf %54, %63 : vector<8x32xf32>
    %65 = arith.mulf %64, %64 : vector<8x32xf32>
    %cst_51 = arith.constant dense<0.000000e+00> : vector<8xf32>
    %66 = vector.multi_reduction <add>, %65, %cst_51 [1] : vector<8x32xf32> to vector<8xf32>
    %67 = vector.shape_cast %66 : vector<8xf32> to vector<8x1xf32>
    %cst_52 = arith.constant 3.200000e+01 : f32
    %68 = vector.broadcast %cst_52 : f32 to vector<8x1xf32>
    %69 = arith.divf %67, %68 : vector<8x1xf32>
    %70 = vector.broadcast %62 : vector<8x1xf32> to vector<8x32xf32>
    %71 = arith.subf %54, %70 : vector<8x32xf32>
    %cst_53 = arith.constant 9.99999974E-6 : f32
    %72 = vector.broadcast %cst_53 : f32 to vector<8x1xf32>
    %73 = arith.addf %69, %72 : vector<8x1xf32>
    %74 = math.rsqrt %73 : vector<8x1xf32>
    %75 = vector.broadcast %74 : vector<8x1xf32> to vector<8x32xf32>
    %76 = arith.mulf %71, %75 : vector<8x32xf32>
    %77 = vector.broadcast %56 : vector<1x32xf32> to vector<8x32xf32>
    %78 = arith.mulf %76, %77 : vector<8x32xf32>
    %79 = vector.broadcast %58 : vector<1x32xf32> to vector<8x32xf32>
    %80 = arith.addf %78, %79 : vector<8x32xf32>
    %81 = arith.truncf %80 : vector<8x32xf32> to vector<8x32xbf16>
    %82 = vector.shape_cast %81 : vector<8x32xbf16> to vector<1x8x32xbf16>
    %83 = vector.shape_cast %82 : vector<1x8x32xbf16> to vector<1x8x32xbf16>
    %84 = vector.broadcast %83 : vector<1x8x32xbf16> to vector<4x8x32xbf16>
    %85 = arith.truncf %3 : vector<8x32xf32> to vector<8x32xbf16>
    %86 = vector.shape_cast %85 : vector<8x32xbf16> to vector<1x8x32xbf16>
    %87 = vector.shape_cast %86 : vector<1x8x32xbf16> to vector<1x8x32xbf16>
    %88 = vector.broadcast %87 : vector<1x8x32xbf16> to vector<4x8x32xbf16>
    %c0_54 = arith.constant 0 : index
    %c0_55 = arith.constant 0 : index
    %c0_56 = arith.constant 0 : index
    %c0_57 = arith.constant 0 : index
    %89 = vector.load %arg8[%c0_54, %c0_55, %c0_56, %c0_57] : memref<3x4x32x8xbf16, #tpu.memory_space<vmem>>, vector<1x4x32x8xbf16>
    %90 = vector.shape_cast %89 : vector<1x4x32x8xbf16> to vector<4x32x8xbf16>
    "tpu.trace_start"() <{level = 10 : i32, message = "hsd,hde->hse"}> : () -> ()
    %cst_58 = arith.constant dense<0.000000e+00> : vector<4x8x8xf32>
    %91 = tpu.matmul %84, %90, %cst_58 {dimension_numbers = #tpu.dot_dimension_numbers<[2], [1], [1], [2], [0, 0, 0, 1, 1, 2], [0], [0]>} : vector<4x8x32xbf16>, vector<4x32x8xbf16>, vector<4x8x8xf32> -> vector<4x8x8xf32>
    "tpu.trace_stop"() : () -> ()
    %c0_59 = arith.constant 0 : index
    %c0_60 = arith.constant 0 : index
    %c0_61 = arith.constant 0 : index
    %c0_62 = arith.constant 0 : index
    %92 = vector.load %arg9[%c0_59, %c0_60, %c0_61, %c0_62] : memref<3x4x1x8xf32, #tpu.memory_space<vmem>>, vector<1x4x1x8xf32>
    %93 = vector.shape_cast %92 : vector<1x4x1x8xf32> to vector<4x1x8xf32>
    %94 = vector.broadcast %93 : vector<4x1x8xf32> to vector<4x8x8xf32>
    %95 = arith.addf %91, %94 : vector<4x8x8xf32>
    %c1_63 = arith.constant 1 : index
    %c0_64 = arith.constant 0 : index
    %c0_65 = arith.constant 0 : index
    %c0_66 = arith.constant 0 : index
    %96 = vector.load %arg8[%c1_63, %c0_64, %c0_65, %c0_66] : memref<3x4x32x8xbf16, #tpu.memory_space<vmem>>, vector<1x4x32x8xbf16>
    %97 = vector.shape_cast %96 : vector<1x4x32x8xbf16> to vector<4x32x8xbf16>
    "tpu.trace_start"() <{level = 10 : i32, message = "hsd,hde->hse"}> : () -> ()
    %cst_67 = arith.constant dense<0.000000e+00> : vector<4x8x8xf32>
    %98 = tpu.matmul %88, %97, %cst_67 {dimension_numbers = #tpu.dot_dimension_numbers<[2], [1], [1], [2], [0, 0, 0, 1, 1, 2], [0], [0]>} : vector<4x8x32xbf16>, vector<4x32x8xbf16>, vector<4x8x8xf32> -> vector<4x8x8xf32>
    "tpu.trace_stop"() : () -> ()
    %c1_68 = arith.constant 1 : index
    %c0_69 = arith.constant 0 : index
    %c0_70 = arith.constant 0 : index
    %c0_71 = arith.constant 0 : index
    %99 = vector.load %arg9[%c1_68, %c0_69, %c0_70, %c0_71] : memref<3x4x1x8xf32, #tpu.memory_space<vmem>>, vector<1x4x1x8xf32>
    %100 = vector.shape_cast %99 : vector<1x4x1x8xf32> to vector<4x1x8xf32>
    %101 = vector.broadcast %100 : vector<4x1x8xf32> to vector<4x8x8xf32>
    %102 = arith.addf %98, %101 : vector<4x8x8xf32>
    %c2_72 = arith.constant 2 : index
    %c0_73 = arith.constant 0 : index
    %c0_74 = arith.constant 0 : index
    %c0_75 = arith.constant 0 : index
    %103 = vector.load %arg8[%c2_72, %c0_73, %c0_74, %c0_75] : memref<3x4x32x8xbf16, #tpu.memory_space<vmem>>, vector<1x4x32x8xbf16>
    %104 = vector.shape_cast %103 : vector<1x4x32x8xbf16> to vector<4x32x8xbf16>
    "tpu.trace_start"() <{level = 10 : i32, message = "hsd,hde->hse"}> : () -> ()
    %cst_76 = arith.constant dense<0.000000e+00> : vector<4x8x8xf32>
    %105 = tpu.matmul %88, %104, %cst_76 {dimension_numbers = #tpu.dot_dimension_numbers<[2], [1], [1], [2], [0, 0, 0, 1, 1, 2], [0], [0]>} : vector<4x8x32xbf16>, vector<4x32x8xbf16>, vector<4x8x8xf32> -> vector<4x8x8xf32>
    "tpu.trace_stop"() : () -> ()
    %c2_77 = arith.constant 2 : index
    %c0_78 = arith.constant 0 : index
    %c0_79 = arith.constant 0 : index
    %c0_80 = arith.constant 0 : index
    %106 = vector.load %arg9[%c2_77, %c0_78, %c0_79, %c0_80] : memref<3x4x1x8xf32, #tpu.memory_space<vmem>>, vector<1x4x1x8xf32>
    %107 = vector.shape_cast %106 : vector<1x4x1x8xf32> to vector<4x1x8xf32>
    %108 = vector.broadcast %107 : vector<4x1x8xf32> to vector<4x8x8xf32>
    %109 = arith.addf %105, %108 : vector<4x8x8xf32>
    "tpu.trace_start"() <{level = 10 : i32, message = "hqe,hke->hqk"}> : () -> ()
    %cst_81 = arith.constant dense<0.000000e+00> : vector<4x8x8xf32>
    %110 = tpu.matmul %95, %102, %cst_81 {dimension_numbers = #tpu.dot_dimension_numbers<[2], [2], [1], [1], [0, 0, 0, 1, 1, 1], [0], [0]>} : vector<4x8x8xf32>, vector<4x8x8xf32>, vector<4x8x8xf32> -> vector<4x8x8xf32>
    "tpu.trace_stop"() : () -> ()
    %cst_82 = arith.constant 0.353553385 : f32
    %111 = vector.broadcast %cst_82 : f32 to vector<4x8x8xf32>
    %112 = arith.mulf %110, %111 : vector<4x8x8xf32>
    %cst_83 = arith.constant dense<0xFF800000> : vector<4x8xf32>
    %113 = vector.multi_reduction <maximumf>, %112, %cst_83 [2] : vector<4x8x8xf32> to vector<4x8xf32>
    %114 = vector.shape_cast %113 : vector<4x8xf32> to vector<4x8x1xf32>
    %115 = vector.broadcast %114 : vector<4x8x1xf32> to vector<4x8x8xf32>
    %116 = arith.subf %112, %115 : vector<4x8x8xf32>
    %117 = math.exp %116 : vector<4x8x8xf32>
    %cst_84 = arith.constant dense<0.000000e+00> : vector<4x8xf32>
    %118 = vector.multi_reduction <add>, %117, %cst_84 [2] : vector<4x8x8xf32> to vector<4x8xf32>
    %119 = vector.shape_cast %118 : vector<4x8xf32> to vector<4x8x1xf32>
    %120 = tpu.reciprocal %119 {approx = true} : vector<4x8x1xf32> -> vector<4x8x1xf32>
    %121 = vector.broadcast %120 : vector<4x8x1xf32> to vector<4x8x8xf32>
    %122 = arith.mulf %117, %121 : vector<4x8x8xf32>
    "tpu.trace_start"() <{level = 10 : i32, message = "hqk,hke->hqe"}> : () -> ()
    %cst_85 = arith.constant dense<0.000000e+00> : vector<4x8x8xf32>
    %123 = tpu.matmul %122, %109, %cst_85 {dimension_numbers = #tpu.dot_dimension_numbers<[2], [1], [1], [2], [0, 0, 0, 1, 1, 2], [0], [0]>} : vector<4x8x8xf32>, vector<4x8x8xf32>, vector<4x8x8xf32> -> vector<4x8x8xf32>
    "tpu.trace_stop"() : () -> ()
    %124 = arith.truncf %123 : vector<4x8x8xf32> to vector<4x8x8xbf16>
    %c0_86 = arith.constant 0 : index
    %c0_87 = arith.constant 0 : index
    %c0_88 = arith.constant 0 : index
    %125 = vector.load %arg10[%c0_86, %c0_87, %c0_88] : memref<4x8x32xbf16, #tpu.memory_space<vmem>>, vector<4x8x32xbf16>
    "tpu.trace_start"() <{level = 10 : i32, message = "hqe,hed->hqd"}> : () -> ()
    %cst_89 = arith.constant dense<0.000000e+00> : vector<4x8x32xf32>
    %126 = tpu.matmul %124, %125, %cst_89 {dimension_numbers = #tpu.dot_dimension_numbers<[2], [1], [1], [2], [0, 0, 0, 1, 1, 2], [0], [0]>} : vector<4x8x8xbf16>, vector<4x8x32xbf16>, vector<4x8x32xf32> -> vector<4x8x32xf32>
    "tpu.trace_stop"() : () -> ()
    %cst_90 = arith.constant dense<0.000000e+00> : vector<8x32xf32>
    %127 = vector.multi_reduction <add>, %126, %cst_90 [0] : vector<4x8x32xf32> to vector<8x32xf32>
    %c0_91 = arith.constant 0 : index
    %c0_92 = arith.constant 0 : index
    %128 = vector.load %arg11[%c0_91, %c0_92] : memref<1x32xf32, #tpu.memory_space<vmem>>, vector<1x32xf32>
    %129 = vector.broadcast %128 : vector<1x32xf32> to vector<8x32xf32>
    %130 = arith.addf %127, %129 : vector<8x32xf32>
    %131 = arith.addf %80, %130 : vector<8x32xf32>
    %c1_93 = arith.constant 1 : index
    %c0_94 = arith.constant 0 : index
    %c0_95 = arith.constant 0 : index
    %132 = vector.load %arg16[%c1_93, %c0_94, %c0_95] : memref<3x1x32xf32, #tpu.memory_space<vmem>>, vector<1x1x32xf32>
    %133 = vector.shape_cast %132 : vector<1x1x32xf32> to vector<1x32xf32>
    %c1_96 = arith.constant 1 : index
    %c0_97 = arith.constant 0 : index
    %c0_98 = arith.constant 0 : index
    %134 = vector.load %arg17[%c1_96, %c0_97, %c0_98] : memref<3x1x32xf32, #tpu.memory_space<vmem>>, vector<1x1x32xf32>
    %135 = vector.shape_cast %134 : vector<1x1x32xf32> to vector<1x32xf32>
    %cst_99 = arith.constant dense<0.000000e+00> : vector<8xf32>
    %136 = vector.multi_reduction <add>, %131, %cst_99 [1] : vector<8x32xf32> to vector<8xf32>
    %137 = vector.shape_cast %136 : vector<8xf32> to vector<8x1xf32>
    %cst_100 = arith.constant 3.200000e+01 : f32
    %138 = vector.broadcast %cst_100 : f32 to vector<8x1xf32>
    %139 = arith.divf %137, %138 : vector<8x1xf32>
    %140 = vector.broadcast %139 : vector<8x1xf32> to vector<8x32xf32>
    %141 = arith.subf %131, %140 : vector<8x32xf32>
    %142 = arith.mulf %141, %141 : vector<8x32xf32>
    %cst_101 = arith.constant dense<0.000000e+00> : vector<8xf32>
    %143 = vector.multi_reduction <add>, %142, %cst_101 [1] : vector<8x32xf32> to vector<8xf32>
    %144 = vector.shape_cast %143 : vector<8xf32> to vector<8x1xf32>
    %cst_102 = arith.constant 3.200000e+01 : f32
    %145 = vector.broadcast %cst_102 : f32 to vector<8x1xf32>
    %146 = arith.divf %144, %145 : vector<8x1xf32>
    %147 = vector.broadcast %139 : vector<8x1xf32> to vector<8x32xf32>
    %148 = arith.subf %131, %147 : vector<8x32xf32>
    %cst_103 = arith.constant 9.99999974E-6 : f32
    %149 = vector.broadcast %cst_103 : f32 to vector<8x1xf32>
    %150 = arith.addf %146, %149 : vector<8x1xf32>
    %151 = math.rsqrt %150 : vector<8x1xf32>
    %152 = vector.broadcast %151 : vector<8x1xf32> to vector<8x32xf32>
    %153 = arith.mulf %148, %152 : vector<8x32xf32>
    %154 = vector.broadcast %133 : vector<1x32xf32> to vector<8x32xf32>
    %155 = arith.mulf %153, %154 : vector<8x32xf32>
    %156 = vector.broadcast %135 : vector<1x32xf32> to vector<8x32xf32>
    %157 = arith.addf %155, %156 : vector<8x32xf32>
    %158 = arith.truncf %157 : vector<8x32xf32> to vector<8x32xbf16>
    %c0_104 = arith.constant 0 : index
    %c0_105 = arith.constant 0 : index
    %159 = vector.load %arg12[%c0_104, %c0_105] : memref<32x2048xbf16, #tpu.memory_space<vmem>>, vector<32x2048xbf16>
    %cst_106 = arith.constant dense<0.000000e+00> : vector<8x2048xf32>
    %160 = tpu.matmul %158, %159, %cst_106 {dimension_numbers = #tpu.dot_dimension_numbers<[1], [0], [0], [1], [0, 0, 1, 1], [], []>} : vector<8x32xbf16>, vector<32x2048xbf16>, vector<8x2048xf32> -> vector<8x2048xf32>
    %c0_107 = arith.constant 0 : index
    %c0_108 = arith.constant 0 : index
    %161 = vector.load %arg13[%c0_107, %c0_108] : memref<1x2048xf32, #tpu.memory_space<vmem>>, vector<1x2048xf32>
    %162 = vector.broadcast %161 : vector<1x2048xf32> to vector<8x2048xf32>
    %163 = arith.addf %160, %162 : vector<8x2048xf32>
    %cst_109 = arith.constant 0.000000e+00 : f32
    %164 = vector.broadcast %cst_109 : f32 to vector<8x2048xf32>
    %165 = arith.maximumf %163, %164 : vector<8x2048xf32>
    %166 = arith.truncf %165 : vector<8x2048xf32> to vector<8x2048xbf16>
    %c0_110 = arith.constant 0 : index
    %c0_111 = arith.constant 0 : index
    %167 = vector.load %arg14[%c0_110, %c0_111] : memref<2048x32xbf16, #tpu.memory_space<vmem>>, vector<2048x32xbf16>
    %cst_112 = arith.constant dense<0.000000e+00> : vector<8x32xf32>
    %168 = tpu.matmul %166, %167, %cst_112 {dimension_numbers = #tpu.dot_dimension_numbers<[1], [0], [0], [1], [0, 0, 1, 1], [], []>} : vector<8x2048xbf16>, vector<2048x32xbf16>, vector<8x32xf32> -> vector<8x32xf32>
    %c0_113 = arith.constant 0 : index
    %c0_114 = arith.constant 0 : index
    %169 = vector.load %arg15[%c0_113, %c0_114] : memref<1x32xf32, #tpu.memory_space<vmem>>, vector<1x32xf32>
    %170 = vector.broadcast %169 : vector<1x32xf32> to vector<8x32xf32>
    %171 = arith.addf %168, %170 : vector<8x32xf32>
    %172 = arith.addf %157, %171 : vector<8x32xf32>
    %c2_115 = arith.constant 2 : index
    %c0_116 = arith.constant 0 : index
    %c0_117 = arith.constant 0 : index
    %173 = vector.load %arg16[%c2_115, %c0_116, %c0_117] : memref<3x1x32xf32, #tpu.memory_space<vmem>>, vector<1x1x32xf32>
    %174 = vector.shape_cast %173 : vector<1x1x32xf32> to vector<1x32xf32>
    %c2_118 = arith.constant 2 : index
    %c0_119 = arith.constant 0 : index
    %c0_120 = arith.constant 0 : index
    %175 = vector.load %arg17[%c2_118, %c0_119, %c0_120] : memref<3x1x32xf32, #tpu.memory_space<vmem>>, vector<1x1x32xf32>
    %176 = vector.shape_cast %175 : vector<1x1x32xf32> to vector<1x32xf32>
    %cst_121 = arith.constant dense<0.000000e+00> : vector<8xf32>
    %177 = vector.multi_reduction <add>, %172, %cst_121 [1] : vector<8x32xf32> to vector<8xf32>
    %178 = vector.shape_cast %177 : vector<8xf32> to vector<8x1xf32>
    %cst_122 = arith.constant 3.200000e+01 : f32
    %179 = vector.broadcast %cst_122 : f32 to vector<8x1xf32>
    %180 = arith.divf %178, %179 : vector<8x1xf32>
    %181 = vector.broadcast %180 : vector<8x1xf32> to vector<8x32xf32>
    %182 = arith.subf %172, %181 : vector<8x32xf32>
    %183 = arith.mulf %182, %182 : vector<8x32xf32>
    %cst_123 = arith.constant dense<0.000000e+00> : vector<8xf32>
    %184 = vector.multi_reduction <add>, %183, %cst_123 [1] : vector<8x32xf32> to vector<8xf32>
    %185 = vector.shape_cast %184 : vector<8xf32> to vector<8x1xf32>
    %cst_124 = arith.constant 3.200000e+01 : f32
    %186 = vector.broadcast %cst_124 : f32 to vector<8x1xf32>
    %187 = arith.divf %185, %186 : vector<8x1xf32>
    %188 = vector.broadcast %180 : vector<8x1xf32> to vector<8x32xf32>
    %189 = arith.subf %172, %188 : vector<8x32xf32>
    %cst_125 = arith.constant 9.99999974E-6 : f32
    %190 = vector.broadcast %cst_125 : f32 to vector<8x1xf32>
    %191 = arith.addf %187, %190 : vector<8x1xf32>
    %192 = math.rsqrt %191 : vector<8x1xf32>
    %193 = vector.broadcast %192 : vector<8x1xf32> to vector<8x32xf32>
    %194 = arith.mulf %189, %193 : vector<8x32xf32>
    %195 = vector.broadcast %174 : vector<1x32xf32> to vector<8x32xf32>
    %196 = arith.mulf %194, %195 : vector<8x32xf32>
    %197 = vector.broadcast %176 : vector<1x32xf32> to vector<8x32xf32>
    %198 = arith.addf %196, %197 : vector<8x32xf32>
    %c0_126 = arith.constant 0 : index
    %c0_127 = arith.constant 0 : index
    %c0_128 = arith.constant 0 : index
    %199 = vector.load %arg20[%c0_126, %c0_127, %c0_128] : memref<1x8x32xf32, #tpu.memory_space<vmem>>, vector<1x8x32xf32>
    %200 = vector.shape_cast %199 : vector<1x8x32xf32> to vector<8x32xf32>
    %201 = vector.shape_cast %198 : vector<8x32xf32> to vector<1x8x32xf32>
    tpu.vector_store %arg20[%c0_126, %c0_127, %c0_128], %201 {strides = array<i32>} : memref<1x8x32xf32, #tpu.memory_space<vmem>>, vector<1x8x32xf32>,
    %c0_129 = arith.constant 0 : index
    %c0_130 = arith.constant 0 : index
    %202 = vector.load %arg18[%c0_129, %c0_130] : memref<1x32xf32, #tpu.memory_space<vmem>>, vector<1x32xf32>
    %203 = vector.broadcast %202 : vector<1x32xf32> to vector<8x32xf32>
    %204 = arith.mulf %198, %203 : vector<8x32xf32>
    %cst_131 = arith.constant dense<0.000000e+00> : vector<8xf32>
    %205 = vector.multi_reduction <add>, %204, %cst_131 [1] : vector<8x32xf32> to vector<8xf32>
    %206 = vector.shape_cast %205 : vector<8xf32> to vector<8x1xf32>
    %c0_132 = arith.constant 0 : index
    %c0_133 = arith.constant 0 : index
    %207 = vector.load %arg19[%c0_132, %c0_133] : memref<1x1xf32, #tpu.memory_space<vmem>>, vector<1x1xf32>
    %208 = vector.broadcast %207 : vector<1x1xf32> to vector<8x1xf32>
    %209 = arith.addf %206, %208 : vector<8x1xf32>
    %c0_134 = arith.constant 0 : index
    %c0_135 = arith.constant 0 : index
    %c0_136 = arith.constant 0 : index
    %210 = vector.load %arg21[%c0_134, %c0_135, %c0_136] : memref<1x8x1xf32, #tpu.memory_space<vmem>>, vector<1x8x1xf32>
    %211 = vector.shape_cast %210 : vector<1x8x1xf32> to vector<8x1xf32>
    %212 = vector.shape_cast %209 : vector<8x1xf32> to vector<1x8x1xf32>
    tpu.vector_store %arg21[%c0_134, %c0_135, %c0_136], %212 {strides = array<i32>} : memref<1x8x1xf32, #tpu.memory_space<vmem>>, vector<1x8x1xf32>,
    return
  }
  func.func @transform_0(%arg0: i32) -> (i32, i32, i32) {
    %c0_i32 = arith.constant 0 : i32
    %c0_i32_0 = arith.constant 0 : i32
    %c0_i32_1 = arith.constant 0 : i32
    return %arg0, %c0_i32, %c0_i32_0 : i32, i32, i32
  }
  func.func @transform_1(%arg0: i32) -> (i32, i32, i32) {
    %c0_i32 = arith.constant 0 : i32
    %c0_i32_0 = arith.constant 0 : i32
    %c0_i32_1 = arith.constant 0 : i32
    return %arg0, %c0_i32, %c0_i32_0 : i32, i32, i32
  }
  func.func @transform_2(%arg0: i32) -> (i32, i32) {
    %c0_i32 = arith.constant 0 : i32
    %c0_i32_0 = arith.constant 0 : i32
    %c0_i32_1 = arith.constant 0 : i32
    return %c0_i32, %c0_i32_0 : i32, i32
  }
  func.func @transform_3(%arg0: i32) -> (i32, i32, i32, i32) {
    %c0_i32 = arith.constant 0 : i32
    %c0_i32_0 = arith.constant 0 : i32
    %c0_i32_1 = arith.constant 0 : i32
    %c0_i32_2 = arith.constant 0 : i32
    %c0_i32_3 = arith.constant 0 : i32
    return %c0_i32, %c0_i32_0, %c0_i32_1, %c0_i32_2 : i32, i32, i32, i32
  }
  func.func @transform_4(%arg0: i32) -> (i32, i32, i32, i32) {
    %c0_i32 = arith.constant 0 : i32
    %c0_i32_0 = arith.constant 0 : i32
    %c0_i32_1 = arith.constant 0 : i32
    %c0_i32_2 = arith.constant 0 : i32
    %c0_i32_3 = arith.constant 0 : i32
    return %c0_i32, %c0_i32_0, %c0_i32_1, %c0_i32_2 : i32, i32, i32, i32
  }
  func.func @transform_5(%arg0: i32) -> (i32, i32, i32) {
    %c0_i32 = arith.constant 0 : i32
    %c0_i32_0 = arith.constant 0 : i32
    %c0_i32_1 = arith.constant 0 : i32
    %c0_i32_2 = arith.constant 0 : i32
    return %c0_i32, %c0_i32_0, %c0_i32_1 : i32, i32, i32
  }
  func.func @transform_6(%arg0: i32) -> (i32, i32) {
    %c0_i32 = arith.constant 0 : i32
    %c0_i32_0 = arith.constant 0 : i32
    %c0_i32_1 = arith.constant 0 : i32
    return %c0_i32, %c0_i32_0 : i32, i32
  }
  func.func @transform_7(%arg0: i32) -> (i32, i32, i32, i32) {
    %c0_i32 = arith.constant 0 : i32
    %c0_i32_0 = arith.constant 0 : i32
    %c0_i32_1 = arith.constant 0 : i32
    %c0_i32_2 = arith.constant 0 : i32
    %c0_i32_3 = arith.constant 0 : i32
    return %c0_i32, %c0_i32_0, %c0_i32_1, %c0_i32_2 : i32, i32, i32, i32
  }
  func.func @transform_8(%arg0: i32) -> (i32, i32, i32, i32) {
    %c0_i32 = arith.constant 0 : i32
    %c0_i32_0 = arith.constant 0 : i32
    %c0_i32_1 = arith.constant 0 : i32
    %c0_i32_2 = arith.constant 0 : i32
    %c0_i32_3 = arith.constant 0 : i32
    return %c0_i32, %c0_i32_0, %c0_i32_1, %c0_i32_2 : i32, i32, i32, i32
  }
  func.func @transform_9(%arg0: i32) -> (i32, i32, i32) {
    %c0_i32 = arith.constant 0 : i32
    %c0_i32_0 = arith.constant 0 : i32
    %c0_i32_1 = arith.constant 0 : i32
    %c0_i32_2 = arith.constant 0 : i32
    return %c0_i32, %c0_i32_0, %c0_i32_1 : i32, i32, i32
  }
  func.func @transform_10(%arg0: i32) -> (i32, i32) {
    %c0_i32 = arith.constant 0 : i32
    %c0_i32_0 = arith.constant 0 : i32
    %c0_i32_1 = arith.constant 0 : i32
    return %c0_i32, %c0_i32_0 : i32, i32
  }
  func.func @transform_11(%arg0: i32) -> (i32, i32) {
    %c0_i32 = arith.constant 0 : i32
    %c0_i32_0 = arith.constant 0 : i32
    %c0_i32_1 = arith.constant 0 : i32
    return %c0_i32, %c0_i32_0 : i32, i32
  }
  func.func @transform_12(%arg0: i32) -> (i32, i32) {
    %c0_i32 = arith.constant 0 : i32
    %c0_i32_0 = arith.constant 0 : i32
    %c0_i32_1 = arith.constant 0 : i32
    return %c0_i32, %c0_i32_0 : i32, i32
  }
  func.func @transform_13(%arg0: i32) -> (i32, i32) {
    %c0_i32 = arith.constant 0 : i32
    %c0_i32_0 = arith.constant 0 : i32
    %c0_i32_1 = arith.constant 0 : i32
    return %c0_i32, %c0_i32_0 : i32, i32
  }
  func.func @transform_14(%arg0: i32) -> (i32, i32) {
    %c0_i32 = arith.constant 0 : i32
    %c0_i32_0 = arith.constant 0 : i32
    %c0_i32_1 = arith.constant 0 : i32
    return %c0_i32, %c0_i32_0 : i32, i32
  }
  func.func @transform_15(%arg0: i32) -> (i32, i32, i32) {
    %c0_i32 = arith.constant 0 : i32
    %c0_i32_0 = arith.constant 0 : i32
    %c0_i32_1 = arith.constant 0 : i32
    %c0_i32_2 = arith.constant 0 : i32
    return %c0_i32, %c0_i32_0, %c0_i32_1 : i32, i32, i32
  }
  func.func @transform_16(%arg0: i32) -> (i32, i32, i32) {
    %c0_i32 = arith.constant 0 : i32
    %c0_i32_0 = arith.constant 0 : i32
    %c0_i32_1 = arith.constant 0 : i32
    %c0_i32_2 = arith.constant 0 : i32
    return %c0_i32, %c0_i32_0, %c0_i32_1 : i32, i32, i32
  }
  func.func @transform_17(%arg0: i32) -> (i32, i32) {
    %c0_i32 = arith.constant 0 : i32
    %c0_i32_0 = arith.constant 0 : i32
    %c0_i32_1 = arith.constant 0 : i32
    return %c0_i32, %c0_i32_0 : i32, i32
  }
  func.func @transform_18(%arg0: i32) -> (i32, i32) {
    %c0_i32 = arith.constant 0 : i32
    %c0_i32_0 = arith.constant 0 : i32
    %c0_i32_1 = arith.constant 0 : i32
    return %c0_i32, %c0_i32_0 : i32, i32
  }
  func.func @transform_19(%arg0: i32) -> (i32, i32, i32) {
    %c0_i32 = arith.constant 0 : i32
    %c0_i32_0 = arith.constant 0 : i32
    %c0_i32_1 = arith.constant 0 : i32
    return %arg0, %c0_i32, %c0_i32_0 : i32, i32, i32
  }
  func.func @transform_20(%arg0: i32) -> (i32, i32, i32) {
    %c0_i32 = arith.constant 0 : i32
    %c0_i32_0 = arith.constant 0 : i32
    %c0_i32_1 = arith.constant 0 : i32
    return %arg0, %c0_i32, %c0_i32_0 : i32, i32, i32
  }
}

</mosaic_0001>

<llo_original>
// kernel: transformer_forward.4
$region0: #{transformer_forward.4}
  #allocation0 [shape = 'u32[]', space=smem, size = 0x4, offset = 0x4, fixed_abs, tag = 'smem constant byte address 0x4 - core index']
  #allocation1 [shape = 'u32[72,128]{1,0:T(1,128)}', space=vmem, size = 0x9000, scoped, tag = 'internal scratch']
  %s0 = inlined_call_operand.vmem [shape: f32[2,8,32], index: 0, kind: input, shape index: {}]
  %s1 = inlined_call_operand.vmem [shape: bf16[3,4,32,8], index: 1, kind: input, shape index: {}]
  %s2 = inlined_call_operand.vmem [shape: f32[3,4,1,8], index: 2, kind: input, shape index: {}]
  %s3 = inlined_call_operand.vmem [shape: bf16[4,8,32], index: 3, kind: input, shape index: {}]
  %s4 = inlined_call_operand.vmem [shape: f32[1,32], index: 4, kind: input, shape index: {}]
  %s5 = inlined_call_operand.vmem [shape: bf16[32,2048], index: 5, kind: input, shape index: {}]
  %s6 = inlined_call_operand.vmem [shape: f32[1,2048], index: 6, kind: input, shape index: {}]
  %s7 = inlined_call_operand.vmem [shape: bf16[2048,32], index: 7, kind: input, shape index: {}]
  %s8 = inlined_call_operand.vmem [shape: f32[1,32], index: 8, kind: input, shape index: {}]
  %s9 = inlined_call_operand.vmem [shape: f32[2,1,32], index: 9, kind: input, shape index: {}]
  %s10 = inlined_call_operand.vmem [shape: f32[2,1,32], index: 10, kind: input, shape index: {}]
  %s11 = inlined_call_operand.vmem [shape: f32[2,8,32], index: 11, kind: output, shape index: {}]
  %s12 = sld [smem:[#allocation0]]
  $region77: #{transformer_forward.4} parent=0
    _
  %s14 = ssub.s32 1, %s12
  %s15 = scalar_select 0, %s14, %s12
  loop: start=0, step=1, limit=4
  $region2: #{transformer_forward.4} parent=0 // loop_pre_header
    _
  $region3: #{transformer_forward.4} parent=0 // loop_header
    %s17 = sphi 0, %s21
    %p18 = scmp.ge.s32.totalorder %s17, 4
    %s27 = sphi 0, %s29
    %s30 = sphi 0, %s27
    %s31 = sphi 0, %s30
    %s47 = sphi 0, %s31
    %s51 = sphi 0, %s51
    %s53 = sphi 0, %s51
    %s54 = sphi 0, %s53
    %s68 = sphi 0, %s54
    %s72 = sphi 0, %s72
    %s74 = sphi 0, %s72
    %s75 = sphi 0, %s74
    %s89 = sphi 0, %s75
    %s93 = sphi 0, %s93
    %s95 = sphi 0, %s93
    %s96 = sphi 0, %s95
    %s110 = sphi 0, %s96
    %s114 = sphi 0, %s114
    %s116 = sphi 0, %s114
    %s117 = sphi 0, %s116
    %s131 = sphi 0, %s117
    %s135 = sphi 0, %s135
    %s137 = sphi 0, %s135
    %s138 = sphi 0, %s137
    %s152 = sphi 0, %s138
    %s156 = sphi 0, %s156
    %s158 = sphi 0, %s156
    %s159 = sphi 0, %s158
    %s173 = sphi 0, %s159
    %s177 = sphi 0, %s177
    %s179 = sphi 0, %s177
    %s180 = sphi 0, %s179
    %s194 = sphi 0, %s180
    %s198 = sphi 0, %s198
    %s200 = sphi 0, %s198
    %s201 = sphi 0, %s200
    %s215 = sphi 0, %s201
    %s219 = sphi 0, %s219
    %s221 = sphi 0, %s219
    %s222 = sphi 0, %s221
    %s236 = sphi 0, %s222
    %s240 = sphi 0, %s240
    %s242 = sphi 0, %s240
    %s243 = sphi 0, %s242
    %s257 = sphi 0, %s243
    %s263 = sphi 0, %s265
    %s266 = sphi 0, %s263
    %s267 = sphi 0, %s266
    %s283 = sphi 0, %s267
  $region4: #{transformer_forward.4} parent=0 // loop_header_branch
    %20 = sbr.rel (%p18) target = $region8
  $region5: #{transformer_forward.4} parent=0 // loop_body
    %s22 = ssub.s32 %s17, 1
    %s23 = ssub.s32 %s17, 2
    %s24 = sadd.s32 %s17, 1
    %s25 = ssub.s32 %s17, %s24
    %p26 = scmp.eq.s32.totalorder %s25, 0
    %s28 = sadd.s32 %s27, 1
    %s29 = scalar_select %p26, %s27, %s28
    %p32 = pneg %p26
    %p33 = scmp.eq.s32.totalorder %s17, 1
    %p34 = por %p32, %p33
    %p35 = scmp.ne.s32.totalorder %s27, %s30
    %p36 = scmp.eq.s32.totalorder %s17, 0
    %p37 = por %p35, %p36
    %p38 = scmp.ne.s32.totalorder %s27, %s30
    %p39 = scmp.eq.s32.totalorder %s22, 1
    %p40 = por %p38, %p39
    %p41 = scmp.ne.s32.totalorder %s30, %s31
    %p42 = scmp.eq.s32.totalorder %s22, 0
    %p43 = por %p41, %p42
    %p44 = scmp.ne.s32.totalorder %s30, %s31
    %p45 = scmp.eq.s32.totalorder %s23, 1
    %p46 = por %p44, %p45
    %p48 = scmp.ne.s32.totalorder %s31, %s47
    %p49 = scmp.eq.s32.totalorder %s23, 0
    %p50 = por %p48, %p49
    %s52 = sadd.s32 %s51, 1
    %p55 = scmp.eq.s32.totalorder %s17, 1
    %p56 = scmp.ne.s32.totalorder %s51, %s53
    %p57 = scmp.eq.s32.totalorder %s17, 0
    %p58 = por %p56, %p57
    %p59 = scmp.ne.s32.totalorder %s51, %s53
    %p60 = scmp.eq.s32.totalorder %s22, 1
    %p61 = por %p59, %p60
    %p62 = scmp.ne.s32.totalorder %s53, %s54
    %p63 = scmp.eq.s32.totalorder %s22, 0
    %p64 = por %p62, %p63
    %p65 = scmp.ne.s32.totalorder %s53, %s54
    %p66 = scmp.eq.s32.totalorder %s23, 1
    %p67 = por %p65, %p66
    %p69 = scmp.ne.s32.totalorder %s54, %s68
    %p70 = scmp.eq.s32.totalorder %s23, 0
    %p71 = por %p69, %p70
    %s73 = sadd.s32 %s72, 1
    %p76 = scmp.eq.s32.totalorder %s17, 1
    %p77 = scmp.ne.s32.totalorder %s72, %s74
    %p78 = scmp.eq.s32.totalorder %s17, 0
    %p79 = por %p77, %p78
    %p80 = scmp.ne.s32.totalorder %s72, %s74
    %p81 = scmp.eq.s32.totalorder %s22, 1
    %p82 = por %p80, %p81
    %p83 = scmp.ne.s32.totalorder %s74, %s75
    %p84 = scmp.eq.s32.totalorder %s22, 0
    %p85 = por %p83, %p84
    %p86 = scmp.ne.s32.totalorder %s74, %s75
    %p87 = scmp.eq.s32.totalorder %s23, 1
    %p88 = por %p86, %p87
    %p90 = scmp.ne.s32.totalorder %s75, %s89
    %p91 = scmp.eq.s32.totalorder %s23, 0
    %p92 = por %p90, %p91
    %s94 = sadd.s32 %s93, 1
    %p97 = scmp.eq.s32.totalorder %s17, 1
    %p98 = scmp.ne.s32.totalorder %s93, %s95
    %p99 = scmp.eq.s32.totalorder %s17, 0
    %p100 = por %p98, %p99
    %p101 = scmp.ne.s32.totalorder %s93, %s95
    %p102 = scmp.eq.s32.totalorder %s22, 1
    %p103 = por %p101, %p102
    %p104 = scmp.ne.s32.totalorder %s95, %s96
    %p105 = scmp.eq.s32.totalorder %s22, 0
    %p106 = por %p104, %p105
    %p107 = scmp.ne.s32.totalorder %s95, %s96
    %p108 = scmp.eq.s32.totalorder %s23, 1
    %p109 = por %p107, %p108
    %p111 = scmp.ne.s32.totalorder %s96, %s110
    %p112 = scmp.eq.s32.totalorder %s23, 0
    %p113 = por %p111, %p112
    %s115 = sadd.s32 %s114, 1
    %p118 = scmp.eq.s32.totalorder %s17, 1
    %p119 = scmp.ne.s32.totalorder %s114, %s116
    %p120 = scmp.eq.s32.totalorder %s17, 0
    %p121 = por %p119, %p120
    %p122 = scmp.ne.s32.totalorder %s114, %s116
    %p123 = scmp.eq.s32.totalorder %s22, 1
    %p124 = por %p122, %p123
    %p125 = scmp.ne.s32.totalorder %s116, %s117
    %p126 = scmp.eq.s32.totalorder %s22, 0
    %p127 = por %p125, %p126
    %p128 = scmp.ne.s32.totalorder %s116, %s117
    %p129 = scmp.eq.s32.totalorder %s23, 1
    %p130 = por %p128, %p129
    %p132 = scmp.ne.s32.totalorder %s117, %s131
    %p133 = scmp.eq.s32.totalorder %s23, 0
    %p134 = por %p132, %p133
    %s136 = sadd.s32 %s135, 1
    %p139 = scmp.eq.s32.totalorder %s17, 1
    %p140 = scmp.ne.s32.totalorder %s135, %s137
    %p141 = scmp.eq.s32.totalorder %s17, 0
    %p142 = por %p140, %p141
    %p143 = scmp.ne.s32.totalorder %s135, %s137
    %p144 = scmp.eq.s32.totalorder %s22, 1
    %p145 = por %p143, %p144
    %p146 = scmp.ne.s32.totalorder %s137, %s138
    %p147 = scmp.eq.s32.totalorder %s22, 0
    %p148 = por %p146, %p147
    %p149 = scmp.ne.s32.totalorder %s137, %s138
    %p150 = scmp.eq.s32.totalorder %s23, 1
    %p151 = por %p149, %p150
    %p153 = scmp.ne.s32.totalorder %s138, %s152
    %p154 = scmp.eq.s32.totalorder %s23, 0
    %p155 = por %p153, %p154
    %s157 = sadd.s32 %s156, 1
    %p160 = scmp.eq.s32.totalorder %s17, 1
    %p161 = scmp.ne.s32.totalorder %s156, %s158
    %p162 = scmp.eq.s32.totalorder %s17, 0
    %p163 = por %p161, %p162
    %p164 = scmp.ne.s32.totalorder %s156, %s158
    %p165 = scmp.eq.s32.totalorder %s22, 1
    %p166 = por %p164, %p165
    %p167 = scmp.ne.s32.totalorder %s158, %s159
    %p168 = scmp.eq.s32.totalorder %s22, 0
    %p169 = por %p167, %p168
    %p170 = scmp.ne.s32.totalorder %s158, %s159
    %p171 = scmp.eq.s32.totalorder %s23, 1
    %p172 = por %p170, %p171
    %p174 = scmp.ne.s32.totalorder %s159, %s173
    %p175 = scmp.eq.s32.totalorder %s23, 0
    %p176 = por %p174, %p175
    %s178 = sadd.s32 %s177, 1
    %p181 = scmp.eq.s32.totalorder %s17, 1
    %p182 = scmp.ne.s32.totalorder %s177, %s179
    %p183 = scmp.eq.s32.totalorder %s17, 0
    %p184 = por %p182, %p183
    %p185 = scmp.ne.s32.totalorder %s177, %s179
    %p186 = scmp.eq.s32.totalorder %s22, 1
    %p187 = por %p185, %p186
    %p188 = scmp.ne.s32.totalorder %s179, %s180
    %p189 = scmp.eq.s32.totalorder %s22, 0
    %p190 = por %p188, %p189
    %p191 = scmp.ne.s32.totalorder %s179, %s180
    %p192 = scmp.eq.s32.totalorder %s23, 1
    %p193 = por %p191, %p192
    %p195 = scmp.ne.s32.totalorder %s180, %s194
    %p196 = scmp.eq.s32.totalorder %s23, 0
    %p197 = por %p195, %p196
    %s199 = sadd.s32 %s198, 1
    %p202 = scmp.eq.s32.totalorder %s17, 1
    %p203 = scmp.ne.s32.totalorder %s198, %s200
    %p204 = scmp.eq.s32.totalorder %s17, 0
    %p205 = por %p203, %p204
    %p206 = scmp.ne.s32.totalorder %s198, %s200
    %p207 = scmp.eq.s32.totalorder %s22, 1
    %p208 = por %p206, %p207
    %p209 = scmp.ne.s32.totalorder %s200, %s201
    %p210 = scmp.eq.s32.totalorder %s22, 0
    %p211 = por %p209, %p210
    %p212 = scmp.ne.s32.totalorder %s200, %s201
    %p213 = scmp.eq.s32.totalorder %s23, 1
    %p214 = por %p212, %p213
    %p216 = scmp.ne.s32.totalorder %s201, %s215
    %p217 = scmp.eq.s32.totalorder %s23, 0
    %p218 = por %p216, %p217
    %s220 = sadd.s32 %s219, 1
    %p223 = scmp.eq.s32.totalorder %s17, 1
    %p224 = scmp.ne.s32.totalorder %s219, %s221
    %p225 = scmp.eq.s32.totalorder %s17, 0
    %p226 = por %p224, %p225
    %p227 = scmp.ne.s32.totalorder %s219, %s221
    %p228 = scmp.eq.s32.totalorder %s22, 1
    %p229 = por %p227, %p228
    %p230 = scmp.ne.s32.totalorder %s221, %s222
    %p231 = scmp.eq.s32.totalorder %s22, 0
    %p232 = por %p230, %p231
    %p233 = scmp.ne.s32.totalorder %s221, %s222
    %p234 = scmp.eq.s32.totalorder %s23, 1
    %p235 = por %p233, %p234
    %p237 = scmp.ne.s32.totalorder %s222, %s236
    %p238 = scmp.eq.s32.totalorder %s23, 0
    %p239 = por %p237, %p238
    %s241 = sadd.s32 %s240, 1
    %p244 = scmp.eq.s32.totalorder %s17, 1
    %p245 = scmp.ne.s32.totalorder %s240, %s242
    %p246 = scmp.eq.s32.totalorder %s17, 0
    %p247 = por %p245, %p246
    %p248 = scmp.ne.s32.totalorder %s240, %s242
    %p249 = scmp.eq.s32.totalorder %s22, 1
    %p250 = por %p248, %p249
    %p251 = scmp.ne.s32.totalorder %s242, %s243
    %p252 = scmp.eq.s32.totalorder %s22, 0
    %p253 = por %p251, %p252
    %p254 = scmp.ne.s32.totalorder %s242, %s243
    %p255 = scmp.eq.s32.totalorder %s23, 1
    %p256 = por %p254, %p255
    %p258 = scmp.ne.s32.totalorder %s243, %s257
    %p259 = scmp.eq.s32.totalorder %s23, 0
    %p260 = por %p258, %p259
    %s261 = ssub.s32 %s17, %s24
    %p262 = scmp.eq.s32.totalorder %s261, 0
    %s264 = sadd.s32 %s263, 1
    %s265 = scalar_select %p262, %s263, %s264
    %p268 = pneg %p262
    %p269 = scmp.eq.s32.totalorder %s17, 1
    %p270 = por %p268, %p269
    %p271 = scmp.ne.s32.totalorder %s263, %s266
    %p272 = scmp.eq.s32.totalorder %s17, 0
    %p273 = por %p271, %p272
    %p274 = scmp.ne.s32.totalorder %s263, %s266
    %p275 = scmp.eq.s32.totalorder %s22, 1
    %p276 = por %p274, %p275
    %p277 = scmp.ne.s32.totalorder %s266, %s267
    %p278 = scmp.eq.s32.totalorder %s22, 0
    %p279 = por %p277, %p278
    %p280 = scmp.ne.s32.totalorder %s266, %s267
    %p281 = scmp.eq.s32.totalorder %s23, 1
    %p282 = por %p280, %p281
    %p284 = scmp.ne.s32.totalorder %s267, %s283
    %p285 = scmp.eq.s32.totalorder %s23, 0
    %p286 = por %p284, %p285
    %p287 = scmp.le.s32.totalorder 1, %s17
    %p288 = scmp.lt.s32.totalorder %s17, 3
    %p289 = pnand %p287, %p288
    %p290 = pneg %p289
    // Predicated region
    $region9: #{transformer_forward.4} parent=5 // pred_check
      _
    $region10: #{transformer_forward.4} parent=5 // pred_check_branch
      %292 = sbr.rel (%p289) target = $region12
    $region11: #{transformer_forward.4} parent=5 // pred_region
      %s293 = ssub.s32 %s17, 1
      // Predicated region
      $region13: #{transformer_forward.4} parent=11 // pred_check
        %p294 = pneg %p64
      $region14: #{transformer_forward.4} parent=11 // pred_check_branch
        %296 = sbr.rel (%p294) target = $region16
      $region15: #{transformer_forward.4} parent=11 // pred_region
        _
      $region16: #{transformer_forward.4} parent=11 // pred_fallthru
        _
      // Predicated region
      $region17: #{transformer_forward.4} parent=11 // pred_check
        %p297 = pneg %p85
      $region18: #{transformer_forward.4} parent=11 // pred_check_branch
        %299 = sbr.rel (%p297) target = $region20
      $region19: #{transformer_forward.4} parent=11 // pred_region
        _
      $region20: #{transformer_forward.4} parent=11 // pred_fallthru
        _
      // Predicated region
      $region21: #{transformer_forward.4} parent=11 // pred_check
        %p300 = pneg %p106
      $region22: #{transformer_forward.4} parent=11 // pred_check_branch
        %302 = sbr.rel (%p300) target = $region24
      $region23: #{transformer_forward.4} parent=11 // pred_region
        _
      $region24: #{transformer_forward.4} parent=11 // pred_fallthru
        _
      // Predicated region
      $region25: #{transformer_forward.4} parent=11 // pred_check
        %p303 = pneg %p127
      $region26: #{transformer_forward.4} parent=11 // pred_check_branch
        %305 = sbr.rel (%p303) target = $region28
      $region27: #{transformer_forward.4} parent=11 // pred_region
        _
      $region28: #{transformer_forward.4} parent=11 // pred_fallthru
        _
      // Predicated region
      $region29: #{transformer_forward.4} parent=11 // pred_check
        %p306 = pneg %p148
      $region30: #{transformer_forward.4} parent=11 // pred_check_branch
        %308 = sbr.rel (%p306) target = $region32
      $region31: #{transformer_forward.4} parent=11 // pred_region
        _
      $region32: #{transformer_forward.4} parent=11 // pred_fallthru
        _
      // Predicated region
      $region33: #{transformer_forward.4} parent=11 // pred_check
        %p309 = pneg %p169
      $region34: #{transformer_forward.4} parent=11 // pred_check_branch
        %311 = sbr.rel (%p309) target = $region36
      $region35: #{transformer_forward.4} parent=11 // pred_region
        _
      $region36: #{transformer_forward.4} parent=11 // pred_fallthru
        _
      // Predicated region
      $region37: #{transformer_forward.4} parent=11 // pred_check
        %p312 = pneg %p190
      $region38: #{transformer_forward.4} parent=11 // pred_check_branch
        %314 = sbr.rel (%p312) target = $region40
      $region39: #{transformer_forward.4} parent=11 // pred_region
        _
      $region40: #{transformer_forward.4} parent=11 // pred_fallthru
        _
      // Predicated region
      $region41: #{transformer_forward.4} parent=11 // pred_check
        %p315 = pneg %p211
      $region42: #{transformer_forward.4} parent=11 // pred_check_branch
        %317 = sbr.rel (%p315) target = $region44
      $region43: #{transformer_forward.4} parent=11 // pred_region
        _
      $region44: #{transformer_forward.4} parent=11 // pred_fallthru
        _
      // Predicated region
      $region45: #{transformer_forward.4} parent=11 // pred_check
        %p318 = pneg %p232
      $region46: #{transformer_forward.4} parent=11 // pred_check_branch
        %320 = sbr.rel (%p318) target = $region48
      $region47: #{transformer_forward.4} parent=11 // pred_region
        _
      $region48: #{transformer_forward.4} parent=11 // pred_fallthru
        _
      // Predicated region
      $region49: #{transformer_forward.4} parent=11 // pred_check
        %p321 = pneg %p253
      $region50: #{transformer_forward.4} parent=11 // pred_check_branch
        %323 = sbr.rel (%p321) target = $region52
      $region51: #{transformer_forward.4} parent=11 // pred_region
        _
      $region52: #{transformer_forward.4} parent=11 // pred_fallthru
        _
    $region12: #{transformer_forward.4} parent=5 // pred_fallthru
      _
    %p324 = scmp.lt.s32.totalorder %s17, 2
    // Predicated region
    $region53: #{transformer_forward.4} parent=5 // pred_check
      %p325 = pneg %p324
    $region54: #{transformer_forward.4} parent=5 // pred_check_branch
      %327 = sbr.rel (%p325) target = $region56
    $region55: #{transformer_forward.4} parent=5 // pred_region
      // Predicated region
      $region57: #{transformer_forward.4} parent=55 // pred_check
        %p328 = pneg %p37
      $region58: #{transformer_forward.4} parent=55 // pred_check_branch
        %330 = sbr.rel (%p328) target = $region60
      $region59: #{transformer_forward.4} parent=55 // pred_region
        %p331 = scmp.lt.s32.totalorder %s17, 1
        %s332 = scalar_select %p331, %s17, 1
        %s333 = smul.addr %s332, 8
        %s334 = scalar_lea.vmem %s0, %s333
      $region60: #{transformer_forward.4} parent=55 // pred_fallthru
        _
    $region56: #{transformer_forward.4} parent=5 // pred_fallthru
      _
    %p335 = scmp.le.s32.totalorder 1, %s17
    %p336 = scmp.lt.s32.totalorder %s17, 3
    %p337 = pnand %p335, %p336
    %p338 = pneg %p337
    // Predicated region
    $region61: #{transformer_forward.4} parent=5 // pred_check
      _
    $region62: #{transformer_forward.4} parent=5 // pred_check_branch
      %340 = sbr.rel (%p337) target = $region64
    $region63: #{transformer_forward.4} parent=5 // pred_region
      %s341 = ssub.s32 %s17, 1
      %p342 = scmp.lt.s32.totalorder %s22, 1
      %s343 = scalar_select %p342, %s22, 1
      %s344 = smul.addr %s343, 8
      %s345 = scalar_lea.vmem %s0, %s344
      %p346 = pneg %p43
      %p347 = pneg %p40
      %p348 = pneg %p64
      %p349 = pneg %p61
      %p350 = pneg %p85
      %p351 = pneg %p82
      %p352 = pneg %p106
      %p353 = pneg %p103
      %p354 = pneg %p127
      %p355 = pneg %p124
      %p356 = pneg %p148
      %p357 = pneg %p145
      %p358 = pneg %p169
      %p359 = pneg %p166
      %p360 = pneg %p190
      %p361 = pneg %p187
      %p362 = pneg %p211
      %p363 = pneg %p208
      %p364 = pneg %p232
      %p365 = pneg %p229
      %p366 = pneg %p253
      %p367 = pneg %p250
      %p368 = pneg %p279
      %p369 = pneg %p276
      %p370 = scmp.lt.s32.totalorder %s22, 1
      %s371 = scalar_select %p370, %s22, 1
      %s372 = smul.addr %s371, 8
      %s373 = scalar_lea.vmem %s11, %s372
      %p374 = scmp.lt.s32.totalorder %s22, 1
      %s375 = scalar_select %p374, %s22, 1
      %s376 = smul.addr %s375, 8
      %s377 = scalar_lea.vmem %s0, %s376
      %p378 = scmp.lt.s32.totalorder %s22, 1
      %s379 = scalar_select %p378, %s22, 1
      %s380 = smul.addr %s379, 8
      %s381 = scalar_lea.vmem %s11, %s380
      %v383 = vld [vmem:[%s377] sm:$0xff]
      %v384 = vpack.c.bf16 %v383, %v383
      %v385 = vld [vmem:[%s1] sm:$0xf]
      %v386 = vld [vmem:[%s1 + $0x4] sm:$0xf]
      %v387 = vld [vmem:[%s1 + $0x8] sm:$0xf]
      %v388 = vld [vmem:[%s1 + $0xc] sm:$0xf]
      %v389 = vld [vmem:[%s1 + $0x10] sm:$0xf]
      %v390 = vld [vmem:[%s1 + $0x14] sm:$0xf]
      %v391 = vld [vmem:[%s1 + $0x18] sm:$0xf]
      %v392 = vld [vmem:[%s1 + $0x1c] sm:$0xf]
      %v393 = vld [vmem:[%s1 + $0x20] sm:$0xf]
      %v394 = vld [vmem:[%s1 + $0x24] sm:$0xf]
      %v395 = vld [vmem:[%s1 + $0x28] sm:$0xf]
      %v396 = vld [vmem:[%s1 + $0x2c] sm:$0xf]
      %v397 = vld [vmem:[%s1 + $0x30] sm:$0xf]
      %v398 = vld [vmem:[%s1 + $0x34] sm:$0xf]
      %v399 = vld [vmem:[%s1 + $0x38] sm:$0xf]
      %v400 = vld [vmem:[%s1 + $0x3c] sm:$0xf]
      %v401 = vld [vmem:[%s2] sm:$0x1]
      %v402 = vld [vmem:[%s2 + $0x1] sm:$0x1]
      %v403 = vld [vmem:[%s2 + $0x2] sm:$0x1]
      %v404 = vld [vmem:[%s2 + $0x3] sm:$0x1]
      %v409 = vperm.slane %v401, 0
      %v410 = vperm.slane %v402, 0
      %v411 = vperm.slane %v403, 0
      %v412 = vperm.slane %v404, 0
      %v421 = vunpack.c.l.b16 %v385
      %v422 = vunpack.c.l.b16 %v386
      %v423 = vunpack.c.l.b16 %v387
      %v424 = vunpack.c.l.b16 %v388
      %v425 = vpack.c.b16 %v422, %v421
      %v426 = vpack.c.b16 %v424, %v423
      %vm429 = vcmask 261120
      %v431 = vsel %vm429, %v384, 0
      %433 = vmatpush.bf16.msra.mxu0 0
      %434 = vmatpush.bf16.msra.mxu0 0
      %435 = vmatpush.bf16.msra.mxu0 0
      %436 = vmatpush.bf16.msra.mxu0 0
      %437 = vmatpush.bf16.msra.mxu0 0
      %438 = vmatpush.bf16.msra.mxu0 0
      %439 = vmatpush.bf16.msra.mxu0 %v426
      %440 = vmatpush.bf16.msra.mxu0 %v425
      %441 = vmatmul.bf16.gmra.mxu0 %v431
      %v442 = vpop.f32.mrf.mxu0
      %v443 = vadd.f32 %v409, %v442
      %v444 = vpop.f32.mrf.mxu0
      %445 = vdwg.mxu0
      %v450 = vunpack.c.l.b16 %v389
      %v451 = vunpack.c.l.b16 %v390
      %v452 = vunpack.c.l.b16 %v391
      %v453 = vunpack.c.l.b16 %v392
      %v454 = vpack.c.b16 %v451, %v450
      %v455 = vpack.c.b16 %v453, %v452
      %458 = vmatpush.bf16.msra.mxu0 0
      %459 = vmatpush.bf16.msra.mxu0 0
      %460 = vmatpush.bf16.msra.mxu0 0
      %461 = vmatpush.bf16.msra.mxu0 0
      %462 = vmatpush.bf16.msra.mxu0 0
      %463 = vmatpush.bf16.msra.mxu0 0
      %464 = vmatpush.bf16.msra.mxu0 %v455
      %465 = vmatpush.bf16.msra.mxu0 %v454
      %466 = vmatmul.bf16.gmra.mxu0 %v431
      %v467 = vpop.f32.mrf.mxu0
      %v468 = vadd.f32 %v410, %v467
      %v469 = vpop.f32.mrf.mxu0
      %470 = vdwg.mxu0
      %v475 = vunpack.c.l.b16 %v393
      %v476 = vunpack.c.l.b16 %v394
      %v477 = vunpack.c.l.b16 %v395
      %v478 = vunpack.c.l.b16 %v396
      %v479 = vpack.c.b16 %v476, %v475
      %v480 = vpack.c.b16 %v478, %v477
      %483 = vmatpush.bf16.msra.mxu0 0
      %484 = vmatpush.bf16.msra.mxu0 0
      %485 = vmatpush.bf16.msra.mxu0 0
      %486 = vmatpush.bf16.msra.mxu0 0
      %487 = vmatpush.bf16.msra.mxu0 0
      %488 = vmatpush.bf16.msra.mxu0 0
      %489 = vmatpush.bf16.msra.mxu0 %v480
      %490 = vmatpush.bf16.msra.mxu0 %v479
      %491 = vmatmul.bf16.gmra.mxu0 %v431
      %v492 = vpop.f32.mrf.mxu0
      %v493 = vadd.f32 %v411, %v492
      %v494 = vpop.f32.mrf.mxu0
      %495 = vdwg.mxu0
      %v500 = vunpack.c.l.b16 %v397
      %v501 = vunpack.c.l.b16 %v398
      %v502 = vunpack.c.l.b16 %v399
      %v503 = vunpack.c.l.b16 %v400
      %v504 = vpack.c.b16 %v501, %v500
      %v505 = vpack.c.b16 %v503, %v502
      %508 = vmatpush.bf16.msra.mxu0 0
      %509 = vmatpush.bf16.msra.mxu0 0
      %510 = vmatpush.bf16.msra.mxu0 0
      %511 = vmatpush.bf16.msra.mxu0 0
      %512 = vmatpush.bf16.msra.mxu0 0
      %513 = vmatpush.bf16.msra.mxu0 0
      %514 = vmatpush.bf16.msra.mxu0 %v505
      %515 = vmatpush.bf16.msra.mxu0 %v504
      %516 = vmatmul.bf16.gmra.mxu0 %v431
      %v517 = vpop.f32.mrf.mxu0
      %v518 = vadd.f32 %v412, %v517
      %v519 = vpop.f32.mrf.mxu0
      %520 = vdwg.mxu0
      %s521 = scalar_lea.vmem %s1, 64
      %v522 = vld [vmem:[%s521] sm:$0xf]
      %v523 = vld [vmem:[%s521 + $0x4] sm:$0xf]
      %v524 = vld [vmem:[%s521 + $0x8] sm:$0xf]
      %v525 = vld [vmem:[%s521 + $0xc] sm:$0xf]
      %v526 = vld [vmem:[%s521 + $0x10] sm:$0xf]
      %v527 = vld [vmem:[%s521 + $0x14] sm:$0xf]
      %v528 = vld [vmem:[%s521 + $0x18] sm:$0xf]
      %v529 = vld [vmem:[%s521 + $0x1c] sm:$0xf]
      %v530 = vld [vmem:[%s521 + $0x20] sm:$0xf]
      %v531 = vld [vmem:[%s521 + $0x24] sm:$0xf]
      %v532 = vld [vmem:[%s521 + $0x28] sm:$0xf]
      %v533 = vld [vmem:[%s521 + $0x2c] sm:$0xf]
      %v534 = vld [vmem:[%s521 + $0x30] sm:$0xf]
      %v535 = vld [vmem:[%s521 + $0x34] sm:$0xf]
      %v536 = vld [vmem:[%s521 + $0x38] sm:$0xf]
      %v537 = vld [vmem:[%s521 + $0x3c] sm:$0xf]
      %s538 = scalar_lea.vmem %s2, 4
      %v539 = vld [vmem:[%s538] sm:$0x1]
      %v540 = vld [vmem:[%s538 + $0x1] sm:$0x1]
      %v541 = vld [vmem:[%s538 + $0x2] sm:$0x1]
      %v542 = vld [vmem:[%s538 + $0x3] sm:$0x1]
      %v547 = vperm.slane %v539, 0
      %v548 = vperm.slane %v540, 0
      %v549 = vperm.slane %v541, 0
      %v550 = vperm.slane %v542, 0
      %v559 = vunpack.c.l.b16 %v522
      %v560 = vunpack.c.l.b16 %v523
      %v561 = vunpack.c.l.b16 %v524
      %v562 = vunpack.c.l.b16 %v525
      %v563 = vpack.c.b16 %v560, %v559
      %v564 = vpack.c.b16 %v562, %v561
      %567 = vmatpush.bf16.msra.mxu0 0
      %568 = vmatpush.bf16.msra.mxu0 0
      %569 = vmatpush.bf16.msra.mxu0 0
      %570 = vmatpush.bf16.msra.mxu0 0
      %571 = vmatpush.bf16.msra.mxu0 0
      %572 = vmatpush.bf16.msra.mxu0 0
      %573 = vmatpush.bf16.msra.mxu0 %v564
      %574 = vmatpush.bf16.msra.mxu0 %v563
      %575 = vmatmul.bf16.gmra.mxu0 %v431
      %v576 = vpop.f32.mrf.mxu0
      %v577 = vadd.f32 %v547, %v576
      %v578 = vpop.f32.mrf.mxu0
      %579 = vdwg.mxu0
      %v584 = vunpack.c.l.b16 %v526
      %v585 = vunpack.c.l.b16 %v527
      %v586 = vunpack.c.l.b16 %v528
      %v587 = vunpack.c.l.b16 %v529
      %v588 = vpack.c.b16 %v585, %v584
      %v589 = vpack.c.b16 %v587, %v586
      %592 = vmatpush.bf16.msra.mxu0 0
      %593 = vmatpush.bf16.msra.mxu0 0
      %594 = vmatpush.bf16.msra.mxu0 0
      %595 = vmatpush.bf16.msra.mxu0 0
      %596 = vmatpush.bf16.msra.mxu0 0
      %597 = vmatpush.bf16.msra.mxu0 0
      %598 = vmatpush.bf16.msra.mxu0 %v589
      %599 = vmatpush.bf16.msra.mxu0 %v588
      %600 = vmatmul.bf16.gmra.mxu0 %v431
      %v601 = vpop.f32.mrf.mxu0
      %v602 = vadd.f32 %v548, %v601
      %v603 = vpop.f32.mrf.mxu0
      %604 = vdwg.mxu0
      %v609 = vunpack.c.l.b16 %v530
      %v610 = vunpack.c.l.b16 %v531
      %v611 = vunpack.c.l.b16 %v532
      %v612 = vunpack.c.l.b16 %v533
      %v613 = vpack.c.b16 %v610, %v609
      %v614 = vpack.c.b16 %v612, %v611
      %617 = vmatpush.bf16.msra.mxu0 0
      %618 = vmatpush.bf16.msra.mxu0 0
      %619 = vmatpush.bf16.msra.mxu0 0
      %620 = vmatpush.bf16.msra.mxu0 0
      %621 = vmatpush.bf16.msra.mxu0 0
      %622 = vmatpush.bf16.msra.mxu0 0
      %623 = vmatpush.bf16.msra.mxu0 %v614
      %624 = vmatpush.bf16.msra.mxu0 %v613
      %625 = vmatmul.bf16.gmra.mxu0 %v431
      %v626 = vpop.f32.mrf.mxu0
      %v627 = vadd.f32 %v549, %v626
      %v628 = vpop.f32.mrf.mxu0
      %629 = vdwg.mxu0
      %v634 = vunpack.c.l.b16 %v534
      %v635 = vunpack.c.l.b16 %v535
      %v636 = vunpack.c.l.b16 %v536
      %v637 = vunpack.c.l.b16 %v537
      %v638 = vpack.c.b16 %v635, %v634
      %v639 = vpack.c.b16 %v637, %v636
      %642 = vmatpush.bf16.msra.mxu0 0
      %643 = vmatpush.bf16.msra.mxu0 0
      %644 = vmatpush.bf16.msra.mxu0 0
      %645 = vmatpush.bf16.msra.mxu0 0
      %646 = vmatpush.bf16.msra.mxu0 0
      %647 = vmatpush.bf16.msra.mxu0 0
      %648 = vmatpush.bf16.msra.mxu0 %v639
      %649 = vmatpush.bf16.msra.mxu0 %v638
      %650 = vmatmul.bf16.gmra.mxu0 %v431
      %v651 = vpop.f32.mrf.mxu0
      %v652 = vadd.f32 %v550, %v651
      %v653 = vpop.f32.mrf.mxu0
      %654 = vdwg.mxu0
      %s655 = scalar_lea.vmem %s1, 128
      %v656 = vld [vmem:[%s655] sm:$0xf]
      %v657 = vld [vmem:[%s655 + $0x4] sm:$0xf]
      %v658 = vld [vmem:[%s655 + $0x8] sm:$0xf]
      %v659 = vld [vmem:[%s655 + $0xc] sm:$0xf]
      %v660 = vld [vmem:[%s655 + $0x10] sm:$0xf]
      %v661 = vld [vmem:[%s655 + $0x14] sm:$0xf]
      %v662 = vld [vmem:[%s655 + $0x18] sm:$0xf]
      %v663 = vld [vmem:[%s655 + $0x1c] sm:$0xf]
      %v664 = vld [vmem:[%s655 + $0x20] sm:$0xf]
      %v665 = vld [vmem:[%s655 + $0x24] sm:$0xf]
      %v666 = vld [vmem:[%s655 + $0x28] sm:$0xf]
      %v667 = vld [vmem:[%s655 + $0x2c] sm:$0xf]
      %v668 = vld [vmem:[%s655 + $0x30] sm:$0xf]
      %v669 = vld [vmem:[%s655 + $0x34] sm:$0xf]
      %v670 = vld [vmem:[%s655 + $0x38] sm:$0xf]
      %v671 = vld [vmem:[%s655 + $0x3c] sm:$0xf]
      %s672 = scalar_lea.vmem %s2, 8
      %v673 = vld [vmem:[%s672] sm:$0x1]
      %v674 = vld [vmem:[%s672 + $0x1] sm:$0x1]
      %v675 = vld [vmem:[%s672 + $0x2] sm:$0x1]
      %v676 = vld [vmem:[%s672 + $0x3] sm:$0x1]
      %v681 = vperm.slane %v673, 0
      %v682 = vperm.slane %v674, 0
      %v683 = vperm.slane %v675, 0
      %v684 = vperm.slane %v676, 0
      %v693 = vunpack.c.l.b16 %v656
      %v694 = vunpack.c.l.b16 %v657
      %v695 = vunpack.c.l.b16 %v658
      %v696 = vunpack.c.l.b16 %v659
      %v697 = vpack.c.b16 %v694, %v693
      %v698 = vpack.c.b16 %v696, %v695
      %701 = vmatpush.bf16.msra.mxu0 0
      %702 = vmatpush.bf16.msra.mxu0 0
      %703 = vmatpush.bf16.msra.mxu0 0
      %704 = vmatpush.bf16.msra.mxu0 0
      %705 = vmatpush.bf16.msra.mxu0 0
      %706 = vmatpush.bf16.msra.mxu0 0
      %707 = vmatpush.bf16.msra.mxu0 %v698
      %708 = vmatpush.bf16.msra.mxu0 %v697
      %709 = vmatmul.bf16.gmra.mxu0 %v431
      %v710 = vpop.f32.mrf.mxu0
      %v711 = vadd.f32 %v681, %v710
      %v712 = vpop.f32.mrf.mxu0
      %713 = vdwg.mxu0
      %v718 = vunpack.c.l.b16 %v660
      %v719 = vunpack.c.l.b16 %v661
      %v720 = vunpack.c.l.b16 %v662
      %v721 = vunpack.c.l.b16 %v663
      %v722 = vpack.c.b16 %v719, %v718
      %v723 = vpack.c.b16 %v721, %v720
      %726 = vmatpush.bf16.msra.mxu0 0
      %727 = vmatpush.bf16.msra.mxu0 0
      %728 = vmatpush.bf16.msra.mxu0 0
      %729 = vmatpush.bf16.msra.mxu0 0
      %730 = vmatpush.bf16.msra.mxu0 0
      %731 = vmatpush.bf16.msra.mxu0 0
      %732 = vmatpush.bf16.msra.mxu0 %v723
      %733 = vmatpush.bf16.msra.mxu0 %v722
      %734 = vmatmul.bf16.gmra.mxu0 %v431
      %v735 = vpop.f32.mrf.mxu0
      %v736 = vadd.f32 %v682, %v735
      %v737 = vpop.f32.mrf.mxu0
      %738 = vdwg.mxu0
      %v743 = vunpack.c.l.b16 %v664
      %v744 = vunpack.c.l.b16 %v665
      %v745 = vunpack.c.l.b16 %v666
      %v746 = vunpack.c.l.b16 %v667
      %v747 = vpack.c.b16 %v744, %v743
      %v748 = vpack.c.b16 %v746, %v745
      %751 = vmatpush.bf16.msra.mxu0 0
      %752 = vmatpush.bf16.msra.mxu0 0
      %753 = vmatpush.bf16.msra.mxu0 0
      %754 = vmatpush.bf16.msra.mxu0 0
      %755 = vmatpush.bf16.msra.mxu0 0
      %756 = vmatpush.bf16.msra.mxu0 0
      %757 = vmatpush.bf16.msra.mxu0 %v748
      %758 = vmatpush.bf16.msra.mxu0 %v747
      %759 = vmatmul.bf16.gmra.mxu0 %v431
      %v760 = vpop.f32.mrf.mxu0
      %v761 = vadd.f32 %v683, %v760
      %v762 = vpop.f32.mrf.mxu0
      %763 = vdwg.mxu0
      %v768 = vunpack.c.l.b16 %v668
      %v769 = vunpack.c.l.b16 %v669
      %v770 = vunpack.c.l.b16 %v670
      %v771 = vunpack.c.l.b16 %v671
      %v772 = vpack.c.b16 %v769, %v768
      %v773 = vpack.c.b16 %v771, %v770
      %776 = vmatpush.bf16.msra.mxu0 0
      %777 = vmatpush.bf16.msra.mxu0 0
      %778 = vmatpush.bf16.msra.mxu0 0
      %779 = vmatpush.bf16.msra.mxu0 0
      %780 = vmatpush.bf16.msra.mxu0 0
      %781 = vmatpush.bf16.msra.mxu0 0
      %782 = vmatpush.bf16.msra.mxu0 %v773
      %783 = vmatpush.bf16.msra.mxu0 %v772
      %784 = vmatmul.bf16.gmra.mxu0 %v431
      %v785 = vpop.f32.mrf.mxu0
      %v786 = vadd.f32 %v684, %v785
      %v787 = vpop.f32.mrf.mxu0
      %788 = vdwg.mxu0
      %vm789 = vcmask 64512
      %v791 = vsel %vm789, %v443, 0
      %v794 = vsel %vm789, %v577, 0
      %796 = vmatpush.xpose.msra.mxu0 0.0
      %797 = vmatpush.xpose.msra.mxu0 0.0
      %798 = vmatpush.xpose.msra.mxu0 0.0
      %799 = vmatpush.xpose.msra.mxu0 0.0
      %800 = vmatpush.xpose.msra.mxu0 0.0
      %801 = vmatpush.xpose.msra.mxu0 0.0
      %802 = vmatpush.xpose.msra.mxu0 0.0
      %803 = vmatpush.xpose.msra.mxu0 0.0
      %804 = vmatpush.xpose.msra.mxu0 0.0
      %805 = vmatpush.xpose.msra.mxu0 0.0
      %806 = vmatpush.xpose.msra.mxu0 0.0
      %807 = vmatpush.xpose.msra.mxu0 0.0
      %808 = vmatpush.xpose.msra.mxu0 0.0
      %809 = vmatpush.xpose.msra.mxu0 0.0
      %810 = vmatpush.xpose.msra.mxu0 0.0
      %811 = vmatpush.xpose.msra.mxu0 %v794
      %812 = vmatmul.f32.gmra.mxu0 %v791
      %v813 = vpop.f32.mrf.mxu0
      %v814 = vadd.f32 0.0, %v813
      %815 = vdwg.mxu0
      %v817 = vsel %vm789, %v468, 0
      %v820 = vsel %vm789, %v602, 0
      %822 = vmatpush.xpose.msra.mxu0 0.0
      %823 = vmatpush.xpose.msra.mxu0 0.0
      %824 = vmatpush.xpose.msra.mxu0 0.0
      %825 = vmatpush.xpose.msra.mxu0 0.0
      %826 = vmatpush.xpose.msra.mxu0 0.0
      %827 = vmatpush.xpose.msra.mxu0 0.0
      %828 = vmatpush.xpose.msra.mxu0 0.0
      %829 = vmatpush.xpose.msra.mxu0 0.0
      %830 = vmatpush.xpose.msra.mxu0 0.0
      %831 = vmatpush.xpose.msra.mxu0 0.0
      %832 = vmatpush.xpose.msra.mxu0 0.0
      %833 = vmatpush.xpose.msra.mxu0 0.0
      %834 = vmatpush.xpose.msra.mxu0 0.0
      %835 = vmatpush.xpose.msra.mxu0 0.0
      %836 = vmatpush.xpose.msra.mxu0 0.0
      %837 = vmatpush.xpose.msra.mxu0 %v820
      %838 = vmatmul.f32.gmra.mxu0 %v817
      %v839 = vpop.f32.mrf.mxu0
      %v840 = vadd.f32 0.0, %v839
      %841 = vdwg.mxu0
      %v843 = vsel %vm789, %v493, 0
      %v846 = vsel %vm789, %v627, 0
      %848 = vmatpush.xpose.msra.mxu0 0.0
      %849 = vmatpush.xpose.msra.mxu0 0.0
      %850 = vmatpush.xpose.msra.mxu0 0.0
      %851 = vmatpush.xpose.msra.mxu0 0.0
      %852 = vmatpush.xpose.msra.mxu0 0.0
      %853 = vmatpush.xpose.msra.mxu0 0.0
      %854 = vmatpush.xpose.msra.mxu0 0.0
      %855 = vmatpush.xpose.msra.mxu0 0.0
      %856 = vmatpush.xpose.msra.mxu0 0.0
      %857 = vmatpush.xpose.msra.mxu0 0.0
      %858 = vmatpush.xpose.msra.mxu0 0.0
      %859 = vmatpush.xpose.msra.mxu0 0.0
      %860 = vmatpush.xpose.msra.mxu0 0.0
      %861 = vmatpush.xpose.msra.mxu0 0.0
      %862 = vmatpush.xpose.msra.mxu0 0.0
      %863 = vmatpush.xpose.msra.mxu0 %v846
      %864 = vmatmul.f32.gmra.mxu0 %v843
      %v865 = vpop.f32.mrf.mxu0
      %v866 = vadd.f32 0.0, %v865
      %867 = vdwg.mxu0
      %v869 = vsel %vm789, %v518, 0
      %v872 = vsel %vm789, %v652, 0
      %874 = vmatpush.xpose.msra.mxu0 0.0
      %875 = vmatpush.xpose.msra.mxu0 0.0
      %876 = vmatpush.xpose.msra.mxu0 0.0
      %877 = vmatpush.xpose.msra.mxu0 0.0
      %878 = vmatpush.xpose.msra.mxu0 0.0
      %879 = vmatpush.xpose.msra.mxu0 0.0
      %880 = vmatpush.xpose.msra.mxu0 0.0
      %881 = vmatpush.xpose.msra.mxu0 0.0
      %882 = vmatpush.xpose.msra.mxu0 0.0
      %883 = vmatpush.xpose.msra.mxu0 0.0
      %884 = vmatpush.xpose.msra.mxu0 0.0
      %885 = vmatpush.xpose.msra.mxu0 0.0
      %886 = vmatpush.xpose.msra.mxu0 0.0
      %887 = vmatpush.xpose.msra.mxu0 0.0
      %888 = vmatpush.xpose.msra.mxu0 0.0
      %889 = vmatpush.xpose.msra.mxu0 %v872
      %890 = vmatmul.f32.gmra.mxu0 %v869
      %v891 = vpop.f32.mrf.mxu0
      %v892 = vadd.f32 0.0, %v891
      %893 = vdwg.mxu0
      %v894 = vmul.f32 %v814, 0.35355338
      %v895 = vmul.f32 %v840, 0.35355338
      %v896 = vmul.f32 %v866, 0.35355338
      %v897 = vmul.f32 %v892, 0.35355338
      %v898 = vsel %vm789, %v894, -inf
      %899 = vmax.xlane.f32.xlu0 %v898
      %v900 = vpop.xlane.xlu0 %899
      %v901 = vsel %vm789, %v895, -inf
      %902 = vmax.xlane.f32.xlu0 %v901
      %v903 = vpop.xlane.xlu0 %902
      %v904 = vsel %vm789, %v896, -inf
      %905 = vmax.xlane.f32.xlu0 %v904
      %v906 = vpop.xlane.xlu0 %905
      %v907 = vsel %vm789, %v897, -inf
      %908 = vmax.xlane.f32.xlu0 %v907
      %v909 = vpop.xlane.xlu0 %908
      %v910 = vsub.f32 %v894, %v900
      %v911 = vsub.f32 %v895, %v903
      %v912 = vsub.f32 %v896, %v906
      %v913 = vsub.f32 %v897, %v909
      %v914 = vmul.f32 %v910, 1.442695
      %v915 = vpow.pop %v914
      %v916 = vmul.f32 %v911, 1.442695
      %v917 = vpow.pop %v916
      %v918 = vmul.f32 %v912, 1.442695
      %v919 = vpow.pop %v918
      %v920 = vmul.f32 %v913, 1.442695
      %v921 = vpow.pop %v920
      %v922 = vsel %vm789, %v915, 0.0
      %923 = vadd.xlane.f32.xlu0 %v922
      %v924 = vpop.xlane.xlu0 %923
      %v925 = vsel %vm789, %v917, 0.0
      %926 = vadd.xlane.f32.xlu0 %v925
      %v927 = vpop.xlane.xlu0 %926
      %v928 = vsel %vm789, %v919, 0.0
      %929 = vadd.xlane.f32.xlu0 %v928
      %v930 = vpop.xlane.xlu0 %929
      %v931 = vsel %vm789, %v921, 0.0
      %932 = vadd.xlane.f32.xlu0 %v931
      %v933 = vpop.xlane.xlu0 %932
      %v934 = vrcp.pop %v924
      %v935 = vrcp.pop %v927
      %v936 = vrcp.pop %v930
      %v937 = vrcp.pop %v933
      %v938 = vmul.f32 %v915, %v934
      %v939 = vmul.f32 %v917, %v935
      %v940 = vmul.f32 %v919, %v936
      %v941 = vmul.f32 %v921, %v937
      %v943 = vsel %vm789, %v938, 0
      %945 = vmatpush.msra.mxu0 0.0
      %946 = vmatpush.msra.mxu0 0.0
      %947 = vmatpush.msra.mxu0 0.0
      %948 = vmatpush.msra.mxu0 0.0
      %949 = vmatpush.msra.mxu0 0.0
      %950 = vmatpush.msra.mxu0 0.0
      %951 = vmatpush.msra.mxu0 0.0
      %952 = vmatpush.msra.mxu0 0.0
      %953 = vmatpush.msra.mxu0 0.0
      %954 = vmatpush.msra.mxu0 0.0
      %955 = vmatpush.msra.mxu0 0.0
      %956 = vmatpush.msra.mxu0 0.0
      %957 = vmatpush.msra.mxu0 0.0
      %958 = vmatpush.msra.mxu0 0.0
      %959 = vmatpush.msra.mxu0 0.0
      %960 = vmatpush.msra.mxu0 %v711
      %961 = vmatmul.f32.gmra.mxu0 %v943
      %v962 = vpop.f32.mrf.mxu0
      %v963 = vadd.f32 0.0, %v962
      %964 = vdwg.mxu0
      %v966 = vsel %vm789, %v939, 0
      %968 = vmatpush.msra.mxu0 0.0
      %969 = vmatpush.msra.mxu0 0.0
      %970 = vmatpush.msra.mxu0 0.0
      %971 = vmatpush.msra.mxu0 0.0
      %972 = vmatpush.msra.mxu0 0.0
      %973 = vmatpush.msra.mxu0 0.0
      %974 = vmatpush.msra.mxu0 0.0
      %975 = vmatpush.msra.mxu0 0.0
      %976 = vmatpush.msra.mxu0 0.0
      %977 = vmatpush.msra.mxu0 0.0
      %978 = vmatpush.msra.mxu0 0.0
      %979 = vmatpush.msra.mxu0 0.0
      %980 = vmatpush.msra.mxu0 0.0
      %981 = vmatpush.msra.mxu0 0.0
      %982 = vmatpush.msra.mxu0 0.0
      %983 = vmatpush.msra.mxu0 %v736
      %984 = vmatmul.f32.gmra.mxu0 %v966
      %v985 = vpop.f32.mrf.mxu0
      %v986 = vadd.f32 0.0, %v985
      %987 = vdwg.mxu0
      %v989 = vsel %vm789, %v940, 0
      %991 = vmatpush.msra.mxu0 0.0
      %992 = vmatpush.msra.mxu0 0.0
      %993 = vmatpush.msra.mxu0 0.0
      %994 = vmatpush.msra.mxu0 0.0
      %995 = vmatpush.msra.mxu0 0.0
      %996 = vmatpush.msra.mxu0 0.0
      %997 = vmatpush.msra.mxu0 0.0
      %998 = vmatpush.msra.mxu0 0.0
      %999 = vmatpush.msra.mxu0 0.0
      %1000 = vmatpush.msra.mxu0 0.0
      %1001 = vmatpush.msra.mxu0 0.0
      %1002 = vmatpush.msra.mxu0 0.0
      %1003 = vmatpush.msra.mxu0 0.0
      %1004 = vmatpush.msra.mxu0 0.0
      %1005 = vmatpush.msra.mxu0 0.0
      %1006 = vmatpush.msra.mxu0 %v761
      %1007 = vmatmul.f32.gmra.mxu0 %v989
      %v1008 = vpop.f32.mrf.mxu0
      %v1009 = vadd.f32 0.0, %v1008
      %1010 = vdwg.mxu0
      %v1012 = vsel %vm789, %v941, 0
      %1014 = vmatpush.msra.mxu0 0.0
      %1015 = vmatpush.msra.mxu0 0.0
      %1016 = vmatpush.msra.mxu0 0.0
      %1017 = vmatpush.msra.mxu0 0.0
      %1018 = vmatpush.msra.mxu0 0.0
      %1019 = vmatpush.msra.mxu0 0.0
      %1020 = vmatpush.msra.mxu0 0.0
      %1021 = vmatpush.msra.mxu0 0.0
      %1022 = vmatpush.msra.mxu0 0.0
      %1023 = vmatpush.msra.mxu0 0.0
      %1024 = vmatpush.msra.mxu0 0.0
      %1025 = vmatpush.msra.mxu0 0.0
      %1026 = vmatpush.msra.mxu0 0.0
      %1027 = vmatpush.msra.mxu0 0.0
      %1028 = vmatpush.msra.mxu0 0.0
      %1029 = vmatpush.msra.mxu0 %v786
      %1030 = vmatmul.f32.gmra.mxu0 %v1012
      %v1031 = vpop.f32.mrf.mxu0
      %v1032 = vadd.f32 0.0, %v1031
      %1033 = vdwg.mxu0
      %v1034 = vpack.c.bf16 %v963, %v963
      %v1035 = vpack.c.bf16 %v986, %v986
      %v1036 = vpack.c.bf16 %v1009, %v1009
      %v1037 = vpack.c.bf16 %v1032, %v1032
      %v1038 = vld [vmem:[%s3] sm:$0xf]
      %v1039 = vld [vmem:[%s3 + $0x4] sm:$0xf]
      %v1040 = vld [vmem:[%s3 + $0x8] sm:$0xf]
      %v1041 = vld [vmem:[%s3 + $0xc] sm:$0xf]
      %v1043 = vsel %vm789, %v1034, 0
      %vm1045 = vcmask 1043456
      %v1047 = vsel %vm1045, %v1038, 0
      %1049 = vmatpush.bf16.msra.mxu0 0
      %1050 = vmatpush.bf16.msra.mxu0 0
      %1051 = vmatpush.bf16.msra.mxu0 0
      %1052 = vmatpush.bf16.msra.mxu0 0
      %1053 = vmatpush.bf16.msra.mxu0 0
      %1054 = vmatpush.bf16.msra.mxu0 0
      %1055 = vmatpush.bf16.msra.mxu0 0
      %1056 = vmatpush.bf16.msra.mxu0 %v1047
      %1057 = vmatmul.bf16.gmra.mxu0 %v1043
      %v1058 = vpop.f32.mrf.mxu0
      %v1059 = vadd.f32 0.0, %v1058
      %v1060 = vpop.f32.mrf.mxu0
      %1061 = vdwg.mxu0
      %v1063 = vsel %vm789, %v1035, 0
      %v1066 = vsel %vm1045, %v1039, 0
      %1068 = vmatpush.bf16.msra.mxu0 0
      %1069 = vmatpush.bf16.msra.mxu0 0
      %1070 = vmatpush.bf16.msra.mxu0 0
      %1071 = vmatpush.bf16.msra.mxu0 0
      %1072 = vmatpush.bf16.msra.mxu0 0
      %1073 = vmatpush.bf16.msra.mxu0 0
      %1074 = vmatpush.bf16.msra.mxu0 0
      %1075 = vmatpush.bf16.msra.mxu0 %v1066
      %1076 = vmatmul.bf16.gmra.mxu0 %v1063
      %v1077 = vpop.f32.mrf.mxu0
      %v1078 = vadd.f32 0.0, %v1077
      %v1079 = vpop.f32.mrf.mxu0
      %1080 = vdwg.mxu0
      %v1082 = vsel %vm789, %v1036, 0
      %v1085 = vsel %vm1045, %v1040, 0
      %1087 = vmatpush.bf16.msra.mxu0 0
      %1088 = vmatpush.bf16.msra.mxu0 0
      %1089 = vmatpush.bf16.msra.mxu0 0
      %1090 = vmatpush.bf16.msra.mxu0 0
      %1091 = vmatpush.bf16.msra.mxu0 0
      %1092 = vmatpush.bf16.msra.mxu0 0
      %1093 = vmatpush.bf16.msra.mxu0 0
      %1094 = vmatpush.bf16.msra.mxu0 %v1085
      %1095 = vmatmul.bf16.gmra.mxu0 %v1082
      %v1096 = vpop.f32.mrf.mxu0
      %v1097 = vadd.f32 0.0, %v1096
      %v1098 = vpop.f32.mrf.mxu0
      %1099 = vdwg.mxu0
      %v1101 = vsel %vm789, %v1037, 0
      %v1104 = vsel %vm1045, %v1041, 0
      %1106 = vmatpush.bf16.msra.mxu0 0
      %1107 = vmatpush.bf16.msra.mxu0 0
      %1108 = vmatpush.bf16.msra.mxu0 0
      %1109 = vmatpush.bf16.msra.mxu0 0
      %1110 = vmatpush.bf16.msra.mxu0 0
      %1111 = vmatpush.bf16.msra.mxu0 0
      %1112 = vmatpush.bf16.msra.mxu0 0
      %1113 = vmatpush.bf16.msra.mxu0 %v1104
      %1114 = vmatmul.bf16.gmra.mxu0 %v1101
      %v1115 = vpop.f32.mrf.mxu0
      %v1116 = vadd.f32 0.0, %v1115
      %v1117 = vpop.f32.mrf.mxu0
      %1118 = vdwg.mxu0
      %v1119 = vsel %vm429, %v1059, 0.0
      %v1120 = vsel %vm429, %v1078, 0.0
      %v1121 = vadd.f32 %v1119, %v1120
      %v1122 = vsel %vm429, %v1097, 0.0
      %v1123 = vadd.f32 %v1121, %v1122
      %v1124 = vsel %vm429, %v1116, 0.0
      %v1125 = vadd.f32 %v1123, %v1124
      %v1126 = vld [vmem:[%s4] sm:$0x1]
      %v1128 = vperm.slane %v1126, 0
      %v1130 = vadd.f32 %v1125, %v1128
      %v1131 = vadd.f32 %v383, %v1130
      %v1132 = vld [vmem:[%s9] sm:$0x1]
      %v1133 = vld [vmem:[%s10] sm:$0x1]
      %v1134 = vsel %vm429, %v1131, 0.0
      %1135 = vadd.xlane.f32.xlu0 %v1134
      %v1136 = vpop.xlane.xlu0 %1135
      %v1137 = vrcp.pop 32.0
      %v1138 = vmul.f32 32.0, %v1137
      %v1139 = vsub.f32 1.0, %v1138
      %v1140 = vmul.f32 %v1137, %v1139
      %v1141 = vadd.f32 %v1137, %v1140
      %vm1142 = vweird.f32 %v1137
      %v1143 = vsel %vm1142, %v1137, %v1141
      %v1144 = vmul.f32 %v1136, %v1143
      %v1145 = vsub.f32 %v1131, %v1144
      %v1146 = vmul.f32 %v1145, %v1145
      %v1147 = vsel %vm429, %v1146, 0.0
      %1148 = vadd.xlane.f32.xlu0 %v1147
      %v1149 = vpop.xlane.xlu0 %1148
      %v1150 = vmul.f32 %v1149, %v1143
      %v1151 = vadd.f32 %v1150, 1e-05
      %v1152 = vrsqrt.pop %v1151
      %v1153 = vmul.f32 %v1152, %v1151
      %v1154 = vmul.f32 %v1153, %v1152
      %v1155 = vmul.f32 0.5, %v1154
      %v1156 = vsub.f32 1.5, %v1155
      %v1157 = vmul.f32 %v1152, %v1156
      %vm1158 = vweird.f32 %v1151
      %vm1159 = vweird.f32 %v1152
      %vm1160 = vmor %vm1158, %vm1159
      %v1161 = vsel %vm1160, %v1152, %v1157
      %v1162 = vmul.f32 %v1145, %v1161
      %v1164 = vperm.slane %v1132, 0
      %v1166 = vmul.f32 %v1162, %v1164
      %v1168 = vperm.slane %v1133, 0
      %v1170 = vadd.f32 %v1166, %v1168
      %v1171 = vpack.c.bf16 %v1170, %v1170
      %v1172 = vld [vmem:[%s5] sm:$0xff]
      %v1173 = vld [vmem:[%s5 + $0x8] sm:$0xff]
      %v1174 = vld [vmem:[%s5 + $0x10] sm:$0xff]
      %v1175 = vld [vmem:[%s5 + $0x18] sm:$0xff]
      %v1176 = vld [vmem:[%s5 + $0x20] sm:$0xff]
      %v1177 = vld [vmem:[%s5 + $0x28] sm:$0xff]
      %v1178 = vld [vmem:[%s5 + $0x30] sm:$0xff]
      %v1179 = vld [vmem:[%s5 + $0x38] sm:$0xff]
      %v1180 = vld [vmem:[%s5 + $0x40] sm:$0xff]
      %v1181 = vld [vmem:[%s5 + $0x48] sm:$0xff]
      %v1182 = vld [vmem:[%s5 + $0x50] sm:$0xff]
      %v1183 = vld [vmem:[%s5 + $0x58] sm:$0xff]
      %v1184 = vld [vmem:[%s5 + $0x60] sm:$0xff]
      %v1185 = vld [vmem:[%s5 + $0x68] sm:$0xff]
      %v1186 = vld [vmem:[%s5 + $0x70] sm:$0xff]
      %v1187 = vld [vmem:[%s5 + $0x78] sm:$0xff]
      %v1188 = vld [vmem:[%s5 + $0x80] sm:$0xff]
      %v1189 = vld [vmem:[%s5 + $0x88] sm:$0xff]
      %v1190 = vld [vmem:[%s5 + $0x90] sm:$0xff]
      %v1191 = vld [vmem:[%s5 + $0x98] sm:$0xff]
      %v1192 = vld [vmem:[%s5 + $0xa0] sm:$0xff]
      %v1193 = vld [vmem:[%s5 + $0xa8] sm:$0xff]
      %v1194 = vld [vmem:[%s5 + $0xb0] sm:$0xff]
      %v1195 = vld [vmem:[%s5 + $0xb8] sm:$0xff]
      %v1196 = vld [vmem:[%s5 + $0xc0] sm:$0xff]
      %v1197 = vld [vmem:[%s5 + $0xc8] sm:$0xff]
      %v1198 = vld [vmem:[%s5 + $0xd0] sm:$0xff]
      %v1199 = vld [vmem:[%s5 + $0xd8] sm:$0xff]
      %v1200 = vld [vmem:[%s5 + $0xe0] sm:$0xff]
      %v1201 = vld [vmem:[%s5 + $0xe8] sm:$0xff]
      %v1202 = vld [vmem:[%s5 + $0xf0] sm:$0xff]
      %v1203 = vld [vmem:[%s5 + $0xf8] sm:$0xff]
      %v1204 = vld [vmem:[%s6] sm:$0xff]
      %v1205 = vld [vmem:[%s6 + $0x8] sm:$0xff]
      %v1208 = vperm.slane %v1204, 0
      %v1209 = vperm.slane %v1204, 1
      %v1210 = vperm.slane %v1204, 2
      %v1211 = vperm.slane %v1204, 3
      %v1212 = vperm.slane %v1204, 4
      %v1213 = vperm.slane %v1204, 5
      %v1214 = vperm.slane %v1204, 6
      %v1215 = vperm.slane %v1204, 7
      %v1216 = vperm.slane %v1205, 0
      %v1217 = vperm.slane %v1205, 1
      %v1218 = vperm.slane %v1205, 2
      %v1219 = vperm.slane %v1205, 3
      %v1220 = vperm.slane %v1205, 4
      %v1221 = vperm.slane %v1205, 5
      %v1222 = vperm.slane %v1205, 6
      %v1223 = vperm.slane %v1205, 7
      %v1272 = vunpack.c.l.b16 %v1172
      %v1273 = vunpack.c.h.b16 %v1172
      %v1274 = vunpack.c.l.b16 %v1173
      %v1275 = vunpack.c.h.b16 %v1173
      %v1276 = vunpack.c.l.b16 %v1174
      %v1277 = vunpack.c.h.b16 %v1174
      %v1278 = vunpack.c.l.b16 %v1175
      %v1279 = vunpack.c.h.b16 %v1175
      %v1280 = vunpack.c.l.b16 %v1176
      %v1281 = vunpack.c.h.b16 %v1176
      %v1282 = vunpack.c.l.b16 %v1177
      %v1283 = vunpack.c.h.b16 %v1177
      %v1284 = vunpack.c.l.b16 %v1178
      %v1285 = vunpack.c.h.b16 %v1178
      %v1286 = vunpack.c.l.b16 %v1179
      %v1287 = vunpack.c.h.b16 %v1179
      %v1288 = vunpack.c.l.b16 %v1180
      %v1289 = vunpack.c.h.b16 %v1180
      %v1290 = vunpack.c.l.b16 %v1181
      %v1291 = vunpack.c.h.b16 %v1181
      %v1292 = vunpack.c.l.b16 %v1182
      %v1293 = vunpack.c.h.b16 %v1182
      %v1294 = vunpack.c.l.b16 %v1183
      %v1295 = vunpack.c.h.b16 %v1183
      %v1296 = vunpack.c.l.b16 %v1184
      %v1297 = vunpack.c.h.b16 %v1184
      %v1298 = vunpack.c.l.b16 %v1185
      %v1299 = vunpack.c.h.b16 %v1185
      %v1300 = vunpack.c.l.b16 %v1186
      %v1301 = vunpack.c.h.b16 %v1186
      %v1302 = vunpack.c.l.b16 %v1187
      %v1303 = vunpack.c.h.b16 %v1187
      %v1304 = vunpack.c.l.b16 %v1188
      %v1305 = vunpack.c.h.b16 %v1188
      %v1306 = vunpack.c.l.b16 %v1189
      %v1307 = vunpack.c.h.b16 %v1189
      %v1308 = vunpack.c.l.b16 %v1190
      %v1309 = vunpack.c.h.b16 %v1190
      %v1310 = vunpack.c.l.b16 %v1191
      %v1311 = vunpack.c.h.b16 %v1191
      %v1312 = vunpack.c.l.b16 %v1192
      %v1313 = vunpack.c.h.b16 %v1192
      %v1314 = vunpack.c.l.b16 %v1193
      %v1315 = vunpack.c.h.b16 %v1193
      %v1316 = vunpack.c.l.b16 %v1194
      %v1317 = vunpack.c.h.b16 %v1194
      %v1318 = vunpack.c.l.b16 %v1195
      %v1319 = vunpack.c.h.b16 %v1195
      %v1320 = vunpack.c.l.b16 %v1196
      %v1321 = vunpack.c.h.b16 %v1196
      %v1322 = vunpack.c.l.b16 %v1197
      %v1323 = vunpack.c.h.b16 %v1197
      %v1324 = vunpack.c.l.b16 %v1198
      %v1325 = vunpack.c.h.b16 %v1198
      %v1326 = vunpack.c.l.b16 %v1199
      %v1327 = vunpack.c.h.b16 %v1199
      %v1328 = vunpack.c.l.b16 %v1200
      %v1329 = vunpack.c.h.b16 %v1200
      %v1330 = vunpack.c.l.b16 %v1201
      %v1331 = vunpack.c.h.b16 %v1201
      %v1332 = vunpack.c.l.b16 %v1202
      %v1333 = vunpack.c.h.b16 %v1202
      %v1334 = vunpack.c.l.b16 %v1203
      %v1335 = vunpack.c.h.b16 %v1203
      %v1336 = vpack.c.b16 %v1288, %v1272
      %v1337 = vpack.c.b16 %v1289, %v1273
      %v1338 = vpack.c.b16 %v1290, %v1274
      %v1339 = vpack.c.b16 %v1291, %v1275
      %v1340 = vpack.c.b16 %v1292, %v1276
      %v1341 = vpack.c.b16 %v1293, %v1277
      %v1342 = vpack.c.b16 %v1294, %v1278
      %v1343 = vpack.c.b16 %v1295, %v1279
      %v1344 = vpack.c.b16 %v1296, %v1280
      %v1345 = vpack.c.b16 %v1297, %v1281
      %v1346 = vpack.c.b16 %v1298, %v1282
      %v1347 = vpack.c.b16 %v1299, %v1283
      %v1348 = vpack.c.b16 %v1300, %v1284
      %v1349 = vpack.c.b16 %v1301, %v1285
      %v1350 = vpack.c.b16 %v1302, %v1286
      %v1351 = vpack.c.b16 %v1303, %v1287
      %v1352 = vpack.c.b16 %v1320, %v1304
      %v1353 = vpack.c.b16 %v1321, %v1305
      %v1354 = vpack.c.b16 %v1322, %v1306
      %v1355 = vpack.c.b16 %v1323, %v1307
      %v1356 = vpack.c.b16 %v1324, %v1308
      %v1357 = vpack.c.b16 %v1325, %v1309
      %v1358 = vpack.c.b16 %v1326, %v1310
      %v1359 = vpack.c.b16 %v1327, %v1311
      %v1360 = vpack.c.b16 %v1328, %v1312
      %v1361 = vpack.c.b16 %v1329, %v1313
      %v1362 = vpack.c.b16 %v1330, %v1314
      %v1363 = vpack.c.b16 %v1331, %v1315
      %v1364 = vpack.c.b16 %v1332, %v1316
      %v1365 = vpack.c.b16 %v1333, %v1317
      %v1366 = vpack.c.b16 %v1334, %v1318
      %v1367 = vpack.c.b16 %v1335, %v1319
      %v1401 = vsel %vm429, %v1171, 0
      %1403 = vmatpush.bf16.msra.mxu0 0
      %1404 = vmatpush.bf16.msra.mxu0 0
      %1405 = vmatpush.bf16.msra.mxu0 0
      %1406 = vmatpush.bf16.msra.mxu0 0
      %1407 = vmatpush.bf16.msra.mxu0 0
      %1408 = vmatpush.bf16.msra.mxu0 0
      %1409 = vmatpush.bf16.msra.mxu0 %v1352
      %1410 = vmatpush.bf16.msra.mxu0 %v1336
      %1411 = vmatmul.bf16.gmra.mxu0 %v1401
      %v1412 = vpop.f32.mrf.mxu0
      %v1413 = vadd.f32 %v1208, %v1412
      %v1414 = vpop.f32.mrf.mxu0
      %1415 = vdwg.mxu0
      %1416 = vmatpush.bf16.msra.mxu0 0
      %1417 = vmatpush.bf16.msra.mxu0 0
      %1418 = vmatpush.bf16.msra.mxu0 0
      %1419 = vmatpush.bf16.msra.mxu0 0
      %1420 = vmatpush.bf16.msra.mxu0 0
      %1421 = vmatpush.bf16.msra.mxu0 0
      %1422 = vmatpush.bf16.msra.mxu0 %v1353
      %1423 = vmatpush.bf16.msra.mxu0 %v1337
      %1424 = vmatmul.bf16.gmra.mxu0 %v1401
      %v1425 = vpop.f32.mrf.mxu0
      %v1426 = vadd.f32 %v1209, %v1425
      %v1427 = vpop.f32.mrf.mxu0
      %1428 = vdwg.mxu0
      %1429 = vmatpush.bf16.msra.mxu0 0
      %1430 = vmatpush.bf16.msra.mxu0 0
      %1431 = vmatpush.bf16.msra.mxu0 0
      %1432 = vmatpush.bf16.msra.mxu0 0
      %1433 = vmatpush.bf16.msra.mxu0 0
      %1434 = vmatpush.bf16.msra.mxu0 0
      %1435 = vmatpush.bf16.msra.mxu0 %v1354
      %1436 = vmatpush.bf16.msra.mxu0 %v1338
      %1437 = vmatmul.bf16.gmra.mxu0 %v1401
      %v1438 = vpop.f32.mrf.mxu0
      %v1439 = vadd.f32 %v1210, %v1438
      %v1440 = vpop.f32.mrf.mxu0
      %1441 = vdwg.mxu0
      %1442 = vmatpush.bf16.msra.mxu0 0
      %1443 = vmatpush.bf16.msra.mxu0 0
      %1444 = vmatpush.bf16.msra.mxu0 0
      %1445 = vmatpush.bf16.msra.mxu0 0
      %1446 = vmatpush.bf16.msra.mxu0 0
      %1447 = vmatpush.bf16.msra.mxu0 0
      %1448 = vmatpush.bf16.msra.mxu0 %v1355
      %1449 = vmatpush.bf16.msra.mxu0 %v1339
      %1450 = vmatmul.bf16.gmra.mxu0 %v1401
      %v1451 = vpop.f32.mrf.mxu0
      %v1452 = vadd.f32 %v1211, %v1451
      %v1453 = vpop.f32.mrf.mxu0
      %1454 = vdwg.mxu0
      %1455 = vmatpush.bf16.msra.mxu0 0
      %1456 = vmatpush.bf16.msra.mxu0 0
      %1457 = vmatpush.bf16.msra.mxu0 0
      %1458 = vmatpush.bf16.msra.mxu0 0
      %1459 = vmatpush.bf16.msra.mxu0 0
      %1460 = vmatpush.bf16.msra.mxu0 0
      %1461 = vmatpush.bf16.msra.mxu0 %v1356
      %1462 = vmatpush.bf16.msra.mxu0 %v1340
      %1463 = vmatmul.bf16.gmra.mxu0 %v1401
      %v1464 = vpop.f32.mrf.mxu0
      %v1465 = vadd.f32 %v1212, %v1464
      %v1466 = vpop.f32.mrf.mxu0
      %1467 = vdwg.mxu0
      %1468 = vmatpush.bf16.msra.mxu0 0
      %1469 = vmatpush.bf16.msra.mxu0 0
      %1470 = vmatpush.bf16.msra.mxu0 0
      %1471 = vmatpush.bf16.msra.mxu0 0
      %1472 = vmatpush.bf16.msra.mxu0 0
      %1473 = vmatpush.bf16.msra.mxu0 0
      %1474 = vmatpush.bf16.msra.mxu0 %v1357
      %1475 = vmatpush.bf16.msra.mxu0 %v1341
      %1476 = vmatmul.bf16.gmra.mxu0 %v1401
      %v1477 = vpop.f32.mrf.mxu0
      %v1478 = vadd.f32 %v1213, %v1477
      %v1479 = vpop.f32.mrf.mxu0
      %1480 = vdwg.mxu0
      %1481 = vmatpush.bf16.msra.mxu0 0
      %1482 = vmatpush.bf16.msra.mxu0 0
      %1483 = vmatpush.bf16.msra.mxu0 0
      %1484 = vmatpush.bf16.msra.mxu0 0
      %1485 = vmatpush.bf16.msra.mxu0 0
      %1486 = vmatpush.bf16.msra.mxu0 0
      %1487 = vmatpush.bf16.msra.mxu0 %v1358
      %1488 = vmatpush.bf16.msra.mxu0 %v1342
      %1489 = vmatmul.bf16.gmra.mxu0 %v1401
      %v1490 = vpop.f32.mrf.mxu0
      %v1491 = vadd.f32 %v1214, %v1490
      %v1492 = vpop.f32.mrf.mxu0
      %1493 = vdwg.mxu0
      %1494 = vmatpush.bf16.msra.mxu0 0
      %1495 = vmatpush.bf16.msra.mxu0 0
      %1496 = vmatpush.bf16.msra.mxu0 0
      %1497 = vmatpush.bf16.msra.mxu0 0
      %1498 = vmatpush.bf16.msra.mxu0 0
      %1499 = vmatpush.bf16.msra.mxu0 0
      %1500 = vmatpush.bf16.msra.mxu0 %v1359
      %1501 = vmatpush.bf16.msra.mxu0 %v1343
      %1502 = vmatmul.bf16.gmra.mxu0 %v1401
      %v1503 = vpop.f32.mrf.mxu0
      %v1504 = vadd.f32 %v1215, %v1503
      %v1505 = vpop.f32.mrf.mxu0
      %1506 = vdwg.mxu0
      %1507 = vmatpush.bf16.msra.mxu0 0
      %1508 = vmatpush.bf16.msra.mxu0 0
      %1509 = vmatpush.bf16.msra.mxu0 0
      %1510 = vmatpush.bf16.msra.mxu0 0
      %1511 = vmatpush.bf16.msra.mxu0 0
      %1512 = vmatpush.bf16.msra.mxu0 0
      %1513 = vmatpush.bf16.msra.mxu0 %v1360
      %1514 = vmatpush.bf16.msra.mxu0 %v1344
      %1515 = vmatmul.bf16.gmra.mxu0 %v1401
      %v1516 = vpop.f32.mrf.mxu0
      %v1517 = vadd.f32 %v1216, %v1516
      %v1518 = vpop.f32.mrf.mxu0
      %1519 = vdwg.mxu0
      %1520 = vmatpush.bf16.msra.mxu0 0
      %1521 = vmatpush.bf16.msra.mxu0 0
      %1522 = vmatpush.bf16.msra.mxu0 0
      %1523 = vmatpush.bf16.msra.mxu0 0
      %1524 = vmatpush.bf16.msra.mxu0 0
      %1525 = vmatpush.bf16.msra.mxu0 0
      %1526 = vmatpush.bf16.msra.mxu0 %v1361
      %1527 = vmatpush.bf16.msra.mxu0 %v1345
      %1528 = vmatmul.bf16.gmra.mxu0 %v1401
      %v1529 = vpop.f32.mrf.mxu0
      %v1530 = vadd.f32 %v1217, %v1529
      %v1531 = vpop.f32.mrf.mxu0
      %1532 = vdwg.mxu0
      %1533 = vmatpush.bf16.msra.mxu0 0
      %1534 = vmatpush.bf16.msra.mxu0 0
      %1535 = vmatpush.bf16.msra.mxu0 0
      %1536 = vmatpush.bf16.msra.mxu0 0
      %1537 = vmatpush.bf16.msra.mxu0 0
      %1538 = vmatpush.bf16.msra.mxu0 0
      %1539 = vmatpush.bf16.msra.mxu0 %v1362
      %1540 = vmatpush.bf16.msra.mxu0 %v1346
      %1541 = vmatmul.bf16.gmra.mxu0 %v1401
      %v1542 = vpop.f32.mrf.mxu0
      %v1543 = vadd.f32 %v1218, %v1542
      %v1544 = vpop.f32.mrf.mxu0
      %1545 = vdwg.mxu0
      %1546 = vmatpush.bf16.msra.mxu0 0
      %1547 = vmatpush.bf16.msra.mxu0 0
      %1548 = vmatpush.bf16.msra.mxu0 0
      %1549 = vmatpush.bf16.msra.mxu0 0
      %1550 = vmatpush.bf16.msra.mxu0 0
      %1551 = vmatpush.bf16.msra.mxu0 0
      %1552 = vmatpush.bf16.msra.mxu0 %v1363
      %1553 = vmatpush.bf16.msra.mxu0 %v1347
      %1554 = vmatmul.bf16.gmra.mxu0 %v1401
      %v1555 = vpop.f32.mrf.mxu0
      %v1556 = vadd.f32 %v1219, %v1555
      %v1557 = vpop.f32.mrf.mxu0
      %1558 = vdwg.mxu0
      %1559 = vmatpush.bf16.msra.mxu0 0
      %1560 = vmatpush.bf16.msra.mxu0 0
      %1561 = vmatpush.bf16.msra.mxu0 0
      %1562 = vmatpush.bf16.msra.mxu0 0
      %1563 = vmatpush.bf16.msra.mxu0 0
      %1564 = vmatpush.bf16.msra.mxu0 0
      %1565 = vmatpush.bf16.msra.mxu0 %v1364
      %1566 = vmatpush.bf16.msra.mxu0 %v1348
      %1567 = vmatmul.bf16.gmra.mxu0 %v1401
      %v1568 = vpop.f32.mrf.mxu0
      %v1569 = vadd.f32 %v1220, %v1568
      %v1570 = vpop.f32.mrf.mxu0
      %1571 = vdwg.mxu0
      %1572 = vmatpush.bf16.msra.mxu0 0
      %1573 = vmatpush.bf16.msra.mxu0 0
      %1574 = vmatpush.bf16.msra.mxu0 0
      %1575 = vmatpush.bf16.msra.mxu0 0
      %1576 = vmatpush.bf16.msra.mxu0 0
      %1577 = vmatpush.bf16.msra.mxu0 0
      %1578 = vmatpush.bf16.msra.mxu0 %v1365
      %1579 = vmatpush.bf16.msra.mxu0 %v1349
      %1580 = vmatmul.bf16.gmra.mxu0 %v1401
      %v1581 = vpop.f32.mrf.mxu0
      %v1582 = vadd.f32 %v1221, %v1581
      %v1583 = vpop.f32.mrf.mxu0
      %1584 = vdwg.mxu0
      %1585 = vmatpush.bf16.msra.mxu0 0
      %1586 = vmatpush.bf16.msra.mxu0 0
      %1587 = vmatpush.bf16.msra.mxu0 0
      %1588 = vmatpush.bf16.msra.mxu0 0
      %1589 = vmatpush.bf16.msra.mxu0 0
      %1590 = vmatpush.bf16.msra.mxu0 0
      %1591 = vmatpush.bf16.msra.mxu0 %v1366
      %1592 = vmatpush.bf16.msra.mxu0 %v1350
      %1593 = vmatmul.bf16.gmra.mxu0 %v1401
      %v1594 = vpop.f32.mrf.mxu0
      %v1595 = vadd.f32 %v1222, %v1594
      %v1596 = vpop.f32.mrf.mxu0
      %1597 = vdwg.mxu0
      %1598 = vmatpush.bf16.msra.mxu0 0
      %1599 = vmatpush.bf16.msra.mxu0 0
      %1600 = vmatpush.bf16.msra.mxu0 0
      %1601 = vmatpush.bf16.msra.mxu0 0
      %1602 = vmatpush.bf16.msra.mxu0 0
      %1603 = vmatpush.bf16.msra.mxu0 0
      %1604 = vmatpush.bf16.msra.mxu0 %v1367
      %1605 = vmatpush.bf16.msra.mxu0 %v1351
      %1606 = vmatmul.bf16.gmra.mxu0 %v1401
      %v1607 = vpop.f32.mrf.mxu0
      %v1608 = vadd.f32 %v1223, %v1607
      %v1609 = vpop.f32.mrf.mxu0
      %1610 = vdwg.mxu0
      %v1611 = vmax.f32 %v1413, 0.0
      %v1612 = vmax.f32 %v1426, 0.0
      %v1613 = vmax.f32 %v1439, 0.0
      %v1614 = vmax.f32 %v1452, 0.0
      %v1615 = vmax.f32 %v1465, 0.0
      %v1616 = vmax.f32 %v1478, 0.0
      %v1617 = vmax.f32 %v1491, 0.0
      %v1618 = vmax.f32 %v1504, 0.0
      %v1619 = vmax.f32 %v1517, 0.0
      %v1620 = vmax.f32 %v1530, 0.0
      %v1621 = vmax.f32 %v1543, 0.0
      %v1622 = vmax.f32 %v1556, 0.0
      %v1623 = vmax.f32 %v1569, 0.0
      %v1624 = vmax.f32 %v1582, 0.0
      %v1625 = vmax.f32 %v1595, 0.0
      %v1626 = vmax.f32 %v1608, 0.0
      %v1627 = vpack.c.bf16 %v1611, %v1611
      %v1628 = vpack.c.bf16 %v1612, %v1612
      %v1629 = vpack.c.bf16 %v1613, %v1613
      %v1630 = vpack.c.bf16 %v1614, %v1614
      %v1631 = vpack.c.bf16 %v1615, %v1615
      %v1632 = vpack.c.bf16 %v1616, %v1616
      %v1633 = vpack.c.bf16 %v1617, %v1617
      %v1634 = vpack.c.bf16 %v1618, %v1618
      %v1635 = vpack.c.bf16 %v1619, %v1619
      %v1636 = vpack.c.bf16 %v1620, %v1620
      %v1637 = vpack.c.bf16 %v1621, %v1621
      %v1638 = vpack.c.bf16 %v1622, %v1622
      %v1639 = vpack.c.bf16 %v1623, %v1623
      %v1640 = vpack.c.bf16 %v1624, %v1624
      %v1641 = vpack.c.bf16 %v1625, %v1625
      %v1642 = vpack.c.bf16 %v1626, %v1626
      %v1643 = vld [vmem:[%s7] sm:$0xf]
      %v1644 = vld [vmem:[%s7 + $0x4] sm:$0xf]
      %v1645 = vld [vmem:[%s7 + $0x8] sm:$0xf]
      %v1646 = vld [vmem:[%s7 + $0xc] sm:$0xf]
      %v1647 = vld [vmem:[%s7 + $0x10] sm:$0xf]
      %v1648 = vld [vmem:[%s7 + $0x14] sm:$0xf]
      %v1649 = vld [vmem:[%s7 + $0x18] sm:$0xf]
      %v1650 = vld [vmem:[%s7 + $0x1c] sm:$0xf]
      %v1651 = vld [vmem:[%s7 + $0x20] sm:$0xf]
      %v1652 = vld [vmem:[%s7 + $0x24] sm:$0xf]
      %v1653 = vld [vmem:[%s7 + $0x28] sm:$0xf]
      %v1654 = vld [vmem:[%s7 + $0x2c] sm:$0xf]
      %v1655 = vld [vmem:[%s7 + $0x30] sm:$0xf]
      %v1656 = vld [vmem:[%s7 + $0x34] sm:$0xf]
      %v1657 = vld [vmem:[%s7 + $0x38] sm:$0xf]
      %v1658 = vld [vmem:[%s7 + $0x3c] sm:$0xf]
      %v1659 = vld [vmem:[%s7 + $0x40] sm:$0xf]
      %v1660 = vld [vmem:[%s7 + $0x44] sm:$0xf]
      %v1661 = vld [vmem:[%s7 + $0x48] sm:$0xf]
      %v1662 = vld [vmem:[%s7 + $0x4c] sm:$0xf]
      %v1663 = vld [vmem:[%s7 + $0x50] sm:$0xf]
      %v1664 = vld [vmem:[%s7 + $0x54] sm:$0xf]
      %v1665 = vld [vmem:[%s7 + $0x58] sm:$0xf]
      %v1666 = vld [vmem:[%s7 + $0x5c] sm:$0xf]
      %v1667 = vld [vmem:[%s7 + $0x60] sm:$0xf]
      %v1668 = vld [vmem:[%s7 + $0x64] sm:$0xf]
      %v1669 = vld [vmem:[%s7 + $0x68] sm:$0xf]
      %v1670 = vld [vmem:[%s7 + $0x6c] sm:$0xf]
      %v1671 = vld [vmem:[%s7 + $0x70] sm:$0xf]
      %v1672 = vld [vmem:[%s7 + $0x74] sm:$0xf]
      %v1673 = vld [vmem:[%s7 + $0x78] sm:$0xf]
      %v1674 = vld [vmem:[%s7 + $0x7c] sm:$0xf]
      %v1675 = vld [vmem:[%s7 + $0x80] sm:$0xf]
      %v1676 = vld [vmem:[%s7 + $0x84] sm:$0xf]
      %v1677 = vld [vmem:[%s7 + $0x88] sm:$0xf]
      %v1678 = vld [vmem:[%s7 + $0x8c] sm:$0xf]
      %v1679 = vld [vmem:[%s7 + $0x90] sm:$0xf]
      %v1680 = vld [vmem:[%s7 + $0x94] sm:$0xf]
      %v1681 = vld [vmem:[%s7 + $0x98] sm:$0xf]
      %v1682 = vld [vmem:[%s7 + $0x9c] sm:$0xf]
      %v1683 = vld [vmem:[%s7 + $0xa0] sm:$0xf]
      %v1684 = vld [vmem:[%s7 + $0xa4] sm:$0xf]
      %v1685 = vld [vmem:[%s7 + $0xa8] sm:$0xf]
      %v1686 = vld [vmem:[%s7 + $0xac] sm:$0xf]
      %v1687 = vld [vmem:[%s7 + $0xb0] sm:$0xf]
      %v1688 = vld [vmem:[%s7 + $0xb4] sm:$0xf]
      %v1689 = vld [vmem:[%s7 + $0xb8] sm:$0xf]
      %v1690 = vld [vmem:[%s7 + $0xbc] sm:$0xf]
      %v1691 = vld [vmem:[%s7 + $0xc0] sm:$0xf]
      %v1692 = vld [vmem:[%s7 + $0xc4] sm:$0xf]
      %v1693 = vld [vmem:[%s7 + $0xc8] sm:$0xf]
      %v1694 = vld [vmem:[%s7 + $0xcc] sm:$0xf]
      %v1695 = vld [vmem:[%s7 + $0xd0] sm:$0xf]
      %v1696 = vld [vmem:[%s7 + $0xd4] sm:$0xf]
      %v1697 = vld [vmem:[%s7 + $0xd8] sm:$0xf]
      %v1698 = vld [vmem:[%s7 + $0xdc] sm:$0xf]
      %v1699 = vld [vmem:[%s7 + $0xe0] sm:$0xf]
      %v1700 = vld [vmem:[%s7 + $0xe4] sm:$0xf]
      %v1701 = vld [vmem:[%s7 + $0xe8] sm:$0xf]
      %v1702 = vld [vmem:[%s7 + $0xec] sm:$0xf]
      %v1703 = vld [vmem:[%s7 + $0xf0] sm:$0xf]
      %v1704 = vld [vmem:[%s7 + $0xf4] sm:$0xf]
      %v1705 = vld [vmem:[%s7 + $0xf8] sm:$0xf]
      %v1706 = vld [vmem:[%s7 + $0xfc] sm:$0xf]
      %v1707 = vld [vmem:[%s7 + $0x100] sm:$0xf]
      %v1708 = vld [vmem:[%s7 + $0x104] sm:$0xf]
      %v1709 = vld [vmem:[%s7 + $0x108] sm:$0xf]
      %v1710 = vld [vmem:[%s7 + $0x10c] sm:$0xf]
      %v1711 = vld [vmem:[%s7 + $0x110] sm:$0xf]
      %v1712 = vld [vmem:[%s7 + $0x114] sm:$0xf]
      %v1713 = vld [vmem:[%s7 + $0x118] sm:$0xf]
      %v1714 = vld [vmem:[%s7 + $0x11c] sm:$0xf]
      %v1715 = vld [vmem:[%s7 + $0x120] sm:$0xf]
      %v1716 = vld [vmem:[%s7 + $0x124] sm:$0xf]
      %v1717 = vld [vmem:[%s7 + $0x128] sm:$0xf]
      %v1718 = vld [vmem:[%s7 + $0x12c] sm:$0xf]
      %v1719 = vld [vmem:[%s7 + $0x130] sm:$0xf]
      %v1720 = vld [vmem:[%s7 + $0x134] sm:$0xf]
      %v1721 = vld [vmem:[%s7 + $0x138] sm:$0xf]
      %v1722 = vld [vmem:[%s7 + $0x13c] sm:$0xf]
      %v1723 = vld [vmem:[%s7 + $0x140] sm:$0xf]
      %v1724 = vld [vmem:[%s7 + $0x144] sm:$0xf]
      %v1725 = vld [vmem:[%s7 + $0x148] sm:$0xf]
      %v1726 = vld [vmem:[%s7 + $0x14c] sm:$0xf]
      %v1727 = vld [vmem:[%s7 + $0x150] sm:$0xf]
      %v1728 = vld [vmem:[%s7 + $0x154] sm:$0xf]
      %v1729 = vld [vmem:[%s7 + $0x158] sm:$0xf]
      %v1730 = vld [vmem:[%s7 + $0x15c] sm:$0xf]
      %v1731 = vld [vmem:[%s7 + $0x160] sm:$0xf]
      %v1732 = vld [vmem:[%s7 + $0x164] sm:$0xf]
      %v1733 = vld [vmem:[%s7 + $0x168] sm:$0xf]
      %v1734 = vld [vmem:[%s7 + $0x16c] sm:$0xf]
      %v1735 = vld [vmem:[%s7 + $0x170] sm:$0xf]
      %v1736 = vld [vmem:[%s7 + $0x174] sm:$0xf]
      %v1737 = vld [vmem:[%s7 + $0x178] sm:$0xf]
      %v1738 = vld [vmem:[%s7 + $0x17c] sm:$0xf]
      %v1739 = vld [vmem:[%s7 + $0x180] sm:$0xf]
      %v1740 = vld [vmem:[%s7 + $0x184] sm:$0xf]
      %v1741 = vld [vmem:[%s7 + $0x188] sm:$0xf]
      %v1742 = vld [vmem:[%s7 + $0x18c] sm:$0xf]
      %v1743 = vld [vmem:[%s7 + $0x190] sm:$0xf]
      %v1744 = vld [vmem:[%s7 + $0x194] sm:$0xf]
      %v1745 = vld [vmem:[%s7 + $0x198] sm:$0xf]
      %v1746 = vld [vmem:[%s7 + $0x19c] sm:$0xf]
      %v1747 = vld [vmem:[%s7 + $0x1a0] sm:$0xf]
      %v1748 = vld [vmem:[%s7 + $0x1a4] sm:$0xf]
      %v1749 = vld [vmem:[%s7 + $0x1a8] sm:$0xf]
      %v1750 = vld [vmem:[%s7 + $0x1ac] sm:$0xf]
      %v1751 = vld [vmem:[%s7 + $0x1b0] sm:$0xf]
      %v1752 = vld [vmem:[%s7 + $0x1b4] sm:$0xf]
      %v1753 = vld [vmem:[%s7 + $0x1b8] sm:$0xf]
      %v1754 = vld [vmem:[%s7 + $0x1bc] sm:$0xf]
      %v1755 = vld [vmem:[%s7 + $0x1c0] sm:$0xf]
      %v1756 = vld [vmem:[%s7 + $0x1c4] sm:$0xf]
      %v1757 = vld [vmem:[%s7 + $0x1c8] sm:$0xf]
      %v1758 = vld [vmem:[%s7 + $0x1cc] sm:$0xf]
      %v1759 = vld [vmem:[%s7 + $0x1d0] sm:$0xf]
      %v1760 = vld [vmem:[%s7 + $0x1d4] sm:$0xf]
      %v1761 = vld [vmem:[%s7 + $0x1d8] sm:$0xf]
      %v1762 = vld [vmem:[%s7 + $0x1dc] sm:$0xf]
      %v1763 = vld [vmem:[%s7 + $0x1e0] sm:$0xf]
      %v1764 = vld [vmem:[%s7 + $0x1e4] sm:$0xf]
      %v1765 = vld [vmem:[%s7 + $0x1e8] sm:$0xf]
      %v1766 = vld [vmem:[%s7 + $0x1ec] sm:$0xf]
      %v1767 = vld [vmem:[%s7 + $0x1f0] sm:$0xf]
      %v1768 = vld [vmem:[%s7 + $0x1f4] sm:$0xf]
      %v1769 = vld [vmem:[%s7 + $0x1f8] sm:$0xf]
      %v1770 = vld [vmem:[%s7 + $0x1fc] sm:$0xf]
      %v1771 = vld [vmem:[%s7 + $0x200] sm:$0xf]
      %v1772 = vld [vmem:[%s7 + $0x204] sm:$0xf]
      %v1773 = vld [vmem:[%s7 + $0x208] sm:$0xf]
      %v1774 = vld [vmem:[%s7 + $0x20c] sm:$0xf]
      %v1775 = vld [vmem:[%s7 + $0x210] sm:$0xf]
      %v1776 = vld [vmem:[%s7 + $0x214] sm:$0xf]
      %v1777 = vld [vmem:[%s7 + $0x218] sm:$0xf]
      %v1778 = vld [vmem:[%s7 + $0x21c] sm:$0xf]
      %v1779 = vld [vmem:[%s7 + $0x220] sm:$0xf]
      %v1780 = vld [vmem:[%s7 + $0x224] sm:$0xf]
      %v1781 = vld [vmem:[%s7 + $0x228] sm:$0xf]
      %v1782 = vld [vmem:[%s7 + $0x22c] sm:$0xf]
      %v1783 = vld [vmem:[%s7 + $0x230] sm:$0xf]
      %v1784 = vld [vmem:[%s7 + $0x234] sm:$0xf]
      %v1785 = vld [vmem:[%s7 + $0x238] sm:$0xf]
      %v1786 = vld [vmem:[%s7 + $0x23c] sm:$0xf]
      %v1787 = vld [vmem:[%s7 + $0x240] sm:$0xf]
      %v1788 = vld [vmem:[%s7 + $0x244] sm:$0xf]
      %v1789 = vld [vmem:[%s7 + $0x248] sm:$0xf]
      %v1790 = vld [vmem:[%s7 + $0x24c] sm:$0xf]
      %v1791 = vld [vmem:[%s7 + $0x250] sm:$0xf]
      %v1792 = vld [vmem:[%s7 + $0x254] sm:$0xf]
      %v1793 = vld [vmem:[%s7 + $0x258] sm:$0xf]
      %v1794 = vld [vmem:[%s7 + $0x25c] sm:$0xf]
      %v1795 = vld [vmem:[%s7 + $0x260] sm:$0xf]
      %v1796 = vld [vmem:[%s7 + $0x264] sm:$0xf]
      %v1797 = vld [vmem:[%s7 + $0x268] sm:$0xf]
      %v1798 = vld [vmem:[%s7 + $0x26c] sm:$0xf]
      %v1799 = vld [vmem:[%s7 + $0x270] sm:$0xf]
      %v1800 = vld [vmem:[%s7 + $0x274] sm:$0xf]
      %v1801 = vld [vmem:[%s7 + $0x278] sm:$0xf]
      %v1802 = vld [vmem:[%s7 + $0x27c] sm:$0xf]
      %v1803 = vld [vmem:[%s7 + $0x280] sm:$0xf]
      %v1804 = vld [vmem:[%s7 + $0x284] sm:$0xf]
      %v1805 = vld [vmem:[%s7 + $0x288] sm:$0xf]
      %v1806 = vld [vmem:[%s7 + $0x28c] sm:$0xf]
      %v1807 = vld [vmem:[%s7 + $0x290] sm:$0xf]
      %v1808 = vld [vmem:[%s7 + $0x294] sm:$0xf]
      %v1809 = vld [vmem:[%s7 + $0x298] sm:$0xf]
      %v1810 = vld [vmem:[%s7 + $0x29c] sm:$0xf]
      %v1811 = vld [vmem:[%s7 + $0x2a0] sm:$0xf]
      %v1812 = vld [vmem:[%s7 + $0x2a4] sm:$0xf]
      %v1813 = vld [vmem:[%s7 + $0x2a8] sm:$0xf]
      %v1814 = vld [vmem:[%s7 + $0x2ac] sm:$0xf]
      %v1815 = vld [vmem:[%s7 + $0x2b0] sm:$0xf]
      %v1816 = vld [vmem:[%s7 + $0x2b4] sm:$0xf]
      %v1817 = vld [vmem:[%s7 + $0x2b8] sm:$0xf]
      %v1818 = vld [vmem:[%s7 + $0x2bc] sm:$0xf]
      %v1819 = vld [vmem:[%s7 + $0x2c0] sm:$0xf]
      %v1820 = vld [vmem:[%s7 + $0x2c4] sm:$0xf]
      %v1821 = vld [vmem:[%s7 + $0x2c8] sm:$0xf]
      %v1822 = vld [vmem:[%s7 + $0x2cc] sm:$0xf]
      %v1823 = vld [vmem:[%s7 + $0x2d0] sm:$0xf]
      %v1824 = vld [vmem:[%s7 + $0x2d4] sm:$0xf]
      %v1825 = vld [vmem:[%s7 + $0x2d8] sm:$0xf]
      %v1826 = vld [vmem:[%s7 + $0x2dc] sm:$0xf]
      %v1827 = vld [vmem:[%s7 + $0x2e0] sm:$0xf]
      %v1828 = vld [vmem:[%s7 + $0x2e4] sm:$0xf]
      %v1829 = vld [vmem:[%s7 + $0x2e8] sm:$0xf]
      %v1830 = vld [vmem:[%s7 + $0x2ec] sm:$0xf]
      %v1831 = vld [vmem:[%s7 + $0x2f0] sm:$0xf]
      %v1832 = vld [vmem:[%s7 + $0x2f4] sm:$0xf]
      %v1833 = vld [vmem:[%s7 + $0x2f8] sm:$0xf]
      %v1834 = vld [vmem:[%s7 + $0x2fc] sm:$0xf]
      %v1835 = vld [vmem:[%s7 + $0x300] sm:$0xf]
      %v1836 = vld [vmem:[%s7 + $0x304] sm:$0xf]
      %v1837 = vld [vmem:[%s7 + $0x308] sm:$0xf]
      %v1838 = vld [vmem:[%s7 + $0x30c] sm:$0xf]
      %v1839 = vld [vmem:[%s7 + $0x310] sm:$0xf]
      %v1840 = vld [vmem:[%s7 + $0x314] sm:$0xf]
      %v1841 = vld [vmem:[%s7 + $0x318] sm:$0xf]
      %v1842 = vld [vmem:[%s7 + $0x31c] sm:$0xf]
      %v1843 = vld [vmem:[%s7 + $0x320] sm:$0xf]
      %v1844 = vld [vmem:[%s7 + $0x324] sm:$0xf]
      %v1845 = vld [vmem:[%s7 + $0x328] sm:$0xf]
      %v1846 = vld [vmem:[%s7 + $0x32c] sm:$0xf]
      %v1847 = vld [vmem:[%s7 + $0x330] sm:$0xf]
      %v1848 = vld [vmem:[%s7 + $0x334] sm:$0xf]
      %v1849 = vld [vmem:[%s7 + $0x338] sm:$0xf]
      %v1850 = vld [vmem:[%s7 + $0x33c] sm:$0xf]
      %v1851 = vld [vmem:[%s7 + $0x340] sm:$0xf]
      %v1852 = vld [vmem:[%s7 + $0x344] sm:$0xf]
      %v1853 = vld [vmem:[%s7 + $0x348] sm:$0xf]
      %v1854 = vld [vmem:[%s7 + $0x34c] sm:$0xf]
      %v1855 = vld [vmem:[%s7 + $0x350] sm:$0xf]
      %v1856 = vld [vmem:[%s7 + $0x354] sm:$0xf]
      %v1857 = vld [vmem:[%s7 + $0x358] sm:$0xf]
      %v1858 = vld [vmem:[%s7 + $0x35c] sm:$0xf]
      %v1859 = vld [vmem:[%s7 + $0x360] sm:$0xf]
      %v1860 = vld [vmem:[%s7 + $0x364] sm:$0xf]
      %v1861 = vld [vmem:[%s7 + $0x368] sm:$0xf]
      %v1862 = vld [vmem:[%s7 + $0x36c] sm:$0xf]
      %v1863 = vld [vmem:[%s7 + $0x370] sm:$0xf]
      %v1864 = vld [vmem:[%s7 + $0x374] sm:$0xf]
      %v1865 = vld [vmem:[%s7 + $0x378] sm:$0xf]
      %v1866 = vld [vmem:[%s7 + $0x37c] sm:$0xf]
      %v1867 = vld [vmem:[%s7 + $0x380] sm:$0xf]
      %v1868 = vld [vmem:[%s7 + $0x384] sm:$0xf]
      %v1869 = vld [vmem:[%s7 + $0x388] sm:$0xf]
      %v1870 = vld [vmem:[%s7 + $0x38c] sm:$0xf]
      %v1871 = vld [vmem:[%s7 + $0x390] sm:$0xf]
      %v1872 = vld [vmem:[%s7 + $0x394] sm:$0xf]
      %v1873 = vld [vmem:[%s7 + $0x398] sm:$0xf]
      %v1874 = vld [vmem:[%s7 + $0x39c] sm:$0xf]
      %v1875 = vld [vmem:[%s7 + $0x3a0] sm:$0xf]
      %v1876 = vld [vmem:[%s7 + $0x3a4] sm:$0xf]
      %v1877 = vld [vmem:[%s7 + $0x3a8] sm:$0xf]
      %v1878 = vld [vmem:[%s7 + $0x3ac] sm:$0xf]
      %v1879 = vld [vmem:[%s7 + $0x3b0] sm:$0xf]
      %v1880 = vld [vmem:[%s7 + $0x3b4] sm:$0xf]
      %v1881 = vld [vmem:[%s7 + $0x3b8] sm:$0xf]
      %v1882 = vld [vmem:[%s7 + $0x3bc] sm:$0xf]
      %v1883 = vld [vmem:[%s7 + $0x3c0] sm:$0xf]
      %v1884 = vld [vmem:[%s7 + $0x3c4] sm:$0xf]
      %v1885 = vld [vmem:[%s7 + $0x3c8] sm:$0xf]
      %v1886 = vld [vmem:[%s7 + $0x3cc] sm:$0xf]
      %v1887 = vld [vmem:[%s7 + $0x3d0] sm:$0xf]
      %v1888 = vld [vmem:[%s7 + $0x3d4] sm:$0xf]
      %v1889 = vld [vmem:[%s7 + $0x3d8] sm:$0xf]
      %v1890 = vld [vmem:[%s7 + $0x3dc] sm:$0xf]
      %v1891 = vld [vmem:[%s7 + $0x3e0] sm:$0xf]
      %v1892 = vld [vmem:[%s7 + $0x3e4] sm:$0xf]
      %v1893 = vld [vmem:[%s7 + $0x3e8] sm:$0xf]
      %v1894 = vld [vmem:[%s7 + $0x3ec] sm:$0xf]
      %v1895 = vld [vmem:[%s7 + $0x3f0] sm:$0xf]
      %v1896 = vld [vmem:[%s7 + $0x3f4] sm:$0xf]
      %v1897 = vld [vmem:[%s7 + $0x3f8] sm:$0xf]
      %v1898 = vld [vmem:[%s7 + $0x3fc] sm:$0xf]
      %v1899 = vld [vmem:[%s8] sm:$0x1]
      %v1901 = vperm.slane %v1899, 0
      %v2159 = vunpack.c.l.b16 %v1643
      %v2160 = vunpack.c.l.b16 %v1644
      %v2161 = vunpack.c.l.b16 %v1645
      %v2162 = vunpack.c.l.b16 %v1646
      %v2163 = vunpack.c.l.b16 %v1647
      %v2164 = vunpack.c.l.b16 %v1648
      %v2165 = vunpack.c.l.b16 %v1649
      %v2166 = vunpack.c.l.b16 %v1650
      %v2167 = vunpack.c.l.b16 %v1651
      %v2168 = vunpack.c.l.b16 %v1652
      %v2169 = vunpack.c.l.b16 %v1653
      %v2170 = vunpack.c.l.b16 %v1654
      %v2171 = vunpack.c.l.b16 %v1655
      %v2172 = vunpack.c.l.b16 %v1656
      %v2173 = vunpack.c.l.b16 %v1657
      %v2174 = vunpack.c.l.b16 %v1658
      %v2175 = vunpack.c.l.b16 %v1659
      %v2176 = vunpack.c.l.b16 %v1660
      %v2177 = vunpack.c.l.b16 %v1661
      %v2178 = vunpack.c.l.b16 %v1662
      %v2179 = vunpack.c.l.b16 %v1663
      %v2180 = vunpack.c.l.b16 %v1664
      %v2181 = vunpack.c.l.b16 %v1665
      %v2182 = vunpack.c.l.b16 %v1666
      %v2183 = vunpack.c.l.b16 %v1667
      %v2184 = vunpack.c.l.b16 %v1668
      %v2185 = vunpack.c.l.b16 %v1669
      %v2186 = vunpack.c.l.b16 %v1670
      %v2187 = vunpack.c.l.b16 %v1671
      %v2188 = vunpack.c.l.b16 %v1672
      %v2189 = vunpack.c.l.b16 %v1673
      %v2190 = vunpack.c.l.b16 %v1674
      %v2191 = vunpack.c.l.b16 %v1675
      %v2192 = vunpack.c.l.b16 %v1676
      %v2193 = vunpack.c.l.b16 %v1677
      %v2194 = vunpack.c.l.b16 %v1678
      %v2195 = vunpack.c.l.b16 %v1679
      %v2196 = vunpack.c.l.b16 %v1680
      %v2197 = vunpack.c.l.b16 %v1681
      %v2198 = vunpack.c.l.b16 %v1682
      %v2199 = vunpack.c.l.b16 %v1683
      %v2200 = vunpack.c.l.b16 %v1684
      %v2201 = vunpack.c.l.b16 %v1685
      %v2202 = vunpack.c.l.b16 %v1686
      %v2203 = vunpack.c.l.b16 %v1687
      %v2204 = vunpack.c.l.b16 %v1688
      %v2205 = vunpack.c.l.b16 %v1689
      %v2206 = vunpack.c.l.b16 %v1690
      %v2207 = vunpack.c.l.b16 %v1691
      %v2208 = vunpack.c.l.b16 %v1692
      %v2209 = vunpack.c.l.b16 %v1693
      %v2210 = vunpack.c.l.b16 %v1694
      %v2211 = vunpack.c.l.b16 %v1695
      %v2212 = vunpack.c.l.b16 %v1696
      %v2213 = vunpack.c.l.b16 %v1697
      %v2214 = vunpack.c.l.b16 %v1698
      %v2215 = vunpack.c.l.b16 %v1699
      %v2216 = vunpack.c.l.b16 %v1700
      %v2217 = vunpack.c.l.b16 %v1701
      %v2218 = vunpack.c.l.b16 %v1702
      %v2219 = vunpack.c.l.b16 %v1703
      %v2220 = vunpack.c.l.b16 %v1704
      %v2221 = vunpack.c.l.b16 %v1705
      %v2222 = vunpack.c.l.b16 %v1706
      %v2223 = vunpack.c.l.b16 %v1707
      %v2224 = vunpack.c.l.b16 %v1708
      %v2225 = vunpack.c.l.b16 %v1709
      %v2226 = vunpack.c.l.b16 %v1710
      %v2227 = vunpack.c.l.b16 %v1711
      %v2228 = vunpack.c.l.b16 %v1712
      %v2229 = vunpack.c.l.b16 %v1713
      %v2230 = vunpack.c.l.b16 %v1714
      %v2231 = vunpack.c.l.b16 %v1715
      %v2232 = vunpack.c.l.b16 %v1716
      %v2233 = vunpack.c.l.b16 %v1717
      %v2234 = vunpack.c.l.b16 %v1718
      %v2235 = vunpack.c.l.b16 %v1719
      %v2236 = vunpack.c.l.b16 %v1720
      %v2237 = vunpack.c.l.b16 %v1721
      %v2238 = vunpack.c.l.b16 %v1722
      %v2239 = vunpack.c.l.b16 %v1723
      %v2240 = vunpack.c.l.b16 %v1724
      %v2241 = vunpack.c.l.b16 %v1725
      %v2242 = vunpack.c.l.b16 %v1726
      %v2243 = vunpack.c.l.b16 %v1727
      %v2244 = vunpack.c.l.b16 %v1728
      %v2245 = vunpack.c.l.b16 %v1729
      %v2246 = vunpack.c.l.b16 %v1730
      %v2247 = vunpack.c.l.b16 %v1731
      %v2248 = vunpack.c.l.b16 %v1732
      %v2249 = vunpack.c.l.b16 %v1733
      %v2250 = vunpack.c.l.b16 %v1734
      %v2251 = vunpack.c.l.b16 %v1735
      %v2252 = vunpack.c.l.b16 %v1736
      %v2253 = vunpack.c.l.b16 %v1737
      %v2254 = vunpack.c.l.b16 %v1738
      %v2255 = vunpack.c.l.b16 %v1739
      %v2256 = vunpack.c.l.b16 %v1740
      %v2257 = vunpack.c.l.b16 %v1741
      %v2258 = vunpack.c.l.b16 %v1742
      %v2259 = vunpack.c.l.b16 %v1743
      %v2260 = vunpack.c.l.b16 %v1744
      %v2261 = vunpack.c.l.b16 %v1745
      %v2262 = vunpack.c.l.b16 %v1746
      %v2263 = vunpack.c.l.b16 %v1747
      %v2264 = vunpack.c.l.b16 %v1748
      %v2265 = vunpack.c.l.b16 %v1749
      %v2266 = vunpack.c.l.b16 %v1750
      %v2267 = vunpack.c.l.b16 %v1751
      %v2268 = vunpack.c.l.b16 %v1752
      %v2269 = vunpack.c.l.b16 %v1753
      %v2270 = vunpack.c.l.b16 %v1754
      %v2271 = vunpack.c.l.b16 %v1755
      %v2272 = vunpack.c.l.b16 %v1756
      %v2273 = vunpack.c.l.b16 %v1757
      %v2274 = vunpack.c.l.b16 %v1758
      %v2275 = vunpack.c.l.b16 %v1759
      %v2276 = vunpack.c.l.b16 %v1760
      %v2277 = vunpack.c.l.b16 %v1761
      %v2278 = vunpack.c.l.b16 %v1762
      %v2279 = vunpack.c.l.b16 %v1763
      %v2280 = vunpack.c.l.b16 %v1764
      %v2281 = vunpack.c.l.b16 %v1765
      %v2282 = vunpack.c.l.b16 %v1766
      %v2283 = vunpack.c.l.b16 %v1767
      %v2284 = vunpack.c.l.b16 %v1768
      %v2285 = vunpack.c.l.b16 %v1769
      %v2286 = vunpack.c.l.b16 %v1770
      %v2287 = vunpack.c.l.b16 %v1771
      %v2288 = vunpack.c.l.b16 %v1772
      %v2289 = vunpack.c.l.b16 %v1773
      %v2290 = vunpack.c.l.b16 %v1774
      %v2291 = vunpack.c.l.b16 %v1775
      %v2292 = vunpack.c.l.b16 %v1776
      %v2293 = vunpack.c.l.b16 %v1777
      %v2294 = vunpack.c.l.b16 %v1778
      %v2295 = vunpack.c.l.b16 %v1779
      %v2296 = vunpack.c.l.b16 %v1780
      %v2297 = vunpack.c.l.b16 %v1781
      %v2298 = vunpack.c.l.b16 %v1782
      %v2299 = vunpack.c.l.b16 %v1783
      %v2300 = vunpack.c.l.b16 %v1784
      %v2301 = vunpack.c.l.b16 %v1785
      %v2302 = vunpack.c.l.b16 %v1786
      %v2303 = vunpack.c.l.b16 %v1787
      %v2304 = vunpack.c.l.b16 %v1788
      %v2305 = vunpack.c.l.b16 %v1789
      %v2306 = vunpack.c.l.b16 %v1790
      %v2307 = vunpack.c.l.b16 %v1791
      %v2308 = vunpack.c.l.b16 %v1792
      %v2309 = vunpack.c.l.b16 %v1793
      %v2310 = vunpack.c.l.b16 %v1794
      %v2311 = vunpack.c.l.b16 %v1795
      %v2312 = vunpack.c.l.b16 %v1796
      %v2313 = vunpack.c.l.b16 %v1797
      %v2314 = vunpack.c.l.b16 %v1798
      %v2315 = vunpack.c.l.b16 %v1799
      %v2316 = vunpack.c.l.b16 %v1800
      %v2317 = vunpack.c.l.b16 %v1801
      %v2318 = vunpack.c.l.b16 %v1802
      %v2319 = vunpack.c.l.b16 %v1803
      %v2320 = vunpack.c.l.b16 %v1804
      %v2321 = vunpack.c.l.b16 %v1805
      %v2322 = vunpack.c.l.b16 %v1806
      %v2323 = vunpack.c.l.b16 %v1807
      %v2324 = vunpack.c.l.b16 %v1808
      %v2325 = vunpack.c.l.b16 %v1809
      %v2326 = vunpack.c.l.b16 %v1810
      %v2327 = vunpack.c.l.b16 %v1811
      %v2328 = vunpack.c.l.b16 %v1812
      %v2329 = vunpack.c.l.b16 %v1813
      %v2330 = vunpack.c.l.b16 %v1814
      %v2331 = vunpack.c.l.b16 %v1815
      %v2332 = vunpack.c.l.b16 %v1816
      %v2333 = vunpack.c.l.b16 %v1817
      %v2334 = vunpack.c.l.b16 %v1818
      %v2335 = vunpack.c.l.b16 %v1819
      %v2336 = vunpack.c.l.b16 %v1820
      %v2337 = vunpack.c.l.b16 %v1821
      %v2338 = vunpack.c.l.b16 %v1822
      %v2339 = vunpack.c.l.b16 %v1823
      %v2340 = vunpack.c.l.b16 %v1824
      %v2341 = vunpack.c.l.b16 %v1825
      %v2342 = vunpack.c.l.b16 %v1826
      %v2343 = vunpack.c.l.b16 %v1827
      %v2344 = vunpack.c.l.b16 %v1828
      %v2345 = vunpack.c.l.b16 %v1829
      %v2346 = vunpack.c.l.b16 %v1830
      %v2347 = vunpack.c.l.b16 %v1831
      %v2348 = vunpack.c.l.b16 %v1832
      %v2349 = vunpack.c.l.b16 %v1833
      %v2350 = vunpack.c.l.b16 %v1834
      %v2351 = vunpack.c.l.b16 %v1835
      %v2352 = vunpack.c.l.b16 %v1836
      %v2353 = vunpack.c.l.b16 %v1837
      %v2354 = vunpack.c.l.b16 %v1838
      %v2355 = vunpack.c.l.b16 %v1839
      %v2356 = vunpack.c.l.b16 %v1840
      %v2357 = vunpack.c.l.b16 %v1841
      %v2358 = vunpack.c.l.b16 %v1842
      %v2359 = vunpack.c.l.b16 %v1843
      %v2360 = vunpack.c.l.b16 %v1844
      %v2361 = vunpack.c.l.b16 %v1845
      %v2362 = vunpack.c.l.b16 %v1846
      %v2363 = vunpack.c.l.b16 %v1847
      %v2364 = vunpack.c.l.b16 %v1848
      %v2365 = vunpack.c.l.b16 %v1849
      %v2366 = vunpack.c.l.b16 %v1850
      %v2367 = vunpack.c.l.b16 %v1851
      %v2368 = vunpack.c.l.b16 %v1852
      %v2369 = vunpack.c.l.b16 %v1853
      %v2370 = vunpack.c.l.b16 %v1854
      %v2371 = vunpack.c.l.b16 %v1855
      %v2372 = vunpack.c.l.b16 %v1856
      %v2373 = vunpack.c.l.b16 %v1857
      %v2374 = vunpack.c.l.b16 %v1858
      %v2375 = vunpack.c.l.b16 %v1859
      %v2376 = vunpack.c.l.b16 %v1860
      %v2377 = vunpack.c.l.b16 %v1861
      %v2378 = vunpack.c.l.b16 %v1862
      %v2379 = vunpack.c.l.b16 %v1863
      %v2380 = vunpack.c.l.b16 %v1864
      %v2381 = vunpack.c.l.b16 %v1865
      %v2382 = vunpack.c.l.b16 %v1866
      %v2383 = vunpack.c.l.b16 %v1867
      %v2384 = vunpack.c.l.b16 %v1868
      %v2385 = vunpack.c.l.b16 %v1869
      %v2386 = vunpack.c.l.b16 %v1870
      %v2387 = vunpack.c.l.b16 %v1871
      %v2388 = vunpack.c.l.b16 %v1872
      %v2389 = vunpack.c.l.b16 %v1873
      %v2390 = vunpack.c.l.b16 %v1874
      %v2391 = vunpack.c.l.b16 %v1875
      %v2392 = vunpack.c.l.b16 %v1876
      %v2393 = vunpack.c.l.b16 %v1877
      %v2394 = vunpack.c.l.b16 %v1878
      %v2395 = vunpack.c.l.b16 %v1879
      %v2396 = vunpack.c.l.b16 %v1880
      %v2397 = vunpack.c.l.b16 %v1881
      %v2398 = vunpack.c.l.b16 %v1882
      %v2399 = vunpack.c.l.b16 %v1883
      %v2400 = vunpack.c.l.b16 %v1884
      %v2401 = vunpack.c.l.b16 %v1885
      %v2402 = vunpack.c.l.b16 %v1886
      %v2403 = vunpack.c.l.b16 %v1887
      %v2404 = vunpack.c.l.b16 %v1888
      %v2405 = vunpack.c.l.b16 %v1889
      %v2406 = vunpack.c.l.b16 %v1890
      %v2407 = vunpack.c.l.b16 %v1891
      %v2408 = vunpack.c.l.b16 %v1892
      %v2409 = vunpack.c.l.b16 %v1893
      %v2410 = vunpack.c.l.b16 %v1894
      %v2411 = vunpack.c.l.b16 %v1895
      %v2412 = vunpack.c.l.b16 %v1896
      %v2413 = vunpack.c.l.b16 %v1897
      %v2414 = vunpack.c.l.b16 %v1898
      %v2415 = vpack.c.b16 %v2160, %v2159
      %v2416 = vpack.c.b16 %v2162, %v2161
      %v2417 = vpack.c.b16 %v2164, %v2163
      %v2418 = vpack.c.b16 %v2166, %v2165
      %v2419 = vpack.c.b16 %v2168, %v2167
      %v2420 = vpack.c.b16 %v2170, %v2169
      %v2421 = vpack.c.b16 %v2172, %v2171
      %v2422 = vpack.c.b16 %v2174, %v2173
      %v2423 = vpack.c.b16 %v2176, %v2175
      %v2424 = vpack.c.b16 %v2178, %v2177
      %v2425 = vpack.c.b16 %v2180, %v2179
      %v2426 = vpack.c.b16 %v2182, %v2181
      %v2427 = vpack.c.b16 %v2184, %v2183
      %v2428 = vpack.c.b16 %v2186, %v2185
      %v2429 = vpack.c.b16 %v2188, %v2187
      %v2430 = vpack.c.b16 %v2190, %v2189
      %v2431 = vpack.c.b16 %v2192, %v2191
      %v2432 = vpack.c.b16 %v2194, %v2193
      %v2433 = vpack.c.b16 %v2196, %v2195
      %v2434 = vpack.c.b16 %v2198, %v2197
      %v2435 = vpack.c.b16 %v2200, %v2199
      %v2436 = vpack.c.b16 %v2202, %v2201
      %v2437 = vpack.c.b16 %v2204, %v2203
      %v2438 = vpack.c.b16 %v2206, %v2205
      %v2439 = vpack.c.b16 %v2208, %v2207
      %v2440 = vpack.c.b16 %v2210, %v2209
      %v2441 = vpack.c.b16 %v2212, %v2211
      %v2442 = vpack.c.b16 %v2214, %v2213
      %v2443 = vpack.c.b16 %v2216, %v2215
      %v2444 = vpack.c.b16 %v2218, %v2217
      %v2445 = vpack.c.b16 %v2220, %v2219
      %v2446 = vpack.c.b16 %v2222, %v2221
      %v2447 = vpack.c.b16 %v2224, %v2223
      %v2448 = vpack.c.b16 %v2226, %v2225
      %v2449 = vpack.c.b16 %v2228, %v2227
      %v2450 = vpack.c.b16 %v2230, %v2229
      %v2451 = vpack.c.b16 %v2232, %v2231
      %v2452 = vpack.c.b16 %v2234, %v2233
      %v2453 = vpack.c.b16 %v2236, %v2235
      %v2454 = vpack.c.b16 %v2238, %v2237
      %v2455 = vpack.c.b16 %v2240, %v2239
      %v2456 = vpack.c.b16 %v2242, %v2241
      %v2457 = vpack.c.b16 %v2244, %v2243
      %v2458 = vpack.c.b16 %v2246, %v2245
      %v2459 = vpack.c.b16 %v2248, %v2247
      %v2460 = vpack.c.b16 %v2250, %v2249
      %v2461 = vpack.c.b16 %v2252, %v2251
      %v2462 = vpack.c.b16 %v2254, %v2253
      %v2463 = vpack.c.b16 %v2256, %v2255
      %v2464 = vpack.c.b16 %v2258, %v2257
      %v2465 = vpack.c.b16 %v2260, %v2259
      %v2466 = vpack.c.b16 %v2262, %v2261
      %v2467 = vpack.c.b16 %v2264, %v2263
      %v2468 = vpack.c.b16 %v2266, %v2265
      %v2469 = vpack.c.b16 %v2268, %v2267
      %v2470 = vpack.c.b16 %v2270, %v2269
      %v2471 = vpack.c.b16 %v2272, %v2271
      %v2472 = vpack.c.b16 %v2274, %v2273
      %v2473 = vpack.c.b16 %v2276, %v2275
      %v2474 = vpack.c.b16 %v2278, %v2277
      %v2475 = vpack.c.b16 %v2280, %v2279
      %v2476 = vpack.c.b16 %v2282, %v2281
      %v2477 = vpack.c.b16 %v2284, %v2283
      %v2478 = vpack.c.b16 %v2286, %v2285
      %v2479 = vpack.c.b16 %v2288, %v2287
      %v2480 = vpack.c.b16 %v2290, %v2289
      %v2481 = vpack.c.b16 %v2292, %v2291
      %v2482 = vpack.c.b16 %v2294, %v2293
      %v2483 = vpack.c.b16 %v2296, %v2295
      %v2484 = vpack.c.b16 %v2298, %v2297
      %v2485 = vpack.c.b16 %v2300, %v2299
      %v2486 = vpack.c.b16 %v2302, %v2301
      %v2487 = vpack.c.b16 %v2304, %v2303
      %v2488 = vpack.c.b16 %v2306, %v2305
      %v2489 = vpack.c.b16 %v2308, %v2307
      %v2490 = vpack.c.b16 %v2310, %v2309
      %v2491 = vpack.c.b16 %v2312, %v2311
      %v2492 = vpack.c.b16 %v2314, %v2313
      %v2493 = vpack.c.b16 %v2316, %v2315
      %v2494 = vpack.c.b16 %v2318, %v2317
      %v2495 = vpack.c.b16 %v2320, %v2319
      %v2496 = vpack.c.b16 %v2322, %v2321
      %v2497 = vpack.c.b16 %v2324, %v2323
      %v2498 = vpack.c.b16 %v2326, %v2325
      %v2499 = vpack.c.b16 %v2328, %v2327
      %v2500 = vpack.c.b16 %v2330, %v2329
      %v2501 = vpack.c.b16 %v2332, %v2331
      %v2502 = vpack.c.b16 %v2334, %v2333
      %v2503 = vpack.c.b16 %v2336, %v2335
      %v2504 = vpack.c.b16 %v2338, %v2337
      %v2505 = vpack.c.b16 %v2340, %v2339
      %v2506 = vpack.c.b16 %v2342, %v2341
      %v2507 = vpack.c.b16 %v2344, %v2343
      %v2508 = vpack.c.b16 %v2346, %v2345
      %v2509 = vpack.c.b16 %v2348, %v2347
      %v2510 = vpack.c.b16 %v2350, %v2349
      %v2511 = vpack.c.b16 %v2352, %v2351
      %v2512 = vpack.c.b16 %v2354, %v2353
      %v2513 = vpack.c.b16 %v2356, %v2355
      %v2514 = vpack.c.b16 %v2358, %v2357
      %v2515 = vpack.c.b16 %v2360, %v2359
      %v2516 = vpack.c.b16 %v2362, %v2361
      %v2517 = vpack.c.b16 %v2364, %v2363
      %v2518 = vpack.c.b16 %v2366, %v2365
      %v2519 = vpack.c.b16 %v2368, %v2367
      %v2520 = vpack.c.b16 %v2370, %v2369
      %v2521 = vpack.c.b16 %v2372, %v2371
      %v2522 = vpack.c.b16 %v2374, %v2373
      %v2523 = vpack.c.b16 %v2376, %v2375
      %v2524 = vpack.c.b16 %v2378, %v2377
      %v2525 = vpack.c.b16 %v2380, %v2379
      %v2526 = vpack.c.b16 %v2382, %v2381
      %v2527 = vpack.c.b16 %v2384, %v2383
      %v2528 = vpack.c.b16 %v2386, %v2385
      %v2529 = vpack.c.b16 %v2388, %v2387
      %v2530 = vpack.c.b16 %v2390, %v2389
      %v2531 = vpack.c.b16 %v2392, %v2391
      %v2532 = vpack.c.b16 %v2394, %v2393
      %v2533 = vpack.c.b16 %v2396, %v2395
      %v2534 = vpack.c.b16 %v2398, %v2397
      %v2535 = vpack.c.b16 %v2400, %v2399
      %v2536 = vpack.c.b16 %v2402, %v2401
      %v2537 = vpack.c.b16 %v2404, %v2403
      %v2538 = vpack.c.b16 %v2406, %v2405
      %v2539 = vpack.c.b16 %v2408, %v2407
      %v2540 = vpack.c.b16 %v2410, %v2409
      %v2541 = vpack.c.b16 %v2412, %v2411
      %v2542 = vpack.c.b16 %v2414, %v2413
      %2671 = vmatpush.bf16.msra.mxu0 %v2422
      %2672 = vmatpush.bf16.msra.mxu0 %v2421
      %2673 = vmatpush.bf16.msra.mxu0 %v2420
      %2674 = vmatpush.bf16.msra.mxu0 %v2419
      %2675 = vmatpush.bf16.msra.mxu0 %v2418
      %2676 = vmatpush.bf16.msra.mxu0 %v2417
      %2677 = vmatpush.bf16.msra.mxu0 %v2416
      %2678 = vmatpush.bf16.msra.mxu0 %v2415
      %2679 = vmatmul.bf16.gmra.mxu0 %v1627
      %v2680 = vpop.f32.mrf.mxu0
      %v2681 = vadd.f32 %v1901, %v2680
      %v2682 = vpop.f32.mrf.mxu0
      %2683 = vdwg.mxu0
      %2684 = vmatpush.bf16.msra.mxu0 %v2430
      %2685 = vmatpush.bf16.msra.mxu0 %v2429
      %2686 = vmatpush.bf16.msra.mxu0 %v2428
      %2687 = vmatpush.bf16.msra.mxu0 %v2427
      %2688 = vmatpush.bf16.msra.mxu0 %v2426
      %2689 = vmatpush.bf16.msra.mxu0 %v2425
      %2690 = vmatpush.bf16.msra.mxu0 %v2424
      %2691 = vmatpush.bf16.msra.mxu0 %v2423
      %2692 = vmatmul.bf16.gmra.mxu0 %v1628
      %v2693 = vpop.f32.mrf.mxu0
      %v2694 = vadd.f32 %v2681, %v2693
      %v2695 = vpop.f32.mrf.mxu0
      %2696 = vdwg.mxu0
      %2697 = vmatpush.bf16.msra.mxu0 %v2438
      %2698 = vmatpush.bf16.msra.mxu0 %v2437
      %2699 = vmatpush.bf16.msra.mxu0 %v2436
      %2700 = vmatpush.bf16.msra.mxu0 %v2435
      %2701 = vmatpush.bf16.msra.mxu0 %v2434
      %2702 = vmatpush.bf16.msra.mxu0 %v2433
      %2703 = vmatpush.bf16.msra.mxu0 %v2432
      %2704 = vmatpush.bf16.msra.mxu0 %v2431
      %2705 = vmatmul.bf16.gmra.mxu0 %v1629
      %v2706 = vpop.f32.mrf.mxu0
      %v2707 = vadd.f32 %v2694, %v2706
      %v2708 = vpop.f32.mrf.mxu0
      %2709 = vdwg.mxu0
      %2710 = vmatpush.bf16.msra.mxu0 %v2446
      %2711 = vmatpush.bf16.msra.mxu0 %v2445
      %2712 = vmatpush.bf16.msra.mxu0 %v2444
      %2713 = vmatpush.bf16.msra.mxu0 %v2443
      %2714 = vmatpush.bf16.msra.mxu0 %v2442
      %2715 = vmatpush.bf16.msra.mxu0 %v2441
      %2716 = vmatpush.bf16.msra.mxu0 %v2440
      %2717 = vmatpush.bf16.msra.mxu0 %v2439
      %2718 = vmatmul.bf16.gmra.mxu0 %v1630
      %v2719 = vpop.f32.mrf.mxu0
      %v2720 = vadd.f32 %v2707, %v2719
      %v2721 = vpop.f32.mrf.mxu0
      %2722 = vdwg.mxu0
      %2723 = vmatpush.bf16.msra.mxu0 %v2454
      %2724 = vmatpush.bf16.msra.mxu0 %v2453
      %2725 = vmatpush.bf16.msra.mxu0 %v2452
      %2726 = vmatpush.bf16.msra.mxu0 %v2451
      %2727 = vmatpush.bf16.msra.mxu0 %v2450
      %2728 = vmatpush.bf16.msra.mxu0 %v2449
      %2729 = vmatpush.bf16.msra.mxu0 %v2448
      %2730 = vmatpush.bf16.msra.mxu0 %v2447
      %2731 = vmatmul.bf16.gmra.mxu0 %v1631
      %v2732 = vpop.f32.mrf.mxu0
      %v2733 = vadd.f32 %v2720, %v2732
      %v2734 = vpop.f32.mrf.mxu0
      %2735 = vdwg.mxu0
      %2736 = vmatpush.bf16.msra.mxu0 %v2462
      %2737 = vmatpush.bf16.msra.mxu0 %v2461
      %2738 = vmatpush.bf16.msra.mxu0 %v2460
      %2739 = vmatpush.bf16.msra.mxu0 %v2459
      %2740 = vmatpush.bf16.msra.mxu0 %v2458
      %2741 = vmatpush.bf16.msra.mxu0 %v2457
      %2742 = vmatpush.bf16.msra.mxu0 %v2456
      %2743 = vmatpush.bf16.msra.mxu0 %v2455
      %2744 = vmatmul.bf16.gmra.mxu0 %v1632
      %v2745 = vpop.f32.mrf.mxu0
      %v2746 = vadd.f32 %v2733, %v2745
      %v2747 = vpop.f32.mrf.mxu0
      %2748 = vdwg.mxu0
      %2749 = vmatpush.bf16.msra.mxu0 %v2470
      %2750 = vmatpush.bf16.msra.mxu0 %v2469
      %2751 = vmatpush.bf16.msra.mxu0 %v2468
      %2752 = vmatpush.bf16.msra.mxu0 %v2467
      %2753 = vmatpush.bf16.msra.mxu0 %v2466
      %2754 = vmatpush.bf16.msra.mxu0 %v2465
      %2755 = vmatpush.bf16.msra.mxu0 %v2464
      %2756 = vmatpush.bf16.msra.mxu0 %v2463
      %2757 = vmatmul.bf16.gmra.mxu0 %v1633
      %v2758 = vpop.f32.mrf.mxu0
      %v2759 = vadd.f32 %v2746, %v2758
      %v2760 = vpop.f32.mrf.mxu0
      %2761 = vdwg.mxu0
      %2762 = vmatpush.bf16.msra.mxu0 %v2478
      %2763 = vmatpush.bf16.msra.mxu0 %v2477
      %2764 = vmatpush.bf16.msra.mxu0 %v2476
      %2765 = vmatpush.bf16.msra.mxu0 %v2475
      %2766 = vmatpush.bf16.msra.mxu0 %v2474
      %2767 = vmatpush.bf16.msra.mxu0 %v2473
      %2768 = vmatpush.bf16.msra.mxu0 %v2472
      %2769 = vmatpush.bf16.msra.mxu0 %v2471
      %2770 = vmatmul.bf16.gmra.mxu0 %v1634
      %v2771 = vpop.f32.mrf.mxu0
      %v2772 = vadd.f32 %v2759, %v2771
      %v2773 = vpop.f32.mrf.mxu0
      %2774 = vdwg.mxu0
      %2775 = vmatpush.bf16.msra.mxu0 %v2486
      %2776 = vmatpush.bf16.msra.mxu0 %v2485
      %2777 = vmatpush.bf16.msra.mxu0 %v2484
      %2778 = vmatpush.bf16.msra.mxu0 %v2483
      %2779 = vmatpush.bf16.msra.mxu0 %v2482
      %2780 = vmatpush.bf16.msra.mxu0 %v2481
      %2781 = vmatpush.bf16.msra.mxu0 %v2480
      %2782 = vmatpush.bf16.msra.mxu0 %v2479
      %2783 = vmatmul.bf16.gmra.mxu0 %v1635
      %v2784 = vpop.f32.mrf.mxu0
      %v2785 = vadd.f32 %v2772, %v2784
      %v2786 = vpop.f32.mrf.mxu0
      %2787 = vdwg.mxu0
      %2788 = vmatpush.bf16.msra.mxu0 %v2494
      %2789 = vmatpush.bf16.msra.mxu0 %v2493
      %2790 = vmatpush.bf16.msra.mxu0 %v2492
      %2791 = vmatpush.bf16.msra.mxu0 %v2491
      %2792 = vmatpush.bf16.msra.mxu0 %v2490
      %2793 = vmatpush.bf16.msra.mxu0 %v2489
      %2794 = vmatpush.bf16.msra.mxu0 %v2488
      %2795 = vmatpush.bf16.msra.mxu0 %v2487
      %2796 = vmatmul.bf16.gmra.mxu0 %v1636
      %v2797 = vpop.f32.mrf.mxu0
      %v2798 = vadd.f32 %v2785, %v2797
      %v2799 = vpop.f32.mrf.mxu0
      %2800 = vdwg.mxu0
      %2801 = vmatpush.bf16.msra.mxu0 %v2502
      %2802 = vmatpush.bf16.msra.mxu0 %v2501
      %2803 = vmatpush.bf16.msra.mxu0 %v2500
      %2804 = vmatpush.bf16.msra.mxu0 %v2499
      %2805 = vmatpush.bf16.msra.mxu0 %v2498
      %2806 = vmatpush.bf16.msra.mxu0 %v2497
      %2807 = vmatpush.bf16.msra.mxu0 %v2496
      %2808 = vmatpush.bf16.msra.mxu0 %v2495
      %2809 = vmatmul.bf16.gmra.mxu0 %v1637
      %v2810 = vpop.f32.mrf.mxu0
      %v2811 = vadd.f32 %v2798, %v2810
      %v2812 = vpop.f32.mrf.mxu0
      %2813 = vdwg.mxu0
      %2814 = vmatpush.bf16.msra.mxu0 %v2510
      %2815 = vmatpush.bf16.msra.mxu0 %v2509
      %2816 = vmatpush.bf16.msra.mxu0 %v2508
      %2817 = vmatpush.bf16.msra.mxu0 %v2507
      %2818 = vmatpush.bf16.msra.mxu0 %v2506
      %2819 = vmatpush.bf16.msra.mxu0 %v2505
      %2820 = vmatpush.bf16.msra.mxu0 %v2504
      %2821 = vmatpush.bf16.msra.mxu0 %v2503
      %2822 = vmatmul.bf16.gmra.mxu0 %v1638
      %v2823 = vpop.f32.mrf.mxu0
      %v2824 = vadd.f32 %v2811, %v2823
      %v2825 = vpop.f32.mrf.mxu0
      %2826 = vdwg.mxu0
      %2827 = vmatpush.bf16.msra.mxu0 %v2518
      %2828 = vmatpush.bf16.msra.mxu0 %v2517
      %2829 = vmatpush.bf16.msra.mxu0 %v2516
      %2830 = vmatpush.bf16.msra.mxu0 %v2515
      %2831 = vmatpush.bf16.msra.mxu0 %v2514
      %2832 = vmatpush.bf16.msra.mxu0 %v2513
      %2833 = vmatpush.bf16.msra.mxu0 %v2512
      %2834 = vmatpush.bf16.msra.mxu0 %v2511
      %2835 = vmatmul.bf16.gmra.mxu0 %v1639
      %v2836 = vpop.f32.mrf.mxu0
      %v2837 = vadd.f32 %v2824, %v2836
      %v2838 = vpop.f32.mrf.mxu0
      %2839 = vdwg.mxu0
      %2840 = vmatpush.bf16.msra.mxu0 %v2526
      %2841 = vmatpush.bf16.msra.mxu0 %v2525
      %2842 = vmatpush.bf16.msra.mxu0 %v2524
      %2843 = vmatpush.bf16.msra.mxu0 %v2523
      %2844 = vmatpush.bf16.msra.mxu0 %v2522
      %2845 = vmatpush.bf16.msra.mxu0 %v2521
      %2846 = vmatpush.bf16.msra.mxu0 %v2520
      %2847 = vmatpush.bf16.msra.mxu0 %v2519
      %2848 = vmatmul.bf16.gmra.mxu0 %v1640
      %v2849 = vpop.f32.mrf.mxu0
      %v2850 = vadd.f32 %v2837, %v2849
      %v2851 = vpop.f32.mrf.mxu0
      %2852 = vdwg.mxu0
      %2853 = vmatpush.bf16.msra.mxu0 %v2534
      %2854 = vmatpush.bf16.msra.mxu0 %v2533
      %2855 = vmatpush.bf16.msra.mxu0 %v2532
      %2856 = vmatpush.bf16.msra.mxu0 %v2531
      %2857 = vmatpush.bf16.msra.mxu0 %v2530
      %2858 = vmatpush.bf16.msra.mxu0 %v2529
      %2859 = vmatpush.bf16.msra.mxu0 %v2528
      %2860 = vmatpush.bf16.msra.mxu0 %v2527
      %2861 = vmatmul.bf16.gmra.mxu0 %v1641
      %v2862 = vpop.f32.mrf.mxu0
      %v2863 = vadd.f32 %v2850, %v2862
      %v2864 = vpop.f32.mrf.mxu0
      %2865 = vdwg.mxu0
      %2866 = vmatpush.bf16.msra.mxu0 %v2542
      %2867 = vmatpush.bf16.msra.mxu0 %v2541
      %2868 = vmatpush.bf16.msra.mxu0 %v2540
      %2869 = vmatpush.bf16.msra.mxu0 %v2539
      %2870 = vmatpush.bf16.msra.mxu0 %v2538
      %2871 = vmatpush.bf16.msra.mxu0 %v2537
      %2872 = vmatpush.bf16.msra.mxu0 %v2536
      %2873 = vmatpush.bf16.msra.mxu0 %v2535
      %2874 = vmatmul.bf16.gmra.mxu0 %v1642
      %v2875 = vpop.f32.mrf.mxu0
      %v2876 = vadd.f32 %v2863, %v2875
      %v2877 = vpop.f32.mrf.mxu0
      %2878 = vdwg.mxu0
      %v2879 = vadd.f32 %v1170, %v2876
      %s2880 = scalar_lea.vmem %s9, 1
      %v2881 = vld [vmem:[%s2880] sm:$0x1]
      %s2882 = scalar_lea.vmem %s10, 1
      %v2883 = vld [vmem:[%s2882] sm:$0x1]
      %v2884 = vsel %vm429, %v2879, 0.0
      %2885 = vadd.xlane.f32.xlu0 %v2884
      %v2886 = vpop.xlane.xlu0 %2885
      %v2887 = vmul.f32 %v2886, %v1143
      %v2888 = vsub.f32 %v2879, %v2887
      %v2889 = vmul.f32 %v2888, %v2888
      %v2890 = vsel %vm429, %v2889, 0.0
      %2891 = vadd.xlane.f32.xlu0 %v2890
      %v2892 = vpop.xlane.xlu0 %2891
      %v2893 = vmul.f32 %v2892, %v1143
      %v2894 = vadd.f32 %v2893, 1e-05
      %v2895 = vrsqrt.pop %v2894
      %v2896 = vmul.f32 %v2895, %v2894
      %v2897 = vmul.f32 %v2896, %v2895
      %v2898 = vmul.f32 0.5, %v2897
      %v2899 = vsub.f32 1.5, %v2898
      %v2900 = vmul.f32 %v2895, %v2899
      %vm2901 = vweird.f32 %v2894
      %vm2902 = vweird.f32 %v2895
      %vm2903 = vmor %vm2901, %vm2902
      %v2904 = vsel %vm2903, %v2895, %v2900
      %v2905 = vmul.f32 %v2888, %v2904
      %v2907 = vperm.slane %v2881, 0
      %v2909 = vmul.f32 %v2905, %v2907
      %v2911 = vperm.slane %v2883, 0
      %v2913 = vadd.f32 %v2909, %v2911
      %2914 = vst.msk [vmem:[%s381] sm:$0xff] %vm429, %v2913
      %p2915 = scmp.lt.s32.totalorder %s22, 1
      %s2916 = scalar_select %p2915, %s22, 1
      %s2917 = smul.addr %s2916, 8
      %s2918 = scalar_lea.vmem %s11, %s2917
      // Predicated region
      $region65: #{transformer_forward.4} parent=63 // pred_check
        %p2919 = pneg %p276
      $region66: #{transformer_forward.4} parent=63 // pred_check_branch
        %2921 = sbr.rel (%p2919) target = $region68
      $region67: #{transformer_forward.4} parent=63 // pred_region
        _
      $region68: #{transformer_forward.4} parent=63 // pred_fallthru
        _
    $region64: #{transformer_forward.4} parent=5 // pred_fallthru
      _
    %p2922 = scmp.le.s32.totalorder 2, %s17
    // Predicated region
    $region69: #{transformer_forward.4} parent=5 // pred_check
      %p2923 = pneg %p2922
    $region70: #{transformer_forward.4} parent=5 // pred_check_branch
      %2925 = sbr.rel (%p2923) target = $region72
    $region71: #{transformer_forward.4} parent=5 // pred_region
      %s2926 = ssub.s32 %s17, 2
      // Predicated region
      $region73: #{transformer_forward.4} parent=71 // pred_check
        %p2927 = pneg %p282
      $region74: #{transformer_forward.4} parent=71 // pred_check_branch
        %2929 = sbr.rel (%p2927) target = $region76
      $region75: #{transformer_forward.4} parent=71 // pred_region
        %p2930 = scmp.lt.s32.totalorder %s23, 1
        %s2931 = scalar_select %p2930, %s23, 1
        %s2932 = smul.addr %s2931, 8
        %s2933 = scalar_lea.vmem %s11, %s2932
      $region76: #{transformer_forward.4} parent=71 // pred_fallthru
        _
    $region72: #{transformer_forward.4} parent=5 // pred_fallthru
      _
  $region6: #{transformer_forward.4} parent=0 // loop_footer
    %s21 = sadd.s32 1, %s17
  $region7: #{transformer_forward.4} parent=0 // loop_footer_branch
    %16 = sbr.rel target = $region3
  $region8: #{transformer_forward.4} parent=0 // loop_exit
    _

// kernel: transformer_forward.7
$region0: #{transformer_forward.7}
  #allocation0 [shape = 'u32[]', space=smem, size = 0x4, offset = 0x4, fixed_abs, tag = 'smem constant byte address 0x4 - core index']
  #allocation1 [shape = 'u32[72,128]{1,0:T(1,128)}', space=vmem, size = 0x9000, scoped, tag = 'internal scratch']
  #allocation2 [shape = 'f32[1,1]{1,0:T(1,128)S(1)}', space=vmem, size = 0x200, scoped, tag = 'scoped memory for transformer_forward.7']
  %s0 = inlined_call_operand.vmem [shape: f32[2,8,32], index: 0, kind: input, shape index: {}]
  %s1 = inlined_call_operand.vmem [shape: f32[2,8,32], index: 1, kind: input, shape index: {}]
  %s2 = inlined_call_operand.vmem [shape: f32[8,8], index: 2, kind: input, shape index: {}]
  %s3 = inlined_call_operand.vmem [shape: bf16[3,4,32,8], index: 3, kind: input, shape index: {}]
  %s4 = inlined_call_operand.vmem [shape: f32[3,4,1,8], index: 4, kind: input, shape index: {}]
  %s5 = inlined_call_operand.vmem [shape: bf16[4,8,32], index: 5, kind: input, shape index: {}]
  %s6 = inlined_call_operand.vmem [shape: f32[1,32], index: 6, kind: input, shape index: {}]
  %s7 = inlined_call_operand.vmem [shape: bf16[3,4,32,8], index: 7, kind: input, shape index: {}]
  %s8 = inlined_call_operand.vmem [shape: f32[3,4,1,8], index: 8, kind: input, shape index: {}]
  %s9 = inlined_call_operand.vmem [shape: bf16[4,8,32], index: 9, kind: input, shape index: {}]
  %s10 = inlined_call_operand.vmem [shape: f32[1,32], index: 10, kind: input, shape index: {}]
  %s11 = inlined_call_operand.vmem [shape: bf16[32,2048], index: 11, kind: input, shape index: {}]
  %s12 = inlined_call_operand.vmem [shape: f32[1,2048], index: 12, kind: input, shape index: {}]
  %s13 = inlined_call_operand.vmem [shape: bf16[2048,32], index: 13, kind: input, shape index: {}]
  %s14 = inlined_call_operand.vmem [shape: f32[1,32], index: 14, kind: input, shape index: {}]
  %s15 = inlined_call_operand.vmem [shape: f32[3,1,32], index: 15, kind: input, shape index: {}]
  %s16 = inlined_call_operand.vmem [shape: f32[3,1,32], index: 16, kind: input, shape index: {}]
  %s17 = inlined_call_operand.vmem [shape: f32[1,32], index: 17, kind: input, shape index: {}]
  %s18 = inlined_call_operand.<no memory space> [shape: f32[1,1], index: 18, kind: input, shape index: {}]
  %s19 = inlined_call_operand.hbm [shape: f32[2,8,32], index: 19, kind: output, shape index: {0}]
  %s20 = inlined_call_operand.vmem [shape: f32[2,8,1], index: 20, kind: output, shape index: {1}]
  %21 = xla_tuple %s19, %s20
  %s22 = sld [smem:[#allocation0]]
  $region117: #{transformer_forward.7} parent=0
    _
  %s24 = ssub.s32 1, %s22
  %s25 = scalar_select 0, %s24, %s22
  %v26 = vstv %s18
  %27 = vst [vmem:[#allocation2] sm:$0x1] %v26
  $region1: #{transformer_forward.7} parent=0
    #allocation3 [shape = 'u8[8192]{0}', space=vmem, size = 0x2000, scoped, tag = 'output window, operand 0']
    #allocation4 [shape = 's32[2]{0}', space=sflag, size = 0x8, scoped, tag = 'scoped memory for transformer_forward.7']
    %28 = vsyncpa [#allocation4], 0
    %s29 = scalar_lea.sflag [#allocation4], 1
    %30 = vsyncpa %s29, 0
    loop: start=0, step=1, limit=4
    $region2: #{transformer_forward.7} parent=1 // loop_pre_header
      _
    $region3: #{transformer_forward.7} parent=1 // loop_header
      %s32 = sphi 0, %s36
      %p33 = scmp.ge.s32.totalorder %s32, 4
      %s42 = sphi 0, %s44
      %s45 = sphi 0, %s42
      %s46 = sphi 0, %s45
      %s62 = sphi 0, %s46
      %s68 = sphi 0, %s70
      %s71 = sphi 0, %s68
      %s72 = sphi 0, %s71
      %s88 = sphi 0, %s72
      %s92 = sphi 0, %s92
      %s94 = sphi 0, %s92
      %s95 = sphi 0, %s94
      %s109 = sphi 0, %s95
      %s113 = sphi 0, %s113
      %s115 = sphi 0, %s113
      %s116 = sphi 0, %s115
      %s130 = sphi 0, %s116
      %s134 = sphi 0, %s134
      %s136 = sphi 0, %s134
      %s137 = sphi 0, %s136
      %s151 = sphi 0, %s137
      %s155 = sphi 0, %s155
      %s157 = sphi 0, %s155
      %s158 = sphi 0, %s157
      %s172 = sphi 0, %s158
      %s176 = sphi 0, %s176
      %s178 = sphi 0, %s176
      %s179 = sphi 0, %s178
      %s193 = sphi 0, %s179
      %s197 = sphi 0, %s197
      %s199 = sphi 0, %s197
      %s200 = sphi 0, %s199
      %s214 = sphi 0, %s200
      %s218 = sphi 0, %s218
      %s220 = sphi 0, %s218
      %s221 = sphi 0, %s220
      %s235 = sphi 0, %s221
      %s239 = sphi 0, %s239
      %s241 = sphi 0, %s239
      %s242 = sphi 0, %s241
      %s256 = sphi 0, %s242
      %s260 = sphi 0, %s260
      %s262 = sphi 0, %s260
      %s263 = sphi 0, %s262
      %s277 = sphi 0, %s263
      %s281 = sphi 0, %s281
      %s283 = sphi 0, %s281
      %s284 = sphi 0, %s283
      %s298 = sphi 0, %s284
      %s302 = sphi 0, %s302
      %s304 = sphi 0, %s302
      %s305 = sphi 0, %s304
      %s319 = sphi 0, %s305
      %s323 = sphi 0, %s323
      %s325 = sphi 0, %s323
      %s326 = sphi 0, %s325
      %s340 = sphi 0, %s326
      %s344 = sphi 0, %s344
      %s346 = sphi 0, %s344
      %s347 = sphi 0, %s346
      %s361 = sphi 0, %s347
      %s365 = sphi 0, %s365
      %s367 = sphi 0, %s365
      %s368 = sphi 0, %s367
      %s382 = sphi 0, %s368
      %s386 = sphi 0, %s386
      %s388 = sphi 0, %s386
      %s389 = sphi 0, %s388
      %s403 = sphi 0, %s389
      %s407 = sphi 0, %s407
      %s409 = sphi 0, %s407
      %s410 = sphi 0, %s409
      %s424 = sphi 0, %s410
      %s428 = sphi 0, %s428
      %s430 = sphi 0, %s428
      %s431 = sphi 0, %s430
      %s445 = sphi 0, %s431
      %s451 = sphi 0, %s453
      %s454 = sphi 0, %s451
      %s455 = sphi 0, %s454
      %s471 = sphi 0, %s455
      %s477 = sphi 0, %s479
      %s480 = sphi 0, %s477
      %s481 = sphi 0, %s480
      %s497 = sphi 0, %s481
    $region4: #{transformer_forward.7} parent=1 // loop_header_branch
      %35 = sbr.rel (%p33) target = $region8
    $region5: #{transformer_forward.7} parent=1 // loop_body
      %s37 = ssub.s32 %s32, 1
      %s38 = ssub.s32 %s32, 2
      %s39 = sadd.s32 %s32, 1
      %s40 = ssub.s32 %s32, %s39
      %p41 = scmp.eq.s32.totalorder %s40, 0
      %s43 = sadd.s32 %s42, 1
      %s44 = scalar_select %p41, %s42, %s43
      %p47 = pneg %p41
      %p48 = scmp.eq.s32.totalorder %s32, 1
      %p49 = por %p47, %p48
      %p50 = scmp.ne.s32.totalorder %s42, %s45
      %p51 = scmp.eq.s32.totalorder %s32, 0
      %p52 = por %p50, %p51
      %p53 = scmp.ne.s32.totalorder %s42, %s45
      %p54 = scmp.eq.s32.totalorder %s37, 1
      %p55 = por %p53, %p54
      %p56 = scmp.ne.s32.totalorder %s45, %s46
      %p57 = scmp.eq.s32.totalorder %s37, 0
      %p58 = por %p56, %p57
      %p59 = scmp.ne.s32.totalorder %s45, %s46
      %p60 = scmp.eq.s32.totalorder %s38, 1
      %p61 = por %p59, %p60
      %p63 = scmp.ne.s32.totalorder %s46, %s62
      %p64 = scmp.eq.s32.totalorder %s38, 0
      %p65 = por %p63, %p64
      %s66 = ssub.s32 %s32, %s39
      %p67 = scmp.eq.s32.totalorder %s66, 0
      %s69 = sadd.s32 %s68, 1
      %s70 = scalar_select %p67, %s68, %s69
      %p73 = pneg %p67
      %p74 = scmp.eq.s32.totalorder %s32, 1
      %p75 = por %p73, %p74
      %p76 = scmp.ne.s32.totalorder %s68, %s71
      %p77 = scmp.eq.s32.totalorder %s32, 0
      %p78 = por %p76, %p77
      %p79 = scmp.ne.s32.totalorder %s68, %s71
      %p80 = scmp.eq.s32.totalorder %s37, 1
      %p81 = por %p79, %p80
      %p82 = scmp.ne.s32.totalorder %s71, %s72
      %p83 = scmp.eq.s32.totalorder %s37, 0
      %p84 = por %p82, %p83
      %p85 = scmp.ne.s32.totalorder %s71, %s72
      %p86 = scmp.eq.s32.totalorder %s38, 1
      %p87 = por %p85, %p86
      %p89 = scmp.ne.s32.totalorder %s72, %s88
      %p90 = scmp.eq.s32.totalorder %s38, 0
      %p91 = por %p89, %p90
      %s93 = sadd.s32 %s92, 1
      %p96 = scmp.eq.s32.totalorder %s32, 1
      %p97 = scmp.ne.s32.totalorder %s92, %s94
      %p98 = scmp.eq.s32.totalorder %s32, 0
      %p99 = por %p97, %p98
      %p100 = scmp.ne.s32.totalorder %s92, %s94
      %p101 = scmp.eq.s32.totalorder %s37, 1
      %p102 = por %p100, %p101
      %p103 = scmp.ne.s32.totalorder %s94, %s95
      %p104 = scmp.eq.s32.totalorder %s37, 0
      %p105 = por %p103, %p104
      %p106 = scmp.ne.s32.totalorder %s94, %s95
      %p107 = scmp.eq.s32.totalorder %s38, 1
      %p108 = por %p106, %p107
      %p110 = scmp.ne.s32.totalorder %s95, %s109
      %p111 = scmp.eq.s32.totalorder %s38, 0
      %p112 = por %p110, %p111
      %s114 = sadd.s32 %s113, 1
      %p117 = scmp.eq.s32.totalorder %s32, 1
      %p118 = scmp.ne.s32.totalorder %s113, %s115
      %p119 = scmp.eq.s32.totalorder %s32, 0
      %p120 = por %p118, %p119
      %p121 = scmp.ne.s32.totalorder %s113, %s115
      %p122 = scmp.eq.s32.totalorder %s37, 1
      %p123 = por %p121, %p122
      %p124 = scmp.ne.s32.totalorder %s115, %s116
      %p125 = scmp.eq.s32.totalorder %s37, 0
      %p126 = por %p124, %p125
      %p127 = scmp.ne.s32.totalorder %s115, %s116
      %p128 = scmp.eq.s32.totalorder %s38, 1
      %p129 = por %p127, %p128
      %p131 = scmp.ne.s32.totalorder %s116, %s130
      %p132 = scmp.eq.s32.totalorder %s38, 0
      %p133 = por %p131, %p132
      %s135 = sadd.s32 %s134, 1
      %p138 = scmp.eq.s32.totalorder %s32, 1
      %p139 = scmp.ne.s32.totalorder %s134, %s136
      %p140 = scmp.eq.s32.totalorder %s32, 0
      %p141 = por %p139, %p140
      %p142 = scmp.ne.s32.totalorder %s134, %s136
      %p143 = scmp.eq.s32.totalorder %s37, 1
      %p144 = por %p142, %p143
      %p145 = scmp.ne.s32.totalorder %s136, %s137
      %p146 = scmp.eq.s32.totalorder %s37, 0
      %p147 = por %p145, %p146
      %p148 = scmp.ne.s32.totalorder %s136, %s137
      %p149 = scmp.eq.s32.totalorder %s38, 1
      %p150 = por %p148, %p149
      %p152 = scmp.ne.s32.totalorder %s137, %s151
      %p153 = scmp.eq.s32.totalorder %s38, 0
      %p154 = por %p152, %p153
      %s156 = sadd.s32 %s155, 1
      %p159 = scmp.eq.s32.totalorder %s32, 1
      %p160 = scmp.ne.s32.totalorder %s155, %s157
      %p161 = scmp.eq.s32.totalorder %s32, 0
      %p162 = por %p160, %p161
      %p163 = scmp.ne.s32.totalorder %s155, %s157
      %p164 = scmp.eq.s32.totalorder %s37, 1
      %p165 = por %p163, %p164
      %p166 = scmp.ne.s32.totalorder %s157, %s158
      %p167 = scmp.eq.s32.totalorder %s37, 0
      %p168 = por %p166, %p167
      %p169 = scmp.ne.s32.totalorder %s157, %s158
      %p170 = scmp.eq.s32.totalorder %s38, 1
      %p171 = por %p169, %p170
      %p173 = scmp.ne.s32.totalorder %s158, %s172
      %p174 = scmp.eq.s32.totalorder %s38, 0
      %p175 = por %p173, %p174
      %s177 = sadd.s32 %s176, 1
      %p180 = scmp.eq.s32.totalorder %s32, 1
      %p181 = scmp.ne.s32.totalorder %s176, %s178
      %p182 = scmp.eq.s32.totalorder %s32, 0
      %p183 = por %p181, %p182
      %p184 = scmp.ne.s32.totalorder %s176, %s178
      %p185 = scmp.eq.s32.totalorder %s37, 1
      %p186 = por %p184, %p185
      %p187 = scmp.ne.s32.totalorder %s178, %s179
      %p188 = scmp.eq.s32.totalorder %s37, 0
      %p189 = por %p187, %p188
      %p190 = scmp.ne.s32.totalorder %s178, %s179
      %p191 = scmp.eq.s32.totalorder %s38, 1
      %p192 = por %p190, %p191
      %p194 = scmp.ne.s32.totalorder %s179, %s193
      %p195 = scmp.eq.s32.totalorder %s38, 0
      %p196 = por %p194, %p195
      %s198 = sadd.s32 %s197, 1
      %p201 = scmp.eq.s32.totalorder %s32, 1
      %p202 = scmp.ne.s32.totalorder %s197, %s199
      %p203 = scmp.eq.s32.totalorder %s32, 0
      %p204 = por %p202, %p203
      %p205 = scmp.ne.s32.totalorder %s197, %s199
      %p206 = scmp.eq.s32.totalorder %s37, 1
      %p207 = por %p205, %p206
      %p208 = scmp.ne.s32.totalorder %s199, %s200
      %p209 = scmp.eq.s32.totalorder %s37, 0
      %p210 = por %p208, %p209
      %p211 = scmp.ne.s32.totalorder %s199, %s200
      %p212 = scmp.eq.s32.totalorder %s38, 1
      %p213 = por %p211, %p212
      %p215 = scmp.ne.s32.totalorder %s200, %s214
      %p216 = scmp.eq.s32.totalorder %s38, 0
      %p217 = por %p215, %p216
      %s219 = sadd.s32 %s218, 1
      %p222 = scmp.eq.s32.totalorder %s32, 1
      %p223 = scmp.ne.s32.totalorder %s218, %s220
      %p224 = scmp.eq.s32.totalorder %s32, 0
      %p225 = por %p223, %p224
      %p226 = scmp.ne.s32.totalorder %s218, %s220
      %p227 = scmp.eq.s32.totalorder %s37, 1
      %p228 = por %p226, %p227
      %p229 = scmp.ne.s32.totalorder %s220, %s221
      %p230 = scmp.eq.s32.totalorder %s37, 0
      %p231 = por %p229, %p230
      %p232 = scmp.ne.s32.totalorder %s220, %s221
      %p233 = scmp.eq.s32.totalorder %s38, 1
      %p234 = por %p232, %p233
      %p236 = scmp.ne.s32.totalorder %s221, %s235
      %p237 = scmp.eq.s32.totalorder %s38, 0
      %p238 = por %p236, %p237
      %s240 = sadd.s32 %s239, 1
      %p243 = scmp.eq.s32.totalorder %s32, 1
      %p244 = scmp.ne.s32.totalorder %s239, %s241
      %p245 = scmp.eq.s32.totalorder %s32, 0
      %p246 = por %p244, %p245
      %p247 = scmp.ne.s32.totalorder %s239, %s241
      %p248 = scmp.eq.s32.totalorder %s37, 1
      %p249 = por %p247, %p248
      %p250 = scmp.ne.s32.totalorder %s241, %s242
      %p251 = scmp.eq.s32.totalorder %s37, 0
      %p252 = por %p250, %p251
      %p253 = scmp.ne.s32.totalorder %s241, %s242
      %p254 = scmp.eq.s32.totalorder %s38, 1
      %p255 = por %p253, %p254
      %p257 = scmp.ne.s32.totalorder %s242, %s256
      %p258 = scmp.eq.s32.totalorder %s38, 0
      %p259 = por %p257, %p258
      %s261 = sadd.s32 %s260, 1
      %p264 = scmp.eq.s32.totalorder %s32, 1
      %p265 = scmp.ne.s32.totalorder %s260, %s262
      %p266 = scmp.eq.s32.totalorder %s32, 0
      %p267 = por %p265, %p266
      %p268 = scmp.ne.s32.totalorder %s260, %s262
      %p269 = scmp.eq.s32.totalorder %s37, 1
      %p270 = por %p268, %p269
      %p271 = scmp.ne.s32.totalorder %s262, %s263
      %p272 = scmp.eq.s32.totalorder %s37, 0
      %p273 = por %p271, %p272
      %p274 = scmp.ne.s32.totalorder %s262, %s263
      %p275 = scmp.eq.s32.totalorder %s38, 1
      %p276 = por %p274, %p275
      %p278 = scmp.ne.s32.totalorder %s263, %s277
      %p279 = scmp.eq.s32.totalorder %s38, 0
      %p280 = por %p278, %p279
      %s282 = sadd.s32 %s281, 1
      %p285 = scmp.eq.s32.totalorder %s32, 1
      %p286 = scmp.ne.s32.totalorder %s281, %s283
      %p287 = scmp.eq.s32.totalorder %s32, 0
      %p288 = por %p286, %p287
      %p289 = scmp.ne.s32.totalorder %s281, %s283
      %p290 = scmp.eq.s32.totalorder %s37, 1
      %p291 = por %p289, %p290
      %p292 = scmp.ne.s32.totalorder %s283, %s284
      %p293 = scmp.eq.s32.totalorder %s37, 0
      %p294 = por %p292, %p293
      %p295 = scmp.ne.s32.totalorder %s283, %s284
      %p296 = scmp.eq.s32.totalorder %s38, 1
      %p297 = por %p295, %p296
      %p299 = scmp.ne.s32.totalorder %s284, %s298
      %p300 = scmp.eq.s32.totalorder %s38, 0
      %p301 = por %p299, %p300
      %s303 = sadd.s32 %s302, 1
      %p306 = scmp.eq.s32.totalorder %s32, 1
      %p307 = scmp.ne.s32.totalorder %s302, %s304
      %p308 = scmp.eq.s32.totalorder %s32, 0
      %p309 = por %p307, %p308
      %p310 = scmp.ne.s32.totalorder %s302, %s304
      %p311 = scmp.eq.s32.totalorder %s37, 1
      %p312 = por %p310, %p311
      %p313 = scmp.ne.s32.totalorder %s304, %s305
      %p314 = scmp.eq.s32.totalorder %s37, 0
      %p315 = por %p313, %p314
      %p316 = scmp.ne.s32.totalorder %s304, %s305
      %p317 = scmp.eq.s32.totalorder %s38, 1
      %p318 = por %p316, %p317
      %p320 = scmp.ne.s32.totalorder %s305, %s319
      %p321 = scmp.eq.s32.totalorder %s38, 0
      %p322 = por %p320, %p321
      %s324 = sadd.s32 %s323, 1
      %p327 = scmp.eq.s32.totalorder %s32, 1
      %p328 = scmp.ne.s32.totalorder %s323, %s325
      %p329 = scmp.eq.s32.totalorder %s32, 0
      %p330 = por %p328, %p329
      %p331 = scmp.ne.s32.totalorder %s323, %s325
      %p332 = scmp.eq.s32.totalorder %s37, 1
      %p333 = por %p331, %p332
      %p334 = scmp.ne.s32.totalorder %s325, %s326
      %p335 = scmp.eq.s32.totalorder %s37, 0
      %p336 = por %p334, %p335
      %p337 = scmp.ne.s32.totalorder %s325, %s326
      %p338 = scmp.eq.s32.totalorder %s38, 1
      %p339 = por %p337, %p338
      %p341 = scmp.ne.s32.totalorder %s326, %s340
      %p342 = scmp.eq.s32.totalorder %s38, 0
      %p343 = por %p341, %p342
      %s345 = sadd.s32 %s344, 1
      %p348 = scmp.eq.s32.totalorder %s32, 1
      %p349 = scmp.ne.s32.totalorder %s344, %s346
      %p350 = scmp.eq.s32.totalorder %s32, 0
      %p351 = por %p349, %p350
      %p352 = scmp.ne.s32.totalorder %s344, %s346
      %p353 = scmp.eq.s32.totalorder %s37, 1
      %p354 = por %p352, %p353
      %p355 = scmp.ne.s32.totalorder %s346, %s347
      %p356 = scmp.eq.s32.totalorder %s37, 0
      %p357 = por %p355, %p356
      %p358 = scmp.ne.s32.totalorder %s346, %s347
      %p359 = scmp.eq.s32.totalorder %s38, 1
      %p360 = por %p358, %p359
      %p362 = scmp.ne.s32.totalorder %s347, %s361
      %p363 = scmp.eq.s32.totalorder %s38, 0
      %p364 = por %p362, %p363
      %s366 = sadd.s32 %s365, 1
      %p369 = scmp.eq.s32.totalorder %s32, 1
      %p370 = scmp.ne.s32.totalorder %s365, %s367
      %p371 = scmp.eq.s32.totalorder %s32, 0
      %p372 = por %p370, %p371
      %p373 = scmp.ne.s32.totalorder %s365, %s367
      %p374 = scmp.eq.s32.totalorder %s37, 1
      %p375 = por %p373, %p374
      %p376 = scmp.ne.s32.totalorder %s367, %s368
      %p377 = scmp.eq.s32.totalorder %s37, 0
      %p378 = por %p376, %p377
      %p379 = scmp.ne.s32.totalorder %s367, %s368
      %p380 = scmp.eq.s32.totalorder %s38, 1
      %p381 = por %p379, %p380
      %p383 = scmp.ne.s32.totalorder %s368, %s382
      %p384 = scmp.eq.s32.totalorder %s38, 0
      %p385 = por %p383, %p384
      %s387 = sadd.s32 %s386, 1
      %p390 = scmp.eq.s32.totalorder %s32, 1
      %p391 = scmp.ne.s32.totalorder %s386, %s388
      %p392 = scmp.eq.s32.totalorder %s32, 0
      %p393 = por %p391, %p392
      %p394 = scmp.ne.s32.totalorder %s386, %s388
      %p395 = scmp.eq.s32.totalorder %s37, 1
      %p396 = por %p394, %p395
      %p397 = scmp.ne.s32.totalorder %s388, %s389
      %p398 = scmp.eq.s32.totalorder %s37, 0
      %p399 = por %p397, %p398
      %p400 = scmp.ne.s32.totalorder %s388, %s389
      %p401 = scmp.eq.s32.totalorder %s38, 1
      %p402 = por %p400, %p401
      %p404 = scmp.ne.s32.totalorder %s389, %s403
      %p405 = scmp.eq.s32.totalorder %s38, 0
      %p406 = por %p404, %p405
      %s408 = sadd.s32 %s407, 1
      %p411 = scmp.eq.s32.totalorder %s32, 1
      %p412 = scmp.ne.s32.totalorder %s407, %s409
      %p413 = scmp.eq.s32.totalorder %s32, 0
      %p414 = por %p412, %p413
      %p415 = scmp.ne.s32.totalorder %s407, %s409
      %p416 = scmp.eq.s32.totalorder %s37, 1
      %p417 = por %p415, %p416
      %p418 = scmp.ne.s32.totalorder %s409, %s410
      %p419 = scmp.eq.s32.totalorder %s37, 0
      %p420 = por %p418, %p419
      %p421 = scmp.ne.s32.totalorder %s409, %s410
      %p422 = scmp.eq.s32.totalorder %s38, 1
      %p423 = por %p421, %p422
      %p425 = scmp.ne.s32.totalorder %s410, %s424
      %p426 = scmp.eq.s32.totalorder %s38, 0
      %p427 = por %p425, %p426
      %s429 = sadd.s32 %s428, 1
      %p432 = scmp.eq.s32.totalorder %s32, 1
      %p433 = scmp.ne.s32.totalorder %s428, %s430
      %p434 = scmp.eq.s32.totalorder %s32, 0
      %p435 = por %p433, %p434
      %p436 = scmp.ne.s32.totalorder %s428, %s430
      %p437 = scmp.eq.s32.totalorder %s37, 1
      %p438 = por %p436, %p437
      %p439 = scmp.ne.s32.totalorder %s430, %s431
      %p440 = scmp.eq.s32.totalorder %s37, 0
      %p441 = por %p439, %p440
      %p442 = scmp.ne.s32.totalorder %s430, %s431
      %p443 = scmp.eq.s32.totalorder %s38, 1
      %p444 = por %p442, %p443
      %p446 = scmp.ne.s32.totalorder %s431, %s445
      %p447 = scmp.eq.s32.totalorder %s38, 0
      %p448 = por %p446, %p447
      %s449 = ssub.s32 %s32, %s39
      %p450 = scmp.eq.s32.totalorder %s449, 0
      %s452 = sadd.s32 %s451, 1
      %s453 = scalar_select %p450, %s451, %s452
      %p456 = pneg %p450
      %p457 = scmp.eq.s32.totalorder %s32, 1
      %p458 = por %p456, %p457
      %p459 = scmp.ne.s32.totalorder %s451, %s454
      %p460 = scmp.eq.s32.totalorder %s32, 0
      %p461 = por %p459, %p460
      %p462 = scmp.ne.s32.totalorder %s451, %s454
      %p463 = scmp.eq.s32.totalorder %s37, 1
      %p464 = por %p462, %p463
      %p465 = scmp.ne.s32.totalorder %s454, %s455
      %p466 = scmp.eq.s32.totalorder %s37, 0
      %p467 = por %p465, %p466
      %p468 = scmp.ne.s32.totalorder %s454, %s455
      %p469 = scmp.eq.s32.totalorder %s38, 1
      %p470 = por %p468, %p469
      %p472 = scmp.ne.s32.totalorder %s455, %s471
      %p473 = scmp.eq.s32.totalorder %s38, 0
      %p474 = por %p472, %p473
      %s475 = ssub.s32 %s32, %s39
      %p476 = scmp.eq.s32.totalorder %s475, 0
      %s478 = sadd.s32 %s477, 1
      %s479 = scalar_select %p476, %s477, %s478
      %p482 = pneg %p476
      %p483 = scmp.eq.s32.totalorder %s32, 1
      %p484 = por %p482, %p483
      %p485 = scmp.ne.s32.totalorder %s477, %s480
      %p486 = scmp.eq.s32.totalorder %s32, 0
      %p487 = por %p485, %p486
      %p488 = scmp.ne.s32.totalorder %s477, %s480
      %p489 = scmp.eq.s32.totalorder %s37, 1
      %p490 = por %p488, %p489
      %p491 = scmp.ne.s32.totalorder %s480, %s481
      %p492 = scmp.eq.s32.totalorder %s37, 0
      %p493 = por %p491, %p492
      %p494 = scmp.ne.s32.totalorder %s480, %s481
      %p495 = scmp.eq.s32.totalorder %s38, 1
      %p496 = por %p494, %p495
      %p498 = scmp.ne.s32.totalorder %s481, %s497
      %p499 = scmp.eq.s32.totalorder %s38, 0
      %p500 = por %p498, %p499
      %p501 = scmp.le.s32.totalorder 1, %s32
      %p502 = scmp.lt.s32.totalorder %s32, 3
      %p503 = pnand %p501, %p502
      %p504 = pneg %p503
      // Predicated region
      $region9: #{transformer_forward.7} parent=5 // pred_check
        _
      $region10: #{transformer_forward.7} parent=5 // pred_check_branch
        %506 = sbr.rel (%p503) target = $region12
      $region11: #{transformer_forward.7} parent=5 // pred_region
        %s507 = ssub.s32 %s32, 1
        // Predicated region
        $region13: #{transformer_forward.7} parent=11 // pred_check
          %p508 = pneg %p105
        $region14: #{transformer_forward.7} parent=11 // pred_check_branch
          %510 = sbr.rel (%p508) target = $region16
        $region15: #{transformer_forward.7} parent=11 // pred_region
          _
        $region16: #{transformer_forward.7} parent=11 // pred_fallthru
          _
        // Predicated region
        $region17: #{transformer_forward.7} parent=11 // pred_check
          %p511 = pneg %p126
        $region18: #{transformer_forward.7} parent=11 // pred_check_branch
          %513 = sbr.rel (%p511) target = $region20
        $region19: #{transformer_forward.7} parent=11 // pred_region
          _
        $region20: #{transformer_forward.7} parent=11 // pred_fallthru
          _
        // Predicated region
        $region21: #{transformer_forward.7} parent=11 // pred_check
          %p514 = pneg %p147
        $region22: #{transformer_forward.7} parent=11 // pred_check_branch
          %516 = sbr.rel (%p514) target = $region24
        $region23: #{transformer_forward.7} parent=11 // pred_region
          _
        $region24: #{transformer_forward.7} parent=11 // pred_fallthru
          _
        // Predicated region
        $region25: #{transformer_forward.7} parent=11 // pred_check
          %p517 = pneg %p168
        $region26: #{transformer_forward.7} parent=11 // pred_check_branch
          %519 = sbr.rel (%p517) target = $region28
        $region27: #{transformer_forward.7} parent=11 // pred_region
          _
        $region28: #{transformer_forward.7} parent=11 // pred_fallthru
          _
        // Predicated region
        $region29: #{transformer_forward.7} parent=11 // pred_check
          %p520 = pneg %p189
        $region30: #{transformer_forward.7} parent=11 // pred_check_branch
          %522 = sbr.rel (%p520) target = $region32
        $region31: #{transformer_forward.7} parent=11 // pred_region
          _
        $region32: #{transformer_forward.7} parent=11 // pred_fallthru
          _
        // Predicated region
        $region33: #{transformer_forward.7} parent=11 // pred_check
          %p523 = pneg %p210
        $region34: #{transformer_forward.7} parent=11 // pred_check_branch
          %525 = sbr.rel (%p523) target = $region36
        $region35: #{transformer_forward.7} parent=11 // pred_region
          _
        $region36: #{transformer_forward.7} parent=11 // pred_fallthru
          _
        // Predicated region
        $region37: #{transformer_forward.7} parent=11 // pred_check
          %p526 = pneg %p231
        $region38: #{transformer_forward.7} parent=11 // pred_check_branch
          %528 = sbr.rel (%p526) target = $region40
        $region39: #{transformer_forward.7} parent=11 // pred_region
          _
        $region40: #{transformer_forward.7} parent=11 // pred_fallthru
          _
        // Predicated region
        $region41: #{transformer_forward.7} parent=11 // pred_check
          %p529 = pneg %p252
        $region42: #{transformer_forward.7} parent=11 // pred_check_branch
          %531 = sbr.rel (%p529) target = $region44
        $region43: #{transformer_forward.7} parent=11 // pred_region
          _
        $region44: #{transformer_forward.7} parent=11 // pred_fallthru
          _
        // Predicated region
        $region45: #{transformer_forward.7} parent=11 // pred_check
          %p532 = pneg %p273
        $region46: #{transformer_forward.7} parent=11 // pred_check_branch
          %534 = sbr.rel (%p532) target = $region48
        $region47: #{transformer_forward.7} parent=11 // pred_region
          _
        $region48: #{transformer_forward.7} parent=11 // pred_fallthru
          _
        // Predicated region
        $region49: #{transformer_forward.7} parent=11 // pred_check
          %p535 = pneg %p294
        $region50: #{transformer_forward.7} parent=11 // pred_check_branch
          %537 = sbr.rel (%p535) target = $region52
        $region51: #{transformer_forward.7} parent=11 // pred_region
          _
        $region52: #{transformer_forward.7} parent=11 // pred_fallthru
          _
        // Predicated region
        $region53: #{transformer_forward.7} parent=11 // pred_check
          %p538 = pneg %p315
        $region54: #{transformer_forward.7} parent=11 // pred_check_branch
          %540 = sbr.rel (%p538) target = $region56
        $region55: #{transformer_forward.7} parent=11 // pred_region
          _
        $region56: #{transformer_forward.7} parent=11 // pred_fallthru
          _
        // Predicated region
        $region57: #{transformer_forward.7} parent=11 // pred_check
          %p541 = pneg %p336
        $region58: #{transformer_forward.7} parent=11 // pred_check_branch
          %543 = sbr.rel (%p541) target = $region60
        $region59: #{transformer_forward.7} parent=11 // pred_region
          _
        $region60: #{transformer_forward.7} parent=11 // pred_fallthru
          _
        // Predicated region
        $region61: #{transformer_forward.7} parent=11 // pred_check
          %p544 = pneg %p357
        $region62: #{transformer_forward.7} parent=11 // pred_check_branch
          %546 = sbr.rel (%p544) target = $region64
        $region63: #{transformer_forward.7} parent=11 // pred_region
          _
        $region64: #{transformer_forward.7} parent=11 // pred_fallthru
          _
        // Predicated region
        $region65: #{transformer_forward.7} parent=11 // pred_check
          %p547 = pneg %p378
        $region66: #{transformer_forward.7} parent=11 // pred_check_branch
          %549 = sbr.rel (%p547) target = $region68
        $region67: #{transformer_forward.7} parent=11 // pred_region
          _
        $region68: #{transformer_forward.7} parent=11 // pred_fallthru
          _
        // Predicated region
        $region69: #{transformer_forward.7} parent=11 // pred_check
          %p550 = pneg %p399
        $region70: #{transformer_forward.7} parent=11 // pred_check_branch
          %552 = sbr.rel (%p550) target = $region72
        $region71: #{transformer_forward.7} parent=11 // pred_region
          _
        $region72: #{transformer_forward.7} parent=11 // pred_fallthru
          _
        // Predicated region
        $region73: #{transformer_forward.7} parent=11 // pred_check
          %p553 = pneg %p420
        $region74: #{transformer_forward.7} parent=11 // pred_check_branch
          %555 = sbr.rel (%p553) target = $region76
        $region75: #{transformer_forward.7} parent=11 // pred_region
          _
        $region76: #{transformer_forward.7} parent=11 // pred_fallthru
          _
        // Predicated region
        $region77: #{transformer_forward.7} parent=11 // pred_check
          %p556 = pneg %p441
        $region78: #{transformer_forward.7} parent=11 // pred_check_branch
          %558 = sbr.rel (%p556) target = $region80
        $region79: #{transformer_forward.7} parent=11 // pred_region
          _
        $region80: #{transformer_forward.7} parent=11 // pred_fallthru
          _
      $region12: #{transformer_forward.7} parent=5 // pred_fallthru
        _
      %p559 = scmp.lt.s32.totalorder %s32, 2
      // Predicated region
      $region81: #{transformer_forward.7} parent=5 // pred_check
        %p560 = pneg %p559
      $region82: #{transformer_forward.7} parent=5 // pred_check_branch
        %562 = sbr.rel (%p560) target = $region84
      $region83: #{transformer_forward.7} parent=5 // pred_region
        // Predicated region
        $region85: #{transformer_forward.7} parent=83 // pred_check
          %p563 = pneg %p52
        $region86: #{transformer_forward.7} parent=83 // pred_check_branch
          %565 = sbr.rel (%p563) target = $region88
        $region87: #{transformer_forward.7} parent=83 // pred_region
          %p566 = scmp.lt.s32.totalorder %s32, 1
          %s567 = scalar_select %p566, %s32, 1
          %s568 = smul.addr %s567, 8
          %s569 = scalar_lea.vmem %s0, %s568
        $region88: #{transformer_forward.7} parent=83 // pred_fallthru
          _
        // Predicated region
        $region89: #{transformer_forward.7} parent=83 // pred_check
          %p570 = pneg %p78
        $region90: #{transformer_forward.7} parent=83 // pred_check_branch
          %572 = sbr.rel (%p570) target = $region92
        $region91: #{transformer_forward.7} parent=83 // pred_region
          %p573 = scmp.lt.s32.totalorder %s32, 1
          %s574 = scalar_select %p573, %s32, 1
          %s575 = smul.addr %s574, 8
          %s576 = scalar_lea.vmem %s1, %s575
        $region92: #{transformer_forward.7} parent=83 // pred_fallthru
          _
      $region84: #{transformer_forward.7} parent=5 // pred_fallthru
        _
      %p577 = scmp.le.s32.totalorder 1, %s32
      %p578 = scmp.lt.s32.totalorder %s32, 3
      %p579 = pnand %p577, %p578
      %p580 = pneg %p579
      // Predicated region
      $region93: #{transformer_forward.7} parent=5 // pred_check
        _
      $region94: #{transformer_forward.7} parent=5 // pred_check_branch
        %582 = sbr.rel (%p579) target = $region96
      $region95: #{transformer_forward.7} parent=5 // pred_region
        %s583 = ssub.s32 %s32, 1
        %p584 = scmp.lt.s32.totalorder %s37, 1
        %s585 = scalar_select %p584, %s37, 1
        %s586 = smul.addr %s585, 8
        %s587 = scalar_lea.vmem %s0, %s586
        %p588 = pneg %p58
        %p589 = pneg %p55
        %p590 = scmp.lt.s32.totalorder %s37, 1
        %s591 = scalar_select %p590, %s37, 1
        %s592 = smul.addr %s591, 8
        %s593 = scalar_lea.vmem %s1, %s592
        %p594 = pneg %p84
        %p595 = pneg %p81
        %p596 = pneg %p105
        %p597 = pneg %p102
        %p598 = pneg %p126
        %p599 = pneg %p123
        %p600 = pneg %p147
        %p601 = pneg %p144
        %p602 = pneg %p168
        %p603 = pneg %p165
        %p604 = pneg %p189
        %p605 = pneg %p186
        %p606 = pneg %p210
        %p607 = pneg %p207
        %p608 = pneg %p231
        %p609 = pneg %p228
        %p610 = pneg %p252
        %p611 = pneg %p249
        %p612 = pneg %p273
        %p613 = pneg %p270
        %p614 = pneg %p294
        %p615 = pneg %p291
        %p616 = pneg %p315
        %p617 = pneg %p312
        %p618 = pneg %p336
        %p619 = pneg %p333
        %p620 = pneg %p357
        %p621 = pneg %p354
        %p622 = pneg %p378
        %p623 = pneg %p375
        %p624 = pneg %p399
        %p625 = pneg %p396
        %p626 = pneg %p420
        %p627 = pneg %p417
        %p628 = pneg %p441
        %p629 = pneg %p438
        %p630 = pneg %p467
        %p631 = pneg %p464
        %s632 = sand.u32 %s454, 1
        %s633 = scalar_lea.sflag [#allocation4], %s632
        %s634 = sand.u32 %s454, 1
        %s635 = smul.addr %s634, 8
        %s636 = scalar_lea.vmem [#allocation3], %s635
        %p637 = pneg %p493
        %p638 = pneg %p490
        %p639 = scmp.lt.s32.totalorder %s37, 1
        %s640 = scalar_select %p639, %s37, 1
        %s641 = smul.addr %s640, 8
        %s642 = scalar_lea.vmem %s20, %s641
        %p643 = scmp.lt.s32.totalorder %s37, 1
        %s644 = scalar_select %p643, %s37, 1
        %s645 = smul.addr %s644, 8
        %s646 = scalar_lea.vmem %s0, %s645
        %p647 = scmp.lt.s32.totalorder %s37, 1
        %s648 = scalar_select %p647, %s37, 1
        %s649 = smul.addr %s648, 8
        %s650 = scalar_lea.vmem %s1, %s649
        %p651 = scmp.lt.s32.totalorder %s37, 1
        %s652 = scalar_select %p651, %s37, 1
        %s653 = smul.addr %s652, 8
        %s654 = scalar_lea.vmem %s20, %s653
        %v656 = vld [vmem:[%s646] sm:$0xff]
        %v657 = vld [vmem:[%s650] sm:$0xff]
        %v658 = vld [vmem:[%s2] sm:$0xff]
        %v659 = vpack.c.bf16 %v656, %v656
        %v660 = vld [vmem:[%s3] sm:$0xf]
        %v661 = vld [vmem:[%s3 + $0x4] sm:$0xf]
        %v662 = vld [vmem:[%s3 + $0x8] sm:$0xf]
        %v663 = vld [vmem:[%s3 + $0xc] sm:$0xf]
        %v664 = vld [vmem:[%s3 + $0x10] sm:$0xf]
        %v665 = vld [vmem:[%s3 + $0x14] sm:$0xf]
        %v666 = vld [vmem:[%s3 + $0x18] sm:$0xf]
        %v667 = vld [vmem:[%s3 + $0x1c] sm:$0xf]
        %v668 = vld [vmem:[%s3 + $0x20] sm:$0xf]
        %v669 = vld [vmem:[%s3 + $0x24] sm:$0xf]
        %v670 = vld [vmem:[%s3 + $0x28] sm:$0xf]
        %v671 = vld [vmem:[%s3 + $0x2c] sm:$0xf]
        %v672 = vld [vmem:[%s3 + $0x30] sm:$0xf]
        %v673 = vld [vmem:[%s3 + $0x34] sm:$0xf]
        %v674 = vld [vmem:[%s3 + $0x38] sm:$0xf]
        %v675 = vld [vmem:[%s3 + $0x3c] sm:$0xf]
        %v676 = vld [vmem:[%s4] sm:$0x1]
        %v677 = vld [vmem:[%s4 + $0x1] sm:$0x1]
        %v678 = vld [vmem:[%s4 + $0x2] sm:$0x1]
        %v679 = vld [vmem:[%s4 + $0x3] sm:$0x1]
        %v684 = vperm.slane %v676, 0
        %v685 = vperm.slane %v677, 0
        %v686 = vperm.slane %v678, 0
        %v687 = vperm.slane %v679, 0
        %v696 = vunpack.c.l.b16 %v660
        %v697 = vunpack.c.l.b16 %v661
        %v698 = vunpack.c.l.b16 %v662
        %v699 = vunpack.c.l.b16 %v663
        %v700 = vpack.c.b16 %v697, %v696
        %v701 = vpack.c.b16 %v699, %v698
        %vm704 = vcmask 261120
        %v706 = vsel %vm704, %v659, 0
        %708 = vmatpush.bf16.msra.mxu0 0
        %709 = vmatpush.bf16.msra.mxu0 0
        %710 = vmatpush.bf16.msra.mxu0 0
        %711 = vmatpush.bf16.msra.mxu0 0
        %712 = vmatpush.bf16.msra.mxu0 0
        %713 = vmatpush.bf16.msra.mxu0 0
        %714 = vmatpush.bf16.msra.mxu0 %v701
        %715 = vmatpush.bf16.msra.mxu0 %v700
        %716 = vmatmul.bf16.gmra.mxu0 %v706
        %v717 = vpop.f32.mrf.mxu0
        %v718 = vadd.f32 %v684, %v717
        %v719 = vpop.f32.mrf.mxu0
        %720 = vdwg.mxu0
        %v725 = vunpack.c.l.b16 %v664
        %v726 = vunpack.c.l.b16 %v665
        %v727 = vunpack.c.l.b16 %v666
        %v728 = vunpack.c.l.b16 %v667
        %v729 = vpack.c.b16 %v726, %v725
        %v730 = vpack.c.b16 %v728, %v727
        %733 = vmatpush.bf16.msra.mxu0 0
        %734 = vmatpush.bf16.msra.mxu0 0
        %735 = vmatpush.bf16.msra.mxu0 0
        %736 = vmatpush.bf16.msra.mxu0 0
        %737 = vmatpush.bf16.msra.mxu0 0
        %738 = vmatpush.bf16.msra.mxu0 0
        %739 = vmatpush.bf16.msra.mxu0 %v730
        %740 = vmatpush.bf16.msra.mxu0 %v729
        %741 = vmatmul.bf16.gmra.mxu0 %v706
        %v742 = vpop.f32.mrf.mxu0
        %v743 = vadd.f32 %v685, %v742
        %v744 = vpop.f32.mrf.mxu0
        %745 = vdwg.mxu0
        %v750 = vunpack.c.l.b16 %v668
        %v751 = vunpack.c.l.b16 %v669
        %v752 = vunpack.c.l.b16 %v670
        %v753 = vunpack.c.l.b16 %v671
        %v754 = vpack.c.b16 %v751, %v750
        %v755 = vpack.c.b16 %v753, %v752
        %758 = vmatpush.bf16.msra.mxu0 0
        %759 = vmatpush.bf16.msra.mxu0 0
        %760 = vmatpush.bf16.msra.mxu0 0
        %761 = vmatpush.bf16.msra.mxu0 0
        %762 = vmatpush.bf16.msra.mxu0 0
        %763 = vmatpush.bf16.msra.mxu0 0
        %764 = vmatpush.bf16.msra.mxu0 %v755
        %765 = vmatpush.bf16.msra.mxu0 %v754
        %766 = vmatmul.bf16.gmra.mxu0 %v706
        %v767 = vpop.f32.mrf.mxu0
        %v768 = vadd.f32 %v686, %v767
        %v769 = vpop.f32.mrf.mxu0
        %770 = vdwg.mxu0
        %v775 = vunpack.c.l.b16 %v672
        %v776 = vunpack.c.l.b16 %v673
        %v777 = vunpack.c.l.b16 %v674
        %v778 = vunpack.c.l.b16 %v675
        %v779 = vpack.c.b16 %v776, %v775
        %v780 = vpack.c.b16 %v778, %v777
        %783 = vmatpush.bf16.msra.mxu0 0
        %784 = vmatpush.bf16.msra.mxu0 0
        %785 = vmatpush.bf16.msra.mxu0 0
        %786 = vmatpush.bf16.msra.mxu0 0
        %787 = vmatpush.bf16.msra.mxu0 0
        %788 = vmatpush.bf16.msra.mxu0 0
        %789 = vmatpush.bf16.msra.mxu0 %v780
        %790 = vmatpush.bf16.msra.mxu0 %v779
        %791 = vmatmul.bf16.gmra.mxu0 %v706
        %v792 = vpop.f32.mrf.mxu0
        %v793 = vadd.f32 %v687, %v792
        %v794 = vpop.f32.mrf.mxu0
        %795 = vdwg.mxu0
        %s796 = scalar_lea.vmem %s3, 64
        %v797 = vld [vmem:[%s796] sm:$0xf]
        %v798 = vld [vmem:[%s796 + $0x4] sm:$0xf]
        %v799 = vld [vmem:[%s796 + $0x8] sm:$0xf]
        %v800 = vld [vmem:[%s796 + $0xc] sm:$0xf]
        %v801 = vld [vmem:[%s796 + $0x10] sm:$0xf]
        %v802 = vld [vmem:[%s796 + $0x14] sm:$0xf]
        %v803 = vld [vmem:[%s796 + $0x18] sm:$0xf]
        %v804 = vld [vmem:[%s796 + $0x1c] sm:$0xf]
        %v805 = vld [vmem:[%s796 + $0x20] sm:$0xf]
        %v806 = vld [vmem:[%s796 + $0x24] sm:$0xf]
        %v807 = vld [vmem:[%s796 + $0x28] sm:$0xf]
        %v808 = vld [vmem:[%s796 + $0x2c] sm:$0xf]
        %v809 = vld [vmem:[%s796 + $0x30] sm:$0xf]
        %v810 = vld [vmem:[%s796 + $0x34] sm:$0xf]
        %v811 = vld [vmem:[%s796 + $0x38] sm:$0xf]
        %v812 = vld [vmem:[%s796 + $0x3c] sm:$0xf]
        %s813 = scalar_lea.vmem %s4, 4
        %v814 = vld [vmem:[%s813] sm:$0x1]
        %v815 = vld [vmem:[%s813 + $0x1] sm:$0x1]
        %v816 = vld [vmem:[%s813 + $0x2] sm:$0x1]
        %v817 = vld [vmem:[%s813 + $0x3] sm:$0x1]
        %v822 = vperm.slane %v814, 0
        %v823 = vperm.slane %v815, 0
        %v824 = vperm.slane %v816, 0
        %v825 = vperm.slane %v817, 0
        %v834 = vunpack.c.l.b16 %v797
        %v835 = vunpack.c.l.b16 %v798
        %v836 = vunpack.c.l.b16 %v799
        %v837 = vunpack.c.l.b16 %v800
        %v838 = vpack.c.b16 %v835, %v834
        %v839 = vpack.c.b16 %v837, %v836
        %842 = vmatpush.bf16.msra.mxu0 0
        %843 = vmatpush.bf16.msra.mxu0 0
        %844 = vmatpush.bf16.msra.mxu0 0
        %845 = vmatpush.bf16.msra.mxu0 0
        %846 = vmatpush.bf16.msra.mxu0 0
        %847 = vmatpush.bf16.msra.mxu0 0
        %848 = vmatpush.bf16.msra.mxu0 %v839
        %849 = vmatpush.bf16.msra.mxu0 %v838
        %850 = vmatmul.bf16.gmra.mxu0 %v706
        %v851 = vpop.f32.mrf.mxu0
        %v852 = vadd.f32 %v822, %v851
        %v853 = vpop.f32.mrf.mxu0
        %854 = vdwg.mxu0
        %v859 = vunpack.c.l.b16 %v801
        %v860 = vunpack.c.l.b16 %v802
        %v861 = vunpack.c.l.b16 %v803
        %v862 = vunpack.c.l.b16 %v804
        %v863 = vpack.c.b16 %v860, %v859
        %v864 = vpack.c.b16 %v862, %v861
        %867 = vmatpush.bf16.msra.mxu0 0
        %868 = vmatpush.bf16.msra.mxu0 0
        %869 = vmatpush.bf16.msra.mxu0 0
        %870 = vmatpush.bf16.msra.mxu0 0
        %871 = vmatpush.bf16.msra.mxu0 0
        %872 = vmatpush.bf16.msra.mxu0 0
        %873 = vmatpush.bf16.msra.mxu0 %v864
        %874 = vmatpush.bf16.msra.mxu0 %v863
        %875 = vmatmul.bf16.gmra.mxu0 %v706
        %v876 = vpop.f32.mrf.mxu0
        %v877 = vadd.f32 %v823, %v876
        %v878 = vpop.f32.mrf.mxu0
        %879 = vdwg.mxu0
        %v884 = vunpack.c.l.b16 %v805
        %v885 = vunpack.c.l.b16 %v806
        %v886 = vunpack.c.l.b16 %v807
        %v887 = vunpack.c.l.b16 %v808
        %v888 = vpack.c.b16 %v885, %v884
        %v889 = vpack.c.b16 %v887, %v886
        %892 = vmatpush.bf16.msra.mxu0 0
        %893 = vmatpush.bf16.msra.mxu0 0
        %894 = vmatpush.bf16.msra.mxu0 0
        %895 = vmatpush.bf16.msra.mxu0 0
        %896 = vmatpush.bf16.msra.mxu0 0
        %897 = vmatpush.bf16.msra.mxu0 0
        %898 = vmatpush.bf16.msra.mxu0 %v889
        %899 = vmatpush.bf16.msra.mxu0 %v888
        %900 = vmatmul.bf16.gmra.mxu0 %v706
        %v901 = vpop.f32.mrf.mxu0
        %v902 = vadd.f32 %v824, %v901
        %v903 = vpop.f32.mrf.mxu0
        %904 = vdwg.mxu0
        %v909 = vunpack.c.l.b16 %v809
        %v910 = vunpack.c.l.b16 %v810
        %v911 = vunpack.c.l.b16 %v811
        %v912 = vunpack.c.l.b16 %v812
        %v913 = vpack.c.b16 %v910, %v909
        %v914 = vpack.c.b16 %v912, %v911
        %917 = vmatpush.bf16.msra.mxu0 0
        %918 = vmatpush.bf16.msra.mxu0 0
        %919 = vmatpush.bf16.msra.mxu0 0
        %920 = vmatpush.bf16.msra.mxu0 0
        %921 = vmatpush.bf16.msra.mxu0 0
        %922 = vmatpush.bf16.msra.mxu0 0
        %923 = vmatpush.bf16.msra.mxu0 %v914
        %924 = vmatpush.bf16.msra.mxu0 %v913
        %925 = vmatmul.bf16.gmra.mxu0 %v706
        %v926 = vpop.f32.mrf.mxu0
        %v927 = vadd.f32 %v825, %v926
        %v928 = vpop.f32.mrf.mxu0
        %929 = vdwg.mxu0
        %s930 = scalar_lea.vmem %s3, 128
        %v931 = vld [vmem:[%s930] sm:$0xf]
        %v932 = vld [vmem:[%s930 + $0x4] sm:$0xf]
        %v933 = vld [vmem:[%s930 + $0x8] sm:$0xf]
        %v934 = vld [vmem:[%s930 + $0xc] sm:$0xf]
        %v935 = vld [vmem:[%s930 + $0x10] sm:$0xf]
        %v936 = vld [vmem:[%s930 + $0x14] sm:$0xf]
        %v937 = vld [vmem:[%s930 + $0x18] sm:$0xf]
        %v938 = vld [vmem:[%s930 + $0x1c] sm:$0xf]
        %v939 = vld [vmem:[%s930 + $0x20] sm:$0xf]
        %v940 = vld [vmem:[%s930 + $0x24] sm:$0xf]
        %v941 = vld [vmem:[%s930 + $0x28] sm:$0xf]
        %v942 = vld [vmem:[%s930 + $0x2c] sm:$0xf]
        %v943 = vld [vmem:[%s930 + $0x30] sm:$0xf]
        %v944 = vld [vmem:[%s930 + $0x34] sm:$0xf]
        %v945 = vld [vmem:[%s930 + $0x38] sm:$0xf]
        %v946 = vld [vmem:[%s930 + $0x3c] sm:$0xf]
        %s947 = scalar_lea.vmem %s4, 8
        %v948 = vld [vmem:[%s947] sm:$0x1]
        %v949 = vld [vmem:[%s947 + $0x1] sm:$0x1]
        %v950 = vld [vmem:[%s947 + $0x2] sm:$0x1]
        %v951 = vld [vmem:[%s947 + $0x3] sm:$0x1]
        %v956 = vperm.slane %v948, 0
        %v957 = vperm.slane %v949, 0
        %v958 = vperm.slane %v950, 0
        %v959 = vperm.slane %v951, 0
        %v968 = vunpack.c.l.b16 %v931
        %v969 = vunpack.c.l.b16 %v932
        %v970 = vunpack.c.l.b16 %v933
        %v971 = vunpack.c.l.b16 %v934
        %v972 = vpack.c.b16 %v969, %v968
        %v973 = vpack.c.b16 %v971, %v970
        %976 = vmatpush.bf16.msra.mxu0 0
        %977 = vmatpush.bf16.msra.mxu0 0
        %978 = vmatpush.bf16.msra.mxu0 0
        %979 = vmatpush.bf16.msra.mxu0 0
        %980 = vmatpush.bf16.msra.mxu0 0
        %981 = vmatpush.bf16.msra.mxu0 0
        %982 = vmatpush.bf16.msra.mxu0 %v973
        %983 = vmatpush.bf16.msra.mxu0 %v972
        %984 = vmatmul.bf16.gmra.mxu0 %v706
        %v985 = vpop.f32.mrf.mxu0
        %v986 = vadd.f32 %v956, %v985
        %v987 = vpop.f32.mrf.mxu0
        %988 = vdwg.mxu0
        %v993 = vunpack.c.l.b16 %v935
        %v994 = vunpack.c.l.b16 %v936
        %v995 = vunpack.c.l.b16 %v937
        %v996 = vunpack.c.l.b16 %v938
        %v997 = vpack.c.b16 %v994, %v993
        %v998 = vpack.c.b16 %v996, %v995
        %1001 = vmatpush.bf16.msra.mxu0 0
        %1002 = vmatpush.bf16.msra.mxu0 0
        %1003 = vmatpush.bf16.msra.mxu0 0
        %1004 = vmatpush.bf16.msra.mxu0 0
        %1005 = vmatpush.bf16.msra.mxu0 0
        %1006 = vmatpush.bf16.msra.mxu0 0
        %1007 = vmatpush.bf16.msra.mxu0 %v998
        %1008 = vmatpush.bf16.msra.mxu0 %v997
        %1009 = vmatmul.bf16.gmra.mxu0 %v706
        %v1010 = vpop.f32.mrf.mxu0
        %v1011 = vadd.f32 %v957, %v1010
        %v1012 = vpop.f32.mrf.mxu0
        %1013 = vdwg.mxu0
        %v1018 = vunpack.c.l.b16 %v939
        %v1019 = vunpack.c.l.b16 %v940
        %v1020 = vunpack.c.l.b16 %v941
        %v1021 = vunpack.c.l.b16 %v942
        %v1022 = vpack.c.b16 %v1019, %v1018
        %v1023 = vpack.c.b16 %v1021, %v1020
        %1026 = vmatpush.bf16.msra.mxu0 0
        %1027 = vmatpush.bf16.msra.mxu0 0
        %1028 = vmatpush.bf16.msra.mxu0 0
        %1029 = vmatpush.bf16.msra.mxu0 0
        %1030 = vmatpush.bf16.msra.mxu0 0
        %1031 = vmatpush.bf16.msra.mxu0 0
        %1032 = vmatpush.bf16.msra.mxu0 %v1023
        %1033 = vmatpush.bf16.msra.mxu0 %v1022
        %1034 = vmatmul.bf16.gmra.mxu0 %v706
        %v1035 = vpop.f32.mrf.mxu0
        %v1036 = vadd.f32 %v958, %v1035
        %v1037 = vpop.f32.mrf.mxu0
        %1038 = vdwg.mxu0
        %v1043 = vunpack.c.l.b16 %v943
        %v1044 = vunpack.c.l.b16 %v944
        %v1045 = vunpack.c.l.b16 %v945
        %v1046 = vunpack.c.l.b16 %v946
        %v1047 = vpack.c.b16 %v1044, %v1043
        %v1048 = vpack.c.b16 %v1046, %v1045
        %1051 = vmatpush.bf16.msra.mxu0 0
        %1052 = vmatpush.bf16.msra.mxu0 0
        %1053 = vmatpush.bf16.msra.mxu0 0
        %1054 = vmatpush.bf16.msra.mxu0 0
        %1055 = vmatpush.bf16.msra.mxu0 0
        %1056 = vmatpush.bf16.msra.mxu0 0
        %1057 = vmatpush.bf16.msra.mxu0 %v1048
        %1058 = vmatpush.bf16.msra.mxu0 %v1047
        %1059 = vmatmul.bf16.gmra.mxu0 %v706
        %v1060 = vpop.f32.mrf.mxu0
        %v1061 = vadd.f32 %v959, %v1060
        %v1062 = vpop.f32.mrf.mxu0
        %1063 = vdwg.mxu0
        %vm1064 = vcmask 64512
        %v1066 = vsel %vm1064, %v718, 0
        %v1069 = vsel %vm1064, %v852, 0
        %1071 = vmatpush.xpose.msra.mxu0 0.0
        %1072 = vmatpush.xpose.msra.mxu0 0.0
        %1073 = vmatpush.xpose.msra.mxu0 0.0
        %1074 = vmatpush.xpose.msra.mxu0 0.0
        %1075 = vmatpush.xpose.msra.mxu0 0.0
        %1076 = vmatpush.xpose.msra.mxu0 0.0
        %1077 = vmatpush.xpose.msra.mxu0 0.0
        %1078 = vmatpush.xpose.msra.mxu0 0.0
        %1079 = vmatpush.xpose.msra.mxu0 0.0
        %1080 = vmatpush.xpose.msra.mxu0 0.0
        %1081 = vmatpush.xpose.msra.mxu0 0.0
        %1082 = vmatpush.xpose.msra.mxu0 0.0
        %1083 = vmatpush.xpose.msra.mxu0 0.0
        %1084 = vmatpush.xpose.msra.mxu0 0.0
        %1085 = vmatpush.xpose.msra.mxu0 0.0
        %1086 = vmatpush.xpose.msra.mxu0 %v1069
        %1087 = vmatmul.f32.gmra.mxu0 %v1066
        %v1088 = vpop.f32.mrf.mxu0
        %v1089 = vadd.f32 0.0, %v1088
        %1090 = vdwg.mxu0
        %v1092 = vsel %vm1064, %v743, 0
        %v1095 = vsel %vm1064, %v877, 0
        %1097 = vmatpush.xpose.msra.mxu0 0.0
        %1098 = vmatpush.xpose.msra.mxu0 0.0
        %1099 = vmatpush.xpose.msra.mxu0 0.0
        %1100 = vmatpush.xpose.msra.mxu0 0.0
        %1101 = vmatpush.xpose.msra.mxu0 0.0
        %1102 = vmatpush.xpose.msra.mxu0 0.0
        %1103 = vmatpush.xpose.msra.mxu0 0.0
        %1104 = vmatpush.xpose.msra.mxu0 0.0
        %1105 = vmatpush.xpose.msra.mxu0 0.0
        %1106 = vmatpush.xpose.msra.mxu0 0.0
        %1107 = vmatpush.xpose.msra.mxu0 0.0
        %1108 = vmatpush.xpose.msra.mxu0 0.0
        %1109 = vmatpush.xpose.msra.mxu0 0.0
        %1110 = vmatpush.xpose.msra.mxu0 0.0
        %1111 = vmatpush.xpose.msra.mxu0 0.0
        %1112 = vmatpush.xpose.msra.mxu0 %v1095
        %1113 = vmatmul.f32.gmra.mxu0 %v1092
        %v1114 = vpop.f32.mrf.mxu0
        %v1115 = vadd.f32 0.0, %v1114
        %1116 = vdwg.mxu0
        %v1118 = vsel %vm1064, %v768, 0
        %v1121 = vsel %vm1064, %v902, 0
        %1123 = vmatpush.xpose.msra.mxu0 0.0
        %1124 = vmatpush.xpose.msra.mxu0 0.0
        %1125 = vmatpush.xpose.msra.mxu0 0.0
        %1126 = vmatpush.xpose.msra.mxu0 0.0
        %1127 = vmatpush.xpose.msra.mxu0 0.0
        %1128 = vmatpush.xpose.msra.mxu0 0.0
        %1129 = vmatpush.xpose.msra.mxu0 0.0
        %1130 = vmatpush.xpose.msra.mxu0 0.0
        %1131 = vmatpush.xpose.msra.mxu0 0.0
        %1132 = vmatpush.xpose.msra.mxu0 0.0
        %1133 = vmatpush.xpose.msra.mxu0 0.0
        %1134 = vmatpush.xpose.msra.mxu0 0.0
        %1135 = vmatpush.xpose.msra.mxu0 0.0
        %1136 = vmatpush.xpose.msra.mxu0 0.0
        %1137 = vmatpush.xpose.msra.mxu0 0.0
        %1138 = vmatpush.xpose.msra.mxu0 %v1121
        %1139 = vmatmul.f32.gmra.mxu0 %v1118
        %v1140 = vpop.f32.mrf.mxu0
        %v1141 = vadd.f32 0.0, %v1140
        %1142 = vdwg.mxu0
        %v1144 = vsel %vm1064, %v793, 0
        %v1147 = vsel %vm1064, %v927, 0
        %1149 = vmatpush.xpose.msra.mxu0 0.0
        %1150 = vmatpush.xpose.msra.mxu0 0.0
        %1151 = vmatpush.xpose.msra.mxu0 0.0
        %1152 = vmatpush.xpose.msra.mxu0 0.0
        %1153 = vmatpush.xpose.msra.mxu0 0.0
        %1154 = vmatpush.xpose.msra.mxu0 0.0
        %1155 = vmatpush.xpose.msra.mxu0 0.0
        %1156 = vmatpush.xpose.msra.mxu0 0.0
        %1157 = vmatpush.xpose.msra.mxu0 0.0
        %1158 = vmatpush.xpose.msra.mxu0 0.0
        %1159 = vmatpush.xpose.msra.mxu0 0.0
        %1160 = vmatpush.xpose.msra.mxu0 0.0
        %1161 = vmatpush.xpose.msra.mxu0 0.0
        %1162 = vmatpush.xpose.msra.mxu0 0.0
        %1163 = vmatpush.xpose.msra.mxu0 0.0
        %1164 = vmatpush.xpose.msra.mxu0 %v1147
        %1165 = vmatmul.f32.gmra.mxu0 %v1144
        %v1166 = vpop.f32.mrf.mxu0
        %v1167 = vadd.f32 0.0, %v1166
        %1168 = vdwg.mxu0
        %v1169 = vmul.f32 %v1089, 0.35355338
        %v1170 = vmul.f32 %v1115, 0.35355338
        %v1171 = vmul.f32 %v1141, 0.35355338
        %v1172 = vmul.f32 %v1167, 0.35355338
        %v1173 = vadd.f32 %v1169, %v658
        %v1174 = vadd.f32 %v1170, %v658
        %v1175 = vadd.f32 %v1171, %v658
        %v1176 = vadd.f32 %v1172, %v658
        %v1177 = vsel %vm1064, %v1173, -inf
        %1178 = vmax.xlane.f32.xlu0 %v1177
        %v1179 = vpop.xlane.xlu0 %1178
        %v1180 = vsel %vm1064, %v1174, -inf
        %1181 = vmax.xlane.f32.xlu0 %v1180
        %v1182 = vpop.xlane.xlu0 %1181
        %v1183 = vsel %vm1064, %v1175, -inf
        %1184 = vmax.xlane.f32.xlu0 %v1183
        %v1185 = vpop.xlane.xlu0 %1184
        %v1186 = vsel %vm1064, %v1176, -inf
        %1187 = vmax.xlane.f32.xlu0 %v1186
        %v1188 = vpop.xlane.xlu0 %1187
        %v1189 = vsub.f32 %v1173, %v1179
        %v1190 = vsub.f32 %v1174, %v1182
        %v1191 = vsub.f32 %v1175, %v1185
        %v1192 = vsub.f32 %v1176, %v1188
        %v1193 = vmul.f32 %v1189, 1.442695
        %v1194 = vpow.pop %v1193
        %v1195 = vmul.f32 %v1190, 1.442695
        %v1196 = vpow.pop %v1195
        %v1197 = vmul.f32 %v1191, 1.442695
        %v1198 = vpow.pop %v1197
        %v1199 = vmul.f32 %v1192, 1.442695
        %v1200 = vpow.pop %v1199
        %v1201 = vsel %vm1064, %v1194, 0.0
        %1202 = vadd.xlane.f32.xlu0 %v1201
        %v1203 = vpop.xlane.xlu0 %1202
        %v1204 = vsel %vm1064, %v1196, 0.0
        %1205 = vadd.xlane.f32.xlu0 %v1204
        %v1206 = vpop.xlane.xlu0 %1205
        %v1207 = vsel %vm1064, %v1198, 0.0
        %1208 = vadd.xlane.f32.xlu0 %v1207
        %v1209 = vpop.xlane.xlu0 %1208
        %v1210 = vsel %vm1064, %v1200, 0.0
        %1211 = vadd.xlane.f32.xlu0 %v1210
        %v1212 = vpop.xlane.xlu0 %1211
        %v1213 = vrcp.pop %v1203
        %v1214 = vrcp.pop %v1206
        %v1215 = vrcp.pop %v1209
        %v1216 = vrcp.pop %v1212
        %v1217 = vmul.f32 %v1194, %v1213
        %v1218 = vmul.f32 %v1196, %v1214
        %v1219 = vmul.f32 %v1198, %v1215
        %v1220 = vmul.f32 %v1200, %v1216
        %v1222 = vsel %vm1064, %v1217, 0
        %1224 = vmatpush.msra.mxu0 0.0
        %1225 = vmatpush.msra.mxu0 0.0
        %1226 = vmatpush.msra.mxu0 0.0
        %1227 = vmatpush.msra.mxu0 0.0
        %1228 = vmatpush.msra.mxu0 0.0
        %1229 = vmatpush.msra.mxu0 0.0
        %1230 = vmatpush.msra.mxu0 0.0
        %1231 = vmatpush.msra.mxu0 0.0
        %1232 = vmatpush.msra.mxu0 0.0
        %1233 = vmatpush.msra.mxu0 0.0
        %1234 = vmatpush.msra.mxu0 0.0
        %1235 = vmatpush.msra.mxu0 0.0
        %1236 = vmatpush.msra.mxu0 0.0
        %1237 = vmatpush.msra.mxu0 0.0
        %1238 = vmatpush.msra.mxu0 0.0
        %1239 = vmatpush.msra.mxu0 %v986
        %1240 = vmatmul.f32.gmra.mxu0 %v1222
        %v1241 = vpop.f32.mrf.mxu0
        %v1242 = vadd.f32 0.0, %v1241
        %1243 = vdwg.mxu0
        %v1245 = vsel %vm1064, %v1218, 0
        %1247 = vmatpush.msra.mxu0 0.0
        %1248 = vmatpush.msra.mxu0 0.0
        %1249 = vmatpush.msra.mxu0 0.0
        %1250 = vmatpush.msra.mxu0 0.0
        %1251 = vmatpush.msra.mxu0 0.0
        %1252 = vmatpush.msra.mxu0 0.0
        %1253 = vmatpush.msra.mxu0 0.0
        %1254 = vmatpush.msra.mxu0 0.0
        %1255 = vmatpush.msra.mxu0 0.0
        %1256 = vmatpush.msra.mxu0 0.0
        %1257 = vmatpush.msra.mxu0 0.0
        %1258 = vmatpush.msra.mxu0 0.0
        %1259 = vmatpush.msra.mxu0 0.0
        %1260 = vmatpush.msra.mxu0 0.0
        %1261 = vmatpush.msra.mxu0 0.0
        %1262 = vmatpush.msra.mxu0 %v1011
        %1263 = vmatmul.f32.gmra.mxu0 %v1245
        %v1264 = vpop.f32.mrf.mxu0
        %v1265 = vadd.f32 0.0, %v1264
        %1266 = vdwg.mxu0
        %v1268 = vsel %vm1064, %v1219, 0
        %1270 = vmatpush.msra.mxu0 0.0
        %1271 = vmatpush.msra.mxu0 0.0
        %1272 = vmatpush.msra.mxu0 0.0
        %1273 = vmatpush.msra.mxu0 0.0
        %1274 = vmatpush.msra.mxu0 0.0
        %1275 = vmatpush.msra.mxu0 0.0
        %1276 = vmatpush.msra.mxu0 0.0
        %1277 = vmatpush.msra.mxu0 0.0
        %1278 = vmatpush.msra.mxu0 0.0
        %1279 = vmatpush.msra.mxu0 0.0
        %1280 = vmatpush.msra.mxu0 0.0
        %1281 = vmatpush.msra.mxu0 0.0
        %1282 = vmatpush.msra.mxu0 0.0
        %1283 = vmatpush.msra.mxu0 0.0
        %1284 = vmatpush.msra.mxu0 0.0
        %1285 = vmatpush.msra.mxu0 %v1036
        %1286 = vmatmul.f32.gmra.mxu0 %v1268
        %v1287 = vpop.f32.mrf.mxu0
        %v1288 = vadd.f32 0.0, %v1287
        %1289 = vdwg.mxu0
        %v1291 = vsel %vm1064, %v1220, 0
        %1293 = vmatpush.msra.mxu0 0.0
        %1294 = vmatpush.msra.mxu0 0.0
        %1295 = vmatpush.msra.mxu0 0.0
        %1296 = vmatpush.msra.mxu0 0.0
        %1297 = vmatpush.msra.mxu0 0.0
        %1298 = vmatpush.msra.mxu0 0.0
        %1299 = vmatpush.msra.mxu0 0.0
        %1300 = vmatpush.msra.mxu0 0.0
        %1301 = vmatpush.msra.mxu0 0.0
        %1302 = vmatpush.msra.mxu0 0.0
        %1303 = vmatpush.msra.mxu0 0.0
        %1304 = vmatpush.msra.mxu0 0.0
        %1305 = vmatpush.msra.mxu0 0.0
        %1306 = vmatpush.msra.mxu0 0.0
        %1307 = vmatpush.msra.mxu0 0.0
        %1308 = vmatpush.msra.mxu0 %v1061
        %1309 = vmatmul.f32.gmra.mxu0 %v1291
        %v1310 = vpop.f32.mrf.mxu0
        %v1311 = vadd.f32 0.0, %v1310
        %1312 = vdwg.mxu0
        %v1313 = vpack.c.bf16 %v1242, %v1242
        %v1314 = vpack.c.bf16 %v1265, %v1265
        %v1315 = vpack.c.bf16 %v1288, %v1288
        %v1316 = vpack.c.bf16 %v1311, %v1311
        %v1317 = vld [vmem:[%s5] sm:$0xf]
        %v1318 = vld [vmem:[%s5 + $0x4] sm:$0xf]
        %v1319 = vld [vmem:[%s5 + $0x8] sm:$0xf]
        %v1320 = vld [vmem:[%s5 + $0xc] sm:$0xf]
        %v1322 = vsel %vm1064, %v1313, 0
        %vm1324 = vcmask 1043456
        %v1326 = vsel %vm1324, %v1317, 0
        %1328 = vmatpush.bf16.msra.mxu0 0
        %1329 = vmatpush.bf16.msra.mxu0 0
        %1330 = vmatpush.bf16.msra.mxu0 0
        %1331 = vmatpush.bf16.msra.mxu0 0
        %1332 = vmatpush.bf16.msra.mxu0 0
        %1333 = vmatpush.bf16.msra.mxu0 0
        %1334 = vmatpush.bf16.msra.mxu0 0
        %1335 = vmatpush.bf16.msra.mxu0 %v1326
        %1336 = vmatmul.bf16.gmra.mxu0 %v1322
        %v1337 = vpop.f32.mrf.mxu0
        %v1338 = vadd.f32 0.0, %v1337
        %v1339 = vpop.f32.mrf.mxu0
        %1340 = vdwg.mxu0
        %v1342 = vsel %vm1064, %v1314, 0
        %v1345 = vsel %vm1324, %v1318, 0
        %1347 = vmatpush.bf16.msra.mxu0 0
        %1348 = vmatpush.bf16.msra.mxu0 0
        %1349 = vmatpush.bf16.msra.mxu0 0
        %1350 = vmatpush.bf16.msra.mxu0 0
        %1351 = vmatpush.bf16.msra.mxu0 0
        %1352 = vmatpush.bf16.msra.mxu0 0
        %1353 = vmatpush.bf16.msra.mxu0 0
        %1354 = vmatpush.bf16.msra.mxu0 %v1345
        %1355 = vmatmul.bf16.gmra.mxu0 %v1342
        %v1356 = vpop.f32.mrf.mxu0
        %v1357 = vadd.f32 0.0, %v1356
        %v1358 = vpop.f32.mrf.mxu0
        %1359 = vdwg.mxu0
        %v1361 = vsel %vm1064, %v1315, 0
        %v1364 = vsel %vm1324, %v1319, 0
        %1366 = vmatpush.bf16.msra.mxu0 0
        %1367 = vmatpush.bf16.msra.mxu0 0
        %1368 = vmatpush.bf16.msra.mxu0 0
        %1369 = vmatpush.bf16.msra.mxu0 0
        %1370 = vmatpush.bf16.msra.mxu0 0
        %1371 = vmatpush.bf16.msra.mxu0 0
        %1372 = vmatpush.bf16.msra.mxu0 0
        %1373 = vmatpush.bf16.msra.mxu0 %v1364
        %1374 = vmatmul.bf16.gmra.mxu0 %v1361
        %v1375 = vpop.f32.mrf.mxu0
        %v1376 = vadd.f32 0.0, %v1375
        %v1377 = vpop.f32.mrf.mxu0
        %1378 = vdwg.mxu0
        %v1380 = vsel %vm1064, %v1316, 0
        %v1383 = vsel %vm1324, %v1320, 0
        %1385 = vmatpush.bf16.msra.mxu0 0
        %1386 = vmatpush.bf16.msra.mxu0 0
        %1387 = vmatpush.bf16.msra.mxu0 0
        %1388 = vmatpush.bf16.msra.mxu0 0
        %1389 = vmatpush.bf16.msra.mxu0 0
        %1390 = vmatpush.bf16.msra.mxu0 0
        %1391 = vmatpush.bf16.msra.mxu0 0
        %1392 = vmatpush.bf16.msra.mxu0 %v1383
        %1393 = vmatmul.bf16.gmra.mxu0 %v1380
        %v1394 = vpop.f32.mrf.mxu0
        %v1395 = vadd.f32 0.0, %v1394
        %v1396 = vpop.f32.mrf.mxu0
        %1397 = vdwg.mxu0
        %v1398 = vsel %vm704, %v1338, 0.0
        %v1399 = vsel %vm704, %v1357, 0.0
        %v1400 = vadd.f32 %v1398, %v1399
        %v1401 = vsel %vm704, %v1376, 0.0
        %v1402 = vadd.f32 %v1400, %v1401
        %v1403 = vsel %vm704, %v1395, 0.0
        %v1404 = vadd.f32 %v1402, %v1403
        %v1405 = vld [vmem:[%s6] sm:$0x1]
        %v1407 = vperm.slane %v1405, 0
        %v1409 = vadd.f32 %v1404, %v1407
        %v1410 = vadd.f32 %v656, %v1409
        %v1411 = vld [vmem:[%s15] sm:$0x1]
        %v1412 = vld [vmem:[%s16] sm:$0x1]
        %v1413 = vsel %vm704, %v1410, 0.0
        %1414 = vadd.xlane.f32.xlu0 %v1413
        %v1415 = vpop.xlane.xlu0 %1414
        %v1416 = vrcp.pop 32.0
        %v1417 = vmul.f32 32.0, %v1416
        %v1418 = vsub.f32 1.0, %v1417
        %v1419 = vmul.f32 %v1416, %v1418
        %v1420 = vadd.f32 %v1416, %v1419
        %vm1421 = vweird.f32 %v1416
        %v1422 = vsel %vm1421, %v1416, %v1420
        %v1423 = vmul.f32 %v1415, %v1422
        %v1424 = vsub.f32 %v1410, %v1423
        %v1425 = vmul.f32 %v1424, %v1424
        %v1426 = vsel %vm704, %v1425, 0.0
        %1427 = vadd.xlane.f32.xlu0 %v1426
        %v1428 = vpop.xlane.xlu0 %1427
        %v1429 = vmul.f32 %v1428, %v1422
        %v1430 = vadd.f32 %v1429, 1e-05
        %v1431 = vrsqrt.pop %v1430
        %v1432 = vmul.f32 %v1431, %v1430
        %v1433 = vmul.f32 %v1432, %v1431
        %v1434 = vmul.f32 0.5, %v1433
        %v1435 = vsub.f32 1.5, %v1434
        %v1436 = vmul.f32 %v1431, %v1435
        %vm1437 = vweird.f32 %v1430
        %vm1438 = vweird.f32 %v1431
        %vm1439 = vmor %vm1437, %vm1438
        %v1440 = vsel %vm1439, %v1431, %v1436
        %v1441 = vmul.f32 %v1424, %v1440
        %v1443 = vperm.slane %v1411, 0
        %v1445 = vmul.f32 %v1441, %v1443
        %v1447 = vperm.slane %v1412, 0
        %v1449 = vadd.f32 %v1445, %v1447
        %v1450 = vpack.c.bf16 %v1449, %v1449
        %v1451 = vpack.c.bf16 %v657, %v657
        %v1452 = vld [vmem:[%s7] sm:$0xf]
        %v1453 = vld [vmem:[%s7 + $0x4] sm:$0xf]
        %v1454 = vld [vmem:[%s7 + $0x8] sm:$0xf]
        %v1455 = vld [vmem:[%s7 + $0xc] sm:$0xf]
        %v1456 = vld [vmem:[%s7 + $0x10] sm:$0xf]
        %v1457 = vld [vmem:[%s7 + $0x14] sm:$0xf]
        %v1458 = vld [vmem:[%s7 + $0x18] sm:$0xf]
        %v1459 = vld [vmem:[%s7 + $0x1c] sm:$0xf]
        %v1460 = vld [vmem:[%s7 + $0x20] sm:$0xf]
        %v1461 = vld [vmem:[%s7 + $0x24] sm:$0xf]
        %v1462 = vld [vmem:[%s7 + $0x28] sm:$0xf]
        %v1463 = vld [vmem:[%s7 + $0x2c] sm:$0xf]
        %v1464 = vld [vmem:[%s7 + $0x30] sm:$0xf]
        %v1465 = vld [vmem:[%s7 + $0x34] sm:$0xf]
        %v1466 = vld [vmem:[%s7 + $0x38] sm:$0xf]
        %v1467 = vld [vmem:[%s7 + $0x3c] sm:$0xf]
        %v1468 = vld [vmem:[%s8] sm:$0x1]
        %v1469 = vld [vmem:[%s8 + $0x1] sm:$0x1]
        %v1470 = vld [vmem:[%s8 + $0x2] sm:$0x1]
        %v1471 = vld [vmem:[%s8 + $0x3] sm:$0x1]
        %v1476 = vperm.slane %v1468, 0
        %v1477 = vperm.slane %v1469, 0
        %v1478 = vperm.slane %v1470, 0
        %v1479 = vperm.slane %v1471, 0
        %v1488 = vunpack.c.l.b16 %v1452
        %v1489 = vunpack.c.l.b16 %v1453
        %v1490 = vunpack.c.l.b16 %v1454
        %v1491 = vunpack.c.l.b16 %v1455
        %v1492 = vpack.c.b16 %v1489, %v1488
        %v1493 = vpack.c.b16 %v1491, %v1490
        %v1497 = vsel %vm704, %v1450, 0
        %1499 = vmatpush.bf16.msra.mxu0 0
        %1500 = vmatpush.bf16.msra.mxu0 0
        %1501 = vmatpush.bf16.msra.mxu0 0
        %1502 = vmatpush.bf16.msra.mxu0 0
        %1503 = vmatpush.bf16.msra.mxu0 0
        %1504 = vmatpush.bf16.msra.mxu0 0
        %1505 = vmatpush.bf16.msra.mxu0 %v1493
        %1506 = vmatpush.bf16.msra.mxu0 %v1492
        %1507 = vmatmul.bf16.gmra.mxu0 %v1497
        %v1508 = vpop.f32.mrf.mxu0
        %v1509 = vadd.f32 %v1476, %v1508
        %v1510 = vpop.f32.mrf.mxu0
        %1511 = vdwg.mxu0
        %v1516 = vunpack.c.l.b16 %v1456
        %v1517 = vunpack.c.l.b16 %v1457
        %v1518 = vunpack.c.l.b16 %v1458
        %v1519 = vunpack.c.l.b16 %v1459
        %v1520 = vpack.c.b16 %v1517, %v1516
        %v1521 = vpack.c.b16 %v1519, %v1518
        %1524 = vmatpush.bf16.msra.mxu0 0
        %1525 = vmatpush.bf16.msra.mxu0 0
        %1526 = vmatpush.bf16.msra.mxu0 0
        %1527 = vmatpush.bf16.msra.mxu0 0
        %1528 = vmatpush.bf16.msra.mxu0 0
        %1529 = vmatpush.bf16.msra.mxu0 0
        %1530 = vmatpush.bf16.msra.mxu0 %v1521
        %1531 = vmatpush.bf16.msra.mxu0 %v1520
        %1532 = vmatmul.bf16.gmra.mxu0 %v1497
        %v1533 = vpop.f32.mrf.mxu0
        %v1534 = vadd.f32 %v1477, %v1533
        %v1535 = vpop.f32.mrf.mxu0
        %1536 = vdwg.mxu0
        %v1541 = vunpack.c.l.b16 %v1460
        %v1542 = vunpack.c.l.b16 %v1461
        %v1543 = vunpack.c.l.b16 %v1462
        %v1544 = vunpack.c.l.b16 %v1463
        %v1545 = vpack.c.b16 %v1542, %v1541
        %v1546 = vpack.c.b16 %v1544, %v1543
        %1549 = vmatpush.bf16.msra.mxu0 0
        %1550 = vmatpush.bf16.msra.mxu0 0
        %1551 = vmatpush.bf16.msra.mxu0 0
        %1552 = vmatpush.bf16.msra.mxu0 0
        %1553 = vmatpush.bf16.msra.mxu0 0
        %1554 = vmatpush.bf16.msra.mxu0 0
        %1555 = vmatpush.bf16.msra.mxu0 %v1546
        %1556 = vmatpush.bf16.msra.mxu0 %v1545
        %1557 = vmatmul.bf16.gmra.mxu0 %v1497
        %v1558 = vpop.f32.mrf.mxu0
        %v1559 = vadd.f32 %v1478, %v1558
        %v1560 = vpop.f32.mrf.mxu0
        %1561 = vdwg.mxu0
        %v1566 = vunpack.c.l.b16 %v1464
        %v1567 = vunpack.c.l.b16 %v1465
        %v1568 = vunpack.c.l.b16 %v1466
        %v1569 = vunpack.c.l.b16 %v1467
        %v1570 = vpack.c.b16 %v1567, %v1566
        %v1571 = vpack.c.b16 %v1569, %v1568
        %1574 = vmatpush.bf16.msra.mxu0 0
        %1575 = vmatpush.bf16.msra.mxu0 0
        %1576 = vmatpush.bf16.msra.mxu0 0
        %1577 = vmatpush.bf16.msra.mxu0 0
        %1578 = vmatpush.bf16.msra.mxu0 0
        %1579 = vmatpush.bf16.msra.mxu0 0
        %1580 = vmatpush.bf16.msra.mxu0 %v1571
        %1581 = vmatpush.bf16.msra.mxu0 %v1570
        %1582 = vmatmul.bf16.gmra.mxu0 %v1497
        %v1583 = vpop.f32.mrf.mxu0
        %v1584 = vadd.f32 %v1479, %v1583
        %v1585 = vpop.f32.mrf.mxu0
        %1586 = vdwg.mxu0
        %s1587 = scalar_lea.vmem %s7, 64
        %v1588 = vld [vmem:[%s1587] sm:$0xf]
        %v1589 = vld [vmem:[%s1587 + $0x4] sm:$0xf]
        %v1590 = vld [vmem:[%s1587 + $0x8] sm:$0xf]
        %v1591 = vld [vmem:[%s1587 + $0xc] sm:$0xf]
        %v1592 = vld [vmem:[%s1587 + $0x10] sm:$0xf]
        %v1593 = vld [vmem:[%s1587 + $0x14] sm:$0xf]
        %v1594 = vld [vmem:[%s1587 + $0x18] sm:$0xf]
        %v1595 = vld [vmem:[%s1587 + $0x1c] sm:$0xf]
        %v1596 = vld [vmem:[%s1587 + $0x20] sm:$0xf]
        %v1597 = vld [vmem:[%s1587 + $0x24] sm:$0xf]
        %v1598 = vld [vmem:[%s1587 + $0x28] sm:$0xf]
        %v1599 = vld [vmem:[%s1587 + $0x2c] sm:$0xf]
        %v1600 = vld [vmem:[%s1587 + $0x30] sm:$0xf]
        %v1601 = vld [vmem:[%s1587 + $0x34] sm:$0xf]
        %v1602 = vld [vmem:[%s1587 + $0x38] sm:$0xf]
        %v1603 = vld [vmem:[%s1587 + $0x3c] sm:$0xf]
        %s1604 = scalar_lea.vmem %s8, 4
        %v1605 = vld [vmem:[%s1604] sm:$0x1]
        %v1606 = vld [vmem:[%s1604 + $0x1] sm:$0x1]
        %v1607 = vld [vmem:[%s1604 + $0x2] sm:$0x1]
        %v1608 = vld [vmem:[%s1604 + $0x3] sm:$0x1]
        %v1613 = vperm.slane %v1605, 0
        %v1614 = vperm.slane %v1606, 0
        %v1615 = vperm.slane %v1607, 0
        %v1616 = vperm.slane %v1608, 0
        %v1625 = vunpack.c.l.b16 %v1588
        %v1626 = vunpack.c.l.b16 %v1589
        %v1627 = vunpack.c.l.b16 %v1590
        %v1628 = vunpack.c.l.b16 %v1591
        %v1629 = vpack.c.b16 %v1626, %v1625
        %v1630 = vpack.c.b16 %v1628, %v1627
        %v1634 = vsel %vm704, %v1451, 0
        %1636 = vmatpush.bf16.msra.mxu0 0
        %1637 = vmatpush.bf16.msra.mxu0 0
        %1638 = vmatpush.bf16.msra.mxu0 0
        %1639 = vmatpush.bf16.msra.mxu0 0
        %1640 = vmatpush.bf16.msra.mxu0 0
        %1641 = vmatpush.bf16.msra.mxu0 0
        %1642 = vmatpush.bf16.msra.mxu0 %v1630
        %1643 = vmatpush.bf16.msra.mxu0 %v1629
        %1644 = vmatmul.bf16.gmra.mxu0 %v1634
        %v1645 = vpop.f32.mrf.mxu0
        %v1646 = vadd.f32 %v1613, %v1645
        %v1647 = vpop.f32.mrf.mxu0
        %1648 = vdwg.mxu0
        %v1653 = vunpack.c.l.b16 %v1592
        %v1654 = vunpack.c.l.b16 %v1593
        %v1655 = vunpack.c.l.b16 %v1594
        %v1656 = vunpack.c.l.b16 %v1595
        %v1657 = vpack.c.b16 %v1654, %v1653
        %v1658 = vpack.c.b16 %v1656, %v1655
        %1661 = vmatpush.bf16.msra.mxu0 0
        %1662 = vmatpush.bf16.msra.mxu0 0
        %1663 = vmatpush.bf16.msra.mxu0 0
        %1664 = vmatpush.bf16.msra.mxu0 0
        %1665 = vmatpush.bf16.msra.mxu0 0
        %1666 = vmatpush.bf16.msra.mxu0 0
        %1667 = vmatpush.bf16.msra.mxu0 %v1658
        %1668 = vmatpush.bf16.msra.mxu0 %v1657
        %1669 = vmatmul.bf16.gmra.mxu0 %v1634
        %v1670 = vpop.f32.mrf.mxu0
        %v1671 = vadd.f32 %v1614, %v1670
        %v1672 = vpop.f32.mrf.mxu0
        %1673 = vdwg.mxu0
        %v1678 = vunpack.c.l.b16 %v1596
        %v1679 = vunpack.c.l.b16 %v1597
        %v1680 = vunpack.c.l.b16 %v1598
        %v1681 = vunpack.c.l.b16 %v1599
        %v1682 = vpack.c.b16 %v1679, %v1678
        %v1683 = vpack.c.b16 %v1681, %v1680
        %1686 = vmatpush.bf16.msra.mxu0 0
        %1687 = vmatpush.bf16.msra.mxu0 0
        %1688 = vmatpush.bf16.msra.mxu0 0
        %1689 = vmatpush.bf16.msra.mxu0 0
        %1690 = vmatpush.bf16.msra.mxu0 0
        %1691 = vmatpush.bf16.msra.mxu0 0
        %1692 = vmatpush.bf16.msra.mxu0 %v1683
        %1693 = vmatpush.bf16.msra.mxu0 %v1682
        %1694 = vmatmul.bf16.gmra.mxu0 %v1634
        %v1695 = vpop.f32.mrf.mxu0
        %v1696 = vadd.f32 %v1615, %v1695
        %v1697 = vpop.f32.mrf.mxu0
        %1698 = vdwg.mxu0
        %v1703 = vunpack.c.l.b16 %v1600
        %v1704 = vunpack.c.l.b16 %v1601
        %v1705 = vunpack.c.l.b16 %v1602
        %v1706 = vunpack.c.l.b16 %v1603
        %v1707 = vpack.c.b16 %v1704, %v1703
        %v1708 = vpack.c.b16 %v1706, %v1705
        %1711 = vmatpush.bf16.msra.mxu0 0
        %1712 = vmatpush.bf16.msra.mxu0 0
        %1713 = vmatpush.bf16.msra.mxu0 0
        %1714 = vmatpush.bf16.msra.mxu0 0
        %1715 = vmatpush.bf16.msra.mxu0 0
        %1716 = vmatpush.bf16.msra.mxu0 0
        %1717 = vmatpush.bf16.msra.mxu0 %v1708
        %1718 = vmatpush.bf16.msra.mxu0 %v1707
        %1719 = vmatmul.bf16.gmra.mxu0 %v1634
        %v1720 = vpop.f32.mrf.mxu0
        %v1721 = vadd.f32 %v1616, %v1720
        %v1722 = vpop.f32.mrf.mxu0
        %1723 = vdwg.mxu0
        %s1724 = scalar_lea.vmem %s7, 128
        %v1725 = vld [vmem:[%s1724] sm:$0xf]
        %v1726 = vld [vmem:[%s1724 + $0x4] sm:$0xf]
        %v1727 = vld [vmem:[%s1724 + $0x8] sm:$0xf]
        %v1728 = vld [vmem:[%s1724 + $0xc] sm:$0xf]
        %v1729 = vld [vmem:[%s1724 + $0x10] sm:$0xf]
        %v1730 = vld [vmem:[%s1724 + $0x14] sm:$0xf]
        %v1731 = vld [vmem:[%s1724 + $0x18] sm:$0xf]
        %v1732 = vld [vmem:[%s1724 + $0x1c] sm:$0xf]
        %v1733 = vld [vmem:[%s1724 + $0x20] sm:$0xf]
        %v1734 = vld [vmem:[%s1724 + $0x24] sm:$0xf]
        %v1735 = vld [vmem:[%s1724 + $0x28] sm:$0xf]
        %v1736 = vld [vmem:[%s1724 + $0x2c] sm:$0xf]
        %v1737 = vld [vmem:[%s1724 + $0x30] sm:$0xf]
        %v1738 = vld [vmem:[%s1724 + $0x34] sm:$0xf]
        %v1739 = vld [vmem:[%s1724 + $0x38] sm:$0xf]
        %v1740 = vld [vmem:[%s1724 + $0x3c] sm:$0xf]
        %s1741 = scalar_lea.vmem %s8, 8
        %v1742 = vld [vmem:[%s1741] sm:$0x1]
        %v1743 = vld [vmem:[%s1741 + $0x1] sm:$0x1]
        %v1744 = vld [vmem:[%s1741 + $0x2] sm:$0x1]
        %v1745 = vld [vmem:[%s1741 + $0x3] sm:$0x1]
        %v1750 = vperm.slane %v1742, 0
        %v1751 = vperm.slane %v1743, 0
        %v1752 = vperm.slane %v1744, 0
        %v1753 = vperm.slane %v1745, 0
        %v1762 = vunpack.c.l.b16 %v1725
        %v1763 = vunpack.c.l.b16 %v1726
        %v1764 = vunpack.c.l.b16 %v1727
        %v1765 = vunpack.c.l.b16 %v1728
        %v1766 = vpack.c.b16 %v1763, %v1762
        %v1767 = vpack.c.b16 %v1765, %v1764
        %1770 = vmatpush.bf16.msra.mxu0 0
        %1771 = vmatpush.bf16.msra.mxu0 0
        %1772 = vmatpush.bf16.msra.mxu0 0
        %1773 = vmatpush.bf16.msra.mxu0 0
        %1774 = vmatpush.bf16.msra.mxu0 0
        %1775 = vmatpush.bf16.msra.mxu0 0
        %1776 = vmatpush.bf16.msra.mxu0 %v1767
        %1777 = vmatpush.bf16.msra.mxu0 %v1766
        %1778 = vmatmul.bf16.gmra.mxu0 %v1634
        %v1779 = vpop.f32.mrf.mxu0
        %v1780 = vadd.f32 %v1750, %v1779
        %v1781 = vpop.f32.mrf.mxu0
        %1782 = vdwg.mxu0
        %v1787 = vunpack.c.l.b16 %v1729
        %v1788 = vunpack.c.l.b16 %v1730
        %v1789 = vunpack.c.l.b16 %v1731
        %v1790 = vunpack.c.l.b16 %v1732
        %v1791 = vpack.c.b16 %v1788, %v1787
        %v1792 = vpack.c.b16 %v1790, %v1789
        %1795 = vmatpush.bf16.msra.mxu0 0
        %1796 = vmatpush.bf16.msra.mxu0 0
        %1797 = vmatpush.bf16.msra.mxu0 0
        %1798 = vmatpush.bf16.msra.mxu0 0
        %1799 = vmatpush.bf16.msra.mxu0 0
        %1800 = vmatpush.bf16.msra.mxu0 0
        %1801 = vmatpush.bf16.msra.mxu0 %v1792
        %1802 = vmatpush.bf16.msra.mxu0 %v1791
        %1803 = vmatmul.bf16.gmra.mxu0 %v1634
        %v1804 = vpop.f32.mrf.mxu0
        %v1805 = vadd.f32 %v1751, %v1804
        %v1806 = vpop.f32.mrf.mxu0
        %1807 = vdwg.mxu0
        %v1812 = vunpack.c.l.b16 %v1733
        %v1813 = vunpack.c.l.b16 %v1734
        %v1814 = vunpack.c.l.b16 %v1735
        %v1815 = vunpack.c.l.b16 %v1736
        %v1816 = vpack.c.b16 %v1813, %v1812
        %v1817 = vpack.c.b16 %v1815, %v1814
        %1820 = vmatpush.bf16.msra.mxu0 0
        %1821 = vmatpush.bf16.msra.mxu0 0
        %1822 = vmatpush.bf16.msra.mxu0 0
        %1823 = vmatpush.bf16.msra.mxu0 0
        %1824 = vmatpush.bf16.msra.mxu0 0
        %1825 = vmatpush.bf16.msra.mxu0 0
        %1826 = vmatpush.bf16.msra.mxu0 %v1817
        %1827 = vmatpush.bf16.msra.mxu0 %v1816
        %1828 = vmatmul.bf16.gmra.mxu0 %v1634
        %v1829 = vpop.f32.mrf.mxu0
        %v1830 = vadd.f32 %v1752, %v1829
        %v1831 = vpop.f32.mrf.mxu0
        %1832 = vdwg.mxu0
        %v1837 = vunpack.c.l.b16 %v1737
        %v1838 = vunpack.c.l.b16 %v1738
        %v1839 = vunpack.c.l.b16 %v1739
        %v1840 = vunpack.c.l.b16 %v1740
        %v1841 = vpack.c.b16 %v1838, %v1837
        %v1842 = vpack.c.b16 %v1840, %v1839
        %1845 = vmatpush.bf16.msra.mxu0 0
        %1846 = vmatpush.bf16.msra.mxu0 0
        %1847 = vmatpush.bf16.msra.mxu0 0
        %1848 = vmatpush.bf16.msra.mxu0 0
        %1849 = vmatpush.bf16.msra.mxu0 0
        %1850 = vmatpush.bf16.msra.mxu0 0
        %1851 = vmatpush.bf16.msra.mxu0 %v1842
        %1852 = vmatpush.bf16.msra.mxu0 %v1841
        %1853 = vmatmul.bf16.gmra.mxu0 %v1634
        %v1854 = vpop.f32.mrf.mxu0
        %v1855 = vadd.f32 %v1753, %v1854
        %v1856 = vpop.f32.mrf.mxu0
        %1857 = vdwg.mxu0
        %v1859 = vsel %vm1064, %v1509, 0
        %v1862 = vsel %vm1064, %v1646, 0
        %1864 = vmatpush.xpose.msra.mxu0 0.0
        %1865 = vmatpush.xpose.msra.mxu0 0.0
        %1866 = vmatpush.xpose.msra.mxu0 0.0
        %1867 = vmatpush.xpose.msra.mxu0 0.0
        %1868 = vmatpush.xpose.msra.mxu0 0.0
        %1869 = vmatpush.xpose.msra.mxu0 0.0
        %1870 = vmatpush.xpose.msra.mxu0 0.0
        %1871 = vmatpush.xpose.msra.mxu0 0.0
        %1872 = vmatpush.xpose.msra.mxu0 0.0
        %1873 = vmatpush.xpose.msra.mxu0 0.0
        %1874 = vmatpush.xpose.msra.mxu0 0.0
        %1875 = vmatpush.xpose.msra.mxu0 0.0
        %1876 = vmatpush.xpose.msra.mxu0 0.0
        %1877 = vmatpush.xpose.msra.mxu0 0.0
        %1878 = vmatpush.xpose.msra.mxu0 0.0
        %1879 = vmatpush.xpose.msra.mxu0 %v1862
        %1880 = vmatmul.f32.gmra.mxu0 %v1859
        %v1881 = vpop.f32.mrf.mxu0
        %v1882 = vadd.f32 0.0, %v1881
        %1883 = vdwg.mxu0
        %v1885 = vsel %vm1064, %v1534, 0
        %v1888 = vsel %vm1064, %v1671, 0
        %1890 = vmatpush.xpose.msra.mxu0 0.0
        %1891 = vmatpush.xpose.msra.mxu0 0.0
        %1892 = vmatpush.xpose.msra.mxu0 0.0
        %1893 = vmatpush.xpose.msra.mxu0 0.0
        %1894 = vmatpush.xpose.msra.mxu0 0.0
        %1895 = vmatpush.xpose.msra.mxu0 0.0
        %1896 = vmatpush.xpose.msra.mxu0 0.0
        %1897 = vmatpush.xpose.msra.mxu0 0.0
        %1898 = vmatpush.xpose.msra.mxu0 0.0
        %1899 = vmatpush.xpose.msra.mxu0 0.0
        %1900 = vmatpush.xpose.msra.mxu0 0.0
        %1901 = vmatpush.xpose.msra.mxu0 0.0
        %1902 = vmatpush.xpose.msra.mxu0 0.0
        %1903 = vmatpush.xpose.msra.mxu0 0.0
        %1904 = vmatpush.xpose.msra.mxu0 0.0
        %1905 = vmatpush.xpose.msra.mxu0 %v1888
        %1906 = vmatmul.f32.gmra.mxu0 %v1885
        %v1907 = vpop.f32.mrf.mxu0
        %v1908 = vadd.f32 0.0, %v1907
        %1909 = vdwg.mxu0
        %v1911 = vsel %vm1064, %v1559, 0
        %v1914 = vsel %vm1064, %v1696, 0
        %1916 = vmatpush.xpose.msra.mxu0 0.0
        %1917 = vmatpush.xpose.msra.mxu0 0.0
        %1918 = vmatpush.xpose.msra.mxu0 0.0
        %1919 = vmatpush.xpose.msra.mxu0 0.0
        %1920 = vmatpush.xpose.msra.mxu0 0.0
        %1921 = vmatpush.xpose.msra.mxu0 0.0
        %1922 = vmatpush.xpose.msra.mxu0 0.0
        %1923 = vmatpush.xpose.msra.mxu0 0.0
        %1924 = vmatpush.xpose.msra.mxu0 0.0
        %1925 = vmatpush.xpose.msra.mxu0 0.0
        %1926 = vmatpush.xpose.msra.mxu0 0.0
        %1927 = vmatpush.xpose.msra.mxu0 0.0
        %1928 = vmatpush.xpose.msra.mxu0 0.0
        %1929 = vmatpush.xpose.msra.mxu0 0.0
        %1930 = vmatpush.xpose.msra.mxu0 0.0
        %1931 = vmatpush.xpose.msra.mxu0 %v1914
        %1932 = vmatmul.f32.gmra.mxu0 %v1911
        %v1933 = vpop.f32.mrf.mxu0
        %v1934 = vadd.f32 0.0, %v1933
        %1935 = vdwg.mxu0
        %v1937 = vsel %vm1064, %v1584, 0
        %v1940 = vsel %vm1064, %v1721, 0
        %1942 = vmatpush.xpose.msra.mxu0 0.0
        %1943 = vmatpush.xpose.msra.mxu0 0.0
        %1944 = vmatpush.xpose.msra.mxu0 0.0
        %1945 = vmatpush.xpose.msra.mxu0 0.0
        %1946 = vmatpush.xpose.msra.mxu0 0.0
        %1947 = vmatpush.xpose.msra.mxu0 0.0
        %1948 = vmatpush.xpose.msra.mxu0 0.0
        %1949 = vmatpush.xpose.msra.mxu0 0.0
        %1950 = vmatpush.xpose.msra.mxu0 0.0
        %1951 = vmatpush.xpose.msra.mxu0 0.0
        %1952 = vmatpush.xpose.msra.mxu0 0.0
        %1953 = vmatpush.xpose.msra.mxu0 0.0
        %1954 = vmatpush.xpose.msra.mxu0 0.0
        %1955 = vmatpush.xpose.msra.mxu0 0.0
        %1956 = vmatpush.xpose.msra.mxu0 0.0
        %1957 = vmatpush.xpose.msra.mxu0 %v1940
        %1958 = vmatmul.f32.gmra.mxu0 %v1937
        %v1959 = vpop.f32.mrf.mxu0
        %v1960 = vadd.f32 0.0, %v1959
        %1961 = vdwg.mxu0
        %v1962 = vmul.f32 %v1882, 0.35355338
        %v1963 = vmul.f32 %v1908, 0.35355338
        %v1964 = vmul.f32 %v1934, 0.35355338
        %v1965 = vmul.f32 %v1960, 0.35355338
        %v1966 = vsel %vm1064, %v1962, -inf
        %1967 = vmax.xlane.f32.xlu0 %v1966
        %v1968 = vpop.xlane.xlu0 %1967
        %v1969 = vsel %vm1064, %v1963, -inf
        %1970 = vmax.xlane.f32.xlu0 %v1969
        %v1971 = vpop.xlane.xlu0 %1970
        %v1972 = vsel %vm1064, %v1964, -inf
        %1973 = vmax.xlane.f32.xlu0 %v1972
        %v1974 = vpop.xlane.xlu0 %1973
        %v1975 = vsel %vm1064, %v1965, -inf
        %1976 = vmax.xlane.f32.xlu0 %v1975
        %v1977 = vpop.xlane.xlu0 %1976
        %v1978 = vsub.f32 %v1962, %v1968
        %v1979 = vsub.f32 %v1963, %v1971
        %v1980 = vsub.f32 %v1964, %v1974
        %v1981 = vsub.f32 %v1965, %v1977
        %v1982 = vmul.f32 %v1978, 1.442695
        %v1983 = vpow.pop %v1982
        %v1984 = vmul.f32 %v1979, 1.442695
        %v1985 = vpow.pop %v1984
        %v1986 = vmul.f32 %v1980, 1.442695
        %v1987 = vpow.pop %v1986
        %v1988 = vmul.f32 %v1981, 1.442695
        %v1989 = vpow.pop %v1988
        %v1990 = vsel %vm1064, %v1983, 0.0
        %1991 = vadd.xlane.f32.xlu0 %v1990
        %v1992 = vpop.xlane.xlu0 %1991
        %v1993 = vsel %vm1064, %v1985, 0.0
        %1994 = vadd.xlane.f32.xlu0 %v1993
        %v1995 = vpop.xlane.xlu0 %1994
        %v1996 = vsel %vm1064, %v1987, 0.0
        %1997 = vadd.xlane.f32.xlu0 %v1996
        %v1998 = vpop.xlane.xlu0 %1997
        %v1999 = vsel %vm1064, %v1989, 0.0
        %2000 = vadd.xlane.f32.xlu0 %v1999
        %v2001 = vpop.xlane.xlu0 %2000
        %v2002 = vrcp.pop %v1992
        %v2003 = vrcp.pop %v1995
        %v2004 = vrcp.pop %v1998
        %v2005 = vrcp.pop %v2001
        %v2006 = vmul.f32 %v1983, %v2002
        %v2007 = vmul.f32 %v1985, %v2003
        %v2008 = vmul.f32 %v1987, %v2004
        %v2009 = vmul.f32 %v1989, %v2005
        %v2011 = vsel %vm1064, %v2006, 0
        %2013 = vmatpush.msra.mxu0 0.0
        %2014 = vmatpush.msra.mxu0 0.0
        %2015 = vmatpush.msra.mxu0 0.0
        %2016 = vmatpush.msra.mxu0 0.0
        %2017 = vmatpush.msra.mxu0 0.0
        %2018 = vmatpush.msra.mxu0 0.0
        %2019 = vmatpush.msra.mxu0 0.0
        %2020 = vmatpush.msra.mxu0 0.0
        %2021 = vmatpush.msra.mxu0 0.0
        %2022 = vmatpush.msra.mxu0 0.0
        %2023 = vmatpush.msra.mxu0 0.0
        %2024 = vmatpush.msra.mxu0 0.0
        %2025 = vmatpush.msra.mxu0 0.0
        %2026 = vmatpush.msra.mxu0 0.0
        %2027 = vmatpush.msra.mxu0 0.0
        %2028 = vmatpush.msra.mxu0 %v1780
        %2029 = vmatmul.f32.gmra.mxu0 %v2011
        %v2030 = vpop.f32.mrf.mxu0
        %v2031 = vadd.f32 0.0, %v2030
        %2032 = vdwg.mxu0
        %v2034 = vsel %vm1064, %v2007, 0
        %2036 = vmatpush.msra.mxu0 0.0
        %2037 = vmatpush.msra.mxu0 0.0
        %2038 = vmatpush.msra.mxu0 0.0
        %2039 = vmatpush.msra.mxu0 0.0
        %2040 = vmatpush.msra.mxu0 0.0
        %2041 = vmatpush.msra.mxu0 0.0
        %2042 = vmatpush.msra.mxu0 0.0
        %2043 = vmatpush.msra.mxu0 0.0
        %2044 = vmatpush.msra.mxu0 0.0
        %2045 = vmatpush.msra.mxu0 0.0
        %2046 = vmatpush.msra.mxu0 0.0
        %2047 = vmatpush.msra.mxu0 0.0
        %2048 = vmatpush.msra.mxu0 0.0
        %2049 = vmatpush.msra.mxu0 0.0
        %2050 = vmatpush.msra.mxu0 0.0
        %2051 = vmatpush.msra.mxu0 %v1805
        %2052 = vmatmul.f32.gmra.mxu0 %v2034
        %v2053 = vpop.f32.mrf.mxu0
        %v2054 = vadd.f32 0.0, %v2053
        %2055 = vdwg.mxu0
        %v2057 = vsel %vm1064, %v2008, 0
        %2059 = vmatpush.msra.mxu0 0.0
        %2060 = vmatpush.msra.mxu0 0.0
        %2061 = vmatpush.msra.mxu0 0.0
        %2062 = vmatpush.msra.mxu0 0.0
        %2063 = vmatpush.msra.mxu0 0.0
        %2064 = vmatpush.msra.mxu0 0.0
        %2065 = vmatpush.msra.mxu0 0.0
        %2066 = vmatpush.msra.mxu0 0.0
        %2067 = vmatpush.msra.mxu0 0.0
        %2068 = vmatpush.msra.mxu0 0.0
        %2069 = vmatpush.msra.mxu0 0.0
        %2070 = vmatpush.msra.mxu0 0.0
        %2071 = vmatpush.msra.mxu0 0.0
        %2072 = vmatpush.msra.mxu0 0.0
        %2073 = vmatpush.msra.mxu0 0.0
        %2074 = vmatpush.msra.mxu0 %v1830
        %2075 = vmatmul.f32.gmra.mxu0 %v2057
        %v2076 = vpop.f32.mrf.mxu0
        %v2077 = vadd.f32 0.0, %v2076
        %2078 = vdwg.mxu0
        %v2080 = vsel %vm1064, %v2009, 0
        %2082 = vmatpush.msra.mxu0 0.0
        %2083 = vmatpush.msra.mxu0 0.0
        %2084 = vmatpush.msra.mxu0 0.0
        %2085 = vmatpush.msra.mxu0 0.0
        %2086 = vmatpush.msra.mxu0 0.0
        %2087 = vmatpush.msra.mxu0 0.0
        %2088 = vmatpush.msra.mxu0 0.0
        %2089 = vmatpush.msra.mxu0 0.0
        %2090 = vmatpush.msra.mxu0 0.0
        %2091 = vmatpush.msra.mxu0 0.0
        %2092 = vmatpush.msra.mxu0 0.0
        %2093 = vmatpush.msra.mxu0 0.0
        %2094 = vmatpush.msra.mxu0 0.0
        %2095 = vmatpush.msra.mxu0 0.0
        %2096 = vmatpush.msra.mxu0 0.0
        %2097 = vmatpush.msra.mxu0 %v1855
        %2098 = vmatmul.f32.gmra.mxu0 %v2080
        %v2099 = vpop.f32.mrf.mxu0
        %v2100 = vadd.f32 0.0, %v2099
        %2101 = vdwg.mxu0
        %v2102 = vpack.c.bf16 %v2031, %v2031
        %v2103 = vpack.c.bf16 %v2054, %v2054
        %v2104 = vpack.c.bf16 %v2077, %v2077
        %v2105 = vpack.c.bf16 %v2100, %v2100
        %v2106 = vld [vmem:[%s9] sm:$0xf]
        %v2107 = vld [vmem:[%s9 + $0x4] sm:$0xf]
        %v2108 = vld [vmem:[%s9 + $0x8] sm:$0xf]
        %v2109 = vld [vmem:[%s9 + $0xc] sm:$0xf]
        %v2111 = vsel %vm1064, %v2102, 0
        %v2114 = vsel %vm1324, %v2106, 0
        %2116 = vmatpush.bf16.msra.mxu0 0
        %2117 = vmatpush.bf16.msra.mxu0 0
        %2118 = vmatpush.bf16.msra.mxu0 0
        %2119 = vmatpush.bf16.msra.mxu0 0
        %2120 = vmatpush.bf16.msra.mxu0 0
        %2121 = vmatpush.bf16.msra.mxu0 0
        %2122 = vmatpush.bf16.msra.mxu0 0
        %2123 = vmatpush.bf16.msra.mxu0 %v2114
        %2124 = vmatmul.bf16.gmra.mxu0 %v2111
        %v2125 = vpop.f32.mrf.mxu0
        %v2126 = vadd.f32 0.0, %v2125
        %v2127 = vpop.f32.mrf.mxu0
        %2128 = vdwg.mxu0
        %v2130 = vsel %vm1064, %v2103, 0
        %v2133 = vsel %vm1324, %v2107, 0
        %2135 = vmatpush.bf16.msra.mxu0 0
        %2136 = vmatpush.bf16.msra.mxu0 0
        %2137 = vmatpush.bf16.msra.mxu0 0
        %2138 = vmatpush.bf16.msra.mxu0 0
        %2139 = vmatpush.bf16.msra.mxu0 0
        %2140 = vmatpush.bf16.msra.mxu0 0
        %2141 = vmatpush.bf16.msra.mxu0 0
        %2142 = vmatpush.bf16.msra.mxu0 %v2133
        %2143 = vmatmul.bf16.gmra.mxu0 %v2130
        %v2144 = vpop.f32.mrf.mxu0
        %v2145 = vadd.f32 0.0, %v2144
        %v2146 = vpop.f32.mrf.mxu0
        %2147 = vdwg.mxu0
        %v2149 = vsel %vm1064, %v2104, 0
        %v2152 = vsel %vm1324, %v2108, 0
        %2154 = vmatpush.bf16.msra.mxu0 0
        %2155 = vmatpush.bf16.msra.mxu0 0
        %2156 = vmatpush.bf16.msra.mxu0 0
        %2157 = vmatpush.bf16.msra.mxu0 0
        %2158 = vmatpush.bf16.msra.mxu0 0
        %2159 = vmatpush.bf16.msra.mxu0 0
        %2160 = vmatpush.bf16.msra.mxu0 0
        %2161 = vmatpush.bf16.msra.mxu0 %v2152
        %2162 = vmatmul.bf16.gmra.mxu0 %v2149
        %v2163 = vpop.f32.mrf.mxu0
        %v2164 = vadd.f32 0.0, %v2163
        %v2165 = vpop.f32.mrf.mxu0
        %2166 = vdwg.mxu0
        %v2168 = vsel %vm1064, %v2105, 0
        %v2171 = vsel %vm1324, %v2109, 0
        %2173 = vmatpush.bf16.msra.mxu0 0
        %2174 = vmatpush.bf16.msra.mxu0 0
        %2175 = vmatpush.bf16.msra.mxu0 0
        %2176 = vmatpush.bf16.msra.mxu0 0
        %2177 = vmatpush.bf16.msra.mxu0 0
        %2178 = vmatpush.bf16.msra.mxu0 0
        %2179 = vmatpush.bf16.msra.mxu0 0
        %2180 = vmatpush.bf16.msra.mxu0 %v2171
        %2181 = vmatmul.bf16.gmra.mxu0 %v2168
        %v2182 = vpop.f32.mrf.mxu0
        %v2183 = vadd.f32 0.0, %v2182
        %v2184 = vpop.f32.mrf.mxu0
        %2185 = vdwg.mxu0
        %v2186 = vsel %vm704, %v2126, 0.0
        %v2187 = vsel %vm704, %v2145, 0.0
        %v2188 = vadd.f32 %v2186, %v2187
        %v2189 = vsel %vm704, %v2164, 0.0
        %v2190 = vadd.f32 %v2188, %v2189
        %v2191 = vsel %vm704, %v2183, 0.0
        %v2192 = vadd.f32 %v2190, %v2191
        %v2193 = vld [vmem:[%s10] sm:$0x1]
        %v2195 = vperm.slane %v2193, 0
        %v2197 = vadd.f32 %v2192, %v2195
        %v2198 = vadd.f32 %v1449, %v2197
        %s2199 = scalar_lea.vmem %s15, 1
        %v2200 = vld [vmem:[%s2199] sm:$0x1]
        %s2201 = scalar_lea.vmem %s16, 1
        %v2202 = vld [vmem:[%s2201] sm:$0x1]
        %v2203 = vsel %vm704, %v2198, 0.0
        %2204 = vadd.xlane.f32.xlu0 %v2203
        %v2205 = vpop.xlane.xlu0 %2204
        %v2206 = vmul.f32 %v2205, %v1422
        %v2207 = vsub.f32 %v2198, %v2206
        %v2208 = vmul.f32 %v2207, %v2207
        %v2209 = vsel %vm704, %v2208, 0.0
        %2210 = vadd.xlane.f32.xlu0 %v2209
        %v2211 = vpop.xlane.xlu0 %2210
        %v2212 = vmul.f32 %v2211, %v1422
        %v2213 = vadd.f32 %v2212, 1e-05
        %v2214 = vrsqrt.pop %v2213
        %v2215 = vmul.f32 %v2214, %v2213
        %v2216 = vmul.f32 %v2215, %v2214
        %v2217 = vmul.f32 0.5, %v2216
        %v2218 = vsub.f32 1.5, %v2217
        %v2219 = vmul.f32 %v2214, %v2218
        %vm2220 = vweird.f32 %v2213
        %vm2221 = vweird.f32 %v2214
        %vm2222 = vmor %vm2220, %vm2221
        %v2223 = vsel %vm2222, %v2214, %v2219
        %v2224 = vmul.f32 %v2207, %v2223
        %v2226 = vperm.slane %v2200, 0
        %v2228 = vmul.f32 %v2224, %v2226
        %v2230 = vperm.slane %v2202, 0
        %v2232 = vadd.f32 %v2228, %v2230
        %v2233 = vpack.c.bf16 %v2232, %v2232
        %v2234 = vld [vmem:[%s11] sm:$0xff]
        %v2235 = vld [vmem:[%s11 + $0x8] sm:$0xff]
        %v2236 = vld [vmem:[%s11 + $0x10] sm:$0xff]
        %v2237 = vld [vmem:[%s11 + $0x18] sm:$0xff]
        %v2238 = vld [vmem:[%s11 + $0x20] sm:$0xff]
        %v2239 = vld [vmem:[%s11 + $0x28] sm:$0xff]
        %v2240 = vld [vmem:[%s11 + $0x30] sm:$0xff]
        %v2241 = vld [vmem:[%s11 + $0x38] sm:$0xff]
        %v2242 = vld [vmem:[%s11 + $0x40] sm:$0xff]
        %v2243 = vld [vmem:[%s11 + $0x48] sm:$0xff]
        %v2244 = vld [vmem:[%s11 + $0x50] sm:$0xff]
        %v2245 = vld [vmem:[%s11 + $0x58] sm:$0xff]
        %v2246 = vld [vmem:[%s11 + $0x60] sm:$0xff]
        %v2247 = vld [vmem:[%s11 + $0x68] sm:$0xff]
        %v2248 = vld [vmem:[%s11 + $0x70] sm:$0xff]
        %v2249 = vld [vmem:[%s11 + $0x78] sm:$0xff]
        %v2250 = vld [vmem:[%s11 + $0x80] sm:$0xff]
        %v2251 = vld [vmem:[%s11 + $0x88] sm:$0xff]
        %v2252 = vld [vmem:[%s11 + $0x90] sm:$0xff]
        %v2253 = vld [vmem:[%s11 + $0x98] sm:$0xff]
        %v2254 = vld [vmem:[%s11 + $0xa0] sm:$0xff]
        %v2255 = vld [vmem:[%s11 + $0xa8] sm:$0xff]
        %v2256 = vld [vmem:[%s11 + $0xb0] sm:$0xff]
        %v2257 = vld [vmem:[%s11 + $0xb8] sm:$0xff]
        %v2258 = vld [vmem:[%s11 + $0xc0] sm:$0xff]
        %v2259 = vld [vmem:[%s11 + $0xc8] sm:$0xff]
        %v2260 = vld [vmem:[%s11 + $0xd0] sm:$0xff]
        %v2261 = vld [vmem:[%s11 + $0xd8] sm:$0xff]
        %v2262 = vld [vmem:[%s11 + $0xe0] sm:$0xff]
        %v2263 = vld [vmem:[%s11 + $0xe8] sm:$0xff]
        %v2264 = vld [vmem:[%s11 + $0xf0] sm:$0xff]
        %v2265 = vld [vmem:[%s11 + $0xf8] sm:$0xff]
        %v2266 = vld [vmem:[%s12] sm:$0xff]
        %v2267 = vld [vmem:[%s12 + $0x8] sm:$0xff]
        %v2270 = vperm.slane %v2266, 0
        %v2271 = vperm.slane %v2266, 1
        %v2272 = vperm.slane %v2266, 2
        %v2273 = vperm.slane %v2266, 3
        %v2274 = vperm.slane %v2266, 4
        %v2275 = vperm.slane %v2266, 5
        %v2276 = vperm.slane %v2266, 6
        %v2277 = vperm.slane %v2266, 7
        %v2278 = vperm.slane %v2267, 0
        %v2279 = vperm.slane %v2267, 1
        %v2280 = vperm.slane %v2267, 2
        %v2281 = vperm.slane %v2267, 3
        %v2282 = vperm.slane %v2267, 4
        %v2283 = vperm.slane %v2267, 5
        %v2284 = vperm.slane %v2267, 6
        %v2285 = vperm.slane %v2267, 7
        %v2334 = vunpack.c.l.b16 %v2234
        %v2335 = vunpack.c.h.b16 %v2234
        %v2336 = vunpack.c.l.b16 %v2235
        %v2337 = vunpack.c.h.b16 %v2235
        %v2338 = vunpack.c.l.b16 %v2236
        %v2339 = vunpack.c.h.b16 %v2236
        %v2340 = vunpack.c.l.b16 %v2237
        %v2341 = vunpack.c.h.b16 %v2237
        %v2342 = vunpack.c.l.b16 %v2238
        %v2343 = vunpack.c.h.b16 %v2238
        %v2344 = vunpack.c.l.b16 %v2239
        %v2345 = vunpack.c.h.b16 %v2239
        %v2346 = vunpack.c.l.b16 %v2240
        %v2347 = vunpack.c.h.b16 %v2240
        %v2348 = vunpack.c.l.b16 %v2241
        %v2349 = vunpack.c.h.b16 %v2241
        %v2350 = vunpack.c.l.b16 %v2242
        %v2351 = vunpack.c.h.b16 %v2242
        %v2352 = vunpack.c.l.b16 %v2243
        %v2353 = vunpack.c.h.b16 %v2243
        %v2354 = vunpack.c.l.b16 %v2244
        %v2355 = vunpack.c.h.b16 %v2244
        %v2356 = vunpack.c.l.b16 %v2245
        %v2357 = vunpack.c.h.b16 %v2245
        %v2358 = vunpack.c.l.b16 %v2246
        %v2359 = vunpack.c.h.b16 %v2246
        %v2360 = vunpack.c.l.b16 %v2247
        %v2361 = vunpack.c.h.b16 %v2247
        %v2362 = vunpack.c.l.b16 %v2248
        %v2363 = vunpack.c.h.b16 %v2248
        %v2364 = vunpack.c.l.b16 %v2249
        %v2365 = vunpack.c.h.b16 %v2249
        %v2366 = vunpack.c.l.b16 %v2250
        %v2367 = vunpack.c.h.b16 %v2250
        %v2368 = vunpack.c.l.b16 %v2251
        %v2369 = vunpack.c.h.b16 %v2251
        %v2370 = vunpack.c.l.b16 %v2252
        %v2371 = vunpack.c.h.b16 %v2252
        %v2372 = vunpack.c.l.b16 %v2253
        %v2373 = vunpack.c.h.b16 %v2253
        %v2374 = vunpack.c.l.b16 %v2254
        %v2375 = vunpack.c.h.b16 %v2254
        %v2376 = vunpack.c.l.b16 %v2255
        %v2377 = vunpack.c.h.b16 %v2255
        %v2378 = vunpack.c.l.b16 %v2256
        %v2379 = vunpack.c.h.b16 %v2256
        %v2380 = vunpack.c.l.b16 %v2257
        %v2381 = vunpack.c.h.b16 %v2257
        %v2382 = vunpack.c.l.b16 %v2258
        %v2383 = vunpack.c.h.b16 %v2258
        %v2384 = vunpack.c.l.b16 %v2259
        %v2385 = vunpack.c.h.b16 %v2259
        %v2386 = vunpack.c.l.b16 %v2260
        %v2387 = vunpack.c.h.b16 %v2260
        %v2388 = vunpack.c.l.b16 %v2261
        %v2389 = vunpack.c.h.b16 %v2261
        %v2390 = vunpack.c.l.b16 %v2262
        %v2391 = vunpack.c.h.b16 %v2262
        %v2392 = vunpack.c.l.b16 %v2263
        %v2393 = vunpack.c.h.b16 %v2263
        %v2394 = vunpack.c.l.b16 %v2264
        %v2395 = vunpack.c.h.b16 %v2264
        %v2396 = vunpack.c.l.b16 %v2265
        %v2397 = vunpack.c.h.b16 %v2265
        %v2398 = vpack.c.b16 %v2350, %v2334
        %v2399 = vpack.c.b16 %v2351, %v2335
        %v2400 = vpack.c.b16 %v2352, %v2336
        %v2401 = vpack.c.b16 %v2353, %v2337
        %v2402 = vpack.c.b16 %v2354, %v2338
        %v2403 = vpack.c.b16 %v2355, %v2339
        %v2404 = vpack.c.b16 %v2356, %v2340
        %v2405 = vpack.c.b16 %v2357, %v2341
        %v2406 = vpack.c.b16 %v2358, %v2342
        %v2407 = vpack.c.b16 %v2359, %v2343
        %v2408 = vpack.c.b16 %v2360, %v2344
        %v2409 = vpack.c.b16 %v2361, %v2345
        %v2410 = vpack.c.b16 %v2362, %v2346
        %v2411 = vpack.c.b16 %v2363, %v2347
        %v2412 = vpack.c.b16 %v2364, %v2348
        %v2413 = vpack.c.b16 %v2365, %v2349
        %v2414 = vpack.c.b16 %v2382, %v2366
        %v2415 = vpack.c.b16 %v2383, %v2367
        %v2416 = vpack.c.b16 %v2384, %v2368
        %v2417 = vpack.c.b16 %v2385, %v2369
        %v2418 = vpack.c.b16 %v2386, %v2370
        %v2419 = vpack.c.b16 %v2387, %v2371
        %v2420 = vpack.c.b16 %v2388, %v2372
        %v2421 = vpack.c.b16 %v2389, %v2373
        %v2422 = vpack.c.b16 %v2390, %v2374
        %v2423 = vpack.c.b16 %v2391, %v2375
        %v2424 = vpack.c.b16 %v2392, %v2376
        %v2425 = vpack.c.b16 %v2393, %v2377
        %v2426 = vpack.c.b16 %v2394, %v2378
        %v2427 = vpack.c.b16 %v2395, %v2379
        %v2428 = vpack.c.b16 %v2396, %v2380
        %v2429 = vpack.c.b16 %v2397, %v2381
        %v2463 = vsel %vm704, %v2233, 0
        %2465 = vmatpush.bf16.msra.mxu0 0
        %2466 = vmatpush.bf16.msra.mxu0 0
        %2467 = vmatpush.bf16.msra.mxu0 0
        %2468 = vmatpush.bf16.msra.mxu0 0
        %2469 = vmatpush.bf16.msra.mxu0 0
        %2470 = vmatpush.bf16.msra.mxu0 0
        %2471 = vmatpush.bf16.msra.mxu0 %v2414
        %2472 = vmatpush.bf16.msra.mxu0 %v2398
        %2473 = vmatmul.bf16.gmra.mxu0 %v2463
        %v2474 = vpop.f32.mrf.mxu0
        %v2475 = vadd.f32 %v2270, %v2474
        %v2476 = vpop.f32.mrf.mxu0
        %2477 = vdwg.mxu0
        %2478 = vmatpush.bf16.msra.mxu0 0
        %2479 = vmatpush.bf16.msra.mxu0 0
        %2480 = vmatpush.bf16.msra.mxu0 0
        %2481 = vmatpush.bf16.msra.mxu0 0
        %2482 = vmatpush.bf16.msra.mxu0 0
        %2483 = vmatpush.bf16.msra.mxu0 0
        %2484 = vmatpush.bf16.msra.mxu0 %v2415
        %2485 = vmatpush.bf16.msra.mxu0 %v2399
        %2486 = vmatmul.bf16.gmra.mxu0 %v2463
        %v2487 = vpop.f32.mrf.mxu0
        %v2488 = vadd.f32 %v2271, %v2487
        %v2489 = vpop.f32.mrf.mxu0
        %2490 = vdwg.mxu0
        %2491 = vmatpush.bf16.msra.mxu0 0
        %2492 = vmatpush.bf16.msra.mxu0 0
        %2493 = vmatpush.bf16.msra.mxu0 0
        %2494 = vmatpush.bf16.msra.mxu0 0
        %2495 = vmatpush.bf16.msra.mxu0 0
        %2496 = vmatpush.bf16.msra.mxu0 0
        %2497 = vmatpush.bf16.msra.mxu0 %v2416
        %2498 = vmatpush.bf16.msra.mxu0 %v2400
        %2499 = vmatmul.bf16.gmra.mxu0 %v2463
        %v2500 = vpop.f32.mrf.mxu0
        %v2501 = vadd.f32 %v2272, %v2500
        %v2502 = vpop.f32.mrf.mxu0
        %2503 = vdwg.mxu0
        %2504 = vmatpush.bf16.msra.mxu0 0
        %2505 = vmatpush.bf16.msra.mxu0 0
        %2506 = vmatpush.bf16.msra.mxu0 0
        %2507 = vmatpush.bf16.msra.mxu0 0
        %2508 = vmatpush.bf16.msra.mxu0 0
        %2509 = vmatpush.bf16.msra.mxu0 0
        %2510 = vmatpush.bf16.msra.mxu0 %v2417
        %2511 = vmatpush.bf16.msra.mxu0 %v2401
        %2512 = vmatmul.bf16.gmra.mxu0 %v2463
        %v2513 = vpop.f32.mrf.mxu0
        %v2514 = vadd.f32 %v2273, %v2513
        %v2515 = vpop.f32.mrf.mxu0
        %2516 = vdwg.mxu0
        %2517 = vmatpush.bf16.msra.mxu0 0
        %2518 = vmatpush.bf16.msra.mxu0 0
        %2519 = vmatpush.bf16.msra.mxu0 0
        %2520 = vmatpush.bf16.msra.mxu0 0
        %2521 = vmatpush.bf16.msra.mxu0 0
        %2522 = vmatpush.bf16.msra.mxu0 0
        %2523 = vmatpush.bf16.msra.mxu0 %v2418
        %2524 = vmatpush.bf16.msra.mxu0 %v2402
        %2525 = vmatmul.bf16.gmra.mxu0 %v2463
        %v2526 = vpop.f32.mrf.mxu0
        %v2527 = vadd.f32 %v2274, %v2526
        %v2528 = vpop.f32.mrf.mxu0
        %2529 = vdwg.mxu0
        %2530 = vmatpush.bf16.msra.mxu0 0
        %2531 = vmatpush.bf16.msra.mxu0 0
        %2532 = vmatpush.bf16.msra.mxu0 0
        %2533 = vmatpush.bf16.msra.mxu0 0
        %2534 = vmatpush.bf16.msra.mxu0 0
        %2535 = vmatpush.bf16.msra.mxu0 0
        %2536 = vmatpush.bf16.msra.mxu0 %v2419
        %2537 = vmatpush.bf16.msra.mxu0 %v2403
        %2538 = vmatmul.bf16.gmra.mxu0 %v2463
        %v2539 = vpop.f32.mrf.mxu0
        %v2540 = vadd.f32 %v2275, %v2539
        %v2541 = vpop.f32.mrf.mxu0
        %2542 = vdwg.mxu0
        %2543 = vmatpush.bf16.msra.mxu0 0
        %2544 = vmatpush.bf16.msra.mxu0 0
        %2545 = vmatpush.bf16.msra.mxu0 0
        %2546 = vmatpush.bf16.msra.mxu0 0
        %2547 = vmatpush.bf16.msra.mxu0 0
        %2548 = vmatpush.bf16.msra.mxu0 0
        %2549 = vmatpush.bf16.msra.mxu0 %v2420
        %2550 = vmatpush.bf16.msra.mxu0 %v2404
        %2551 = vmatmul.bf16.gmra.mxu0 %v2463
        %v2552 = vpop.f32.mrf.mxu0
        %v2553 = vadd.f32 %v2276, %v2552
        %v2554 = vpop.f32.mrf.mxu0
        %2555 = vdwg.mxu0
        %2556 = vmatpush.bf16.msra.mxu0 0
        %2557 = vmatpush.bf16.msra.mxu0 0
        %2558 = vmatpush.bf16.msra.mxu0 0
        %2559 = vmatpush.bf16.msra.mxu0 0
        %2560 = vmatpush.bf16.msra.mxu0 0
        %2561 = vmatpush.bf16.msra.mxu0 0
        %2562 = vmatpush.bf16.msra.mxu0 %v2421
        %2563 = vmatpush.bf16.msra.mxu0 %v2405
        %2564 = vmatmul.bf16.gmra.mxu0 %v2463
        %v2565 = vpop.f32.mrf.mxu0
        %v2566 = vadd.f32 %v2277, %v2565
        %v2567 = vpop.f32.mrf.mxu0
        %2568 = vdwg.mxu0
        %2569 = vmatpush.bf16.msra.mxu0 0
        %2570 = vmatpush.bf16.msra.mxu0 0
        %2571 = vmatpush.bf16.msra.mxu0 0
        %2572 = vmatpush.bf16.msra.mxu0 0
        %2573 = vmatpush.bf16.msra.mxu0 0
        %2574 = vmatpush.bf16.msra.mxu0 0
        %2575 = vmatpush.bf16.msra.mxu0 %v2422
        %2576 = vmatpush.bf16.msra.mxu0 %v2406
        %2577 = vmatmul.bf16.gmra.mxu0 %v2463
        %v2578 = vpop.f32.mrf.mxu0
        %v2579 = vadd.f32 %v2278, %v2578
        %v2580 = vpop.f32.mrf.mxu0
        %2581 = vdwg.mxu0
        %2582 = vmatpush.bf16.msra.mxu0 0
        %2583 = vmatpush.bf16.msra.mxu0 0
        %2584 = vmatpush.bf16.msra.mxu0 0
        %2585 = vmatpush.bf16.msra.mxu0 0
        %2586 = vmatpush.bf16.msra.mxu0 0
        %2587 = vmatpush.bf16.msra.mxu0 0
        %2588 = vmatpush.bf16.msra.mxu0 %v2423
        %2589 = vmatpush.bf16.msra.mxu0 %v2407
        %2590 = vmatmul.bf16.gmra.mxu0 %v2463
        %v2591 = vpop.f32.mrf.mxu0
        %v2592 = vadd.f32 %v2279, %v2591
        %v2593 = vpop.f32.mrf.mxu0
        %2594 = vdwg.mxu0
        %2595 = vmatpush.bf16.msra.mxu0 0
        %2596 = vmatpush.bf16.msra.mxu0 0
        %2597 = vmatpush.bf16.msra.mxu0 0
        %2598 = vmatpush.bf16.msra.mxu0 0
        %2599 = vmatpush.bf16.msra.mxu0 0
        %2600 = vmatpush.bf16.msra.mxu0 0
        %2601 = vmatpush.bf16.msra.mxu0 %v2424
        %2602 = vmatpush.bf16.msra.mxu0 %v2408
        %2603 = vmatmul.bf16.gmra.mxu0 %v2463
        %v2604 = vpop.f32.mrf.mxu0
        %v2605 = vadd.f32 %v2280, %v2604
        %v2606 = vpop.f32.mrf.mxu0
        %2607 = vdwg.mxu0
        %2608 = vmatpush.bf16.msra.mxu0 0
        %2609 = vmatpush.bf16.msra.mxu0 0
        %2610 = vmatpush.bf16.msra.mxu0 0
        %2611 = vmatpush.bf16.msra.mxu0 0
        %2612 = vmatpush.bf16.msra.mxu0 0
        %2613 = vmatpush.bf16.msra.mxu0 0
        %2614 = vmatpush.bf16.msra.mxu0 %v2425
        %2615 = vmatpush.bf16.msra.mxu0 %v2409
        %2616 = vmatmul.bf16.gmra.mxu0 %v2463
        %v2617 = vpop.f32.mrf.mxu0
        %v2618 = vadd.f32 %v2281, %v2617
        %v2619 = vpop.f32.mrf.mxu0
        %2620 = vdwg.mxu0
        %2621 = vmatpush.bf16.msra.mxu0 0
        %2622 = vmatpush.bf16.msra.mxu0 0
        %2623 = vmatpush.bf16.msra.mxu0 0
        %2624 = vmatpush.bf16.msra.mxu0 0
        %2625 = vmatpush.bf16.msra.mxu0 0
        %2626 = vmatpush.bf16.msra.mxu0 0
        %2627 = vmatpush.bf16.msra.mxu0 %v2426
        %2628 = vmatpush.bf16.msra.mxu0 %v2410
        %2629 = vmatmul.bf16.gmra.mxu0 %v2463
        %v2630 = vpop.f32.mrf.mxu0
        %v2631 = vadd.f32 %v2282, %v2630
        %v2632 = vpop.f32.mrf.mxu0
        %2633 = vdwg.mxu0
        %2634 = vmatpush.bf16.msra.mxu0 0
        %2635 = vmatpush.bf16.msra.mxu0 0
        %2636 = vmatpush.bf16.msra.mxu0 0
        %2637 = vmatpush.bf16.msra.mxu0 0
        %2638 = vmatpush.bf16.msra.mxu0 0
        %2639 = vmatpush.bf16.msra.mxu0 0
        %2640 = vmatpush.bf16.msra.mxu0 %v2427
        %2641 = vmatpush.bf16.msra.mxu0 %v2411
        %2642 = vmatmul.bf16.gmra.mxu0 %v2463
        %v2643 = vpop.f32.mrf.mxu0
        %v2644 = vadd.f32 %v2283, %v2643
        %v2645 = vpop.f32.mrf.mxu0
        %2646 = vdwg.mxu0
        %2647 = vmatpush.bf16.msra.mxu0 0
        %2648 = vmatpush.bf16.msra.mxu0 0
        %2649 = vmatpush.bf16.msra.mxu0 0
        %2650 = vmatpush.bf16.msra.mxu0 0
        %2651 = vmatpush.bf16.msra.mxu0 0
        %2652 = vmatpush.bf16.msra.mxu0 0
        %2653 = vmatpush.bf16.msra.mxu0 %v2428
        %2654 = vmatpush.bf16.msra.mxu0 %v2412
        %2655 = vmatmul.bf16.gmra.mxu0 %v2463
        %v2656 = vpop.f32.mrf.mxu0
        %v2657 = vadd.f32 %v2284, %v2656
        %v2658 = vpop.f32.mrf.mxu0
        %2659 = vdwg.mxu0
        %2660 = vmatpush.bf16.msra.mxu0 0
        %2661 = vmatpush.bf16.msra.mxu0 0
        %2662 = vmatpush.bf16.msra.mxu0 0
        %2663 = vmatpush.bf16.msra.mxu0 0
        %2664 = vmatpush.bf16.msra.mxu0 0
        %2665 = vmatpush.bf16.msra.mxu0 0
        %2666 = vmatpush.bf16.msra.mxu0 %v2429
        %2667 = vmatpush.bf16.msra.mxu0 %v2413
        %2668 = vmatmul.bf16.gmra.mxu0 %v2463
        %v2669 = vpop.f32.mrf.mxu0
        %v2670 = vadd.f32 %v2285, %v2669
        %v2671 = vpop.f32.mrf.mxu0
        %2672 = vdwg.mxu0
        %v2673 = vmax.f32 %v2475, 0.0
        %v2674 = vmax.f32 %v2488, 0.0
        %v2675 = vmax.f32 %v2501, 0.0
        %v2676 = vmax.f32 %v2514, 0.0
        %v2677 = vmax.f32 %v2527, 0.0
        %v2678 = vmax.f32 %v2540, 0.0
        %v2679 = vmax.f32 %v2553, 0.0
        %v2680 = vmax.f32 %v2566, 0.0
        %v2681 = vmax.f32 %v2579, 0.0
        %v2682 = vmax.f32 %v2592, 0.0
        %v2683 = vmax.f32 %v2605, 0.0
        %v2684 = vmax.f32 %v2618, 0.0
        %v2685 = vmax.f32 %v2631, 0.0
        %v2686 = vmax.f32 %v2644, 0.0
        %v2687 = vmax.f32 %v2657, 0.0
        %v2688 = vmax.f32 %v2670, 0.0
        %v2689 = vpack.c.bf16 %v2673, %v2673
        %v2690 = vpack.c.bf16 %v2674, %v2674
        %v2691 = vpack.c.bf16 %v2675, %v2675
        %v2692 = vpack.c.bf16 %v2676, %v2676
        %v2693 = vpack.c.bf16 %v2677, %v2677
        %v2694 = vpack.c.bf16 %v2678, %v2678
        %v2695 = vpack.c.bf16 %v2679, %v2679
        %v2696 = vpack.c.bf16 %v2680, %v2680
        %v2697 = vpack.c.bf16 %v2681, %v2681
        %v2698 = vpack.c.bf16 %v2682, %v2682
        %v2699 = vpack.c.bf16 %v2683, %v2683
        %v2700 = vpack.c.bf16 %v2684, %v2684
        %v2701 = vpack.c.bf16 %v2685, %v2685
        %v2702 = vpack.c.bf16 %v2686, %v2686
        %v2703 = vpack.c.bf16 %v2687, %v2687
        %v2704 = vpack.c.bf16 %v2688, %v2688
        %v2705 = vld [vmem:[%s13] sm:$0xf]
        %v2706 = vld [vmem:[%s13 + $0x4] sm:$0xf]
        %v2707 = vld [vmem:[%s13 + $0x8] sm:$0xf]
        %v2708 = vld [vmem:[%s13 + $0xc] sm:$0xf]
        %v2709 = vld [vmem:[%s13 + $0x10] sm:$0xf]
        %v2710 = vld [vmem:[%s13 + $0x14] sm:$0xf]
        %v2711 = vld [vmem:[%s13 + $0x18] sm:$0xf]
        %v2712 = vld [vmem:[%s13 + $0x1c] sm:$0xf]
        %v2713 = vld [vmem:[%s13 + $0x20] sm:$0xf]
        %v2714 = vld [vmem:[%s13 + $0x24] sm:$0xf]
        %v2715 = vld [vmem:[%s13 + $0x28] sm:$0xf]
        %v2716 = vld [vmem:[%s13 + $0x2c] sm:$0xf]
        %v2717 = vld [vmem:[%s13 + $0x30] sm:$0xf]
        %v2718 = vld [vmem:[%s13 + $0x34] sm:$0xf]
        %v2719 = vld [vmem:[%s13 + $0x38] sm:$0xf]
        %v2720 = vld [vmem:[%s13 + $0x3c] sm:$0xf]
        %v2721 = vld [vmem:[%s13 + $0x40] sm:$0xf]
        %v2722 = vld [vmem:[%s13 + $0x44] sm:$0xf]
        %v2723 = vld [vmem:[%s13 + $0x48] sm:$0xf]
        %v2724 = vld [vmem:[%s13 + $0x4c] sm:$0xf]
        %v2725 = vld [vmem:[%s13 + $0x50] sm:$0xf]
        %v2726 = vld [vmem:[%s13 + $0x54] sm:$0xf]
        %v2727 = vld [vmem:[%s13 + $0x58] sm:$0xf]
        %v2728 = vld [vmem:[%s13 + $0x5c] sm:$0xf]
        %v2729 = vld [vmem:[%s13 + $0x60] sm:$0xf]
        %v2730 = vld [vmem:[%s13 + $0x64] sm:$0xf]
        %v2731 = vld [vmem:[%s13 + $0x68] sm:$0xf]
        %v2732 = vld [vmem:[%s13 + $0x6c] sm:$0xf]
        %v2733 = vld [vmem:[%s13 + $0x70] sm:$0xf]
        %v2734 = vld [vmem:[%s13 + $0x74] sm:$0xf]
        %v2735 = vld [vmem:[%s13 + $0x78] sm:$0xf]
        %v2736 = vld [vmem:[%s13 + $0x7c] sm:$0xf]
        %v2737 = vld [vmem:[%s13 + $0x80] sm:$0xf]
        %v2738 = vld [vmem:[%s13 + $0x84] sm:$0xf]
        %v2739 = vld [vmem:[%s13 + $0x88] sm:$0xf]
        %v2740 = vld [vmem:[%s13 + $0x8c] sm:$0xf]
        %v2741 = vld [vmem:[%s13 + $0x90] sm:$0xf]
        %v2742 = vld [vmem:[%s13 + $0x94] sm:$0xf]
        %v2743 = vld [vmem:[%s13 + $0x98] sm:$0xf]
        %v2744 = vld [vmem:[%s13 + $0x9c] sm:$0xf]
        %v2745 = vld [vmem:[%s13 + $0xa0] sm:$0xf]
        %v2746 = vld [vmem:[%s13 + $0xa4] sm:$0xf]
        %v2747 = vld [vmem:[%s13 + $0xa8] sm:$0xf]
        %v2748 = vld [vmem:[%s13 + $0xac] sm:$0xf]
        %v2749 = vld [vmem:[%s13 + $0xb0] sm:$0xf]
        %v2750 = vld [vmem:[%s13 + $0xb4] sm:$0xf]
        %v2751 = vld [vmem:[%s13 + $0xb8] sm:$0xf]
        %v2752 = vld [vmem:[%s13 + $0xbc] sm:$0xf]
        %v2753 = vld [vmem:[%s13 + $0xc0] sm:$0xf]
        %v2754 = vld [vmem:[%s13 + $0xc4] sm:$0xf]
        %v2755 = vld [vmem:[%s13 + $0xc8] sm:$0xf]
        %v2756 = vld [vmem:[%s13 + $0xcc] sm:$0xf]
        %v2757 = vld [vmem:[%s13 + $0xd0] sm:$0xf]
        %v2758 = vld [vmem:[%s13 + $0xd4] sm:$0xf]
        %v2759 = vld [vmem:[%s13 + $0xd8] sm:$0xf]
        %v2760 = vld [vmem:[%s13 + $0xdc] sm:$0xf]
        %v2761 = vld [vmem:[%s13 + $0xe0] sm:$0xf]
        %v2762 = vld [vmem:[%s13 + $0xe4] sm:$0xf]
        %v2763 = vld [vmem:[%s13 + $0xe8] sm:$0xf]
        %v2764 = vld [vmem:[%s13 + $0xec] sm:$0xf]
        %v2765 = vld [vmem:[%s13 + $0xf0] sm:$0xf]
        %v2766 = vld [vmem:[%s13 + $0xf4] sm:$0xf]
        %v2767 = vld [vmem:[%s13 + $0xf8] sm:$0xf]
        %v2768 = vld [vmem:[%s13 + $0xfc] sm:$0xf]
        %v2769 = vld [vmem:[%s13 + $0x100] sm:$0xf]
        %v2770 = vld [vmem:[%s13 + $0x104] sm:$0xf]
        %v2771 = vld [vmem:[%s13 + $0x108] sm:$0xf]
        %v2772 = vld [vmem:[%s13 + $0x10c] sm:$0xf]
        %v2773 = vld [vmem:[%s13 + $0x110] sm:$0xf]
        %v2774 = vld [vmem:[%s13 + $0x114] sm:$0xf]
        %v2775 = vld [vmem:[%s13 + $0x118] sm:$0xf]
        %v2776 = vld [vmem:[%s13 + $0x11c] sm:$0xf]
        %v2777 = vld [vmem:[%s13 + $0x120] sm:$0xf]
        %v2778 = vld [vmem:[%s13 + $0x124] sm:$0xf]
        %v2779 = vld [vmem:[%s13 + $0x128] sm:$0xf]
        %v2780 = vld [vmem:[%s13 + $0x12c] sm:$0xf]
        %v2781 = vld [vmem:[%s13 + $0x130] sm:$0xf]
        %v2782 = vld [vmem:[%s13 + $0x134] sm:$0xf]
        %v2783 = vld [vmem:[%s13 + $0x138] sm:$0xf]
        %v2784 = vld [vmem:[%s13 + $0x13c] sm:$0xf]
        %v2785 = vld [vmem:[%s13 + $0x140] sm:$0xf]
        %v2786 = vld [vmem:[%s13 + $0x144] sm:$0xf]
        %v2787 = vld [vmem:[%s13 + $0x148] sm:$0xf]
        %v2788 = vld [vmem:[%s13 + $0x14c] sm:$0xf]
        %v2789 = vld [vmem:[%s13 + $0x150] sm:$0xf]
        %v2790 = vld [vmem:[%s13 + $0x154] sm:$0xf]
        %v2791 = vld [vmem:[%s13 + $0x158] sm:$0xf]
        %v2792 = vld [vmem:[%s13 + $0x15c] sm:$0xf]
        %v2793 = vld [vmem:[%s13 + $0x160] sm:$0xf]
        %v2794 = vld [vmem:[%s13 + $0x164] sm:$0xf]
        %v2795 = vld [vmem:[%s13 + $0x168] sm:$0xf]
        %v2796 = vld [vmem:[%s13 + $0x16c] sm:$0xf]
        %v2797 = vld [vmem:[%s13 + $0x170] sm:$0xf]
        %v2798 = vld [vmem:[%s13 + $0x174] sm:$0xf]
        %v2799 = vld [vmem:[%s13 + $0x178] sm:$0xf]
        %v2800 = vld [vmem:[%s13 + $0x17c] sm:$0xf]
        %v2801 = vld [vmem:[%s13 + $0x180] sm:$0xf]
        %v2802 = vld [vmem:[%s13 + $0x184] sm:$0xf]
        %v2803 = vld [vmem:[%s13 + $0x188] sm:$0xf]
        %v2804 = vld [vmem:[%s13 + $0x18c] sm:$0xf]
        %v2805 = vld [vmem:[%s13 + $0x190] sm:$0xf]
        %v2806 = vld [vmem:[%s13 + $0x194] sm:$0xf]
        %v2807 = vld [vmem:[%s13 + $0x198] sm:$0xf]
        %v2808 = vld [vmem:[%s13 + $0x19c] sm:$0xf]
        %v2809 = vld [vmem:[%s13 + $0x1a0] sm:$0xf]
        %v2810 = vld [vmem:[%s13 + $0x1a4] sm:$0xf]
        %v2811 = vld [vmem:[%s13 + $0x1a8] sm:$0xf]
        %v2812 = vld [vmem:[%s13 + $0x1ac] sm:$0xf]
        %v2813 = vld [vmem:[%s13 + $0x1b0] sm:$0xf]
        %v2814 = vld [vmem:[%s13 + $0x1b4] sm:$0xf]
        %v2815 = vld [vmem:[%s13 + $0x1b8] sm:$0xf]
        %v2816 = vld [vmem:[%s13 + $0x1bc] sm:$0xf]
        %v2817 = vld [vmem:[%s13 + $0x1c0] sm:$0xf]
        %v2818 = vld [vmem:[%s13 + $0x1c4] sm:$0xf]
        %v2819 = vld [vmem:[%s13 + $0x1c8] sm:$0xf]
        %v2820 = vld [vmem:[%s13 + $0x1cc] sm:$0xf]
        %v2821 = vld [vmem:[%s13 + $0x1d0] sm:$0xf]
        %v2822 = vld [vmem:[%s13 + $0x1d4] sm:$0xf]
        %v2823 = vld [vmem:[%s13 + $0x1d8] sm:$0xf]
        %v2824 = vld [vmem:[%s13 + $0x1dc] sm:$0xf]
        %v2825 = vld [vmem:[%s13 + $0x1e0] sm:$0xf]
        %v2826 = vld [vmem:[%s13 + $0x1e4] sm:$0xf]
        %v2827 = vld [vmem:[%s13 + $0x1e8] sm:$0xf]
        %v2828 = vld [vmem:[%s13 + $0x1ec] sm:$0xf]
        %v2829 = vld [vmem:[%s13 + $0x1f0] sm:$0xf]
        %v2830 = vld [vmem:[%s13 + $0x1f4] sm:$0xf]
        %v2831 = vld [vmem:[%s13 + $0x1f8] sm:$0xf]
        %v2832 = vld [vmem:[%s13 + $0x1fc] sm:$0xf]
        %v2833 = vld [vmem:[%s13 + $0x200] sm:$0xf]
        %v2834 = vld [vmem:[%s13 + $0x204] sm:$0xf]
        %v2835 = vld [vmem:[%s13 + $0x208] sm:$0xf]
        %v2836 = vld [vmem:[%s13 + $0x20c] sm:$0xf]
        %v2837 = vld [vmem:[%s13 + $0x210] sm:$0xf]
        %v2838 = vld [vmem:[%s13 + $0x214] sm:$0xf]
        %v2839 = vld [vmem:[%s13 + $0x218] sm:$0xf]
        %v2840 = vld [vmem:[%s13 + $0x21c] sm:$0xf]
        %v2841 = vld [vmem:[%s13 + $0x220] sm:$0xf]
        %v2842 = vld [vmem:[%s13 + $0x224] sm:$0xf]
        %v2843 = vld [vmem:[%s13 + $0x228] sm:$0xf]
        %v2844 = vld [vmem:[%s13 + $0x22c] sm:$0xf]
        %v2845 = vld [vmem:[%s13 + $0x230] sm:$0xf]
        %v2846 = vld [vmem:[%s13 + $0x234] sm:$0xf]
        %v2847 = vld [vmem:[%s13 + $0x238] sm:$0xf]
        %v2848 = vld [vmem:[%s13 + $0x23c] sm:$0xf]
        %v2849 = vld [vmem:[%s13 + $0x240] sm:$0xf]
        %v2850 = vld [vmem:[%s13 + $0x244] sm:$0xf]
        %v2851 = vld [vmem:[%s13 + $0x248] sm:$0xf]
        %v2852 = vld [vmem:[%s13 + $0x24c] sm:$0xf]
        %v2853 = vld [vmem:[%s13 + $0x250] sm:$0xf]
        %v2854 = vld [vmem:[%s13 + $0x254] sm:$0xf]
        %v2855 = vld [vmem:[%s13 + $0x258] sm:$0xf]
        %v2856 = vld [vmem:[%s13 + $0x25c] sm:$0xf]
        %v2857 = vld [vmem:[%s13 + $0x260] sm:$0xf]
        %v2858 = vld [vmem:[%s13 + $0x264] sm:$0xf]
        %v2859 = vld [vmem:[%s13 + $0x268] sm:$0xf]
        %v2860 = vld [vmem:[%s13 + $0x26c] sm:$0xf]
        %v2861 = vld [vmem:[%s13 + $0x270] sm:$0xf]
        %v2862 = vld [vmem:[%s13 + $0x274] sm:$0xf]
        %v2863 = vld [vmem:[%s13 + $0x278] sm:$0xf]
        %v2864 = vld [vmem:[%s13 + $0x27c] sm:$0xf]
        %v2865 = vld [vmem:[%s13 + $0x280] sm:$0xf]
        %v2866 = vld [vmem:[%s13 + $0x284] sm:$0xf]
        %v2867 = vld [vmem:[%s13 + $0x288] sm:$0xf]
        %v2868 = vld [vmem:[%s13 + $0x28c] sm:$0xf]
        %v2869 = vld [vmem:[%s13 + $0x290] sm:$0xf]
        %v2870 = vld [vmem:[%s13 + $0x294] sm:$0xf]
        %v2871 = vld [vmem:[%s13 + $0x298] sm:$0xf]
        %v2872 = vld [vmem:[%s13 + $0x29c] sm:$0xf]
        %v2873 = vld [vmem:[%s13 + $0x2a0] sm:$0xf]
        %v2874 = vld [vmem:[%s13 + $0x2a4] sm:$0xf]
        %v2875 = vld [vmem:[%s13 + $0x2a8] sm:$0xf]
        %v2876 = vld [vmem:[%s13 + $0x2ac] sm:$0xf]
        %v2877 = vld [vmem:[%s13 + $0x2b0] sm:$0xf]
        %v2878 = vld [vmem:[%s13 + $0x2b4] sm:$0xf]
        %v2879 = vld [vmem:[%s13 + $0x2b8] sm:$0xf]
        %v2880 = vld [vmem:[%s13 + $0x2bc] sm:$0xf]
        %v2881 = vld [vmem:[%s13 + $0x2c0] sm:$0xf]
        %v2882 = vld [vmem:[%s13 + $0x2c4] sm:$0xf]
        %v2883 = vld [vmem:[%s13 + $0x2c8] sm:$0xf]
        %v2884 = vld [vmem:[%s13 + $0x2cc] sm:$0xf]
        %v2885 = vld [vmem:[%s13 + $0x2d0] sm:$0xf]
        %v2886 = vld [vmem:[%s13 + $0x2d4] sm:$0xf]
        %v2887 = vld [vmem:[%s13 + $0x2d8] sm:$0xf]
        %v2888 = vld [vmem:[%s13 + $0x2dc] sm:$0xf]
        %v2889 = vld [vmem:[%s13 + $0x2e0] sm:$0xf]
        %v2890 = vld [vmem:[%s13 + $0x2e4] sm:$0xf]
        %v2891 = vld [vmem:[%s13 + $0x2e8] sm:$0xf]
        %v2892 = vld [vmem:[%s13 + $0x2ec] sm:$0xf]
        %v2893 = vld [vmem:[%s13 + $0x2f0] sm:$0xf]
        %v2894 = vld [vmem:[%s13 + $0x2f4] sm:$0xf]
        %v2895 = vld [vmem:[%s13 + $0x2f8] sm:$0xf]
        %v2896 = vld [vmem:[%s13 + $0x2fc] sm:$0xf]
        %v2897 = vld [vmem:[%s13 + $0x300] sm:$0xf]
        %v2898 = vld [vmem:[%s13 + $0x304] sm:$0xf]
        %v2899 = vld [vmem:[%s13 + $0x308] sm:$0xf]
        %v2900 = vld [vmem:[%s13 + $0x30c] sm:$0xf]
        %v2901 = vld [vmem:[%s13 + $0x310] sm:$0xf]
        %v2902 = vld [vmem:[%s13 + $0x314] sm:$0xf]
        %v2903 = vld [vmem:[%s13 + $0x318] sm:$0xf]
        %v2904 = vld [vmem:[%s13 + $0x31c] sm:$0xf]
        %v2905 = vld [vmem:[%s13 + $0x320] sm:$0xf]
        %v2906 = vld [vmem:[%s13 + $0x324] sm:$0xf]
        %v2907 = vld [vmem:[%s13 + $0x328] sm:$0xf]
        %v2908 = vld [vmem:[%s13 + $0x32c] sm:$0xf]
        %v2909 = vld [vmem:[%s13 + $0x330] sm:$0xf]
        %v2910 = vld [vmem:[%s13 + $0x334] sm:$0xf]
        %v2911 = vld [vmem:[%s13 + $0x338] sm:$0xf]
        %v2912 = vld [vmem:[%s13 + $0x33c] sm:$0xf]
        %v2913 = vld [vmem:[%s13 + $0x340] sm:$0xf]
        %v2914 = vld [vmem:[%s13 + $0x344] sm:$0xf]
        %v2915 = vld [vmem:[%s13 + $0x348] sm:$0xf]
        %v2916 = vld [vmem:[%s13 + $0x34c] sm:$0xf]
        %v2917 = vld [vmem:[%s13 + $0x350] sm:$0xf]
        %v2918 = vld [vmem:[%s13 + $0x354] sm:$0xf]
        %v2919 = vld [vmem:[%s13 + $0x358] sm:$0xf]
        %v2920 = vld [vmem:[%s13 + $0x35c] sm:$0xf]
        %v2921 = vld [vmem:[%s13 + $0x360] sm:$0xf]
        %v2922 = vld [vmem:[%s13 + $0x364] sm:$0xf]
        %v2923 = vld [vmem:[%s13 + $0x368] sm:$0xf]
        %v2924 = vld [vmem:[%s13 + $0x36c] sm:$0xf]
        %v2925 = vld [vmem:[%s13 + $0x370] sm:$0xf]
        %v2926 = vld [vmem:[%s13 + $0x374] sm:$0xf]
        %v2927 = vld [vmem:[%s13 + $0x378] sm:$0xf]
        %v2928 = vld [vmem:[%s13 + $0x37c] sm:$0xf]
        %v2929 = vld [vmem:[%s13 + $0x380] sm:$0xf]
        %v2930 = vld [vmem:[%s13 + $0x384] sm:$0xf]
        %v2931 = vld [vmem:[%s13 + $0x388] sm:$0xf]
        %v2932 = vld [vmem:[%s13 + $0x38c] sm:$0xf]
        %v2933 = vld [vmem:[%s13 + $0x390] sm:$0xf]
        %v2934 = vld [vmem:[%s13 + $0x394] sm:$0xf]
        %v2935 = vld [vmem:[%s13 + $0x398] sm:$0xf]
        %v2936 = vld [vmem:[%s13 + $0x39c] sm:$0xf]
        %v2937 = vld [vmem:[%s13 + $0x3a0] sm:$0xf]
        %v2938 = vld [vmem:[%s13 + $0x3a4] sm:$0xf]
        %v2939 = vld [vmem:[%s13 + $0x3a8] sm:$0xf]
        %v2940 = vld [vmem:[%s13 + $0x3ac] sm:$0xf]
        %v2941 = vld [vmem:[%s13 + $0x3b0] sm:$0xf]
        %v2942 = vld [vmem:[%s13 + $0x3b4] sm:$0xf]
        %v2943 = vld [vmem:[%s13 + $0x3b8] sm:$0xf]
        %v2944 = vld [vmem:[%s13 + $0x3bc] sm:$0xf]
        %v2945 = vld [vmem:[%s13 + $0x3c0] sm:$0xf]
        %v2946 = vld [vmem:[%s13 + $0x3c4] sm:$0xf]
        %v2947 = vld [vmem:[%s13 + $0x3c8] sm:$0xf]
        %v2948 = vld [vmem:[%s13 + $0x3cc] sm:$0xf]
        %v2949 = vld [vmem:[%s13 + $0x3d0] sm:$0xf]
        %v2950 = vld [vmem:[%s13 + $0x3d4] sm:$0xf]
        %v2951 = vld [vmem:[%s13 + $0x3d8] sm:$0xf]
        %v2952 = vld [vmem:[%s13 + $0x3dc] sm:$0xf]
        %v2953 = vld [vmem:[%s13 + $0x3e0] sm:$0xf]
        %v2954 = vld [vmem:[%s13 + $0x3e4] sm:$0xf]
        %v2955 = vld [vmem:[%s13 + $0x3e8] sm:$0xf]
        %v2956 = vld [vmem:[%s13 + $0x3ec] sm:$0xf]
        %v2957 = vld [vmem:[%s13 + $0x3f0] sm:$0xf]
        %v2958 = vld [vmem:[%s13 + $0x3f4] sm:$0xf]
        %v2959 = vld [vmem:[%s13 + $0x3f8] sm:$0xf]
        %v2960 = vld [vmem:[%s13 + $0x3fc] sm:$0xf]
        %v2961 = vld [vmem:[%s14] sm:$0x1]
        %v2963 = vperm.slane %v2961, 0
        %v3221 = vunpack.c.l.b16 %v2705
        %v3222 = vunpack.c.l.b16 %v2706
        %v3223 = vunpack.c.l.b16 %v2707
        %v3224 = vunpack.c.l.b16 %v2708
        %v3225 = vunpack.c.l.b16 %v2709
        %v3226 = vunpack.c.l.b16 %v2710
        %v3227 = vunpack.c.l.b16 %v2711
        %v3228 = vunpack.c.l.b16 %v2712
        %v3229 = vunpack.c.l.b16 %v2713
        %v3230 = vunpack.c.l.b16 %v2714
        %v3231 = vunpack.c.l.b16 %v2715
        %v3232 = vunpack.c.l.b16 %v2716
        %v3233 = vunpack.c.l.b16 %v2717
        %v3234 = vunpack.c.l.b16 %v2718
        %v3235 = vunpack.c.l.b16 %v2719
        %v3236 = vunpack.c.l.b16 %v2720
        %v3237 = vunpack.c.l.b16 %v2721
        %v3238 = vunpack.c.l.b16 %v2722
        %v3239 = vunpack.c.l.b16 %v2723
        %v3240 = vunpack.c.l.b16 %v2724
        %v3241 = vunpack.c.l.b16 %v2725
        %v3242 = vunpack.c.l.b16 %v2726
        %v3243 = vunpack.c.l.b16 %v2727
        %v3244 = vunpack.c.l.b16 %v2728
        %v3245 = vunpack.c.l.b16 %v2729
        %v3246 = vunpack.c.l.b16 %v2730
        %v3247 = vunpack.c.l.b16 %v2731
        %v3248 = vunpack.c.l.b16 %v2732
        %v3249 = vunpack.c.l.b16 %v2733
        %v3250 = vunpack.c.l.b16 %v2734
        %v3251 = vunpack.c.l.b16 %v2735
        %v3252 = vunpack.c.l.b16 %v2736
        %v3253 = vunpack.c.l.b16 %v2737
        %v3254 = vunpack.c.l.b16 %v2738
        %v3255 = vunpack.c.l.b16 %v2739
        %v3256 = vunpack.c.l.b16 %v2740
        %v3257 = vunpack.c.l.b16 %v2741
        %v3258 = vunpack.c.l.b16 %v2742
        %v3259 = vunpack.c.l.b16 %v2743
        %v3260 = vunpack.c.l.b16 %v2744
        %v3261 = vunpack.c.l.b16 %v2745
        %v3262 = vunpack.c.l.b16 %v2746
        %v3263 = vunpack.c.l.b16 %v2747
        %v3264 = vunpack.c.l.b16 %v2748
        %v3265 = vunpack.c.l.b16 %v2749
        %v3266 = vunpack.c.l.b16 %v2750
        %v3267 = vunpack.c.l.b16 %v2751
        %v3268 = vunpack.c.l.b16 %v2752
        %v3269 = vunpack.c.l.b16 %v2753
        %v3270 = vunpack.c.l.b16 %v2754
        %v3271 = vunpack.c.l.b16 %v2755
        %v3272 = vunpack.c.l.b16 %v2756
        %v3273 = vunpack.c.l.b16 %v2757
        %v3274 = vunpack.c.l.b16 %v2758
        %v3275 = vunpack.c.l.b16 %v2759
        %v3276 = vunpack.c.l.b16 %v2760
        %v3277 = vunpack.c.l.b16 %v2761
        %v3278 = vunpack.c.l.b16 %v2762
        %v3279 = vunpack.c.l.b16 %v2763
        %v3280 = vunpack.c.l.b16 %v2764
        %v3281 = vunpack.c.l.b16 %v2765
        %v3282 = vunpack.c.l.b16 %v2766
        %v3283 = vunpack.c.l.b16 %v2767
        %v3284 = vunpack.c.l.b16 %v2768
        %v3285 = vunpack.c.l.b16 %v2769
        %v3286 = vunpack.c.l.b16 %v2770
        %v3287 = vunpack.c.l.b16 %v2771
        %v3288 = vunpack.c.l.b16 %v2772
        %v3289 = vunpack.c.l.b16 %v2773
        %v3290 = vunpack.c.l.b16 %v2774
        %v3291 = vunpack.c.l.b16 %v2775
        %v3292 = vunpack.c.l.b16 %v2776
        %v3293 = vunpack.c.l.b16 %v2777
        %v3294 = vunpack.c.l.b16 %v2778
        %v3295 = vunpack.c.l.b16 %v2779
        %v3296 = vunpack.c.l.b16 %v2780
        %v3297 = vunpack.c.l.b16 %v2781
        %v3298 = vunpack.c.l.b16 %v2782
        %v3299 = vunpack.c.l.b16 %v2783
        %v3300 = vunpack.c.l.b16 %v2784
        %v3301 = vunpack.c.l.b16 %v2785
        %v3302 = vunpack.c.l.b16 %v2786
        %v3303 = vunpack.c.l.b16 %v2787
        %v3304 = vunpack.c.l.b16 %v2788
        %v3305 = vunpack.c.l.b16 %v2789
        %v3306 = vunpack.c.l.b16 %v2790
        %v3307 = vunpack.c.l.b16 %v2791
        %v3308 = vunpack.c.l.b16 %v2792
        %v3309 = vunpack.c.l.b16 %v2793
        %v3310 = vunpack.c.l.b16 %v2794
        %v3311 = vunpack.c.l.b16 %v2795
        %v3312 = vunpack.c.l.b16 %v2796
        %v3313 = vunpack.c.l.b16 %v2797
        %v3314 = vunpack.c.l.b16 %v2798
        %v3315 = vunpack.c.l.b16 %v2799
        %v3316 = vunpack.c.l.b16 %v2800
        %v3317 = vunpack.c.l.b16 %v2801
        %v3318 = vunpack.c.l.b16 %v2802
        %v3319 = vunpack.c.l.b16 %v2803
        %v3320 = vunpack.c.l.b16 %v2804
        %v3321 = vunpack.c.l.b16 %v2805
        %v3322 = vunpack.c.l.b16 %v2806
        %v3323 = vunpack.c.l.b16 %v2807
        %v3324 = vunpack.c.l.b16 %v2808
        %v3325 = vunpack.c.l.b16 %v2809
        %v3326 = vunpack.c.l.b16 %v2810
        %v3327 = vunpack.c.l.b16 %v2811
        %v3328 = vunpack.c.l.b16 %v2812
        %v3329 = vunpack.c.l.b16 %v2813
        %v3330 = vunpack.c.l.b16 %v2814
        %v3331 = vunpack.c.l.b16 %v2815
        %v3332 = vunpack.c.l.b16 %v2816
        %v3333 = vunpack.c.l.b16 %v2817
        %v3334 = vunpack.c.l.b16 %v2818
        %v3335 = vunpack.c.l.b16 %v2819
        %v3336 = vunpack.c.l.b16 %v2820
        %v3337 = vunpack.c.l.b16 %v2821
        %v3338 = vunpack.c.l.b16 %v2822
        %v3339 = vunpack.c.l.b16 %v2823
        %v3340 = vunpack.c.l.b16 %v2824
        %v3341 = vunpack.c.l.b16 %v2825
        %v3342 = vunpack.c.l.b16 %v2826
        %v3343 = vunpack.c.l.b16 %v2827
        %v3344 = vunpack.c.l.b16 %v2828
        %v3345 = vunpack.c.l.b16 %v2829
        %v3346 = vunpack.c.l.b16 %v2830
        %v3347 = vunpack.c.l.b16 %v2831
        %v3348 = vunpack.c.l.b16 %v2832
        %v3349 = vunpack.c.l.b16 %v2833
        %v3350 = vunpack.c.l.b16 %v2834
        %v3351 = vunpack.c.l.b16 %v2835
        %v3352 = vunpack.c.l.b16 %v2836
        %v3353 = vunpack.c.l.b16 %v2837
        %v3354 = vunpack.c.l.b16 %v2838
        %v3355 = vunpack.c.l.b16 %v2839
        %v3356 = vunpack.c.l.b16 %v2840
        %v3357 = vunpack.c.l.b16 %v2841
        %v3358 = vunpack.c.l.b16 %v2842
        %v3359 = vunpack.c.l.b16 %v2843
        %v3360 = vunpack.c.l.b16 %v2844
        %v3361 = vunpack.c.l.b16 %v2845
        %v3362 = vunpack.c.l.b16 %v2846
        %v3363 = vunpack.c.l.b16 %v2847
        %v3364 = vunpack.c.l.b16 %v2848
        %v3365 = vunpack.c.l.b16 %v2849
        %v3366 = vunpack.c.l.b16 %v2850
        %v3367 = vunpack.c.l.b16 %v2851
        %v3368 = vunpack.c.l.b16 %v2852
        %v3369 = vunpack.c.l.b16 %v2853
        %v3370 = vunpack.c.l.b16 %v2854
        %v3371 = vunpack.c.l.b16 %v2855
        %v3372 = vunpack.c.l.b16 %v2856
        %v3373 = vunpack.c.l.b16 %v2857
        %v3374 = vunpack.c.l.b16 %v2858
        %v3375 = vunpack.c.l.b16 %v2859
        %v3376 = vunpack.c.l.b16 %v2860
        %v3377 = vunpack.c.l.b16 %v2861
        %v3378 = vunpack.c.l.b16 %v2862
        %v3379 = vunpack.c.l.b16 %v2863
        %v3380 = vunpack.c.l.b16 %v2864
        %v3381 = vunpack.c.l.b16 %v2865
        %v3382 = vunpack.c.l.b16 %v2866
        %v3383 = vunpack.c.l.b16 %v2867
        %v3384 = vunpack.c.l.b16 %v2868
        %v3385 = vunpack.c.l.b16 %v2869
        %v3386 = vunpack.c.l.b16 %v2870
        %v3387 = vunpack.c.l.b16 %v2871
        %v3388 = vunpack.c.l.b16 %v2872
        %v3389 = vunpack.c.l.b16 %v2873
        %v3390 = vunpack.c.l.b16 %v2874
        %v3391 = vunpack.c.l.b16 %v2875
        %v3392 = vunpack.c.l.b16 %v2876
        %v3393 = vunpack.c.l.b16 %v2877
        %v3394 = vunpack.c.l.b16 %v2878
        %v3395 = vunpack.c.l.b16 %v2879
        %v3396 = vunpack.c.l.b16 %v2880
        %v3397 = vunpack.c.l.b16 %v2881
        %v3398 = vunpack.c.l.b16 %v2882
        %v3399 = vunpack.c.l.b16 %v2883
        %v3400 = vunpack.c.l.b16 %v2884
        %v3401 = vunpack.c.l.b16 %v2885
        %v3402 = vunpack.c.l.b16 %v2886
        %v3403 = vunpack.c.l.b16 %v2887
        %v3404 = vunpack.c.l.b16 %v2888
        %v3405 = vunpack.c.l.b16 %v2889
        %v3406 = vunpack.c.l.b16 %v2890
        %v3407 = vunpack.c.l.b16 %v2891
        %v3408 = vunpack.c.l.b16 %v2892
        %v3409 = vunpack.c.l.b16 %v2893
        %v3410 = vunpack.c.l.b16 %v2894
        %v3411 = vunpack.c.l.b16 %v2895
        %v3412 = vunpack.c.l.b16 %v2896
        %v3413 = vunpack.c.l.b16 %v2897
        %v3414 = vunpack.c.l.b16 %v2898
        %v3415 = vunpack.c.l.b16 %v2899
        %v3416 = vunpack.c.l.b16 %v2900
        %v3417 = vunpack.c.l.b16 %v2901
        %v3418 = vunpack.c.l.b16 %v2902
        %v3419 = vunpack.c.l.b16 %v2903
        %v3420 = vunpack.c.l.b16 %v2904
        %v3421 = vunpack.c.l.b16 %v2905
        %v3422 = vunpack.c.l.b16 %v2906
        %v3423 = vunpack.c.l.b16 %v2907
        %v3424 = vunpack.c.l.b16 %v2908
        %v3425 = vunpack.c.l.b16 %v2909
        %v3426 = vunpack.c.l.b16 %v2910
        %v3427 = vunpack.c.l.b16 %v2911
        %v3428 = vunpack.c.l.b16 %v2912
        %v3429 = vunpack.c.l.b16 %v2913
        %v3430 = vunpack.c.l.b16 %v2914
        %v3431 = vunpack.c.l.b16 %v2915
        %v3432 = vunpack.c.l.b16 %v2916
        %v3433 = vunpack.c.l.b16 %v2917
        %v3434 = vunpack.c.l.b16 %v2918
        %v3435 = vunpack.c.l.b16 %v2919
        %v3436 = vunpack.c.l.b16 %v2920
        %v3437 = vunpack.c.l.b16 %v2921
        %v3438 = vunpack.c.l.b16 %v2922
        %v3439 = vunpack.c.l.b16 %v2923
        %v3440 = vunpack.c.l.b16 %v2924
        %v3441 = vunpack.c.l.b16 %v2925
        %v3442 = vunpack.c.l.b16 %v2926
        %v3443 = vunpack.c.l.b16 %v2927
        %v3444 = vunpack.c.l.b16 %v2928
        %v3445 = vunpack.c.l.b16 %v2929
        %v3446 = vunpack.c.l.b16 %v2930
        %v3447 = vunpack.c.l.b16 %v2931
        %v3448 = vunpack.c.l.b16 %v2932
        %v3449 = vunpack.c.l.b16 %v2933
        %v3450 = vunpack.c.l.b16 %v2934
        %v3451 = vunpack.c.l.b16 %v2935
        %v3452 = vunpack.c.l.b16 %v2936
        %v3453 = vunpack.c.l.b16 %v2937
        %v3454 = vunpack.c.l.b16 %v2938
        %v3455 = vunpack.c.l.b16 %v2939
        %v3456 = vunpack.c.l.b16 %v2940
        %v3457 = vunpack.c.l.b16 %v2941
        %v3458 = vunpack.c.l.b16 %v2942
        %v3459 = vunpack.c.l.b16 %v2943
        %v3460 = vunpack.c.l.b16 %v2944
        %v3461 = vunpack.c.l.b16 %v2945
        %v3462 = vunpack.c.l.b16 %v2946
        %v3463 = vunpack.c.l.b16 %v2947
        %v3464 = vunpack.c.l.b16 %v2948
        %v3465 = vunpack.c.l.b16 %v2949
        %v3466 = vunpack.c.l.b16 %v2950
        %v3467 = vunpack.c.l.b16 %v2951
        %v3468 = vunpack.c.l.b16 %v2952
        %v3469 = vunpack.c.l.b16 %v2953
        %v3470 = vunpack.c.l.b16 %v2954
        %v3471 = vunpack.c.l.b16 %v2955
        %v3472 = vunpack.c.l.b16 %v2956
        %v3473 = vunpack.c.l.b16 %v2957
        %v3474 = vunpack.c.l.b16 %v2958
        %v3475 = vunpack.c.l.b16 %v2959
        %v3476 = vunpack.c.l.b16 %v2960
        %v3477 = vpack.c.b16 %v3222, %v3221
        %v3478 = vpack.c.b16 %v3224, %v3223
        %v3479 = vpack.c.b16 %v3226, %v3225
        %v3480 = vpack.c.b16 %v3228, %v3227
        %v3481 = vpack.c.b16 %v3230, %v3229
        %v3482 = vpack.c.b16 %v3232, %v3231
        %v3483 = vpack.c.b16 %v3234, %v3233
        %v3484 = vpack.c.b16 %v3236, %v3235
        %v3485 = vpack.c.b16 %v3238, %v3237
        %v3486 = vpack.c.b16 %v3240, %v3239
        %v3487 = vpack.c.b16 %v3242, %v3241
        %v3488 = vpack.c.b16 %v3244, %v3243
        %v3489 = vpack.c.b16 %v3246, %v3245
        %v3490 = vpack.c.b16 %v3248, %v3247
        %v3491 = vpack.c.b16 %v3250, %v3249
        %v3492 = vpack.c.b16 %v3252, %v3251
        %v3493 = vpack.c.b16 %v3254, %v3253
        %v3494 = vpack.c.b16 %v3256, %v3255
        %v3495 = vpack.c.b16 %v3258, %v3257
        %v3496 = vpack.c.b16 %v3260, %v3259
        %v3497 = vpack.c.b16 %v3262, %v3261
        %v3498 = vpack.c.b16 %v3264, %v3263
        %v3499 = vpack.c.b16 %v3266, %v3265
        %v3500 = vpack.c.b16 %v3268, %v3267
        %v3501 = vpack.c.b16 %v3270, %v3269
        %v3502 = vpack.c.b16 %v3272, %v3271
        %v3503 = vpack.c.b16 %v3274, %v3273
        %v3504 = vpack.c.b16 %v3276, %v3275
        %v3505 = vpack.c.b16 %v3278, %v3277
        %v3506 = vpack.c.b16 %v3280, %v3279
        %v3507 = vpack.c.b16 %v3282, %v3281
        %v3508 = vpack.c.b16 %v3284, %v3283
        %v3509 = vpack.c.b16 %v3286, %v3285
        %v3510 = vpack.c.b16 %v3288, %v3287
        %v3511 = vpack.c.b16 %v3290, %v3289
        %v3512 = vpack.c.b16 %v3292, %v3291
        %v3513 = vpack.c.b16 %v3294, %v3293
        %v3514 = vpack.c.b16 %v3296, %v3295
        %v3515 = vpack.c.b16 %v3298, %v3297
        %v3516 = vpack.c.b16 %v3300, %v3299
        %v3517 = vpack.c.b16 %v3302, %v3301
        %v3518 = vpack.c.b16 %v3304, %v3303
        %v3519 = vpack.c.b16 %v3306, %v3305
        %v3520 = vpack.c.b16 %v3308, %v3307
        %v3521 = vpack.c.b16 %v3310, %v3309
        %v3522 = vpack.c.b16 %v3312, %v3311
        %v3523 = vpack.c.b16 %v3314, %v3313
        %v3524 = vpack.c.b16 %v3316, %v3315
        %v3525 = vpack.c.b16 %v3318, %v3317
        %v3526 = vpack.c.b16 %v3320, %v3319
        %v3527 = vpack.c.b16 %v3322, %v3321
        %v3528 = vpack.c.b16 %v3324, %v3323
        %v3529 = vpack.c.b16 %v3326, %v3325
        %v3530 = vpack.c.b16 %v3328, %v3327
        %v3531 = vpack.c.b16 %v3330, %v3329
        %v3532 = vpack.c.b16 %v3332, %v3331
        %v3533 = vpack.c.b16 %v3334, %v3333
        %v3534 = vpack.c.b16 %v3336, %v3335
        %v3535 = vpack.c.b16 %v3338, %v3337
        %v3536 = vpack.c.b16 %v3340, %v3339
        %v3537 = vpack.c.b16 %v3342, %v3341
        %v3538 = vpack.c.b16 %v3344, %v3343
        %v3539 = vpack.c.b16 %v3346, %v3345
        %v3540 = vpack.c.b16 %v3348, %v3347
        %v3541 = vpack.c.b16 %v3350, %v3349
        %v3542 = vpack.c.b16 %v3352, %v3351
        %v3543 = vpack.c.b16 %v3354, %v3353
        %v3544 = vpack.c.b16 %v3356, %v3355
        %v3545 = vpack.c.b16 %v3358, %v3357
        %v3546 = vpack.c.b16 %v3360, %v3359
        %v3547 = vpack.c.b16 %v3362, %v3361
        %v3548 = vpack.c.b16 %v3364, %v3363
        %v3549 = vpack.c.b16 %v3366, %v3365
        %v3550 = vpack.c.b16 %v3368, %v3367
        %v3551 = vpack.c.b16 %v3370, %v3369
        %v3552 = vpack.c.b16 %v3372, %v3371
        %v3553 = vpack.c.b16 %v3374, %v3373
        %v3554 = vpack.c.b16 %v3376, %v3375
        %v3555 = vpack.c.b16 %v3378, %v3377
        %v3556 = vpack.c.b16 %v3380, %v3379
        %v3557 = vpack.c.b16 %v3382, %v3381
        %v3558 = vpack.c.b16 %v3384, %v3383
        %v3559 = vpack.c.b16 %v3386, %v3385
        %v3560 = vpack.c.b16 %v3388, %v3387
        %v3561 = vpack.c.b16 %v3390, %v3389
        %v3562 = vpack.c.b16 %v3392, %v3391
        %v3563 = vpack.c.b16 %v3394, %v3393
        %v3564 = vpack.c.b16 %v3396, %v3395
        %v3565 = vpack.c.b16 %v3398, %v3397
        %v3566 = vpack.c.b16 %v3400, %v3399
        %v3567 = vpack.c.b16 %v3402, %v3401
        %v3568 = vpack.c.b16 %v3404, %v3403
        %v3569 = vpack.c.b16 %v3406, %v3405
        %v3570 = vpack.c.b16 %v3408, %v3407
        %v3571 = vpack.c.b16 %v3410, %v3409
        %v3572 = vpack.c.b16 %v3412, %v3411
        %v3573 = vpack.c.b16 %v3414, %v3413
        %v3574 = vpack.c.b16 %v3416, %v3415
        %v3575 = vpack.c.b16 %v3418, %v3417
        %v3576 = vpack.c.b16 %v3420, %v3419
        %v3577 = vpack.c.b16 %v3422, %v3421
        %v3578 = vpack.c.b16 %v3424, %v3423
        %v3579 = vpack.c.b16 %v3426, %v3425
        %v3580 = vpack.c.b16 %v3428, %v3427
        %v3581 = vpack.c.b16 %v3430, %v3429
        %v3582 = vpack.c.b16 %v3432, %v3431
        %v3583 = vpack.c.b16 %v3434, %v3433
        %v3584 = vpack.c.b16 %v3436, %v3435
        %v3585 = vpack.c.b16 %v3438, %v3437
        %v3586 = vpack.c.b16 %v3440, %v3439
        %v3587 = vpack.c.b16 %v3442, %v3441
        %v3588 = vpack.c.b16 %v3444, %v3443
        %v3589 = vpack.c.b16 %v3446, %v3445
        %v3590 = vpack.c.b16 %v3448, %v3447
        %v3591 = vpack.c.b16 %v3450, %v3449
        %v3592 = vpack.c.b16 %v3452, %v3451
        %v3593 = vpack.c.b16 %v3454, %v3453
        %v3594 = vpack.c.b16 %v3456, %v3455
        %v3595 = vpack.c.b16 %v3458, %v3457
        %v3596 = vpack.c.b16 %v3460, %v3459
        %v3597 = vpack.c.b16 %v3462, %v3461
        %v3598 = vpack.c.b16 %v3464, %v3463
        %v3599 = vpack.c.b16 %v3466, %v3465
        %v3600 = vpack.c.b16 %v3468, %v3467
        %v3601 = vpack.c.b16 %v3470, %v3469
        %v3602 = vpack.c.b16 %v3472, %v3471
        %v3603 = vpack.c.b16 %v3474, %v3473
        %v3604 = vpack.c.b16 %v3476, %v3475
        %3733 = vmatpush.bf16.msra.mxu0 %v3484
        %3734 = vmatpush.bf16.msra.mxu0 %v3483
        %3735 = vmatpush.bf16.msra.mxu0 %v3482
        %3736 = vmatpush.bf16.msra.mxu0 %v3481
        %3737 = vmatpush.bf16.msra.mxu0 %v3480
        %3738 = vmatpush.bf16.msra.mxu0 %v3479
        %3739 = vmatpush.bf16.msra.mxu0 %v3478
        %3740 = vmatpush.bf16.msra.mxu0 %v3477
        %3741 = vmatmul.bf16.gmra.mxu0 %v2689
        %v3742 = vpop.f32.mrf.mxu0
        %v3743 = vadd.f32 %v2963, %v3742
        %v3744 = vpop.f32.mrf.mxu0
        %3745 = vdwg.mxu0
        %3746 = vmatpush.bf16.msra.mxu0 %v3492
        %3747 = vmatpush.bf16.msra.mxu0 %v3491
        %3748 = vmatpush.bf16.msra.mxu0 %v3490
        %3749 = vmatpush.bf16.msra.mxu0 %v3489
        %3750 = vmatpush.bf16.msra.mxu0 %v3488
        %3751 = vmatpush.bf16.msra.mxu0 %v3487
        %3752 = vmatpush.bf16.msra.mxu0 %v3486
        %3753 = vmatpush.bf16.msra.mxu0 %v3485
        %3754 = vmatmul.bf16.gmra.mxu0 %v2690
        %v3755 = vpop.f32.mrf.mxu0
        %v3756 = vadd.f32 %v3743, %v3755
        %v3757 = vpop.f32.mrf.mxu0
        %3758 = vdwg.mxu0
        %3759 = vmatpush.bf16.msra.mxu0 %v3500
        %3760 = vmatpush.bf16.msra.mxu0 %v3499
        %3761 = vmatpush.bf16.msra.mxu0 %v3498
        %3762 = vmatpush.bf16.msra.mxu0 %v3497
        %3763 = vmatpush.bf16.msra.mxu0 %v3496
        %3764 = vmatpush.bf16.msra.mxu0 %v3495
        %3765 = vmatpush.bf16.msra.mxu0 %v3494
        %3766 = vmatpush.bf16.msra.mxu0 %v3493
        %3767 = vmatmul.bf16.gmra.mxu0 %v2691
        %v3768 = vpop.f32.mrf.mxu0
        %v3769 = vadd.f32 %v3756, %v3768
        %v3770 = vpop.f32.mrf.mxu0
        %3771 = vdwg.mxu0
        %3772 = vmatpush.bf16.msra.mxu0 %v3508
        %3773 = vmatpush.bf16.msra.mxu0 %v3507
        %3774 = vmatpush.bf16.msra.mxu0 %v3506
        %3775 = vmatpush.bf16.msra.mxu0 %v3505
        %3776 = vmatpush.bf16.msra.mxu0 %v3504
        %3777 = vmatpush.bf16.msra.mxu0 %v3503
        %3778 = vmatpush.bf16.msra.mxu0 %v3502
        %3779 = vmatpush.bf16.msra.mxu0 %v3501
        %3780 = vmatmul.bf16.gmra.mxu0 %v2692
        %v3781 = vpop.f32.mrf.mxu0
        %v3782 = vadd.f32 %v3769, %v3781
        %v3783 = vpop.f32.mrf.mxu0
        %3784 = vdwg.mxu0
        %3785 = vmatpush.bf16.msra.mxu0 %v3516
        %3786 = vmatpush.bf16.msra.mxu0 %v3515
        %3787 = vmatpush.bf16.msra.mxu0 %v3514
        %3788 = vmatpush.bf16.msra.mxu0 %v3513
        %3789 = vmatpush.bf16.msra.mxu0 %v3512
        %3790 = vmatpush.bf16.msra.mxu0 %v3511
        %3791 = vmatpush.bf16.msra.mxu0 %v3510
        %3792 = vmatpush.bf16.msra.mxu0 %v3509
        %3793 = vmatmul.bf16.gmra.mxu0 %v2693
        %v3794 = vpop.f32.mrf.mxu0
        %v3795 = vadd.f32 %v3782, %v3794
        %v3796 = vpop.f32.mrf.mxu0
        %3797 = vdwg.mxu0
        %3798 = vmatpush.bf16.msra.mxu0 %v3524
        %3799 = vmatpush.bf16.msra.mxu0 %v3523
        %3800 = vmatpush.bf16.msra.mxu0 %v3522
        %3801 = vmatpush.bf16.msra.mxu0 %v3521
        %3802 = vmatpush.bf16.msra.mxu0 %v3520
        %3803 = vmatpush.bf16.msra.mxu0 %v3519
        %3804 = vmatpush.bf16.msra.mxu0 %v3518
        %3805 = vmatpush.bf16.msra.mxu0 %v3517
        %3806 = vmatmul.bf16.gmra.mxu0 %v2694
        %v3807 = vpop.f32.mrf.mxu0
        %v3808 = vadd.f32 %v3795, %v3807
        %v3809 = vpop.f32.mrf.mxu0
        %3810 = vdwg.mxu0
        %3811 = vmatpush.bf16.msra.mxu0 %v3532
        %3812 = vmatpush.bf16.msra.mxu0 %v3531
        %3813 = vmatpush.bf16.msra.mxu0 %v3530
        %3814 = vmatpush.bf16.msra.mxu0 %v3529
        %3815 = vmatpush.bf16.msra.mxu0 %v3528
        %3816 = vmatpush.bf16.msra.mxu0 %v3527
        %3817 = vmatpush.bf16.msra.mxu0 %v3526
        %3818 = vmatpush.bf16.msra.mxu0 %v3525
        %3819 = vmatmul.bf16.gmra.mxu0 %v2695
        %v3820 = vpop.f32.mrf.mxu0
        %v3821 = vadd.f32 %v3808, %v3820
        %v3822 = vpop.f32.mrf.mxu0
        %3823 = vdwg.mxu0
        %3824 = vmatpush.bf16.msra.mxu0 %v3540
        %3825 = vmatpush.bf16.msra.mxu0 %v3539
        %3826 = vmatpush.bf16.msra.mxu0 %v3538
        %3827 = vmatpush.bf16.msra.mxu0 %v3537
        %3828 = vmatpush.bf16.msra.mxu0 %v3536
        %3829 = vmatpush.bf16.msra.mxu0 %v3535
        %3830 = vmatpush.bf16.msra.mxu0 %v3534
        %3831 = vmatpush.bf16.msra.mxu0 %v3533
        %3832 = vmatmul.bf16.gmra.mxu0 %v2696
        %v3833 = vpop.f32.mrf.mxu0
        %v3834 = vadd.f32 %v3821, %v3833
        %v3835 = vpop.f32.mrf.mxu0
        %3836 = vdwg.mxu0
        %3837 = vmatpush.bf16.msra.mxu0 %v3548
        %3838 = vmatpush.bf16.msra.mxu0 %v3547
        %3839 = vmatpush.bf16.msra.mxu0 %v3546
        %3840 = vmatpush.bf16.msra.mxu0 %v3545
        %3841 = vmatpush.bf16.msra.mxu0 %v3544
        %3842 = vmatpush.bf16.msra.mxu0 %v3543
        %3843 = vmatpush.bf16.msra.mxu0 %v3542
        %3844 = vmatpush.bf16.msra.mxu0 %v3541
        %3845 = vmatmul.bf16.gmra.mxu0 %v2697
        %v3846 = vpop.f32.mrf.mxu0
        %v3847 = vadd.f32 %v3834, %v3846
        %v3848 = vpop.f32.mrf.mxu0
        %3849 = vdwg.mxu0
        %3850 = vmatpush.bf16.msra.mxu0 %v3556
        %3851 = vmatpush.bf16.msra.mxu0 %v3555
        %3852 = vmatpush.bf16.msra.mxu0 %v3554
        %3853 = vmatpush.bf16.msra.mxu0 %v3553
        %3854 = vmatpush.bf16.msra.mxu0 %v3552
        %3855 = vmatpush.bf16.msra.mxu0 %v3551
        %3856 = vmatpush.bf16.msra.mxu0 %v3550
        %3857 = vmatpush.bf16.msra.mxu0 %v3549
        %3858 = vmatmul.bf16.gmra.mxu0 %v2698
        %v3859 = vpop.f32.mrf.mxu0
        %v3860 = vadd.f32 %v3847, %v3859
        %v3861 = vpop.f32.mrf.mxu0
        %3862 = vdwg.mxu0
        %3863 = vmatpush.bf16.msra.mxu0 %v3564
        %3864 = vmatpush.bf16.msra.mxu0 %v3563
        %3865 = vmatpush.bf16.msra.mxu0 %v3562
        %3866 = vmatpush.bf16.msra.mxu0 %v3561
        %3867 = vmatpush.bf16.msra.mxu0 %v3560
        %3868 = vmatpush.bf16.msra.mxu0 %v3559
        %3869 = vmatpush.bf16.msra.mxu0 %v3558
        %3870 = vmatpush.bf16.msra.mxu0 %v3557
        %3871 = vmatmul.bf16.gmra.mxu0 %v2699
        %v3872 = vpop.f32.mrf.mxu0
        %v3873 = vadd.f32 %v3860, %v3872
        %v3874 = vpop.f32.mrf.mxu0
        %3875 = vdwg.mxu0
        %3876 = vmatpush.bf16.msra.mxu0 %v3572
        %3877 = vmatpush.bf16.msra.mxu0 %v3571
        %3878 = vmatpush.bf16.msra.mxu0 %v3570
        %3879 = vmatpush.bf16.msra.mxu0 %v3569
        %3880 = vmatpush.bf16.msra.mxu0 %v3568
        %3881 = vmatpush.bf16.msra.mxu0 %v3567
        %3882 = vmatpush.bf16.msra.mxu0 %v3566
        %3883 = vmatpush.bf16.msra.mxu0 %v3565
        %3884 = vmatmul.bf16.gmra.mxu0 %v2700
        %v3885 = vpop.f32.mrf.mxu0
        %v3886 = vadd.f32 %v3873, %v3885
        %v3887 = vpop.f32.mrf.mxu0
        %3888 = vdwg.mxu0
        %3889 = vmatpush.bf16.msra.mxu0 %v3580
        %3890 = vmatpush.bf16.msra.mxu0 %v3579
        %3891 = vmatpush.bf16.msra.mxu0 %v3578
        %3892 = vmatpush.bf16.msra.mxu0 %v3577
        %3893 = vmatpush.bf16.msra.mxu0 %v3576
        %3894 = vmatpush.bf16.msra.mxu0 %v3575
        %3895 = vmatpush.bf16.msra.mxu0 %v3574
        %3896 = vmatpush.bf16.msra.mxu0 %v3573
        %3897 = vmatmul.bf16.gmra.mxu0 %v2701
        %v3898 = vpop.f32.mrf.mxu0
        %v3899 = vadd.f32 %v3886, %v3898
        %v3900 = vpop.f32.mrf.mxu0
        %3901 = vdwg.mxu0
        %3902 = vmatpush.bf16.msra.mxu0 %v3588
        %3903 = vmatpush.bf16.msra.mxu0 %v3587
        %3904 = vmatpush.bf16.msra.mxu0 %v3586
        %3905 = vmatpush.bf16.msra.mxu0 %v3585
        %3906 = vmatpush.bf16.msra.mxu0 %v3584
        %3907 = vmatpush.bf16.msra.mxu0 %v3583
        %3908 = vmatpush.bf16.msra.mxu0 %v3582
        %3909 = vmatpush.bf16.msra.mxu0 %v3581
        %3910 = vmatmul.bf16.gmra.mxu0 %v2702
        %v3911 = vpop.f32.mrf.mxu0
        %v3912 = vadd.f32 %v3899, %v3911
        %v3913 = vpop.f32.mrf.mxu0
        %3914 = vdwg.mxu0
        %3915 = vmatpush.bf16.msra.mxu0 %v3596
        %3916 = vmatpush.bf16.msra.mxu0 %v3595
        %3917 = vmatpush.bf16.msra.mxu0 %v3594
        %3918 = vmatpush.bf16.msra.mxu0 %v3593
        %3919 = vmatpush.bf16.msra.mxu0 %v3592
        %3920 = vmatpush.bf16.msra.mxu0 %v3591
        %3921 = vmatpush.bf16.msra.mxu0 %v3590
        %3922 = vmatpush.bf16.msra.mxu0 %v3589
        %3923 = vmatmul.bf16.gmra.mxu0 %v2703
        %v3924 = vpop.f32.mrf.mxu0
        %v3925 = vadd.f32 %v3912, %v3924
        %v3926 = vpop.f32.mrf.mxu0
        %3927 = vdwg.mxu0
        %3928 = vmatpush.bf16.msra.mxu0 %v3604
        %3929 = vmatpush.bf16.msra.mxu0 %v3603
        %3930 = vmatpush.bf16.msra.mxu0 %v3602
        %3931 = vmatpush.bf16.msra.mxu0 %v3601
        %3932 = vmatpush.bf16.msra.mxu0 %v3600
        %3933 = vmatpush.bf16.msra.mxu0 %v3599
        %3934 = vmatpush.bf16.msra.mxu0 %v3598
        %3935 = vmatpush.bf16.msra.mxu0 %v3597
        %3936 = vmatmul.bf16.gmra.mxu0 %v2704
        %v3937 = vpop.f32.mrf.mxu0
        %v3938 = vadd.f32 %v3925, %v3937
        %v3939 = vpop.f32.mrf.mxu0
        %3940 = vdwg.mxu0
        %v3941 = vadd.f32 %v2232, %v3938
        %s3942 = scalar_lea.vmem %s15, 2
        %v3943 = vld [vmem:[%s3942] sm:$0x1]
        %s3944 = scalar_lea.vmem %s16, 2
        %v3945 = vld [vmem:[%s3944] sm:$0x1]
        %v3946 = vsel %vm704, %v3941, 0.0
        %3947 = vadd.xlane.f32.xlu0 %v3946
        %v3948 = vpop.xlane.xlu0 %3947
        %v3949 = vmul.f32 %v3948, %v1422
        %v3950 = vsub.f32 %v3941, %v3949
        %v3951 = vmul.f32 %v3950, %v3950
        %v3952 = vsel %vm704, %v3951, 0.0
        %3953 = vadd.xlane.f32.xlu0 %v3952
        %v3954 = vpop.xlane.xlu0 %3953
        %v3955 = vmul.f32 %v3954, %v1422
        %v3956 = vadd.f32 %v3955, 1e-05
        %v3957 = vrsqrt.pop %v3956
        %v3958 = vmul.f32 %v3957, %v3956
        %v3959 = vmul.f32 %v3958, %v3957
        %v3960 = vmul.f32 0.5, %v3959
        %v3961 = vsub.f32 1.5, %v3960
        %v3962 = vmul.f32 %v3957, %v3961
        %vm3963 = vweird.f32 %v3956
        %vm3964 = vweird.f32 %v3957
        %vm3965 = vmor %vm3963, %vm3964
        %v3966 = vsel %vm3965, %v3957, %v3962
        %v3967 = vmul.f32 %v3950, %v3966
        %v3969 = vperm.slane %v3943, 0
        %v3971 = vmul.f32 %v3967, %v3969
        %v3973 = vperm.slane %v3945, 0
        %v3975 = vadd.f32 %v3971, %v3973
        %3976 = vst.msk [vmem:[%s636] sm:$0xff] %vm704, %v3975
        %v3977 = vld [vmem:[%s17] sm:$0x1]
        %v3979 = vperm.slane %v3977, 0
        %v3981 = vmul.f32 %v3975, %v3979
        %v3982 = vsel %vm704, %v3981, 0.0
        %3983 = vadd.xlane.f32.xlu0 %v3982
        %v3984 = vpop.xlane.xlu0 %3983
        %v3985 = vld [vmem:[#allocation2] sm:$0x1]
        %v3987 = vperm.slane %v3985, 0
        %v3989 = vadd.f32 %v3984, %v3987
        %vm3990 = vcmask 7168
        %3991 = vst.msk [vmem:[%s654] sm:$0xff] %vm3990, %v3989
        %s3992 = sand.u32 %s454, 1
        %s3993 = scalar_lea.sflag [#allocation4], %s3992
        %s3994 = sand.u32 %s454, 1
        %s3995 = smul.addr %s3994, 8
        %s3996 = scalar_lea.vmem [#allocation3], %s3995
        %p3997 = scmp.lt.s32.totalorder %s37, 1
        %s3998 = scalar_select %p3997, %s37, 1
        %s3999 = smul.addr %s3998, 8
        %s4000 = scalar_lea.vmem %s20, %s3999
        // Predicated region
        $region97: #{transformer_forward.7} parent=95 // pred_check
          %p4001 = pneg %p464
        $region98: #{transformer_forward.7} parent=95 // pred_check_branch
          %4003 = sbr.rel (%p4001) target = $region100
        $region99: #{transformer_forward.7} parent=95 // pred_region
          %4005 = vsyncadd %s3993, 0
          %s4006 = smul.addr %s37, 8
          %s4007 = scalar_lea.hbm %s19, %s4006
          %s4009 = sshll.u32 %s3996, 4
          %s4010 = int_to_ptr.vmem [resolvable:$true] %s4009
          %s4011 = sshll.u32 %s4007, 4
          %s4012 = int_to_ptr.hbm [resolvable:$true] %s4011
          %4014 = dma.vmem_to_hbm [thread:$0]  %s4010, 128, %s4012, %s3993
        $region100: #{transformer_forward.7} parent=95 // pred_fallthru
          _
        // Predicated region
        $region101: #{transformer_forward.7} parent=95 // pred_check
          %p4015 = pneg %p490
        $region102: #{transformer_forward.7} parent=95 // pred_check_branch
          %4017 = sbr.rel (%p4015) target = $region104
        $region103: #{transformer_forward.7} parent=95 // pred_region
          _
        $region104: #{transformer_forward.7} parent=95 // pred_fallthru
          _
      $region96: #{transformer_forward.7} parent=5 // pred_fallthru
        _
      %p4018 = scmp.le.s32.totalorder 2, %s32
      // Predicated region
      $region105: #{transformer_forward.7} parent=5 // pred_check
        %p4019 = pneg %p4018
      $region106: #{transformer_forward.7} parent=5 // pred_check_branch
        %4021 = sbr.rel (%p4019) target = $region108
      $region107: #{transformer_forward.7} parent=5 // pred_region
        %s4022 = ssub.s32 %s32, 2
        // Predicated region
        $region109: #{transformer_forward.7} parent=107 // pred_check
          %p4023 = pneg %p470
        $region110: #{transformer_forward.7} parent=107 // pred_check_branch
          %4025 = sbr.rel (%p4023) target = $region112
        $region111: #{transformer_forward.7} parent=107 // pred_region
          %s4026 = sand.u32 %s455, 1
          %s4027 = scalar_lea.sflag [#allocation4], %s4026
          %s4028 = sand.u32 %s455, 1
          %s4029 = smul.addr %s4028, 8
          %s4030 = scalar_lea.vmem [#allocation3], %s4029
          %4032 = dma.done %s4027, 128
        $region112: #{transformer_forward.7} parent=107 // pred_fallthru
          _
        // Predicated region
        $region113: #{transformer_forward.7} parent=107 // pred_check
          %p4033 = pneg %p496
        $region114: #{transformer_forward.7} parent=107 // pred_check_branch
          %4035 = sbr.rel (%p4033) target = $region116
        $region115: #{transformer_forward.7} parent=107 // pred_region
          %p4036 = scmp.lt.s32.totalorder %s38, 1
          %s4037 = scalar_select %p4036, %s38, 1
          %s4038 = smul.addr %s4037, 8
          %s4039 = scalar_lea.vmem %s20, %s4038
        $region116: #{transformer_forward.7} parent=107 // pred_fallthru
          _
      $region108: #{transformer_forward.7} parent=5 // pred_fallthru
        _
    $region6: #{transformer_forward.7} parent=1 // loop_footer
      %s36 = sadd.s32 1, %s32
    $region7: #{transformer_forward.7} parent=1 // loop_footer_branch
      %31 = sbr.rel target = $region3
    $region8: #{transformer_forward.7} parent=1 // loop_exit
      _
    %4040 = vsyncpa [#allocation4], 1
    %s4041 = scalar_lea.sflag [#allocation4], 1
    %4042 = vsyncpa %s4041, 1

// kernel: transformer_forward.6
$region0: #{transformer_forward.6}
  #allocation0 [shape = 'u32[]', space=smem, size = 0x4, offset = 0x4, fixed_abs, tag = 'smem constant byte address 0x4 - core index']
  #allocation1 [shape = 'u32[72,128]{1,0:T(1,128)}', space=vmem, size = 0x9000, scoped, tag = 'internal scratch']
  %s0 = inlined_call_operand.vmem [shape: f32[2,8,32], index: 0, kind: input, shape index: {}]
  %s1 = inlined_call_operand.vmem [shape: f32[2,8,32], index: 1, kind: input, shape index: {}]
  %s2 = inlined_call_operand.vmem [shape: f32[8,8], index: 2, kind: input, shape index: {}]
  %s3 = inlined_call_operand.vmem [shape: bf16[3,4,32,8], index: 3, kind: input, shape index: {}]
  %s4 = inlined_call_operand.vmem [shape: f32[3,4,1,8], index: 4, kind: input, shape index: {}]
  %s5 = inlined_call_operand.vmem [shape: bf16[4,8,32], index: 5, kind: input, shape index: {}]
  %s6 = inlined_call_operand.vmem [shape: f32[1,32], index: 6, kind: input, shape index: {}]
  %s7 = inlined_call_operand.vmem [shape: bf16[3,4,32,8], index: 7, kind: input, shape index: {}]
  %s8 = inlined_call_operand.vmem [shape: f32[3,4,1,8], index: 8, kind: input, shape index: {}]
  %s9 = inlined_call_operand.vmem [shape: bf16[4,8,32], index: 9, kind: input, shape index: {}]
  %s10 = inlined_call_operand.vmem [shape: f32[1,32], index: 10, kind: input, shape index: {}]
  %s11 = inlined_call_operand.vmem [shape: bf16[32,2048], index: 11, kind: input, shape index: {}]
  %s12 = inlined_call_operand.vmem [shape: f32[1,2048], index: 12, kind: input, shape index: {}]
  %s13 = inlined_call_operand.vmem [shape: bf16[2048,32], index: 13, kind: input, shape index: {}]
  %s14 = inlined_call_operand.vmem [shape: f32[1,32], index: 14, kind: input, shape index: {}]
  %s15 = inlined_call_operand.vmem [shape: f32[3,1,32], index: 15, kind: input, shape index: {}]
  %s16 = inlined_call_operand.vmem [shape: f32[3,1,32], index: 16, kind: input, shape index: {}]
  %s17 = inlined_call_operand.vmem [shape: f32[2,8,32], index: 17, kind: output, shape index: {}]
  %s18 = sld [smem:[#allocation0]]
  $region101: #{transformer_forward.6} parent=0
    _
  %s20 = ssub.s32 1, %s18
  %s21 = scalar_select 0, %s20, %s18
  loop: start=0, step=1, limit=4
  $region2: #{transformer_forward.6} parent=0 // loop_pre_header
    _
  $region3: #{transformer_forward.6} parent=0 // loop_header
    %s23 = sphi 0, %s27
    %p24 = scmp.ge.s32.totalorder %s23, 4
    %s33 = sphi 0, %s35
    %s36 = sphi 0, %s33
    %s37 = sphi 0, %s36
    %s53 = sphi 0, %s37
    %s59 = sphi 0, %s61
    %s62 = sphi 0, %s59
    %s63 = sphi 0, %s62
    %s79 = sphi 0, %s63
    %s83 = sphi 0, %s83
    %s85 = sphi 0, %s83
    %s86 = sphi 0, %s85
    %s100 = sphi 0, %s86
    %s104 = sphi 0, %s104
    %s106 = sphi 0, %s104
    %s107 = sphi 0, %s106
    %s121 = sphi 0, %s107
    %s125 = sphi 0, %s125
    %s127 = sphi 0, %s125
    %s128 = sphi 0, %s127
    %s142 = sphi 0, %s128
    %s146 = sphi 0, %s146
    %s148 = sphi 0, %s146
    %s149 = sphi 0, %s148
    %s163 = sphi 0, %s149
    %s167 = sphi 0, %s167
    %s169 = sphi 0, %s167
    %s170 = sphi 0, %s169
    %s184 = sphi 0, %s170
    %s188 = sphi 0, %s188
    %s190 = sphi 0, %s188
    %s191 = sphi 0, %s190
    %s205 = sphi 0, %s191
    %s209 = sphi 0, %s209
    %s211 = sphi 0, %s209
    %s212 = sphi 0, %s211
    %s226 = sphi 0, %s212
    %s230 = sphi 0, %s230
    %s232 = sphi 0, %s230
    %s233 = sphi 0, %s232
    %s247 = sphi 0, %s233
    %s251 = sphi 0, %s251
    %s253 = sphi 0, %s251
    %s254 = sphi 0, %s253
    %s268 = sphi 0, %s254
    %s272 = sphi 0, %s272
    %s274 = sphi 0, %s272
    %s275 = sphi 0, %s274
    %s289 = sphi 0, %s275
    %s293 = sphi 0, %s293
    %s295 = sphi 0, %s293
    %s296 = sphi 0, %s295
    %s310 = sphi 0, %s296
    %s314 = sphi 0, %s314
    %s316 = sphi 0, %s314
    %s317 = sphi 0, %s316
    %s331 = sphi 0, %s317
    %s335 = sphi 0, %s335
    %s337 = sphi 0, %s335
    %s338 = sphi 0, %s337
    %s352 = sphi 0, %s338
    %s356 = sphi 0, %s356
    %s358 = sphi 0, %s356
    %s359 = sphi 0, %s358
    %s373 = sphi 0, %s359
    %s377 = sphi 0, %s377
    %s379 = sphi 0, %s377
    %s380 = sphi 0, %s379
    %s394 = sphi 0, %s380
    %s400 = sphi 0, %s402
    %s403 = sphi 0, %s400
    %s404 = sphi 0, %s403
    %s420 = sphi 0, %s404
  $region4: #{transformer_forward.6} parent=0 // loop_header_branch
    %26 = sbr.rel (%p24) target = $region8
  $region5: #{transformer_forward.6} parent=0 // loop_body
    %s28 = ssub.s32 %s23, 1
    %s29 = ssub.s32 %s23, 2
    %s30 = sadd.s32 %s23, 1
    %s31 = ssub.s32 %s23, %s30
    %p32 = scmp.eq.s32.totalorder %s31, 0
    %s34 = sadd.s32 %s33, 1
    %s35 = scalar_select %p32, %s33, %s34
    %p38 = pneg %p32
    %p39 = scmp.eq.s32.totalorder %s23, 1
    %p40 = por %p38, %p39
    %p41 = scmp.ne.s32.totalorder %s33, %s36
    %p42 = scmp.eq.s32.totalorder %s23, 0
    %p43 = por %p41, %p42
    %p44 = scmp.ne.s32.totalorder %s33, %s36
    %p45 = scmp.eq.s32.totalorder %s28, 1
    %p46 = por %p44, %p45
    %p47 = scmp.ne.s32.totalorder %s36, %s37
    %p48 = scmp.eq.s32.totalorder %s28, 0
    %p49 = por %p47, %p48
    %p50 = scmp.ne.s32.totalorder %s36, %s37
    %p51 = scmp.eq.s32.totalorder %s29, 1
    %p52 = por %p50, %p51
    %p54 = scmp.ne.s32.totalorder %s37, %s53
    %p55 = scmp.eq.s32.totalorder %s29, 0
    %p56 = por %p54, %p55
    %s57 = ssub.s32 %s23, %s30
    %p58 = scmp.eq.s32.totalorder %s57, 0
    %s60 = sadd.s32 %s59, 1
    %s61 = scalar_select %p58, %s59, %s60
    %p64 = pneg %p58
    %p65 = scmp.eq.s32.totalorder %s23, 1
    %p66 = por %p64, %p65
    %p67 = scmp.ne.s32.totalorder %s59, %s62
    %p68 = scmp.eq.s32.totalorder %s23, 0
    %p69 = por %p67, %p68
    %p70 = scmp.ne.s32.totalorder %s59, %s62
    %p71 = scmp.eq.s32.totalorder %s28, 1
    %p72 = por %p70, %p71
    %p73 = scmp.ne.s32.totalorder %s62, %s63
    %p74 = scmp.eq.s32.totalorder %s28, 0
    %p75 = por %p73, %p74
    %p76 = scmp.ne.s32.totalorder %s62, %s63
    %p77 = scmp.eq.s32.totalorder %s29, 1
    %p78 = por %p76, %p77
    %p80 = scmp.ne.s32.totalorder %s63, %s79
    %p81 = scmp.eq.s32.totalorder %s29, 0
    %p82 = por %p80, %p81
    %s84 = sadd.s32 %s83, 1
    %p87 = scmp.eq.s32.totalorder %s23, 1
    %p88 = scmp.ne.s32.totalorder %s83, %s85
    %p89 = scmp.eq.s32.totalorder %s23, 0
    %p90 = por %p88, %p89
    %p91 = scmp.ne.s32.totalorder %s83, %s85
    %p92 = scmp.eq.s32.totalorder %s28, 1
    %p93 = por %p91, %p92
    %p94 = scmp.ne.s32.totalorder %s85, %s86
    %p95 = scmp.eq.s32.totalorder %s28, 0
    %p96 = por %p94, %p95
    %p97 = scmp.ne.s32.totalorder %s85, %s86
    %p98 = scmp.eq.s32.totalorder %s29, 1
    %p99 = por %p97, %p98
    %p101 = scmp.ne.s32.totalorder %s86, %s100
    %p102 = scmp.eq.s32.totalorder %s29, 0
    %p103 = por %p101, %p102
    %s105 = sadd.s32 %s104, 1
    %p108 = scmp.eq.s32.totalorder %s23, 1
    %p109 = scmp.ne.s32.totalorder %s104, %s106
    %p110 = scmp.eq.s32.totalorder %s23, 0
    %p111 = por %p109, %p110
    %p112 = scmp.ne.s32.totalorder %s104, %s106
    %p113 = scmp.eq.s32.totalorder %s28, 1
    %p114 = por %p112, %p113
    %p115 = scmp.ne.s32.totalorder %s106, %s107
    %p116 = scmp.eq.s32.totalorder %s28, 0
    %p117 = por %p115, %p116
    %p118 = scmp.ne.s32.totalorder %s106, %s107
    %p119 = scmp.eq.s32.totalorder %s29, 1
    %p120 = por %p118, %p119
    %p122 = scmp.ne.s32.totalorder %s107, %s121
    %p123 = scmp.eq.s32.totalorder %s29, 0
    %p124 = por %p122, %p123
    %s126 = sadd.s32 %s125, 1
    %p129 = scmp.eq.s32.totalorder %s23, 1
    %p130 = scmp.ne.s32.totalorder %s125, %s127
    %p131 = scmp.eq.s32.totalorder %s23, 0
    %p132 = por %p130, %p131
    %p133 = scmp.ne.s32.totalorder %s125, %s127
    %p134 = scmp.eq.s32.totalorder %s28, 1
    %p135 = por %p133, %p134
    %p136 = scmp.ne.s32.totalorder %s127, %s128
    %p137 = scmp.eq.s32.totalorder %s28, 0
    %p138 = por %p136, %p137
    %p139 = scmp.ne.s32.totalorder %s127, %s128
    %p140 = scmp.eq.s32.totalorder %s29, 1
    %p141 = por %p139, %p140
    %p143 = scmp.ne.s32.totalorder %s128, %s142
    %p144 = scmp.eq.s32.totalorder %s29, 0
    %p145 = por %p143, %p144
    %s147 = sadd.s32 %s146, 1
    %p150 = scmp.eq.s32.totalorder %s23, 1
    %p151 = scmp.ne.s32.totalorder %s146, %s148
    %p152 = scmp.eq.s32.totalorder %s23, 0
    %p153 = por %p151, %p152
    %p154 = scmp.ne.s32.totalorder %s146, %s148
    %p155 = scmp.eq.s32.totalorder %s28, 1
    %p156 = por %p154, %p155
    %p157 = scmp.ne.s32.totalorder %s148, %s149
    %p158 = scmp.eq.s32.totalorder %s28, 0
    %p159 = por %p157, %p158
    %p160 = scmp.ne.s32.totalorder %s148, %s149
    %p161 = scmp.eq.s32.totalorder %s29, 1
    %p162 = por %p160, %p161
    %p164 = scmp.ne.s32.totalorder %s149, %s163
    %p165 = scmp.eq.s32.totalorder %s29, 0
    %p166 = por %p164, %p165
    %s168 = sadd.s32 %s167, 1
    %p171 = scmp.eq.s32.totalorder %s23, 1
    %p172 = scmp.ne.s32.totalorder %s167, %s169
    %p173 = scmp.eq.s32.totalorder %s23, 0
    %p174 = por %p172, %p173
    %p175 = scmp.ne.s32.totalorder %s167, %s169
    %p176 = scmp.eq.s32.totalorder %s28, 1
    %p177 = por %p175, %p176
    %p178 = scmp.ne.s32.totalorder %s169, %s170
    %p179 = scmp.eq.s32.totalorder %s28, 0
    %p180 = por %p178, %p179
    %p181 = scmp.ne.s32.totalorder %s169, %s170
    %p182 = scmp.eq.s32.totalorder %s29, 1
    %p183 = por %p181, %p182
    %p185 = scmp.ne.s32.totalorder %s170, %s184
    %p186 = scmp.eq.s32.totalorder %s29, 0
    %p187 = por %p185, %p186
    %s189 = sadd.s32 %s188, 1
    %p192 = scmp.eq.s32.totalorder %s23, 1
    %p193 = scmp.ne.s32.totalorder %s188, %s190
    %p194 = scmp.eq.s32.totalorder %s23, 0
    %p195 = por %p193, %p194
    %p196 = scmp.ne.s32.totalorder %s188, %s190
    %p197 = scmp.eq.s32.totalorder %s28, 1
    %p198 = por %p196, %p197
    %p199 = scmp.ne.s32.totalorder %s190, %s191
    %p200 = scmp.eq.s32.totalorder %s28, 0
    %p201 = por %p199, %p200
    %p202 = scmp.ne.s32.totalorder %s190, %s191
    %p203 = scmp.eq.s32.totalorder %s29, 1
    %p204 = por %p202, %p203
    %p206 = scmp.ne.s32.totalorder %s191, %s205
    %p207 = scmp.eq.s32.totalorder %s29, 0
    %p208 = por %p206, %p207
    %s210 = sadd.s32 %s209, 1
    %p213 = scmp.eq.s32.totalorder %s23, 1
    %p214 = scmp.ne.s32.totalorder %s209, %s211
    %p215 = scmp.eq.s32.totalorder %s23, 0
    %p216 = por %p214, %p215
    %p217 = scmp.ne.s32.totalorder %s209, %s211
    %p218 = scmp.eq.s32.totalorder %s28, 1
    %p219 = por %p217, %p218
    %p220 = scmp.ne.s32.totalorder %s211, %s212
    %p221 = scmp.eq.s32.totalorder %s28, 0
    %p222 = por %p220, %p221
    %p223 = scmp.ne.s32.totalorder %s211, %s212
    %p224 = scmp.eq.s32.totalorder %s29, 1
    %p225 = por %p223, %p224
    %p227 = scmp.ne.s32.totalorder %s212, %s226
    %p228 = scmp.eq.s32.totalorder %s29, 0
    %p229 = por %p227, %p228
    %s231 = sadd.s32 %s230, 1
    %p234 = scmp.eq.s32.totalorder %s23, 1
    %p235 = scmp.ne.s32.totalorder %s230, %s232
    %p236 = scmp.eq.s32.totalorder %s23, 0
    %p237 = por %p235, %p236
    %p238 = scmp.ne.s32.totalorder %s230, %s232
    %p239 = scmp.eq.s32.totalorder %s28, 1
    %p240 = por %p238, %p239
    %p241 = scmp.ne.s32.totalorder %s232, %s233
    %p242 = scmp.eq.s32.totalorder %s28, 0
    %p243 = por %p241, %p242
    %p244 = scmp.ne.s32.totalorder %s232, %s233
    %p245 = scmp.eq.s32.totalorder %s29, 1
    %p246 = por %p244, %p245
    %p248 = scmp.ne.s32.totalorder %s233, %s247
    %p249 = scmp.eq.s32.totalorder %s29, 0
    %p250 = por %p248, %p249
    %s252 = sadd.s32 %s251, 1
    %p255 = scmp.eq.s32.totalorder %s23, 1
    %p256 = scmp.ne.s32.totalorder %s251, %s253
    %p257 = scmp.eq.s32.totalorder %s23, 0
    %p258 = por %p256, %p257
    %p259 = scmp.ne.s32.totalorder %s251, %s253
    %p260 = scmp.eq.s32.totalorder %s28, 1
    %p261 = por %p259, %p260
    %p262 = scmp.ne.s32.totalorder %s253, %s254
    %p263 = scmp.eq.s32.totalorder %s28, 0
    %p264 = por %p262, %p263
    %p265 = scmp.ne.s32.totalorder %s253, %s254
    %p266 = scmp.eq.s32.totalorder %s29, 1
    %p267 = por %p265, %p266
    %p269 = scmp.ne.s32.totalorder %s254, %s268
    %p270 = scmp.eq.s32.totalorder %s29, 0
    %p271 = por %p269, %p270
    %s273 = sadd.s32 %s272, 1
    %p276 = scmp.eq.s32.totalorder %s23, 1
    %p277 = scmp.ne.s32.totalorder %s272, %s274
    %p278 = scmp.eq.s32.totalorder %s23, 0
    %p279 = por %p277, %p278
    %p280 = scmp.ne.s32.totalorder %s272, %s274
    %p281 = scmp.eq.s32.totalorder %s28, 1
    %p282 = por %p280, %p281
    %p283 = scmp.ne.s32.totalorder %s274, %s275
    %p284 = scmp.eq.s32.totalorder %s28, 0
    %p285 = por %p283, %p284
    %p286 = scmp.ne.s32.totalorder %s274, %s275
    %p287 = scmp.eq.s32.totalorder %s29, 1
    %p288 = por %p286, %p287
    %p290 = scmp.ne.s32.totalorder %s275, %s289
    %p291 = scmp.eq.s32.totalorder %s29, 0
    %p292 = por %p290, %p291
    %s294 = sadd.s32 %s293, 1
    %p297 = scmp.eq.s32.totalorder %s23, 1
    %p298 = scmp.ne.s32.totalorder %s293, %s295
    %p299 = scmp.eq.s32.totalorder %s23, 0
    %p300 = por %p298, %p299
    %p301 = scmp.ne.s32.totalorder %s293, %s295
    %p302 = scmp.eq.s32.totalorder %s28, 1
    %p303 = por %p301, %p302
    %p304 = scmp.ne.s32.totalorder %s295, %s296
    %p305 = scmp.eq.s32.totalorder %s28, 0
    %p306 = por %p304, %p305
    %p307 = scmp.ne.s32.totalorder %s295, %s296
    %p308 = scmp.eq.s32.totalorder %s29, 1
    %p309 = por %p307, %p308
    %p311 = scmp.ne.s32.totalorder %s296, %s310
    %p312 = scmp.eq.s32.totalorder %s29, 0
    %p313 = por %p311, %p312
    %s315 = sadd.s32 %s314, 1
    %p318 = scmp.eq.s32.totalorder %s23, 1
    %p319 = scmp.ne.s32.totalorder %s314, %s316
    %p320 = scmp.eq.s32.totalorder %s23, 0
    %p321 = por %p319, %p320
    %p322 = scmp.ne.s32.totalorder %s314, %s316
    %p323 = scmp.eq.s32.totalorder %s28, 1
    %p324 = por %p322, %p323
    %p325 = scmp.ne.s32.totalorder %s316, %s317
    %p326 = scmp.eq.s32.totalorder %s28, 0
    %p327 = por %p325, %p326
    %p328 = scmp.ne.s32.totalorder %s316, %s317
    %p329 = scmp.eq.s32.totalorder %s29, 1
    %p330 = por %p328, %p329
    %p332 = scmp.ne.s32.totalorder %s317, %s331
    %p333 = scmp.eq.s32.totalorder %s29, 0
    %p334 = por %p332, %p333
    %s336 = sadd.s32 %s335, 1
    %p339 = scmp.eq.s32.totalorder %s23, 1
    %p340 = scmp.ne.s32.totalorder %s335, %s337
    %p341 = scmp.eq.s32.totalorder %s23, 0
    %p342 = por %p340, %p341
    %p343 = scmp.ne.s32.totalorder %s335, %s337
    %p344 = scmp.eq.s32.totalorder %s28, 1
    %p345 = por %p343, %p344
    %p346 = scmp.ne.s32.totalorder %s337, %s338
    %p347 = scmp.eq.s32.totalorder %s28, 0
    %p348 = por %p346, %p347
    %p349 = scmp.ne.s32.totalorder %s337, %s338
    %p350 = scmp.eq.s32.totalorder %s29, 1
    %p351 = por %p349, %p350
    %p353 = scmp.ne.s32.totalorder %s338, %s352
    %p354 = scmp.eq.s32.totalorder %s29, 0
    %p355 = por %p353, %p354
    %s357 = sadd.s32 %s356, 1
    %p360 = scmp.eq.s32.totalorder %s23, 1
    %p361 = scmp.ne.s32.totalorder %s356, %s358
    %p362 = scmp.eq.s32.totalorder %s23, 0
    %p363 = por %p361, %p362
    %p364 = scmp.ne.s32.totalorder %s356, %s358
    %p365 = scmp.eq.s32.totalorder %s28, 1
    %p366 = por %p364, %p365
    %p367 = scmp.ne.s32.totalorder %s358, %s359
    %p368 = scmp.eq.s32.totalorder %s28, 0
    %p369 = por %p367, %p368
    %p370 = scmp.ne.s32.totalorder %s358, %s359
    %p371 = scmp.eq.s32.totalorder %s29, 1
    %p372 = por %p370, %p371
    %p374 = scmp.ne.s32.totalorder %s359, %s373
    %p375 = scmp.eq.s32.totalorder %s29, 0
    %p376 = por %p374, %p375
    %s378 = sadd.s32 %s377, 1
    %p381 = scmp.eq.s32.totalorder %s23, 1
    %p382 = scmp.ne.s32.totalorder %s377, %s379
    %p383 = scmp.eq.s32.totalorder %s23, 0
    %p384 = por %p382, %p383
    %p385 = scmp.ne.s32.totalorder %s377, %s379
    %p386 = scmp.eq.s32.totalorder %s28, 1
    %p387 = por %p385, %p386
    %p388 = scmp.ne.s32.totalorder %s379, %s380
    %p389 = scmp.eq.s32.totalorder %s28, 0
    %p390 = por %p388, %p389
    %p391 = scmp.ne.s32.totalorder %s379, %s380
    %p392 = scmp.eq.s32.totalorder %s29, 1
    %p393 = por %p391, %p392
    %p395 = scmp.ne.s32.totalorder %s380, %s394
    %p396 = scmp.eq.s32.totalorder %s29, 0
    %p397 = por %p395, %p396
    %s398 = ssub.s32 %s23, %s30
    %p399 = scmp.eq.s32.totalorder %s398, 0
    %s401 = sadd.s32 %s400, 1
    %s402 = scalar_select %p399, %s400, %s401
    %p405 = pneg %p399
    %p406 = scmp.eq.s32.totalorder %s23, 1
    %p407 = por %p405, %p406
    %p408 = scmp.ne.s32.totalorder %s400, %s403
    %p409 = scmp.eq.s32.totalorder %s23, 0
    %p410 = por %p408, %p409
    %p411 = scmp.ne.s32.totalorder %s400, %s403
    %p412 = scmp.eq.s32.totalorder %s28, 1
    %p413 = por %p411, %p412
    %p414 = scmp.ne.s32.totalorder %s403, %s404
    %p415 = scmp.eq.s32.totalorder %s28, 0
    %p416 = por %p414, %p415
    %p417 = scmp.ne.s32.totalorder %s403, %s404
    %p418 = scmp.eq.s32.totalorder %s29, 1
    %p419 = por %p417, %p418
    %p421 = scmp.ne.s32.totalorder %s404, %s420
    %p422 = scmp.eq.s32.totalorder %s29, 0
    %p423 = por %p421, %p422
    %p424 = scmp.le.s32.totalorder 1, %s23
    %p425 = scmp.lt.s32.totalorder %s23, 3
    %p426 = pnand %p424, %p425
    %p427 = pneg %p426
    // Predicated region
    $region9: #{transformer_forward.6} parent=5 // pred_check
      _
    $region10: #{transformer_forward.6} parent=5 // pred_check_branch
      %429 = sbr.rel (%p426) target = $region12
    $region11: #{transformer_forward.6} parent=5 // pred_region
      %s430 = ssub.s32 %s23, 1
      // Predicated region
      $region13: #{transformer_forward.6} parent=11 // pred_check
        %p431 = pneg %p96
      $region14: #{transformer_forward.6} parent=11 // pred_check_branch
        %433 = sbr.rel (%p431) target = $region16
      $region15: #{transformer_forward.6} parent=11 // pred_region
        _
      $region16: #{transformer_forward.6} parent=11 // pred_fallthru
        _
      // Predicated region
      $region17: #{transformer_forward.6} parent=11 // pred_check
        %p434 = pneg %p117
      $region18: #{transformer_forward.6} parent=11 // pred_check_branch
        %436 = sbr.rel (%p434) target = $region20
      $region19: #{transformer_forward.6} parent=11 // pred_region
        _
      $region20: #{transformer_forward.6} parent=11 // pred_fallthru
        _
      // Predicated region
      $region21: #{transformer_forward.6} parent=11 // pred_check
        %p437 = pneg %p138
      $region22: #{transformer_forward.6} parent=11 // pred_check_branch
        %439 = sbr.rel (%p437) target = $region24
      $region23: #{transformer_forward.6} parent=11 // pred_region
        _
      $region24: #{transformer_forward.6} parent=11 // pred_fallthru
        _
      // Predicated region
      $region25: #{transformer_forward.6} parent=11 // pred_check
        %p440 = pneg %p159
      $region26: #{transformer_forward.6} parent=11 // pred_check_branch
        %442 = sbr.rel (%p440) target = $region28
      $region27: #{transformer_forward.6} parent=11 // pred_region
        _
      $region28: #{transformer_forward.6} parent=11 // pred_fallthru
        _
      // Predicated region
      $region29: #{transformer_forward.6} parent=11 // pred_check
        %p443 = pneg %p180
      $region30: #{transformer_forward.6} parent=11 // pred_check_branch
        %445 = sbr.rel (%p443) target = $region32
      $region31: #{transformer_forward.6} parent=11 // pred_region
        _
      $region32: #{transformer_forward.6} parent=11 // pred_fallthru
        _
      // Predicated region
      $region33: #{transformer_forward.6} parent=11 // pred_check
        %p446 = pneg %p201
      $region34: #{transformer_forward.6} parent=11 // pred_check_branch
        %448 = sbr.rel (%p446) target = $region36
      $region35: #{transformer_forward.6} parent=11 // pred_region
        _
      $region36: #{transformer_forward.6} parent=11 // pred_fallthru
        _
      // Predicated region
      $region37: #{transformer_forward.6} parent=11 // pred_check
        %p449 = pneg %p222
      $region38: #{transformer_forward.6} parent=11 // pred_check_branch
        %451 = sbr.rel (%p449) target = $region40
      $region39: #{transformer_forward.6} parent=11 // pred_region
        _
      $region40: #{transformer_forward.6} parent=11 // pred_fallthru
        _
      // Predicated region
      $region41: #{transformer_forward.6} parent=11 // pred_check
        %p452 = pneg %p243
      $region42: #{transformer_forward.6} parent=11 // pred_check_branch
        %454 = sbr.rel (%p452) target = $region44
      $region43: #{transformer_forward.6} parent=11 // pred_region
        _
      $region44: #{transformer_forward.6} parent=11 // pred_fallthru
        _
      // Predicated region
      $region45: #{transformer_forward.6} parent=11 // pred_check
        %p455 = pneg %p264
      $region46: #{transformer_forward.6} parent=11 // pred_check_branch
        %457 = sbr.rel (%p455) target = $region48
      $region47: #{transformer_forward.6} parent=11 // pred_region
        _
      $region48: #{transformer_forward.6} parent=11 // pred_fallthru
        _
      // Predicated region
      $region49: #{transformer_forward.6} parent=11 // pred_check
        %p458 = pneg %p285
      $region50: #{transformer_forward.6} parent=11 // pred_check_branch
        %460 = sbr.rel (%p458) target = $region52
      $region51: #{transformer_forward.6} parent=11 // pred_region
        _
      $region52: #{transformer_forward.6} parent=11 // pred_fallthru
        _
      // Predicated region
      $region53: #{transformer_forward.6} parent=11 // pred_check
        %p461 = pneg %p306
      $region54: #{transformer_forward.6} parent=11 // pred_check_branch
        %463 = sbr.rel (%p461) target = $region56
      $region55: #{transformer_forward.6} parent=11 // pred_region
        _
      $region56: #{transformer_forward.6} parent=11 // pred_fallthru
        _
      // Predicated region
      $region57: #{transformer_forward.6} parent=11 // pred_check
        %p464 = pneg %p327
      $region58: #{transformer_forward.6} parent=11 // pred_check_branch
        %466 = sbr.rel (%p464) target = $region60
      $region59: #{transformer_forward.6} parent=11 // pred_region
        _
      $region60: #{transformer_forward.6} parent=11 // pred_fallthru
        _
      // Predicated region
      $region61: #{transformer_forward.6} parent=11 // pred_check
        %p467 = pneg %p348
      $region62: #{transformer_forward.6} parent=11 // pred_check_branch
        %469 = sbr.rel (%p467) target = $region64
      $region63: #{transformer_forward.6} parent=11 // pred_region
        _
      $region64: #{transformer_forward.6} parent=11 // pred_fallthru
        _
      // Predicated region
      $region65: #{transformer_forward.6} parent=11 // pred_check
        %p470 = pneg %p369
      $region66: #{transformer_forward.6} parent=11 // pred_check_branch
        %472 = sbr.rel (%p470) target = $region68
      $region67: #{transformer_forward.6} parent=11 // pred_region
        _
      $region68: #{transformer_forward.6} parent=11 // pred_fallthru
        _
      // Predicated region
      $region69: #{transformer_forward.6} parent=11 // pred_check
        %p473 = pneg %p390
      $region70: #{transformer_forward.6} parent=11 // pred_check_branch
        %475 = sbr.rel (%p473) target = $region72
      $region71: #{transformer_forward.6} parent=11 // pred_region
        _
      $region72: #{transformer_forward.6} parent=11 // pred_fallthru
        _
    $region12: #{transformer_forward.6} parent=5 // pred_fallthru
      _
    %p476 = scmp.lt.s32.totalorder %s23, 2
    // Predicated region
    $region73: #{transformer_forward.6} parent=5 // pred_check
      %p477 = pneg %p476
    $region74: #{transformer_forward.6} parent=5 // pred_check_branch
      %479 = sbr.rel (%p477) target = $region76
    $region75: #{transformer_forward.6} parent=5 // pred_region
      // Predicated region
      $region77: #{transformer_forward.6} parent=75 // pred_check
        %p480 = pneg %p43
      $region78: #{transformer_forward.6} parent=75 // pred_check_branch
        %482 = sbr.rel (%p480) target = $region80
      $region79: #{transformer_forward.6} parent=75 // pred_region
        %p483 = scmp.lt.s32.totalorder %s23, 1
        %s484 = scalar_select %p483, %s23, 1
        %s485 = smul.addr %s484, 8
        %s486 = scalar_lea.vmem %s0, %s485
      $region80: #{transformer_forward.6} parent=75 // pred_fallthru
        _
      // Predicated region
      $region81: #{transformer_forward.6} parent=75 // pred_check
        %p487 = pneg %p69
      $region82: #{transformer_forward.6} parent=75 // pred_check_branch
        %489 = sbr.rel (%p487) target = $region84
      $region83: #{transformer_forward.6} parent=75 // pred_region
        %p490 = scmp.lt.s32.totalorder %s23, 1
        %s491 = scalar_select %p490, %s23, 1
        %s492 = smul.addr %s491, 8
        %s493 = scalar_lea.vmem %s1, %s492
      $region84: #{transformer_forward.6} parent=75 // pred_fallthru
        _
    $region76: #{transformer_forward.6} parent=5 // pred_fallthru
      _
    %p494 = scmp.le.s32.totalorder 1, %s23
    %p495 = scmp.lt.s32.totalorder %s23, 3
    %p496 = pnand %p494, %p495
    %p497 = pneg %p496
    // Predicated region
    $region85: #{transformer_forward.6} parent=5 // pred_check
      _
    $region86: #{transformer_forward.6} parent=5 // pred_check_branch
      %499 = sbr.rel (%p496) target = $region88
    $region87: #{transformer_forward.6} parent=5 // pred_region
      %s500 = ssub.s32 %s23, 1
      %p501 = scmp.lt.s32.totalorder %s28, 1
      %s502 = scalar_select %p501, %s28, 1
      %s503 = smul.addr %s502, 8
      %s504 = scalar_lea.vmem %s0, %s503
      %p505 = pneg %p49
      %p506 = pneg %p46
      %p507 = scmp.lt.s32.totalorder %s28, 1
      %s508 = scalar_select %p507, %s28, 1
      %s509 = smul.addr %s508, 8
      %s510 = scalar_lea.vmem %s1, %s509
      %p511 = pneg %p75
      %p512 = pneg %p72
      %p513 = pneg %p96
      %p514 = pneg %p93
      %p515 = pneg %p117
      %p516 = pneg %p114
      %p517 = pneg %p138
      %p518 = pneg %p135
      %p519 = pneg %p159
      %p520 = pneg %p156
      %p521 = pneg %p180
      %p522 = pneg %p177
      %p523 = pneg %p201
      %p524 = pneg %p198
      %p525 = pneg %p222
      %p526 = pneg %p219
      %p527 = pneg %p243
      %p528 = pneg %p240
      %p529 = pneg %p264
      %p530 = pneg %p261
      %p531 = pneg %p285
      %p532 = pneg %p282
      %p533 = pneg %p306
      %p534 = pneg %p303
      %p535 = pneg %p327
      %p536 = pneg %p324
      %p537 = pneg %p348
      %p538 = pneg %p345
      %p539 = pneg %p369
      %p540 = pneg %p366
      %p541 = pneg %p390
      %p542 = pneg %p387
      %p543 = pneg %p416
      %p544 = pneg %p413
      %p545 = scmp.lt.s32.totalorder %s28, 1
      %s546 = scalar_select %p545, %s28, 1
      %s547 = smul.addr %s546, 8
      %s548 = scalar_lea.vmem %s17, %s547
      %p549 = scmp.lt.s32.totalorder %s28, 1
      %s550 = scalar_select %p549, %s28, 1
      %s551 = smul.addr %s550, 8
      %s552 = scalar_lea.vmem %s0, %s551
      %p553 = scmp.lt.s32.totalorder %s28, 1
      %s554 = scalar_select %p553, %s28, 1
      %s555 = smul.addr %s554, 8
      %s556 = scalar_lea.vmem %s1, %s555
      %p557 = scmp.lt.s32.totalorder %s28, 1
      %s558 = scalar_select %p557, %s28, 1
      %s559 = smul.addr %s558, 8
      %s560 = scalar_lea.vmem %s17, %s559
      %v562 = vld [vmem:[%s552] sm:$0xff]
      %v563 = vld [vmem:[%s556] sm:$0xff]
      %v564 = vld [vmem:[%s2] sm:$0xff]
      %v565 = vpack.c.bf16 %v562, %v562
      %v566 = vld [vmem:[%s3] sm:$0xf]
      %v567 = vld [vmem:[%s3 + $0x4] sm:$0xf]
      %v568 = vld [vmem:[%s3 + $0x8] sm:$0xf]
      %v569 = vld [vmem:[%s3 + $0xc] sm:$0xf]
      %v570 = vld [vmem:[%s3 + $0x10] sm:$0xf]
      %v571 = vld [vmem:[%s3 + $0x14] sm:$0xf]
      %v572 = vld [vmem:[%s3 + $0x18] sm:$0xf]
      %v573 = vld [vmem:[%s3 + $0x1c] sm:$0xf]
      %v574 = vld [vmem:[%s3 + $0x20] sm:$0xf]
      %v575 = vld [vmem:[%s3 + $0x24] sm:$0xf]
      %v576 = vld [vmem:[%s3 + $0x28] sm:$0xf]
      %v577 = vld [vmem:[%s3 + $0x2c] sm:$0xf]
      %v578 = vld [vmem:[%s3 + $0x30] sm:$0xf]
      %v579 = vld [vmem:[%s3 + $0x34] sm:$0xf]
      %v580 = vld [vmem:[%s3 + $0x38] sm:$0xf]
      %v581 = vld [vmem:[%s3 + $0x3c] sm:$0xf]
      %v582 = vld [vmem:[%s4] sm:$0x1]
      %v583 = vld [vmem:[%s4 + $0x1] sm:$0x1]
      %v584 = vld [vmem:[%s4 + $0x2] sm:$0x1]
      %v585 = vld [vmem:[%s4 + $0x3] sm:$0x1]
      %v590 = vperm.slane %v582, 0
      %v591 = vperm.slane %v583, 0
      %v592 = vperm.slane %v584, 0
      %v593 = vperm.slane %v585, 0
      %v602 = vunpack.c.l.b16 %v566
      %v603 = vunpack.c.l.b16 %v567
      %v604 = vunpack.c.l.b16 %v568
      %v605 = vunpack.c.l.b16 %v569
      %v606 = vpack.c.b16 %v603, %v602
      %v607 = vpack.c.b16 %v605, %v604
      %vm610 = vcmask 261120
      %v612 = vsel %vm610, %v565, 0
      %614 = vmatpush.bf16.msra.mxu0 0
      %615 = vmatpush.bf16.msra.mxu0 0
      %616 = vmatpush.bf16.msra.mxu0 0
      %617 = vmatpush.bf16.msra.mxu0 0
      %618 = vmatpush.bf16.msra.mxu0 0
      %619 = vmatpush.bf16.msra.mxu0 0
      %620 = vmatpush.bf16.msra.mxu0 %v607
      %621 = vmatpush.bf16.msra.mxu0 %v606
      %622 = vmatmul.bf16.gmra.mxu0 %v612
      %v623 = vpop.f32.mrf.mxu0
      %v624 = vadd.f32 %v590, %v623
      %v625 = vpop.f32.mrf.mxu0
      %626 = vdwg.mxu0
      %v631 = vunpack.c.l.b16 %v570
      %v632 = vunpack.c.l.b16 %v571
      %v633 = vunpack.c.l.b16 %v572
      %v634 = vunpack.c.l.b16 %v573
      %v635 = vpack.c.b16 %v632, %v631
      %v636 = vpack.c.b16 %v634, %v633
      %639 = vmatpush.bf16.msra.mxu0 0
      %640 = vmatpush.bf16.msra.mxu0 0
      %641 = vmatpush.bf16.msra.mxu0 0
      %642 = vmatpush.bf16.msra.mxu0 0
      %643 = vmatpush.bf16.msra.mxu0 0
      %644 = vmatpush.bf16.msra.mxu0 0
      %645 = vmatpush.bf16.msra.mxu0 %v636
      %646 = vmatpush.bf16.msra.mxu0 %v635
      %647 = vmatmul.bf16.gmra.mxu0 %v612
      %v648 = vpop.f32.mrf.mxu0
      %v649 = vadd.f32 %v591, %v648
      %v650 = vpop.f32.mrf.mxu0
      %651 = vdwg.mxu0
      %v656 = vunpack.c.l.b16 %v574
      %v657 = vunpack.c.l.b16 %v575
      %v658 = vunpack.c.l.b16 %v576
      %v659 = vunpack.c.l.b16 %v577
      %v660 = vpack.c.b16 %v657, %v656
      %v661 = vpack.c.b16 %v659, %v658
      %664 = vmatpush.bf16.msra.mxu0 0
      %665 = vmatpush.bf16.msra.mxu0 0
      %666 = vmatpush.bf16.msra.mxu0 0
      %667 = vmatpush.bf16.msra.mxu0 0
      %668 = vmatpush.bf16.msra.mxu0 0
      %669 = vmatpush.bf16.msra.mxu0 0
      %670 = vmatpush.bf16.msra.mxu0 %v661
      %671 = vmatpush.bf16.msra.mxu0 %v660
      %672 = vmatmul.bf16.gmra.mxu0 %v612
      %v673 = vpop.f32.mrf.mxu0
      %v674 = vadd.f32 %v592, %v673
      %v675 = vpop.f32.mrf.mxu0
      %676 = vdwg.mxu0
      %v681 = vunpack.c.l.b16 %v578
      %v682 = vunpack.c.l.b16 %v579
      %v683 = vunpack.c.l.b16 %v580
      %v684 = vunpack.c.l.b16 %v581
      %v685 = vpack.c.b16 %v682, %v681
      %v686 = vpack.c.b16 %v684, %v683
      %689 = vmatpush.bf16.msra.mxu0 0
      %690 = vmatpush.bf16.msra.mxu0 0
      %691 = vmatpush.bf16.msra.mxu0 0
      %692 = vmatpush.bf16.msra.mxu0 0
      %693 = vmatpush.bf16.msra.mxu0 0
      %694 = vmatpush.bf16.msra.mxu0 0
      %695 = vmatpush.bf16.msra.mxu0 %v686
      %696 = vmatpush.bf16.msra.mxu0 %v685
      %697 = vmatmul.bf16.gmra.mxu0 %v612
      %v698 = vpop.f32.mrf.mxu0
      %v699 = vadd.f32 %v593, %v698
      %v700 = vpop.f32.mrf.mxu0
      %701 = vdwg.mxu0
      %s702 = scalar_lea.vmem %s3, 64
      %v703 = vld [vmem:[%s702] sm:$0xf]
      %v704 = vld [vmem:[%s702 + $0x4] sm:$0xf]
      %v705 = vld [vmem:[%s702 + $0x8] sm:$0xf]
      %v706 = vld [vmem:[%s702 + $0xc] sm:$0xf]
      %v707 = vld [vmem:[%s702 + $0x10] sm:$0xf]
      %v708 = vld [vmem:[%s702 + $0x14] sm:$0xf]
      %v709 = vld [vmem:[%s702 + $0x18] sm:$0xf]
      %v710 = vld [vmem:[%s702 + $0x1c] sm:$0xf]
      %v711 = vld [vmem:[%s702 + $0x20] sm:$0xf]
      %v712 = vld [vmem:[%s702 + $0x24] sm:$0xf]
      %v713 = vld [vmem:[%s702 + $0x28] sm:$0xf]
      %v714 = vld [vmem:[%s702 + $0x2c] sm:$0xf]
      %v715 = vld [vmem:[%s702 + $0x30] sm:$0xf]
      %v716 = vld [vmem:[%s702 + $0x34] sm:$0xf]
      %v717 = vld [vmem:[%s702 + $0x38] sm:$0xf]
      %v718 = vld [vmem:[%s702 + $0x3c] sm:$0xf]
      %s719 = scalar_lea.vmem %s4, 4
      %v720 = vld [vmem:[%s719] sm:$0x1]
      %v721 = vld [vmem:[%s719 + $0x1] sm:$0x1]
      %v722 = vld [vmem:[%s719 + $0x2] sm:$0x1]
      %v723 = vld [vmem:[%s719 + $0x3] sm:$0x1]
      %v728 = vperm.slane %v720, 0
      %v729 = vperm.slane %v721, 0
      %v730 = vperm.slane %v722, 0
      %v731 = vperm.slane %v723, 0
      %v740 = vunpack.c.l.b16 %v703
      %v741 = vunpack.c.l.b16 %v704
      %v742 = vunpack.c.l.b16 %v705
      %v743 = vunpack.c.l.b16 %v706
      %v744 = vpack.c.b16 %v741, %v740
      %v745 = vpack.c.b16 %v743, %v742
      %748 = vmatpush.bf16.msra.mxu0 0
      %749 = vmatpush.bf16.msra.mxu0 0
      %750 = vmatpush.bf16.msra.mxu0 0
      %751 = vmatpush.bf16.msra.mxu0 0
      %752 = vmatpush.bf16.msra.mxu0 0
      %753 = vmatpush.bf16.msra.mxu0 0
      %754 = vmatpush.bf16.msra.mxu0 %v745
      %755 = vmatpush.bf16.msra.mxu0 %v744
      %756 = vmatmul.bf16.gmra.mxu0 %v612
      %v757 = vpop.f32.mrf.mxu0
      %v758 = vadd.f32 %v728, %v757
      %v759 = vpop.f32.mrf.mxu0
      %760 = vdwg.mxu0
      %v765 = vunpack.c.l.b16 %v707
      %v766 = vunpack.c.l.b16 %v708
      %v767 = vunpack.c.l.b16 %v709
      %v768 = vunpack.c.l.b16 %v710
      %v769 = vpack.c.b16 %v766, %v765
      %v770 = vpack.c.b16 %v768, %v767
      %773 = vmatpush.bf16.msra.mxu0 0
      %774 = vmatpush.bf16.msra.mxu0 0
      %775 = vmatpush.bf16.msra.mxu0 0
      %776 = vmatpush.bf16.msra.mxu0 0
      %777 = vmatpush.bf16.msra.mxu0 0
      %778 = vmatpush.bf16.msra.mxu0 0
      %779 = vmatpush.bf16.msra.mxu0 %v770
      %780 = vmatpush.bf16.msra.mxu0 %v769
      %781 = vmatmul.bf16.gmra.mxu0 %v612
      %v782 = vpop.f32.mrf.mxu0
      %v783 = vadd.f32 %v729, %v782
      %v784 = vpop.f32.mrf.mxu0
      %785 = vdwg.mxu0
      %v790 = vunpack.c.l.b16 %v711
      %v791 = vunpack.c.l.b16 %v712
      %v792 = vunpack.c.l.b16 %v713
      %v793 = vunpack.c.l.b16 %v714
      %v794 = vpack.c.b16 %v791, %v790
      %v795 = vpack.c.b16 %v793, %v792
      %798 = vmatpush.bf16.msra.mxu0 0
      %799 = vmatpush.bf16.msra.mxu0 0
      %800 = vmatpush.bf16.msra.mxu0 0
      %801 = vmatpush.bf16.msra.mxu0 0
      %802 = vmatpush.bf16.msra.mxu0 0
      %803 = vmatpush.bf16.msra.mxu0 0
      %804 = vmatpush.bf16.msra.mxu0 %v795
      %805 = vmatpush.bf16.msra.mxu0 %v794
      %806 = vmatmul.bf16.gmra.mxu0 %v612
      %v807 = vpop.f32.mrf.mxu0
      %v808 = vadd.f32 %v730, %v807
      %v809 = vpop.f32.mrf.mxu0
      %810 = vdwg.mxu0
      %v815 = vunpack.c.l.b16 %v715
      %v816 = vunpack.c.l.b16 %v716
      %v817 = vunpack.c.l.b16 %v717
      %v818 = vunpack.c.l.b16 %v718
      %v819 = vpack.c.b16 %v816, %v815
      %v820 = vpack.c.b16 %v818, %v817
      %823 = vmatpush.bf16.msra.mxu0 0
      %824 = vmatpush.bf16.msra.mxu0 0
      %825 = vmatpush.bf16.msra.mxu0 0
      %826 = vmatpush.bf16.msra.mxu0 0
      %827 = vmatpush.bf16.msra.mxu0 0
      %828 = vmatpush.bf16.msra.mxu0 0
      %829 = vmatpush.bf16.msra.mxu0 %v820
      %830 = vmatpush.bf16.msra.mxu0 %v819
      %831 = vmatmul.bf16.gmra.mxu0 %v612
      %v832 = vpop.f32.mrf.mxu0
      %v833 = vadd.f32 %v731, %v832
      %v834 = vpop.f32.mrf.mxu0
      %835 = vdwg.mxu0
      %s836 = scalar_lea.vmem %s3, 128
      %v837 = vld [vmem:[%s836] sm:$0xf]
      %v838 = vld [vmem:[%s836 + $0x4] sm:$0xf]
      %v839 = vld [vmem:[%s836 + $0x8] sm:$0xf]
      %v840 = vld [vmem:[%s836 + $0xc] sm:$0xf]
      %v841 = vld [vmem:[%s836 + $0x10] sm:$0xf]
      %v842 = vld [vmem:[%s836 + $0x14] sm:$0xf]
      %v843 = vld [vmem:[%s836 + $0x18] sm:$0xf]
      %v844 = vld [vmem:[%s836 + $0x1c] sm:$0xf]
      %v845 = vld [vmem:[%s836 + $0x20] sm:$0xf]
      %v846 = vld [vmem:[%s836 + $0x24] sm:$0xf]
      %v847 = vld [vmem:[%s836 + $0x28] sm:$0xf]
      %v848 = vld [vmem:[%s836 + $0x2c] sm:$0xf]
      %v849 = vld [vmem:[%s836 + $0x30] sm:$0xf]
      %v850 = vld [vmem:[%s836 + $0x34] sm:$0xf]
      %v851 = vld [vmem:[%s836 + $0x38] sm:$0xf]
      %v852 = vld [vmem:[%s836 + $0x3c] sm:$0xf]
      %s853 = scalar_lea.vmem %s4, 8
      %v854 = vld [vmem:[%s853] sm:$0x1]
      %v855 = vld [vmem:[%s853 + $0x1] sm:$0x1]
      %v856 = vld [vmem:[%s853 + $0x2] sm:$0x1]
      %v857 = vld [vmem:[%s853 + $0x3] sm:$0x1]
      %v862 = vperm.slane %v854, 0
      %v863 = vperm.slane %v855, 0
      %v864 = vperm.slane %v856, 0
      %v865 = vperm.slane %v857, 0
      %v874 = vunpack.c.l.b16 %v837
      %v875 = vunpack.c.l.b16 %v838
      %v876 = vunpack.c.l.b16 %v839
      %v877 = vunpack.c.l.b16 %v840
      %v878 = vpack.c.b16 %v875, %v874
      %v879 = vpack.c.b16 %v877, %v876
      %882 = vmatpush.bf16.msra.mxu0 0
      %883 = vmatpush.bf16.msra.mxu0 0
      %884 = vmatpush.bf16.msra.mxu0 0
      %885 = vmatpush.bf16.msra.mxu0 0
      %886 = vmatpush.bf16.msra.mxu0 0
      %887 = vmatpush.bf16.msra.mxu0 0
      %888 = vmatpush.bf16.msra.mxu0 %v879
      %889 = vmatpush.bf16.msra.mxu0 %v878
      %890 = vmatmul.bf16.gmra.mxu0 %v612
      %v891 = vpop.f32.mrf.mxu0
      %v892 = vadd.f32 %v862, %v891
      %v893 = vpop.f32.mrf.mxu0
      %894 = vdwg.mxu0
      %v899 = vunpack.c.l.b16 %v841
      %v900 = vunpack.c.l.b16 %v842
      %v901 = vunpack.c.l.b16 %v843
      %v902 = vunpack.c.l.b16 %v844
      %v903 = vpack.c.b16 %v900, %v899
      %v904 = vpack.c.b16 %v902, %v901
      %907 = vmatpush.bf16.msra.mxu0 0
      %908 = vmatpush.bf16.msra.mxu0 0
      %909 = vmatpush.bf16.msra.mxu0 0
      %910 = vmatpush.bf16.msra.mxu0 0
      %911 = vmatpush.bf16.msra.mxu0 0
      %912 = vmatpush.bf16.msra.mxu0 0
      %913 = vmatpush.bf16.msra.mxu0 %v904
      %914 = vmatpush.bf16.msra.mxu0 %v903
      %915 = vmatmul.bf16.gmra.mxu0 %v612
      %v916 = vpop.f32.mrf.mxu0
      %v917 = vadd.f32 %v863, %v916
      %v918 = vpop.f32.mrf.mxu0
      %919 = vdwg.mxu0
      %v924 = vunpack.c.l.b16 %v845
      %v925 = vunpack.c.l.b16 %v846
      %v926 = vunpack.c.l.b16 %v847
      %v927 = vunpack.c.l.b16 %v848
      %v928 = vpack.c.b16 %v925, %v924
      %v929 = vpack.c.b16 %v927, %v926
      %932 = vmatpush.bf16.msra.mxu0 0
      %933 = vmatpush.bf16.msra.mxu0 0
      %934 = vmatpush.bf16.msra.mxu0 0
      %935 = vmatpush.bf16.msra.mxu0 0
      %936 = vmatpush.bf16.msra.mxu0 0
      %937 = vmatpush.bf16.msra.mxu0 0
      %938 = vmatpush.bf16.msra.mxu0 %v929
      %939 = vmatpush.bf16.msra.mxu0 %v928
      %940 = vmatmul.bf16.gmra.mxu0 %v612
      %v941 = vpop.f32.mrf.mxu0
      %v942 = vadd.f32 %v864, %v941
      %v943 = vpop.f32.mrf.mxu0
      %944 = vdwg.mxu0
      %v949 = vunpack.c.l.b16 %v849
      %v950 = vunpack.c.l.b16 %v850
      %v951 = vunpack.c.l.b16 %v851
      %v952 = vunpack.c.l.b16 %v852
      %v953 = vpack.c.b16 %v950, %v949
      %v954 = vpack.c.b16 %v952, %v951
      %957 = vmatpush.bf16.msra.mxu0 0
      %958 = vmatpush.bf16.msra.mxu0 0
      %959 = vmatpush.bf16.msra.mxu0 0
      %960 = vmatpush.bf16.msra.mxu0 0
      %961 = vmatpush.bf16.msra.mxu0 0
      %962 = vmatpush.bf16.msra.mxu0 0
      %963 = vmatpush.bf16.msra.mxu0 %v954
      %964 = vmatpush.bf16.msra.mxu0 %v953
      %965 = vmatmul.bf16.gmra.mxu0 %v612
      %v966 = vpop.f32.mrf.mxu0
      %v967 = vadd.f32 %v865, %v966
      %v968 = vpop.f32.mrf.mxu0
      %969 = vdwg.mxu0
      %vm970 = vcmask 64512
      %v972 = vsel %vm970, %v624, 0
      %v975 = vsel %vm970, %v758, 0
      %977 = vmatpush.xpose.msra.mxu0 0.0
      %978 = vmatpush.xpose.msra.mxu0 0.0
      %979 = vmatpush.xpose.msra.mxu0 0.0
      %980 = vmatpush.xpose.msra.mxu0 0.0
      %981 = vmatpush.xpose.msra.mxu0 0.0
      %982 = vmatpush.xpose.msra.mxu0 0.0
      %983 = vmatpush.xpose.msra.mxu0 0.0
      %984 = vmatpush.xpose.msra.mxu0 0.0
      %985 = vmatpush.xpose.msra.mxu0 0.0
      %986 = vmatpush.xpose.msra.mxu0 0.0
      %987 = vmatpush.xpose.msra.mxu0 0.0
      %988 = vmatpush.xpose.msra.mxu0 0.0
      %989 = vmatpush.xpose.msra.mxu0 0.0
      %990 = vmatpush.xpose.msra.mxu0 0.0
      %991 = vmatpush.xpose.msra.mxu0 0.0
      %992 = vmatpush.xpose.msra.mxu0 %v975
      %993 = vmatmul.f32.gmra.mxu0 %v972
      %v994 = vpop.f32.mrf.mxu0
      %v995 = vadd.f32 0.0, %v994
      %996 = vdwg.mxu0
      %v998 = vsel %vm970, %v649, 0
      %v1001 = vsel %vm970, %v783, 0
      %1003 = vmatpush.xpose.msra.mxu0 0.0
      %1004 = vmatpush.xpose.msra.mxu0 0.0
      %1005 = vmatpush.xpose.msra.mxu0 0.0
      %1006 = vmatpush.xpose.msra.mxu0 0.0
      %1007 = vmatpush.xpose.msra.mxu0 0.0
      %1008 = vmatpush.xpose.msra.mxu0 0.0
      %1009 = vmatpush.xpose.msra.mxu0 0.0
      %1010 = vmatpush.xpose.msra.mxu0 0.0
      %1011 = vmatpush.xpose.msra.mxu0 0.0
      %1012 = vmatpush.xpose.msra.mxu0 0.0
      %1013 = vmatpush.xpose.msra.mxu0 0.0
      %1014 = vmatpush.xpose.msra.mxu0 0.0
      %1015 = vmatpush.xpose.msra.mxu0 0.0
      %1016 = vmatpush.xpose.msra.mxu0 0.0
      %1017 = vmatpush.xpose.msra.mxu0 0.0
      %1018 = vmatpush.xpose.msra.mxu0 %v1001
      %1019 = vmatmul.f32.gmra.mxu0 %v998
      %v1020 = vpop.f32.mrf.mxu0
      %v1021 = vadd.f32 0.0, %v1020
      %1022 = vdwg.mxu0
      %v1024 = vsel %vm970, %v674, 0
      %v1027 = vsel %vm970, %v808, 0
      %1029 = vmatpush.xpose.msra.mxu0 0.0
      %1030 = vmatpush.xpose.msra.mxu0 0.0
      %1031 = vmatpush.xpose.msra.mxu0 0.0
      %1032 = vmatpush.xpose.msra.mxu0 0.0
      %1033 = vmatpush.xpose.msra.mxu0 0.0
      %1034 = vmatpush.xpose.msra.mxu0 0.0
      %1035 = vmatpush.xpose.msra.mxu0 0.0
      %1036 = vmatpush.xpose.msra.mxu0 0.0
      %1037 = vmatpush.xpose.msra.mxu0 0.0
      %1038 = vmatpush.xpose.msra.mxu0 0.0
      %1039 = vmatpush.xpose.msra.mxu0 0.0
      %1040 = vmatpush.xpose.msra.mxu0 0.0
      %1041 = vmatpush.xpose.msra.mxu0 0.0
      %1042 = vmatpush.xpose.msra.mxu0 0.0
      %1043 = vmatpush.xpose.msra.mxu0 0.0
      %1044 = vmatpush.xpose.msra.mxu0 %v1027
      %1045 = vmatmul.f32.gmra.mxu0 %v1024
      %v1046 = vpop.f32.mrf.mxu0
      %v1047 = vadd.f32 0.0, %v1046
      %1048 = vdwg.mxu0
      %v1050 = vsel %vm970, %v699, 0
      %v1053 = vsel %vm970, %v833, 0
      %1055 = vmatpush.xpose.msra.mxu0 0.0
      %1056 = vmatpush.xpose.msra.mxu0 0.0
      %1057 = vmatpush.xpose.msra.mxu0 0.0
      %1058 = vmatpush.xpose.msra.mxu0 0.0
      %1059 = vmatpush.xpose.msra.mxu0 0.0
      %1060 = vmatpush.xpose.msra.mxu0 0.0
      %1061 = vmatpush.xpose.msra.mxu0 0.0
      %1062 = vmatpush.xpose.msra.mxu0 0.0
      %1063 = vmatpush.xpose.msra.mxu0 0.0
      %1064 = vmatpush.xpose.msra.mxu0 0.0
      %1065 = vmatpush.xpose.msra.mxu0 0.0
      %1066 = vmatpush.xpose.msra.mxu0 0.0
      %1067 = vmatpush.xpose.msra.mxu0 0.0
      %1068 = vmatpush.xpose.msra.mxu0 0.0
      %1069 = vmatpush.xpose.msra.mxu0 0.0
      %1070 = vmatpush.xpose.msra.mxu0 %v1053
      %1071 = vmatmul.f32.gmra.mxu0 %v1050
      %v1072 = vpop.f32.mrf.mxu0
      %v1073 = vadd.f32 0.0, %v1072
      %1074 = vdwg.mxu0
      %v1075 = vmul.f32 %v995, 0.35355338
      %v1076 = vmul.f32 %v1021, 0.35355338
      %v1077 = vmul.f32 %v1047, 0.35355338
      %v1078 = vmul.f32 %v1073, 0.35355338
      %v1079 = vadd.f32 %v1075, %v564
      %v1080 = vadd.f32 %v1076, %v564
      %v1081 = vadd.f32 %v1077, %v564
      %v1082 = vadd.f32 %v1078, %v564
      %v1083 = vsel %vm970, %v1079, -inf
      %1084 = vmax.xlane.f32.xlu0 %v1083
      %v1085 = vpop.xlane.xlu0 %1084
      %v1086 = vsel %vm970, %v1080, -inf
      %1087 = vmax.xlane.f32.xlu0 %v1086
      %v1088 = vpop.xlane.xlu0 %1087
      %v1089 = vsel %vm970, %v1081, -inf
      %1090 = vmax.xlane.f32.xlu0 %v1089
      %v1091 = vpop.xlane.xlu0 %1090
      %v1092 = vsel %vm970, %v1082, -inf
      %1093 = vmax.xlane.f32.xlu0 %v1092
      %v1094 = vpop.xlane.xlu0 %1093
      %v1095 = vsub.f32 %v1079, %v1085
      %v1096 = vsub.f32 %v1080, %v1088
      %v1097 = vsub.f32 %v1081, %v1091
      %v1098 = vsub.f32 %v1082, %v1094
      %v1099 = vmul.f32 %v1095, 1.442695
      %v1100 = vpow.pop %v1099
      %v1101 = vmul.f32 %v1096, 1.442695
      %v1102 = vpow.pop %v1101
      %v1103 = vmul.f32 %v1097, 1.442695
      %v1104 = vpow.pop %v1103
      %v1105 = vmul.f32 %v1098, 1.442695
      %v1106 = vpow.pop %v1105
      %v1107 = vsel %vm970, %v1100, 0.0
      %1108 = vadd.xlane.f32.xlu0 %v1107
      %v1109 = vpop.xlane.xlu0 %1108
      %v1110 = vsel %vm970, %v1102, 0.0
      %1111 = vadd.xlane.f32.xlu0 %v1110
      %v1112 = vpop.xlane.xlu0 %1111
      %v1113 = vsel %vm970, %v1104, 0.0
      %1114 = vadd.xlane.f32.xlu0 %v1113
      %v1115 = vpop.xlane.xlu0 %1114
      %v1116 = vsel %vm970, %v1106, 0.0
      %1117 = vadd.xlane.f32.xlu0 %v1116
      %v1118 = vpop.xlane.xlu0 %1117
      %v1119 = vrcp.pop %v1109
      %v1120 = vrcp.pop %v1112
      %v1121 = vrcp.pop %v1115
      %v1122 = vrcp.pop %v1118
      %v1123 = vmul.f32 %v1100, %v1119
      %v1124 = vmul.f32 %v1102, %v1120
      %v1125 = vmul.f32 %v1104, %v1121
      %v1126 = vmul.f32 %v1106, %v1122
      %v1128 = vsel %vm970, %v1123, 0
      %1130 = vmatpush.msra.mxu0 0.0
      %1131 = vmatpush.msra.mxu0 0.0
      %1132 = vmatpush.msra.mxu0 0.0
      %1133 = vmatpush.msra.mxu0 0.0
      %1134 = vmatpush.msra.mxu0 0.0
      %1135 = vmatpush.msra.mxu0 0.0
      %1136 = vmatpush.msra.mxu0 0.0
      %1137 = vmatpush.msra.mxu0 0.0
      %1138 = vmatpush.msra.mxu0 0.0
      %1139 = vmatpush.msra.mxu0 0.0
      %1140 = vmatpush.msra.mxu0 0.0
      %1141 = vmatpush.msra.mxu0 0.0
      %1142 = vmatpush.msra.mxu0 0.0
      %1143 = vmatpush.msra.mxu0 0.0
      %1144 = vmatpush.msra.mxu0 0.0
      %1145 = vmatpush.msra.mxu0 %v892
      %1146 = vmatmul.f32.gmra.mxu0 %v1128
      %v1147 = vpop.f32.mrf.mxu0
      %v1148 = vadd.f32 0.0, %v1147
      %1149 = vdwg.mxu0
      %v1151 = vsel %vm970, %v1124, 0
      %1153 = vmatpush.msra.mxu0 0.0
      %1154 = vmatpush.msra.mxu0 0.0
      %1155 = vmatpush.msra.mxu0 0.0
      %1156 = vmatpush.msra.mxu0 0.0
      %1157 = vmatpush.msra.mxu0 0.0
      %1158 = vmatpush.msra.mxu0 0.0
      %1159 = vmatpush.msra.mxu0 0.0
      %1160 = vmatpush.msra.mxu0 0.0
      %1161 = vmatpush.msra.mxu0 0.0
      %1162 = vmatpush.msra.mxu0 0.0
      %1163 = vmatpush.msra.mxu0 0.0
      %1164 = vmatpush.msra.mxu0 0.0
      %1165 = vmatpush.msra.mxu0 0.0
      %1166 = vmatpush.msra.mxu0 0.0
      %1167 = vmatpush.msra.mxu0 0.0
      %1168 = vmatpush.msra.mxu0 %v917
      %1169 = vmatmul.f32.gmra.mxu0 %v1151
      %v1170 = vpop.f32.mrf.mxu0
      %v1171 = vadd.f32 0.0, %v1170
      %1172 = vdwg.mxu0
      %v1174 = vsel %vm970, %v1125, 0
      %1176 = vmatpush.msra.mxu0 0.0
      %1177 = vmatpush.msra.mxu0 0.0
      %1178 = vmatpush.msra.mxu0 0.0
      %1179 = vmatpush.msra.mxu0 0.0
      %1180 = vmatpush.msra.mxu0 0.0
      %1181 = vmatpush.msra.mxu0 0.0
      %1182 = vmatpush.msra.mxu0 0.0
      %1183 = vmatpush.msra.mxu0 0.0
      %1184 = vmatpush.msra.mxu0 0.0
      %1185 = vmatpush.msra.mxu0 0.0
      %1186 = vmatpush.msra.mxu0 0.0
      %1187 = vmatpush.msra.mxu0 0.0
      %1188 = vmatpush.msra.mxu0 0.0
      %1189 = vmatpush.msra.mxu0 0.0
      %1190 = vmatpush.msra.mxu0 0.0
      %1191 = vmatpush.msra.mxu0 %v942
      %1192 = vmatmul.f32.gmra.mxu0 %v1174
      %v1193 = vpop.f32.mrf.mxu0
      %v1194 = vadd.f32 0.0, %v1193
      %1195 = vdwg.mxu0
      %v1197 = vsel %vm970, %v1126, 0
      %1199 = vmatpush.msra.mxu0 0.0
      %1200 = vmatpush.msra.mxu0 0.0
      %1201 = vmatpush.msra.mxu0 0.0
      %1202 = vmatpush.msra.mxu0 0.0
      %1203 = vmatpush.msra.mxu0 0.0
      %1204 = vmatpush.msra.mxu0 0.0
      %1205 = vmatpush.msra.mxu0 0.0
      %1206 = vmatpush.msra.mxu0 0.0
      %1207 = vmatpush.msra.mxu0 0.0
      %1208 = vmatpush.msra.mxu0 0.0
      %1209 = vmatpush.msra.mxu0 0.0
      %1210 = vmatpush.msra.mxu0 0.0
      %1211 = vmatpush.msra.mxu0 0.0
      %1212 = vmatpush.msra.mxu0 0.0
      %1213 = vmatpush.msra.mxu0 0.0
      %1214 = vmatpush.msra.mxu0 %v967
      %1215 = vmatmul.f32.gmra.mxu0 %v1197
      %v1216 = vpop.f32.mrf.mxu0
      %v1217 = vadd.f32 0.0, %v1216
      %1218 = vdwg.mxu0
      %v1219 = vpack.c.bf16 %v1148, %v1148
      %v1220 = vpack.c.bf16 %v1171, %v1171
      %v1221 = vpack.c.bf16 %v1194, %v1194
      %v1222 = vpack.c.bf16 %v1217, %v1217
      %v1223 = vld [vmem:[%s5] sm:$0xf]
      %v1224 = vld [vmem:[%s5 + $0x4] sm:$0xf]
      %v1225 = vld [vmem:[%s5 + $0x8] sm:$0xf]
      %v1226 = vld [vmem:[%s5 + $0xc] sm:$0xf]
      %v1228 = vsel %vm970, %v1219, 0
      %vm1230 = vcmask 1043456
      %v1232 = vsel %vm1230, %v1223, 0
      %1234 = vmatpush.bf16.msra.mxu0 0
      %1235 = vmatpush.bf16.msra.mxu0 0
      %1236 = vmatpush.bf16.msra.mxu0 0
      %1237 = vmatpush.bf16.msra.mxu0 0
      %1238 = vmatpush.bf16.msra.mxu0 0
      %1239 = vmatpush.bf16.msra.mxu0 0
      %1240 = vmatpush.bf16.msra.mxu0 0
      %1241 = vmatpush.bf16.msra.mxu0 %v1232
      %1242 = vmatmul.bf16.gmra.mxu0 %v1228
      %v1243 = vpop.f32.mrf.mxu0
      %v1244 = vadd.f32 0.0, %v1243
      %v1245 = vpop.f32.mrf.mxu0
      %1246 = vdwg.mxu0
      %v1248 = vsel %vm970, %v1220, 0
      %v1251 = vsel %vm1230, %v1224, 0
      %1253 = vmatpush.bf16.msra.mxu0 0
      %1254 = vmatpush.bf16.msra.mxu0 0
      %1255 = vmatpush.bf16.msra.mxu0 0
      %1256 = vmatpush.bf16.msra.mxu0 0
      %1257 = vmatpush.bf16.msra.mxu0 0
      %1258 = vmatpush.bf16.msra.mxu0 0
      %1259 = vmatpush.bf16.msra.mxu0 0
      %1260 = vmatpush.bf16.msra.mxu0 %v1251
      %1261 = vmatmul.bf16.gmra.mxu0 %v1248
      %v1262 = vpop.f32.mrf.mxu0
      %v1263 = vadd.f32 0.0, %v1262
      %v1264 = vpop.f32.mrf.mxu0
      %1265 = vdwg.mxu0
      %v1267 = vsel %vm970, %v1221, 0
      %v1270 = vsel %vm1230, %v1225, 0
      %1272 = vmatpush.bf16.msra.mxu0 0
      %1273 = vmatpush.bf16.msra.mxu0 0
      %1274 = vmatpush.bf16.msra.mxu0 0
      %1275 = vmatpush.bf16.msra.mxu0 0
      %1276 = vmatpush.bf16.msra.mxu0 0
      %1277 = vmatpush.bf16.msra.mxu0 0
      %1278 = vmatpush.bf16.msra.mxu0 0
      %1279 = vmatpush.bf16.msra.mxu0 %v1270
      %1280 = vmatmul.bf16.gmra.mxu0 %v1267
      %v1281 = vpop.f32.mrf.mxu0
      %v1282 = vadd.f32 0.0, %v1281
      %v1283 = vpop.f32.mrf.mxu0
      %1284 = vdwg.mxu0
      %v1286 = vsel %vm970, %v1222, 0
      %v1289 = vsel %vm1230, %v1226, 0
      %1291 = vmatpush.bf16.msra.mxu0 0
      %1292 = vmatpush.bf16.msra.mxu0 0
      %1293 = vmatpush.bf16.msra.mxu0 0
      %1294 = vmatpush.bf16.msra.mxu0 0
      %1295 = vmatpush.bf16.msra.mxu0 0
      %1296 = vmatpush.bf16.msra.mxu0 0
      %1297 = vmatpush.bf16.msra.mxu0 0
      %1298 = vmatpush.bf16.msra.mxu0 %v1289
      %1299 = vmatmul.bf16.gmra.mxu0 %v1286
      %v1300 = vpop.f32.mrf.mxu0
      %v1301 = vadd.f32 0.0, %v1300
      %v1302 = vpop.f32.mrf.mxu0
      %1303 = vdwg.mxu0
      %v1304 = vsel %vm610, %v1244, 0.0
      %v1305 = vsel %vm610, %v1263, 0.0
      %v1306 = vadd.f32 %v1304, %v1305
      %v1307 = vsel %vm610, %v1282, 0.0
      %v1308 = vadd.f32 %v1306, %v1307
      %v1309 = vsel %vm610, %v1301, 0.0
      %v1310 = vadd.f32 %v1308, %v1309
      %v1311 = vld [vmem:[%s6] sm:$0x1]
      %v1313 = vperm.slane %v1311, 0
      %v1315 = vadd.f32 %v1310, %v1313
      %v1316 = vadd.f32 %v562, %v1315
      %v1317 = vld [vmem:[%s15] sm:$0x1]
      %v1318 = vld [vmem:[%s16] sm:$0x1]
      %v1319 = vsel %vm610, %v1316, 0.0
      %1320 = vadd.xlane.f32.xlu0 %v1319
      %v1321 = vpop.xlane.xlu0 %1320
      %v1322 = vrcp.pop 32.0
      %v1323 = vmul.f32 32.0, %v1322
      %v1324 = vsub.f32 1.0, %v1323
      %v1325 = vmul.f32 %v1322, %v1324
      %v1326 = vadd.f32 %v1322, %v1325
      %vm1327 = vweird.f32 %v1322
      %v1328 = vsel %vm1327, %v1322, %v1326
      %v1329 = vmul.f32 %v1321, %v1328
      %v1330 = vsub.f32 %v1316, %v1329
      %v1331 = vmul.f32 %v1330, %v1330
      %v1332 = vsel %vm610, %v1331, 0.0
      %1333 = vadd.xlane.f32.xlu0 %v1332
      %v1334 = vpop.xlane.xlu0 %1333
      %v1335 = vmul.f32 %v1334, %v1328
      %v1336 = vadd.f32 %v1335, 1e-05
      %v1337 = vrsqrt.pop %v1336
      %v1338 = vmul.f32 %v1337, %v1336
      %v1339 = vmul.f32 %v1338, %v1337
      %v1340 = vmul.f32 0.5, %v1339
      %v1341 = vsub.f32 1.5, %v1340
      %v1342 = vmul.f32 %v1337, %v1341
      %vm1343 = vweird.f32 %v1336
      %vm1344 = vweird.f32 %v1337
      %vm1345 = vmor %vm1343, %vm1344
      %v1346 = vsel %vm1345, %v1337, %v1342
      %v1347 = vmul.f32 %v1330, %v1346
      %v1349 = vperm.slane %v1317, 0
      %v1351 = vmul.f32 %v1347, %v1349
      %v1353 = vperm.slane %v1318, 0
      %v1355 = vadd.f32 %v1351, %v1353
      %v1356 = vpack.c.bf16 %v1355, %v1355
      %v1357 = vpack.c.bf16 %v563, %v563
      %v1358 = vld [vmem:[%s7] sm:$0xf]
      %v1359 = vld [vmem:[%s7 + $0x4] sm:$0xf]
      %v1360 = vld [vmem:[%s7 + $0x8] sm:$0xf]
      %v1361 = vld [vmem:[%s7 + $0xc] sm:$0xf]
      %v1362 = vld [vmem:[%s7 + $0x10] sm:$0xf]
      %v1363 = vld [vmem:[%s7 + $0x14] sm:$0xf]
      %v1364 = vld [vmem:[%s7 + $0x18] sm:$0xf]
      %v1365 = vld [vmem:[%s7 + $0x1c] sm:$0xf]
      %v1366 = vld [vmem:[%s7 + $0x20] sm:$0xf]
      %v1367 = vld [vmem:[%s7 + $0x24] sm:$0xf]
      %v1368 = vld [vmem:[%s7 + $0x28] sm:$0xf]
      %v1369 = vld [vmem:[%s7 + $0x2c] sm:$0xf]
      %v1370 = vld [vmem:[%s7 + $0x30] sm:$0xf]
      %v1371 = vld [vmem:[%s7 + $0x34] sm:$0xf]
      %v1372 = vld [vmem:[%s7 + $0x38] sm:$0xf]
      %v1373 = vld [vmem:[%s7 + $0x3c] sm:$0xf]
      %v1374 = vld [vmem:[%s8] sm:$0x1]
      %v1375 = vld [vmem:[%s8 + $0x1] sm:$0x1]
      %v1376 = vld [vmem:[%s8 + $0x2] sm:$0x1]
      %v1377 = vld [vmem:[%s8 + $0x3] sm:$0x1]
      %v1382 = vperm.slane %v1374, 0
      %v1383 = vperm.slane %v1375, 0
      %v1384 = vperm.slane %v1376, 0
      %v1385 = vperm.slane %v1377, 0
      %v1394 = vunpack.c.l.b16 %v1358
      %v1395 = vunpack.c.l.b16 %v1359
      %v1396 = vunpack.c.l.b16 %v1360
      %v1397 = vunpack.c.l.b16 %v1361
      %v1398 = vpack.c.b16 %v1395, %v1394
      %v1399 = vpack.c.b16 %v1397, %v1396
      %v1403 = vsel %vm610, %v1356, 0
      %1405 = vmatpush.bf16.msra.mxu0 0
      %1406 = vmatpush.bf16.msra.mxu0 0
      %1407 = vmatpush.bf16.msra.mxu0 0
      %1408 = vmatpush.bf16.msra.mxu0 0
      %1409 = vmatpush.bf16.msra.mxu0 0
      %1410 = vmatpush.bf16.msra.mxu0 0
      %1411 = vmatpush.bf16.msra.mxu0 %v1399
      %1412 = vmatpush.bf16.msra.mxu0 %v1398
      %1413 = vmatmul.bf16.gmra.mxu0 %v1403
      %v1414 = vpop.f32.mrf.mxu0
      %v1415 = vadd.f32 %v1382, %v1414
      %v1416 = vpop.f32.mrf.mxu0
      %1417 = vdwg.mxu0
      %v1422 = vunpack.c.l.b16 %v1362
      %v1423 = vunpack.c.l.b16 %v1363
      %v1424 = vunpack.c.l.b16 %v1364
      %v1425 = vunpack.c.l.b16 %v1365
      %v1426 = vpack.c.b16 %v1423, %v1422
      %v1427 = vpack.c.b16 %v1425, %v1424
      %1430 = vmatpush.bf16.msra.mxu0 0
      %1431 = vmatpush.bf16.msra.mxu0 0
      %1432 = vmatpush.bf16.msra.mxu0 0
      %1433 = vmatpush.bf16.msra.mxu0 0
      %1434 = vmatpush.bf16.msra.mxu0 0
      %1435 = vmatpush.bf16.msra.mxu0 0
      %1436 = vmatpush.bf16.msra.mxu0 %v1427
      %1437 = vmatpush.bf16.msra.mxu0 %v1426
      %1438 = vmatmul.bf16.gmra.mxu0 %v1403
      %v1439 = vpop.f32.mrf.mxu0
      %v1440 = vadd.f32 %v1383, %v1439
      %v1441 = vpop.f32.mrf.mxu0
      %1442 = vdwg.mxu0
      %v1447 = vunpack.c.l.b16 %v1366
      %v1448 = vunpack.c.l.b16 %v1367
      %v1449 = vunpack.c.l.b16 %v1368
      %v1450 = vunpack.c.l.b16 %v1369
      %v1451 = vpack.c.b16 %v1448, %v1447
      %v1452 = vpack.c.b16 %v1450, %v1449
      %1455 = vmatpush.bf16.msra.mxu0 0
      %1456 = vmatpush.bf16.msra.mxu0 0
      %1457 = vmatpush.bf16.msra.mxu0 0
      %1458 = vmatpush.bf16.msra.mxu0 0
      %1459 = vmatpush.bf16.msra.mxu0 0
      %1460 = vmatpush.bf16.msra.mxu0 0
      %1461 = vmatpush.bf16.msra.mxu0 %v1452
      %1462 = vmatpush.bf16.msra.mxu0 %v1451
      %1463 = vmatmul.bf16.gmra.mxu0 %v1403
      %v1464 = vpop.f32.mrf.mxu0
      %v1465 = vadd.f32 %v1384, %v1464
      %v1466 = vpop.f32.mrf.mxu0
      %1467 = vdwg.mxu0
      %v1472 = vunpack.c.l.b16 %v1370
      %v1473 = vunpack.c.l.b16 %v1371
      %v1474 = vunpack.c.l.b16 %v1372
      %v1475 = vunpack.c.l.b16 %v1373
      %v1476 = vpack.c.b16 %v1473, %v1472
      %v1477 = vpack.c.b16 %v1475, %v1474
      %1480 = vmatpush.bf16.msra.mxu0 0
      %1481 = vmatpush.bf16.msra.mxu0 0
      %1482 = vmatpush.bf16.msra.mxu0 0
      %1483 = vmatpush.bf16.msra.mxu0 0
      %1484 = vmatpush.bf16.msra.mxu0 0
      %1485 = vmatpush.bf16.msra.mxu0 0
      %1486 = vmatpush.bf16.msra.mxu0 %v1477
      %1487 = vmatpush.bf16.msra.mxu0 %v1476
      %1488 = vmatmul.bf16.gmra.mxu0 %v1403
      %v1489 = vpop.f32.mrf.mxu0
      %v1490 = vadd.f32 %v1385, %v1489
      %v1491 = vpop.f32.mrf.mxu0
      %1492 = vdwg.mxu0
      %s1493 = scalar_lea.vmem %s7, 64
      %v1494 = vld [vmem:[%s1493] sm:$0xf]
      %v1495 = vld [vmem:[%s1493 + $0x4] sm:$0xf]
      %v1496 = vld [vmem:[%s1493 + $0x8] sm:$0xf]
      %v1497 = vld [vmem:[%s1493 + $0xc] sm:$0xf]
      %v1498 = vld [vmem:[%s1493 + $0x10] sm:$0xf]
      %v1499 = vld [vmem:[%s1493 + $0x14] sm:$0xf]
      %v1500 = vld [vmem:[%s1493 + $0x18] sm:$0xf]
      %v1501 = vld [vmem:[%s1493 + $0x1c] sm:$0xf]
      %v1502 = vld [vmem:[%s1493 + $0x20] sm:$0xf]
      %v1503 = vld [vmem:[%s1493 + $0x24] sm:$0xf]
      %v1504 = vld [vmem:[%s1493 + $0x28] sm:$0xf]
      %v1505 = vld [vmem:[%s1493 + $0x2c] sm:$0xf]
      %v1506 = vld [vmem:[%s1493 + $0x30] sm:$0xf]
      %v1507 = vld [vmem:[%s1493 + $0x34] sm:$0xf]
      %v1508 = vld [vmem:[%s1493 + $0x38] sm:$0xf]
      %v1509 = vld [vmem:[%s1493 + $0x3c] sm:$0xf]
      %s1510 = scalar_lea.vmem %s8, 4
      %v1511 = vld [vmem:[%s1510] sm:$0x1]
      %v1512 = vld [vmem:[%s1510 + $0x1] sm:$0x1]
      %v1513 = vld [vmem:[%s1510 + $0x2] sm:$0x1]
      %v1514 = vld [vmem:[%s1510 + $0x3] sm:$0x1]
      %v1519 = vperm.slane %v1511, 0
      %v1520 = vperm.slane %v1512, 0
      %v1521 = vperm.slane %v1513, 0
      %v1522 = vperm.slane %v1514, 0
      %v1531 = vunpack.c.l.b16 %v1494
      %v1532 = vunpack.c.l.b16 %v1495
      %v1533 = vunpack.c.l.b16 %v1496
      %v1534 = vunpack.c.l.b16 %v1497
      %v1535 = vpack.c.b16 %v1532, %v1531
      %v1536 = vpack.c.b16 %v1534, %v1533
      %v1540 = vsel %vm610, %v1357, 0
      %1542 = vmatpush.bf16.msra.mxu0 0
      %1543 = vmatpush.bf16.msra.mxu0 0
      %1544 = vmatpush.bf16.msra.mxu0 0
      %1545 = vmatpush.bf16.msra.mxu0 0
      %1546 = vmatpush.bf16.msra.mxu0 0
      %1547 = vmatpush.bf16.msra.mxu0 0
      %1548 = vmatpush.bf16.msra.mxu0 %v1536
      %1549 = vmatpush.bf16.msra.mxu0 %v1535
      %1550 = vmatmul.bf16.gmra.mxu0 %v1540
      %v1551 = vpop.f32.mrf.mxu0
      %v1552 = vadd.f32 %v1519, %v1551
      %v1553 = vpop.f32.mrf.mxu0
      %1554 = vdwg.mxu0
      %v1559 = vunpack.c.l.b16 %v1498
      %v1560 = vunpack.c.l.b16 %v1499
      %v1561 = vunpack.c.l.b16 %v1500
      %v1562 = vunpack.c.l.b16 %v1501
      %v1563 = vpack.c.b16 %v1560, %v1559
      %v1564 = vpack.c.b16 %v1562, %v1561
      %1567 = vmatpush.bf16.msra.mxu0 0
      %1568 = vmatpush.bf16.msra.mxu0 0
      %1569 = vmatpush.bf16.msra.mxu0 0
      %1570 = vmatpush.bf16.msra.mxu0 0
      %1571 = vmatpush.bf16.msra.mxu0 0
      %1572 = vmatpush.bf16.msra.mxu0 0
      %1573 = vmatpush.bf16.msra.mxu0 %v1564
      %1574 = vmatpush.bf16.msra.mxu0 %v1563
      %1575 = vmatmul.bf16.gmra.mxu0 %v1540
      %v1576 = vpop.f32.mrf.mxu0
      %v1577 = vadd.f32 %v1520, %v1576
      %v1578 = vpop.f32.mrf.mxu0
      %1579 = vdwg.mxu0
      %v1584 = vunpack.c.l.b16 %v1502
      %v1585 = vunpack.c.l.b16 %v1503
      %v1586 = vunpack.c.l.b16 %v1504
      %v1587 = vunpack.c.l.b16 %v1505
      %v1588 = vpack.c.b16 %v1585, %v1584
      %v1589 = vpack.c.b16 %v1587, %v1586
      %1592 = vmatpush.bf16.msra.mxu0 0
      %1593 = vmatpush.bf16.msra.mxu0 0
      %1594 = vmatpush.bf16.msra.mxu0 0
      %1595 = vmatpush.bf16.msra.mxu0 0
      %1596 = vmatpush.bf16.msra.mxu0 0
      %1597 = vmatpush.bf16.msra.mxu0 0
      %1598 = vmatpush.bf16.msra.mxu0 %v1589
      %1599 = vmatpush.bf16.msra.mxu0 %v1588
      %1600 = vmatmul.bf16.gmra.mxu0 %v1540
      %v1601 = vpop.f32.mrf.mxu0
      %v1602 = vadd.f32 %v1521, %v1601
      %v1603 = vpop.f32.mrf.mxu0
      %1604 = vdwg.mxu0
      %v1609 = vunpack.c.l.b16 %v1506
      %v1610 = vunpack.c.l.b16 %v1507
      %v1611 = vunpack.c.l.b16 %v1508
      %v1612 = vunpack.c.l.b16 %v1509
      %v1613 = vpack.c.b16 %v1610, %v1609
      %v1614 = vpack.c.b16 %v1612, %v1611
      %1617 = vmatpush.bf16.msra.mxu0 0
      %1618 = vmatpush.bf16.msra.mxu0 0
      %1619 = vmatpush.bf16.msra.mxu0 0
      %1620 = vmatpush.bf16.msra.mxu0 0
      %1621 = vmatpush.bf16.msra.mxu0 0
      %1622 = vmatpush.bf16.msra.mxu0 0
      %1623 = vmatpush.bf16.msra.mxu0 %v1614
      %1624 = vmatpush.bf16.msra.mxu0 %v1613
      %1625 = vmatmul.bf16.gmra.mxu0 %v1540
      %v1626 = vpop.f32.mrf.mxu0
      %v1627 = vadd.f32 %v1522, %v1626
      %v1628 = vpop.f32.mrf.mxu0
      %1629 = vdwg.mxu0
      %s1630 = scalar_lea.vmem %s7, 128
      %v1631 = vld [vmem:[%s1630] sm:$0xf]
      %v1632 = vld [vmem:[%s1630 + $0x4] sm:$0xf]
      %v1633 = vld [vmem:[%s1630 + $0x8] sm:$0xf]
      %v1634 = vld [vmem:[%s1630 + $0xc] sm:$0xf]
      %v1635 = vld [vmem:[%s1630 + $0x10] sm:$0xf]
      %v1636 = vld [vmem:[%s1630 + $0x14] sm:$0xf]
      %v1637 = vld [vmem:[%s1630 + $0x18] sm:$0xf]
      %v1638 = vld [vmem:[%s1630 + $0x1c] sm:$0xf]
      %v1639 = vld [vmem:[%s1630 + $0x20] sm:$0xf]
      %v1640 = vld [vmem:[%s1630 + $0x24] sm:$0xf]
      %v1641 = vld [vmem:[%s1630 + $0x28] sm:$0xf]
      %v1642 = vld [vmem:[%s1630 + $0x2c] sm:$0xf]
      %v1643 = vld [vmem:[%s1630 + $0x30] sm:$0xf]
      %v1644 = vld [vmem:[%s1630 + $0x34] sm:$0xf]
      %v1645 = vld [vmem:[%s1630 + $0x38] sm:$0xf]
      %v1646 = vld [vmem:[%s1630 + $0x3c] sm:$0xf]
      %s1647 = scalar_lea.vmem %s8, 8
      %v1648 = vld [vmem:[%s1647] sm:$0x1]
      %v1649 = vld [vmem:[%s1647 + $0x1] sm:$0x1]
      %v1650 = vld [vmem:[%s1647 + $0x2] sm:$0x1]
      %v1651 = vld [vmem:[%s1647 + $0x3] sm:$0x1]
      %v1656 = vperm.slane %v1648, 0
      %v1657 = vperm.slane %v1649, 0
      %v1658 = vperm.slane %v1650, 0
      %v1659 = vperm.slane %v1651, 0
      %v1668 = vunpack.c.l.b16 %v1631
      %v1669 = vunpack.c.l.b16 %v1632
      %v1670 = vunpack.c.l.b16 %v1633
      %v1671 = vunpack.c.l.b16 %v1634
      %v1672 = vpack.c.b16 %v1669, %v1668
      %v1673 = vpack.c.b16 %v1671, %v1670
      %1676 = vmatpush.bf16.msra.mxu0 0
      %1677 = vmatpush.bf16.msra.mxu0 0
      %1678 = vmatpush.bf16.msra.mxu0 0
      %1679 = vmatpush.bf16.msra.mxu0 0
      %1680 = vmatpush.bf16.msra.mxu0 0
      %1681 = vmatpush.bf16.msra.mxu0 0
      %1682 = vmatpush.bf16.msra.mxu0 %v1673
      %1683 = vmatpush.bf16.msra.mxu0 %v1672
      %1684 = vmatmul.bf16.gmra.mxu0 %v1540
      %v1685 = vpop.f32.mrf.mxu0
      %v1686 = vadd.f32 %v1656, %v1685
      %v1687 = vpop.f32.mrf.mxu0
      %1688 = vdwg.mxu0
      %v1693 = vunpack.c.l.b16 %v1635
      %v1694 = vunpack.c.l.b16 %v1636
      %v1695 = vunpack.c.l.b16 %v1637
      %v1696 = vunpack.c.l.b16 %v1638
      %v1697 = vpack.c.b16 %v1694, %v1693
      %v1698 = vpack.c.b16 %v1696, %v1695
      %1701 = vmatpush.bf16.msra.mxu0 0
      %1702 = vmatpush.bf16.msra.mxu0 0
      %1703 = vmatpush.bf16.msra.mxu0 0
      %1704 = vmatpush.bf16.msra.mxu0 0
      %1705 = vmatpush.bf16.msra.mxu0 0
      %1706 = vmatpush.bf16.msra.mxu0 0
      %1707 = vmatpush.bf16.msra.mxu0 %v1698
      %1708 = vmatpush.bf16.msra.mxu0 %v1697
      %1709 = vmatmul.bf16.gmra.mxu0 %v1540
      %v1710 = vpop.f32.mrf.mxu0
      %v1711 = vadd.f32 %v1657, %v1710
      %v1712 = vpop.f32.mrf.mxu0
      %1713 = vdwg.mxu0
      %v1718 = vunpack.c.l.b16 %v1639
      %v1719 = vunpack.c.l.b16 %v1640
      %v1720 = vunpack.c.l.b16 %v1641
      %v1721 = vunpack.c.l.b16 %v1642
      %v1722 = vpack.c.b16 %v1719, %v1718
      %v1723 = vpack.c.b16 %v1721, %v1720
      %1726 = vmatpush.bf16.msra.mxu0 0
      %1727 = vmatpush.bf16.msra.mxu0 0
      %1728 = vmatpush.bf16.msra.mxu0 0
      %1729 = vmatpush.bf16.msra.mxu0 0
      %1730 = vmatpush.bf16.msra.mxu0 0
      %1731 = vmatpush.bf16.msra.mxu0 0
      %1732 = vmatpush.bf16.msra.mxu0 %v1723
      %1733 = vmatpush.bf16.msra.mxu0 %v1722
      %1734 = vmatmul.bf16.gmra.mxu0 %v1540
      %v1735 = vpop.f32.mrf.mxu0
      %v1736 = vadd.f32 %v1658, %v1735
      %v1737 = vpop.f32.mrf.mxu0
      %1738 = vdwg.mxu0
      %v1743 = vunpack.c.l.b16 %v1643
      %v1744 = vunpack.c.l.b16 %v1644
      %v1745 = vunpack.c.l.b16 %v1645
      %v1746 = vunpack.c.l.b16 %v1646
      %v1747 = vpack.c.b16 %v1744, %v1743
      %v1748 = vpack.c.b16 %v1746, %v1745
      %1751 = vmatpush.bf16.msra.mxu0 0
      %1752 = vmatpush.bf16.msra.mxu0 0
      %1753 = vmatpush.bf16.msra.mxu0 0
      %1754 = vmatpush.bf16.msra.mxu0 0
      %1755 = vmatpush.bf16.msra.mxu0 0
      %1756 = vmatpush.bf16.msra.mxu0 0
      %1757 = vmatpush.bf16.msra.mxu0 %v1748
      %1758 = vmatpush.bf16.msra.mxu0 %v1747
      %1759 = vmatmul.bf16.gmra.mxu0 %v1540
      %v1760 = vpop.f32.mrf.mxu0
      %v1761 = vadd.f32 %v1659, %v1760
      %v1762 = vpop.f32.mrf.mxu0
      %1763 = vdwg.mxu0
      %v1765 = vsel %vm970, %v1415, 0
      %v1768 = vsel %vm970, %v1552, 0
      %1770 = vmatpush.xpose.msra.mxu0 0.0
      %1771 = vmatpush.xpose.msra.mxu0 0.0
      %1772 = vmatpush.xpose.msra.mxu0 0.0
      %1773 = vmatpush.xpose.msra.mxu0 0.0
      %1774 = vmatpush.xpose.msra.mxu0 0.0
      %1775 = vmatpush.xpose.msra.mxu0 0.0
      %1776 = vmatpush.xpose.msra.mxu0 0.0
      %1777 = vmatpush.xpose.msra.mxu0 0.0
      %1778 = vmatpush.xpose.msra.mxu0 0.0
      %1779 = vmatpush.xpose.msra.mxu0 0.0
      %1780 = vmatpush.xpose.msra.mxu0 0.0
      %1781 = vmatpush.xpose.msra.mxu0 0.0
      %1782 = vmatpush.xpose.msra.mxu0 0.0
      %1783 = vmatpush.xpose.msra.mxu0 0.0
      %1784 = vmatpush.xpose.msra.mxu0 0.0
      %1785 = vmatpush.xpose.msra.mxu0 %v1768
      %1786 = vmatmul.f32.gmra.mxu0 %v1765
      %v1787 = vpop.f32.mrf.mxu0
      %v1788 = vadd.f32 0.0, %v1787
      %1789 = vdwg.mxu0
      %v1791 = vsel %vm970, %v1440, 0
      %v1794 = vsel %vm970, %v1577, 0
      %1796 = vmatpush.xpose.msra.mxu0 0.0
      %1797 = vmatpush.xpose.msra.mxu0 0.0
      %1798 = vmatpush.xpose.msra.mxu0 0.0
      %1799 = vmatpush.xpose.msra.mxu0 0.0
      %1800 = vmatpush.xpose.msra.mxu0 0.0
      %1801 = vmatpush.xpose.msra.mxu0 0.0
      %1802 = vmatpush.xpose.msra.mxu0 0.0
      %1803 = vmatpush.xpose.msra.mxu0 0.0
      %1804 = vmatpush.xpose.msra.mxu0 0.0
      %1805 = vmatpush.xpose.msra.mxu0 0.0
      %1806 = vmatpush.xpose.msra.mxu0 0.0
      %1807 = vmatpush.xpose.msra.mxu0 0.0
      %1808 = vmatpush.xpose.msra.mxu0 0.0
      %1809 = vmatpush.xpose.msra.mxu0 0.0
      %1810 = vmatpush.xpose.msra.mxu0 0.0
      %1811 = vmatpush.xpose.msra.mxu0 %v1794
      %1812 = vmatmul.f32.gmra.mxu0 %v1791
      %v1813 = vpop.f32.mrf.mxu0
      %v1814 = vadd.f32 0.0, %v1813
      %1815 = vdwg.mxu0
      %v1817 = vsel %vm970, %v1465, 0
      %v1820 = vsel %vm970, %v1602, 0
      %1822 = vmatpush.xpose.msra.mxu0 0.0
      %1823 = vmatpush.xpose.msra.mxu0 0.0
      %1824 = vmatpush.xpose.msra.mxu0 0.0
      %1825 = vmatpush.xpose.msra.mxu0 0.0
      %1826 = vmatpush.xpose.msra.mxu0 0.0
      %1827 = vmatpush.xpose.msra.mxu0 0.0
      %1828 = vmatpush.xpose.msra.mxu0 0.0
      %1829 = vmatpush.xpose.msra.mxu0 0.0
      %1830 = vmatpush.xpose.msra.mxu0 0.0
      %1831 = vmatpush.xpose.msra.mxu0 0.0
      %1832 = vmatpush.xpose.msra.mxu0 0.0
      %1833 = vmatpush.xpose.msra.mxu0 0.0
      %1834 = vmatpush.xpose.msra.mxu0 0.0
      %1835 = vmatpush.xpose.msra.mxu0 0.0
      %1836 = vmatpush.xpose.msra.mxu0 0.0
      %1837 = vmatpush.xpose.msra.mxu0 %v1820
      %1838 = vmatmul.f32.gmra.mxu0 %v1817
      %v1839 = vpop.f32.mrf.mxu0
      %v1840 = vadd.f32 0.0, %v1839
      %1841 = vdwg.mxu0
      %v1843 = vsel %vm970, %v1490, 0
      %v1846 = vsel %vm970, %v1627, 0
      %1848 = vmatpush.xpose.msra.mxu0 0.0
      %1849 = vmatpush.xpose.msra.mxu0 0.0
      %1850 = vmatpush.xpose.msra.mxu0 0.0
      %1851 = vmatpush.xpose.msra.mxu0 0.0
      %1852 = vmatpush.xpose.msra.mxu0 0.0
      %1853 = vmatpush.xpose.msra.mxu0 0.0
      %1854 = vmatpush.xpose.msra.mxu0 0.0
      %1855 = vmatpush.xpose.msra.mxu0 0.0
      %1856 = vmatpush.xpose.msra.mxu0 0.0
      %1857 = vmatpush.xpose.msra.mxu0 0.0
      %1858 = vmatpush.xpose.msra.mxu0 0.0
      %1859 = vmatpush.xpose.msra.mxu0 0.0
      %1860 = vmatpush.xpose.msra.mxu0 0.0
      %1861 = vmatpush.xpose.msra.mxu0 0.0
      %1862 = vmatpush.xpose.msra.mxu0 0.0
      %1863 = vmatpush.xpose.msra.mxu0 %v1846
      %1864 = vmatmul.f32.gmra.mxu0 %v1843
      %v1865 = vpop.f32.mrf.mxu0
      %v1866 = vadd.f32 0.0, %v1865
      %1867 = vdwg.mxu0
      %v1868 = vmul.f32 %v1788, 0.35355338
      %v1869 = vmul.f32 %v1814, 0.35355338
      %v1870 = vmul.f32 %v1840, 0.35355338
      %v1871 = vmul.f32 %v1866, 0.35355338
      %v1872 = vsel %vm970, %v1868, -inf
      %1873 = vmax.xlane.f32.xlu0 %v1872
      %v1874 = vpop.xlane.xlu0 %1873
      %v1875 = vsel %vm970, %v1869, -inf
      %1876 = vmax.xlane.f32.xlu0 %v1875
      %v1877 = vpop.xlane.xlu0 %1876
      %v1878 = vsel %vm970, %v1870, -inf
      %1879 = vmax.xlane.f32.xlu0 %v1878
      %v1880 = vpop.xlane.xlu0 %1879
      %v1881 = vsel %vm970, %v1871, -inf
      %1882 = vmax.xlane.f32.xlu0 %v1881
      %v1883 = vpop.xlane.xlu0 %1882
      %v1884 = vsub.f32 %v1868, %v1874
      %v1885 = vsub.f32 %v1869, %v1877
      %v1886 = vsub.f32 %v1870, %v1880
      %v1887 = vsub.f32 %v1871, %v1883
      %v1888 = vmul.f32 %v1884, 1.442695
      %v1889 = vpow.pop %v1888
      %v1890 = vmul.f32 %v1885, 1.442695
      %v1891 = vpow.pop %v1890
      %v1892 = vmul.f32 %v1886, 1.442695
      %v1893 = vpow.pop %v1892
      %v1894 = vmul.f32 %v1887, 1.442695
      %v1895 = vpow.pop %v1894
      %v1896 = vsel %vm970, %v1889, 0.0
      %1897 = vadd.xlane.f32.xlu0 %v1896
      %v1898 = vpop.xlane.xlu0 %1897
      %v1899 = vsel %vm970, %v1891, 0.0
      %1900 = vadd.xlane.f32.xlu0 %v1899
      %v1901 = vpop.xlane.xlu0 %1900
      %v1902 = vsel %vm970, %v1893, 0.0
      %1903 = vadd.xlane.f32.xlu0 %v1902
      %v1904 = vpop.xlane.xlu0 %1903
      %v1905 = vsel %vm970, %v1895, 0.0
      %1906 = vadd.xlane.f32.xlu0 %v1905
      %v1907 = vpop.xlane.xlu0 %1906
      %v1908 = vrcp.pop %v1898
      %v1909 = vrcp.pop %v1901
      %v1910 = vrcp.pop %v1904
      %v1911 = vrcp.pop %v1907
      %v1912 = vmul.f32 %v1889, %v1908
      %v1913 = vmul.f32 %v1891, %v1909
      %v1914 = vmul.f32 %v1893, %v1910
      %v1915 = vmul.f32 %v1895, %v1911
      %v1917 = vsel %vm970, %v1912, 0
      %1919 = vmatpush.msra.mxu0 0.0
      %1920 = vmatpush.msra.mxu0 0.0
      %1921 = vmatpush.msra.mxu0 0.0
      %1922 = vmatpush.msra.mxu0 0.0
      %1923 = vmatpush.msra.mxu0 0.0
      %1924 = vmatpush.msra.mxu0 0.0
      %1925 = vmatpush.msra.mxu0 0.0
      %1926 = vmatpush.msra.mxu0 0.0
      %1927 = vmatpush.msra.mxu0 0.0
      %1928 = vmatpush.msra.mxu0 0.0
      %1929 = vmatpush.msra.mxu0 0.0
      %1930 = vmatpush.msra.mxu0 0.0
      %1931 = vmatpush.msra.mxu0 0.0
      %1932 = vmatpush.msra.mxu0 0.0
      %1933 = vmatpush.msra.mxu0 0.0
      %1934 = vmatpush.msra.mxu0 %v1686
      %1935 = vmatmul.f32.gmra.mxu0 %v1917
      %v1936 = vpop.f32.mrf.mxu0
      %v1937 = vadd.f32 0.0, %v1936
      %1938 = vdwg.mxu0
      %v1940 = vsel %vm970, %v1913, 0
      %1942 = vmatpush.msra.mxu0 0.0
      %1943 = vmatpush.msra.mxu0 0.0
      %1944 = vmatpush.msra.mxu0 0.0
      %1945 = vmatpush.msra.mxu0 0.0
      %1946 = vmatpush.msra.mxu0 0.0
      %1947 = vmatpush.msra.mxu0 0.0
      %1948 = vmatpush.msra.mxu0 0.0
      %1949 = vmatpush.msra.mxu0 0.0
      %1950 = vmatpush.msra.mxu0 0.0
      %1951 = vmatpush.msra.mxu0 0.0
      %1952 = vmatpush.msra.mxu0 0.0
      %1953 = vmatpush.msra.mxu0 0.0
      %1954 = vmatpush.msra.mxu0 0.0
      %1955 = vmatpush.msra.mxu0 0.0
      %1956 = vmatpush.msra.mxu0 0.0
      %1957 = vmatpush.msra.mxu0 %v1711
      %1958 = vmatmul.f32.gmra.mxu0 %v1940
      %v1959 = vpop.f32.mrf.mxu0
      %v1960 = vadd.f32 0.0, %v1959
      %1961 = vdwg.mxu0
      %v1963 = vsel %vm970, %v1914, 0
      %1965 = vmatpush.msra.mxu0 0.0
      %1966 = vmatpush.msra.mxu0 0.0
      %1967 = vmatpush.msra.mxu0 0.0
      %1968 = vmatpush.msra.mxu0 0.0
      %1969 = vmatpush.msra.mxu0 0.0
      %1970 = vmatpush.msra.mxu0 0.0
      %1971 = vmatpush.msra.mxu0 0.0
      %1972 = vmatpush.msra.mxu0 0.0
      %1973 = vmatpush.msra.mxu0 0.0
      %1974 = vmatpush.msra.mxu0 0.0
      %1975 = vmatpush.msra.mxu0 0.0
      %1976 = vmatpush.msra.mxu0 0.0
      %1977 = vmatpush.msra.mxu0 0.0
      %1978 = vmatpush.msra.mxu0 0.0
      %1979 = vmatpush.msra.mxu0 0.0
      %1980 = vmatpush.msra.mxu0 %v1736
      %1981 = vmatmul.f32.gmra.mxu0 %v1963
      %v1982 = vpop.f32.mrf.mxu0
      %v1983 = vadd.f32 0.0, %v1982
      %1984 = vdwg.mxu0
      %v1986 = vsel %vm970, %v1915, 0
      %1988 = vmatpush.msra.mxu0 0.0
      %1989 = vmatpush.msra.mxu0 0.0
      %1990 = vmatpush.msra.mxu0 0.0
      %1991 = vmatpush.msra.mxu0 0.0
      %1992 = vmatpush.msra.mxu0 0.0
      %1993 = vmatpush.msra.mxu0 0.0
      %1994 = vmatpush.msra.mxu0 0.0
      %1995 = vmatpush.msra.mxu0 0.0
      %1996 = vmatpush.msra.mxu0 0.0
      %1997 = vmatpush.msra.mxu0 0.0
      %1998 = vmatpush.msra.mxu0 0.0
      %1999 = vmatpush.msra.mxu0 0.0
      %2000 = vmatpush.msra.mxu0 0.0
      %2001 = vmatpush.msra.mxu0 0.0
      %2002 = vmatpush.msra.mxu0 0.0
      %2003 = vmatpush.msra.mxu0 %v1761
      %2004 = vmatmul.f32.gmra.mxu0 %v1986
      %v2005 = vpop.f32.mrf.mxu0
      %v2006 = vadd.f32 0.0, %v2005
      %2007 = vdwg.mxu0
      %v2008 = vpack.c.bf16 %v1937, %v1937
      %v2009 = vpack.c.bf16 %v1960, %v1960
      %v2010 = vpack.c.bf16 %v1983, %v1983
      %v2011 = vpack.c.bf16 %v2006, %v2006
      %v2012 = vld [vmem:[%s9] sm:$0xf]
      %v2013 = vld [vmem:[%s9 + $0x4] sm:$0xf]
      %v2014 = vld [vmem:[%s9 + $0x8] sm:$0xf]
      %v2015 = vld [vmem:[%s9 + $0xc] sm:$0xf]
      %v2017 = vsel %vm970, %v2008, 0
      %v2020 = vsel %vm1230, %v2012, 0
      %2022 = vmatpush.bf16.msra.mxu0 0
      %2023 = vmatpush.bf16.msra.mxu0 0
      %2024 = vmatpush.bf16.msra.mxu0 0
      %2025 = vmatpush.bf16.msra.mxu0 0
      %2026 = vmatpush.bf16.msra.mxu0 0
      %2027 = vmatpush.bf16.msra.mxu0 0
      %2028 = vmatpush.bf16.msra.mxu0 0
      %2029 = vmatpush.bf16.msra.mxu0 %v2020
      %2030 = vmatmul.bf16.gmra.mxu0 %v2017
      %v2031 = vpop.f32.mrf.mxu0
      %v2032 = vadd.f32 0.0, %v2031
      %v2033 = vpop.f32.mrf.mxu0
      %2034 = vdwg.mxu0
      %v2036 = vsel %vm970, %v2009, 0
      %v2039 = vsel %vm1230, %v2013, 0
      %2041 = vmatpush.bf16.msra.mxu0 0
      %2042 = vmatpush.bf16.msra.mxu0 0
      %2043 = vmatpush.bf16.msra.mxu0 0
      %2044 = vmatpush.bf16.msra.mxu0 0
      %2045 = vmatpush.bf16.msra.mxu0 0
      %2046 = vmatpush.bf16.msra.mxu0 0
      %2047 = vmatpush.bf16.msra.mxu0 0
      %2048 = vmatpush.bf16.msra.mxu0 %v2039
      %2049 = vmatmul.bf16.gmra.mxu0 %v2036
      %v2050 = vpop.f32.mrf.mxu0
      %v2051 = vadd.f32 0.0, %v2050
      %v2052 = vpop.f32.mrf.mxu0
      %2053 = vdwg.mxu0
      %v2055 = vsel %vm970, %v2010, 0
      %v2058 = vsel %vm1230, %v2014, 0
      %2060 = vmatpush.bf16.msra.mxu0 0
      %2061 = vmatpush.bf16.msra.mxu0 0
      %2062 = vmatpush.bf16.msra.mxu0 0
      %2063 = vmatpush.bf16.msra.mxu0 0
      %2064 = vmatpush.bf16.msra.mxu0 0
      %2065 = vmatpush.bf16.msra.mxu0 0
      %2066 = vmatpush.bf16.msra.mxu0 0
      %2067 = vmatpush.bf16.msra.mxu0 %v2058
      %2068 = vmatmul.bf16.gmra.mxu0 %v2055
      %v2069 = vpop.f32.mrf.mxu0
      %v2070 = vadd.f32 0.0, %v2069
      %v2071 = vpop.f32.mrf.mxu0
      %2072 = vdwg.mxu0
      %v2074 = vsel %vm970, %v2011, 0
      %v2077 = vsel %vm1230, %v2015, 0
      %2079 = vmatpush.bf16.msra.mxu0 0
      %2080 = vmatpush.bf16.msra.mxu0 0
      %2081 = vmatpush.bf16.msra.mxu0 0
      %2082 = vmatpush.bf16.msra.mxu0 0
      %2083 = vmatpush.bf16.msra.mxu0 0
      %2084 = vmatpush.bf16.msra.mxu0 0
      %2085 = vmatpush.bf16.msra.mxu0 0
      %2086 = vmatpush.bf16.msra.mxu0 %v2077
      %2087 = vmatmul.bf16.gmra.mxu0 %v2074
      %v2088 = vpop.f32.mrf.mxu0
      %v2089 = vadd.f32 0.0, %v2088
      %v2090 = vpop.f32.mrf.mxu0
      %2091 = vdwg.mxu0
      %v2092 = vsel %vm610, %v2032, 0.0
      %v2093 = vsel %vm610, %v2051, 0.0
      %v2094 = vadd.f32 %v2092, %v2093
      %v2095 = vsel %vm610, %v2070, 0.0
      %v2096 = vadd.f32 %v2094, %v2095
      %v2097 = vsel %vm610, %v2089, 0.0
      %v2098 = vadd.f32 %v2096, %v2097
      %v2099 = vld [vmem:[%s10] sm:$0x1]
      %v2101 = vperm.slane %v2099, 0
      %v2103 = vadd.f32 %v2098, %v2101
      %v2104 = vadd.f32 %v1355, %v2103
      %s2105 = scalar_lea.vmem %s15, 1
      %v2106 = vld [vmem:[%s2105] sm:$0x1]
      %s2107 = scalar_lea.vmem %s16, 1
      %v2108 = vld [vmem:[%s2107] sm:$0x1]
      %v2109 = vsel %vm610, %v2104, 0.0
      %2110 = vadd.xlane.f32.xlu0 %v2109
      %v2111 = vpop.xlane.xlu0 %2110
      %v2112 = vmul.f32 %v2111, %v1328
      %v2113 = vsub.f32 %v2104, %v2112
      %v2114 = vmul.f32 %v2113, %v2113
      %v2115 = vsel %vm610, %v2114, 0.0
      %2116 = vadd.xlane.f32.xlu0 %v2115
      %v2117 = vpop.xlane.xlu0 %2116
      %v2118 = vmul.f32 %v2117, %v1328
      %v2119 = vadd.f32 %v2118, 1e-05
      %v2120 = vrsqrt.pop %v2119
      %v2121 = vmul.f32 %v2120, %v2119
      %v2122 = vmul.f32 %v2121, %v2120
      %v2123 = vmul.f32 0.5, %v2122
      %v2124 = vsub.f32 1.5, %v2123
      %v2125 = vmul.f32 %v2120, %v2124
      %vm2126 = vweird.f32 %v2119
      %vm2127 = vweird.f32 %v2120
      %vm2128 = vmor %vm2126, %vm2127
      %v2129 = vsel %vm2128, %v2120, %v2125
      %v2130 = vmul.f32 %v2113, %v2129
      %v2132 = vperm.slane %v2106, 0
      %v2134 = vmul.f32 %v2130, %v2132
      %v2136 = vperm.slane %v2108, 0
      %v2138 = vadd.f32 %v2134, %v2136
      %v2139 = vpack.c.bf16 %v2138, %v2138
      %v2140 = vld [vmem:[%s11] sm:$0xff]
      %v2141 = vld [vmem:[%s11 + $0x8] sm:$0xff]
      %v2142 = vld [vmem:[%s11 + $0x10] sm:$0xff]
      %v2143 = vld [vmem:[%s11 + $0x18] sm:$0xff]
      %v2144 = vld [vmem:[%s11 + $0x20] sm:$0xff]
      %v2145 = vld [vmem:[%s11 + $0x28] sm:$0xff]
      %v2146 = vld [vmem:[%s11 + $0x30] sm:$0xff]
      %v2147 = vld [vmem:[%s11 + $0x38] sm:$0xff]
      %v2148 = vld [vmem:[%s11 + $0x40] sm:$0xff]
      %v2149 = vld [vmem:[%s11 + $0x48] sm:$0xff]
      %v2150 = vld [vmem:[%s11 + $0x50] sm:$0xff]
      %v2151 = vld [vmem:[%s11 + $0x58] sm:$0xff]
      %v2152 = vld [vmem:[%s11 + $0x60] sm:$0xff]
      %v2153 = vld [vmem:[%s11 + $0x68] sm:$0xff]
      %v2154 = vld [vmem:[%s11 + $0x70] sm:$0xff]
      %v2155 = vld [vmem:[%s11 + $0x78] sm:$0xff]
      %v2156 = vld [vmem:[%s11 + $0x80] sm:$0xff]
      %v2157 = vld [vmem:[%s11 + $0x88] sm:$0xff]
      %v2158 = vld [vmem:[%s11 + $0x90] sm:$0xff]
      %v2159 = vld [vmem:[%s11 + $0x98] sm:$0xff]
      %v2160 = vld [vmem:[%s11 + $0xa0] sm:$0xff]
      %v2161 = vld [vmem:[%s11 + $0xa8] sm:$0xff]
      %v2162 = vld [vmem:[%s11 + $0xb0] sm:$0xff]
      %v2163 = vld [vmem:[%s11 + $0xb8] sm:$0xff]
      %v2164 = vld [vmem:[%s11 + $0xc0] sm:$0xff]
      %v2165 = vld [vmem:[%s11 + $0xc8] sm:$0xff]
      %v2166 = vld [vmem:[%s11 + $0xd0] sm:$0xff]
      %v2167 = vld [vmem:[%s11 + $0xd8] sm:$0xff]
      %v2168 = vld [vmem:[%s11 + $0xe0] sm:$0xff]
      %v2169 = vld [vmem:[%s11 + $0xe8] sm:$0xff]
      %v2170 = vld [vmem:[%s11 + $0xf0] sm:$0xff]
      %v2171 = vld [vmem:[%s11 + $0xf8] sm:$0xff]
      %v2172 = vld [vmem:[%s12] sm:$0xff]
      %v2173 = vld [vmem:[%s12 + $0x8] sm:$0xff]
      %v2176 = vperm.slane %v2172, 0
      %v2177 = vperm.slane %v2172, 1
      %v2178 = vperm.slane %v2172, 2
      %v2179 = vperm.slane %v2172, 3
      %v2180 = vperm.slane %v2172, 4
      %v2181 = vperm.slane %v2172, 5
      %v2182 = vperm.slane %v2172, 6
      %v2183 = vperm.slane %v2172, 7
      %v2184 = vperm.slane %v2173, 0
      %v2185 = vperm.slane %v2173, 1
      %v2186 = vperm.slane %v2173, 2
      %v2187 = vperm.slane %v2173, 3
      %v2188 = vperm.slane %v2173, 4
      %v2189 = vperm.slane %v2173, 5
      %v2190 = vperm.slane %v2173, 6
      %v2191 = vperm.slane %v2173, 7
      %v2240 = vunpack.c.l.b16 %v2140
      %v2241 = vunpack.c.h.b16 %v2140
      %v2242 = vunpack.c.l.b16 %v2141
      %v2243 = vunpack.c.h.b16 %v2141
      %v2244 = vunpack.c.l.b16 %v2142
      %v2245 = vunpack.c.h.b16 %v2142
      %v2246 = vunpack.c.l.b16 %v2143
      %v2247 = vunpack.c.h.b16 %v2143
      %v2248 = vunpack.c.l.b16 %v2144
      %v2249 = vunpack.c.h.b16 %v2144
      %v2250 = vunpack.c.l.b16 %v2145
      %v2251 = vunpack.c.h.b16 %v2145
      %v2252 = vunpack.c.l.b16 %v2146
      %v2253 = vunpack.c.h.b16 %v2146
      %v2254 = vunpack.c.l.b16 %v2147
      %v2255 = vunpack.c.h.b16 %v2147
      %v2256 = vunpack.c.l.b16 %v2148
      %v2257 = vunpack.c.h.b16 %v2148
      %v2258 = vunpack.c.l.b16 %v2149
      %v2259 = vunpack.c.h.b16 %v2149
      %v2260 = vunpack.c.l.b16 %v2150
      %v2261 = vunpack.c.h.b16 %v2150
      %v2262 = vunpack.c.l.b16 %v2151
      %v2263 = vunpack.c.h.b16 %v2151
      %v2264 = vunpack.c.l.b16 %v2152
      %v2265 = vunpack.c.h.b16 %v2152
      %v2266 = vunpack.c.l.b16 %v2153
      %v2267 = vunpack.c.h.b16 %v2153
      %v2268 = vunpack.c.l.b16 %v2154
      %v2269 = vunpack.c.h.b16 %v2154
      %v2270 = vunpack.c.l.b16 %v2155
      %v2271 = vunpack.c.h.b16 %v2155
      %v2272 = vunpack.c.l.b16 %v2156
      %v2273 = vunpack.c.h.b16 %v2156
      %v2274 = vunpack.c.l.b16 %v2157
      %v2275 = vunpack.c.h.b16 %v2157
      %v2276 = vunpack.c.l.b16 %v2158
      %v2277 = vunpack.c.h.b16 %v2158
      %v2278 = vunpack.c.l.b16 %v2159
      %v2279 = vunpack.c.h.b16 %v2159
      %v2280 = vunpack.c.l.b16 %v2160
      %v2281 = vunpack.c.h.b16 %v2160
      %v2282 = vunpack.c.l.b16 %v2161
      %v2283 = vunpack.c.h.b16 %v2161
      %v2284 = vunpack.c.l.b16 %v2162
      %v2285 = vunpack.c.h.b16 %v2162
      %v2286 = vunpack.c.l.b16 %v2163
      %v2287 = vunpack.c.h.b16 %v2163
      %v2288 = vunpack.c.l.b16 %v2164
      %v2289 = vunpack.c.h.b16 %v2164
      %v2290 = vunpack.c.l.b16 %v2165
      %v2291 = vunpack.c.h.b16 %v2165
      %v2292 = vunpack.c.l.b16 %v2166
      %v2293 = vunpack.c.h.b16 %v2166
      %v2294 = vunpack.c.l.b16 %v2167
      %v2295 = vunpack.c.h.b16 %v2167
      %v2296 = vunpack.c.l.b16 %v2168
      %v2297 = vunpack.c.h.b16 %v2168
      %v2298 = vunpack.c.l.b16 %v2169
      %v2299 = vunpack.c.h.b16 %v2169
      %v2300 = vunpack.c.l.b16 %v2170
      %v2301 = vunpack.c.h.b16 %v2170
      %v2302 = vunpack.c.l.b16 %v2171
      %v2303 = vunpack.c.h.b16 %v2171
      %v2304 = vpack.c.b16 %v2256, %v2240
      %v2305 = vpack.c.b16 %v2257, %v2241
      %v2306 = vpack.c.b16 %v2258, %v2242
      %v2307 = vpack.c.b16 %v2259, %v2243
      %v2308 = vpack.c.b16 %v2260, %v2244
      %v2309 = vpack.c.b16 %v2261, %v2245
      %v2310 = vpack.c.b16 %v2262, %v2246
      %v2311 = vpack.c.b16 %v2263, %v2247
      %v2312 = vpack.c.b16 %v2264, %v2248
      %v2313 = vpack.c.b16 %v2265, %v2249
      %v2314 = vpack.c.b16 %v2266, %v2250
      %v2315 = vpack.c.b16 %v2267, %v2251
      %v2316 = vpack.c.b16 %v2268, %v2252
      %v2317 = vpack.c.b16 %v2269, %v2253
      %v2318 = vpack.c.b16 %v2270, %v2254
      %v2319 = vpack.c.b16 %v2271, %v2255
      %v2320 = vpack.c.b16 %v2288, %v2272
      %v2321 = vpack.c.b16 %v2289, %v2273
      %v2322 = vpack.c.b16 %v2290, %v2274
      %v2323 = vpack.c.b16 %v2291, %v2275
      %v2324 = vpack.c.b16 %v2292, %v2276
      %v2325 = vpack.c.b16 %v2293, %v2277
      %v2326 = vpack.c.b16 %v2294, %v2278
      %v2327 = vpack.c.b16 %v2295, %v2279
      %v2328 = vpack.c.b16 %v2296, %v2280
      %v2329 = vpack.c.b16 %v2297, %v2281
      %v2330 = vpack.c.b16 %v2298, %v2282
      %v2331 = vpack.c.b16 %v2299, %v2283
      %v2332 = vpack.c.b16 %v2300, %v2284
      %v2333 = vpack.c.b16 %v2301, %v2285
      %v2334 = vpack.c.b16 %v2302, %v2286
      %v2335 = vpack.c.b16 %v2303, %v2287
      %v2369 = vsel %vm610, %v2139, 0
      %2371 = vmatpush.bf16.msra.mxu0 0
      %2372 = vmatpush.bf16.msra.mxu0 0
      %2373 = vmatpush.bf16.msra.mxu0 0
      %2374 = vmatpush.bf16.msra.mxu0 0
      %2375 = vmatpush.bf16.msra.mxu0 0
      %2376 = vmatpush.bf16.msra.mxu0 0
      %2377 = vmatpush.bf16.msra.mxu0 %v2320
      %2378 = vmatpush.bf16.msra.mxu0 %v2304
      %2379 = vmatmul.bf16.gmra.mxu0 %v2369
      %v2380 = vpop.f32.mrf.mxu0
      %v2381 = vadd.f32 %v2176, %v2380
      %v2382 = vpop.f32.mrf.mxu0
      %2383 = vdwg.mxu0
      %2384 = vmatpush.bf16.msra.mxu0 0
      %2385 = vmatpush.bf16.msra.mxu0 0
      %2386 = vmatpush.bf16.msra.mxu0 0
      %2387 = vmatpush.bf16.msra.mxu0 0
      %2388 = vmatpush.bf16.msra.mxu0 0
      %2389 = vmatpush.bf16.msra.mxu0 0
      %2390 = vmatpush.bf16.msra.mxu0 %v2321
      %2391 = vmatpush.bf16.msra.mxu0 %v2305
      %2392 = vmatmul.bf16.gmra.mxu0 %v2369
      %v2393 = vpop.f32.mrf.mxu0
      %v2394 = vadd.f32 %v2177, %v2393
      %v2395 = vpop.f32.mrf.mxu0
      %2396 = vdwg.mxu0
      %2397 = vmatpush.bf16.msra.mxu0 0
      %2398 = vmatpush.bf16.msra.mxu0 0
      %2399 = vmatpush.bf16.msra.mxu0 0
      %2400 = vmatpush.bf16.msra.mxu0 0
      %2401 = vmatpush.bf16.msra.mxu0 0
      %2402 = vmatpush.bf16.msra.mxu0 0
      %2403 = vmatpush.bf16.msra.mxu0 %v2322
      %2404 = vmatpush.bf16.msra.mxu0 %v2306
      %2405 = vmatmul.bf16.gmra.mxu0 %v2369
      %v2406 = vpop.f32.mrf.mxu0
      %v2407 = vadd.f32 %v2178, %v2406
      %v2408 = vpop.f32.mrf.mxu0
      %2409 = vdwg.mxu0
      %2410 = vmatpush.bf16.msra.mxu0 0
      %2411 = vmatpush.bf16.msra.mxu0 0
      %2412 = vmatpush.bf16.msra.mxu0 0
      %2413 = vmatpush.bf16.msra.mxu0 0
      %2414 = vmatpush.bf16.msra.mxu0 0
      %2415 = vmatpush.bf16.msra.mxu0 0
      %2416 = vmatpush.bf16.msra.mxu0 %v2323
      %2417 = vmatpush.bf16.msra.mxu0 %v2307
      %2418 = vmatmul.bf16.gmra.mxu0 %v2369
      %v2419 = vpop.f32.mrf.mxu0
      %v2420 = vadd.f32 %v2179, %v2419
      %v2421 = vpop.f32.mrf.mxu0
      %2422 = vdwg.mxu0
      %2423 = vmatpush.bf16.msra.mxu0 0
      %2424 = vmatpush.bf16.msra.mxu0 0
      %2425 = vmatpush.bf16.msra.mxu0 0
      %2426 = vmatpush.bf16.msra.mxu0 0
      %2427 = vmatpush.bf16.msra.mxu0 0
      %2428 = vmatpush.bf16.msra.mxu0 0
      %2429 = vmatpush.bf16.msra.mxu0 %v2324
      %2430 = vmatpush.bf16.msra.mxu0 %v2308
      %2431 = vmatmul.bf16.gmra.mxu0 %v2369
      %v2432 = vpop.f32.mrf.mxu0
      %v2433 = vadd.f32 %v2180, %v2432
      %v2434 = vpop.f32.mrf.mxu0
      %2435 = vdwg.mxu0
      %2436 = vmatpush.bf16.msra.mxu0 0
      %2437 = vmatpush.bf16.msra.mxu0 0
      %2438 = vmatpush.bf16.msra.mxu0 0
      %2439 = vmatpush.bf16.msra.mxu0 0
      %2440 = vmatpush.bf16.msra.mxu0 0
      %2441 = vmatpush.bf16.msra.mxu0 0
      %2442 = vmatpush.bf16.msra.mxu0 %v2325
      %2443 = vmatpush.bf16.msra.mxu0 %v2309
      %2444 = vmatmul.bf16.gmra.mxu0 %v2369
      %v2445 = vpop.f32.mrf.mxu0
      %v2446 = vadd.f32 %v2181, %v2445
      %v2447 = vpop.f32.mrf.mxu0
      %2448 = vdwg.mxu0
      %2449 = vmatpush.bf16.msra.mxu0 0
      %2450 = vmatpush.bf16.msra.mxu0 0
      %2451 = vmatpush.bf16.msra.mxu0 0
      %2452 = vmatpush.bf16.msra.mxu0 0
      %2453 = vmatpush.bf16.msra.mxu0 0
      %2454 = vmatpush.bf16.msra.mxu0 0
      %2455 = vmatpush.bf16.msra.mxu0 %v2326
      %2456 = vmatpush.bf16.msra.mxu0 %v2310
      %2457 = vmatmul.bf16.gmra.mxu0 %v2369
      %v2458 = vpop.f32.mrf.mxu0
      %v2459 = vadd.f32 %v2182, %v2458
      %v2460 = vpop.f32.mrf.mxu0
      %2461 = vdwg.mxu0
      %2462 = vmatpush.bf16.msra.mxu0 0
      %2463 = vmatpush.bf16.msra.mxu0 0
      %2464 = vmatpush.bf16.msra.mxu0 0
      %2465 = vmatpush.bf16.msra.mxu0 0
      %2466 = vmatpush.bf16.msra.mxu0 0
      %2467 = vmatpush.bf16.msra.mxu0 0
      %2468 = vmatpush.bf16.msra.mxu0 %v2327
      %2469 = vmatpush.bf16.msra.mxu0 %v2311
      %2470 = vmatmul.bf16.gmra.mxu0 %v2369
      %v2471 = vpop.f32.mrf.mxu0
      %v2472 = vadd.f32 %v2183, %v2471
      %v2473 = vpop.f32.mrf.mxu0
      %2474 = vdwg.mxu0
      %2475 = vmatpush.bf16.msra.mxu0 0
      %2476 = vmatpush.bf16.msra.mxu0 0
      %2477 = vmatpush.bf16.msra.mxu0 0
      %2478 = vmatpush.bf16.msra.mxu0 0
      %2479 = vmatpush.bf16.msra.mxu0 0
      %2480 = vmatpush.bf16.msra.mxu0 0
      %2481 = vmatpush.bf16.msra.mxu0 %v2328
      %2482 = vmatpush.bf16.msra.mxu0 %v2312
      %2483 = vmatmul.bf16.gmra.mxu0 %v2369
      %v2484 = vpop.f32.mrf.mxu0
      %v2485 = vadd.f32 %v2184, %v2484
      %v2486 = vpop.f32.mrf.mxu0
      %2487 = vdwg.mxu0
      %2488 = vmatpush.bf16.msra.mxu0 0
      %2489 = vmatpush.bf16.msra.mxu0 0
      %2490 = vmatpush.bf16.msra.mxu0 0
      %2491 = vmatpush.bf16.msra.mxu0 0
      %2492 = vmatpush.bf16.msra.mxu0 0
      %2493 = vmatpush.bf16.msra.mxu0 0
      %2494 = vmatpush.bf16.msra.mxu0 %v2329
      %2495 = vmatpush.bf16.msra.mxu0 %v2313
      %2496 = vmatmul.bf16.gmra.mxu0 %v2369
      %v2497 = vpop.f32.mrf.mxu0
      %v2498 = vadd.f32 %v2185, %v2497
      %v2499 = vpop.f32.mrf.mxu0
      %2500 = vdwg.mxu0
      %2501 = vmatpush.bf16.msra.mxu0 0
      %2502 = vmatpush.bf16.msra.mxu0 0
      %2503 = vmatpush.bf16.msra.mxu0 0
      %2504 = vmatpush.bf16.msra.mxu0 0
      %2505 = vmatpush.bf16.msra.mxu0 0
      %2506 = vmatpush.bf16.msra.mxu0 0
      %2507 = vmatpush.bf16.msra.mxu0 %v2330
      %2508 = vmatpush.bf16.msra.mxu0 %v2314
      %2509 = vmatmul.bf16.gmra.mxu0 %v2369
      %v2510 = vpop.f32.mrf.mxu0
      %v2511 = vadd.f32 %v2186, %v2510
      %v2512 = vpop.f32.mrf.mxu0
      %2513 = vdwg.mxu0
      %2514 = vmatpush.bf16.msra.mxu0 0
      %2515 = vmatpush.bf16.msra.mxu0 0
      %2516 = vmatpush.bf16.msra.mxu0 0
      %2517 = vmatpush.bf16.msra.mxu0 0
      %2518 = vmatpush.bf16.msra.mxu0 0
      %2519 = vmatpush.bf16.msra.mxu0 0
      %2520 = vmatpush.bf16.msra.mxu0 %v2331
      %2521 = vmatpush.bf16.msra.mxu0 %v2315
      %2522 = vmatmul.bf16.gmra.mxu0 %v2369
      %v2523 = vpop.f32.mrf.mxu0
      %v2524 = vadd.f32 %v2187, %v2523
      %v2525 = vpop.f32.mrf.mxu0
      %2526 = vdwg.mxu0
      %2527 = vmatpush.bf16.msra.mxu0 0
      %2528 = vmatpush.bf16.msra.mxu0 0
      %2529 = vmatpush.bf16.msra.mxu0 0
      %2530 = vmatpush.bf16.msra.mxu0 0
      %2531 = vmatpush.bf16.msra.mxu0 0
      %2532 = vmatpush.bf16.msra.mxu0 0
      %2533 = vmatpush.bf16.msra.mxu0 %v2332
      %2534 = vmatpush.bf16.msra.mxu0 %v2316
      %2535 = vmatmul.bf16.gmra.mxu0 %v2369
      %v2536 = vpop.f32.mrf.mxu0
      %v2537 = vadd.f32 %v2188, %v2536
      %v2538 = vpop.f32.mrf.mxu0
      %2539 = vdwg.mxu0
      %2540 = vmatpush.bf16.msra.mxu0 0
      %2541 = vmatpush.bf16.msra.mxu0 0
      %2542 = vmatpush.bf16.msra.mxu0 0
      %2543 = vmatpush.bf16.msra.mxu0 0
      %2544 = vmatpush.bf16.msra.mxu0 0
      %2545 = vmatpush.bf16.msra.mxu0 0
      %2546 = vmatpush.bf16.msra.mxu0 %v2333
      %2547 = vmatpush.bf16.msra.mxu0 %v2317
      %2548 = vmatmul.bf16.gmra.mxu0 %v2369
      %v2549 = vpop.f32.mrf.mxu0
      %v2550 = vadd.f32 %v2189, %v2549
      %v2551 = vpop.f32.mrf.mxu0
      %2552 = vdwg.mxu0
      %2553 = vmatpush.bf16.msra.mxu0 0
      %2554 = vmatpush.bf16.msra.mxu0 0
      %2555 = vmatpush.bf16.msra.mxu0 0
      %2556 = vmatpush.bf16.msra.mxu0 0
      %2557 = vmatpush.bf16.msra.mxu0 0
      %2558 = vmatpush.bf16.msra.mxu0 0
      %2559 = vmatpush.bf16.msra.mxu0 %v2334
      %2560 = vmatpush.bf16.msra.mxu0 %v2318
      %2561 = vmatmul.bf16.gmra.mxu0 %v2369
      %v2562 = vpop.f32.mrf.mxu0
      %v2563 = vadd.f32 %v2190, %v2562
      %v2564 = vpop.f32.mrf.mxu0
      %2565 = vdwg.mxu0
      %2566 = vmatpush.bf16.msra.mxu0 0
      %2567 = vmatpush.bf16.msra.mxu0 0
      %2568 = vmatpush.bf16.msra.mxu0 0
      %2569 = vmatpush.bf16.msra.mxu0 0
      %2570 = vmatpush.bf16.msra.mxu0 0
      %2571 = vmatpush.bf16.msra.mxu0 0
      %2572 = vmatpush.bf16.msra.mxu0 %v2335
      %2573 = vmatpush.bf16.msra.mxu0 %v2319
      %2574 = vmatmul.bf16.gmra.mxu0 %v2369
      %v2575 = vpop.f32.mrf.mxu0
      %v2576 = vadd.f32 %v2191, %v2575
      %v2577 = vpop.f32.mrf.mxu0
      %2578 = vdwg.mxu0
      %v2579 = vmax.f32 %v2381, 0.0
      %v2580 = vmax.f32 %v2394, 0.0
      %v2581 = vmax.f32 %v2407, 0.0
      %v2582 = vmax.f32 %v2420, 0.0
      %v2583 = vmax.f32 %v2433, 0.0
      %v2584 = vmax.f32 %v2446, 0.0
      %v2585 = vmax.f32 %v2459, 0.0
      %v2586 = vmax.f32 %v2472, 0.0
      %v2587 = vmax.f32 %v2485, 0.0
      %v2588 = vmax.f32 %v2498, 0.0
      %v2589 = vmax.f32 %v2511, 0.0
      %v2590 = vmax.f32 %v2524, 0.0
      %v2591 = vmax.f32 %v2537, 0.0
      %v2592 = vmax.f32 %v2550, 0.0
      %v2593 = vmax.f32 %v2563, 0.0
      %v2594 = vmax.f32 %v2576, 0.0
      %v2595 = vpack.c.bf16 %v2579, %v2579
      %v2596 = vpack.c.bf16 %v2580, %v2580
      %v2597 = vpack.c.bf16 %v2581, %v2581
      %v2598 = vpack.c.bf16 %v2582, %v2582
      %v2599 = vpack.c.bf16 %v2583, %v2583
      %v2600 = vpack.c.bf16 %v2584, %v2584
      %v2601 = vpack.c.bf16 %v2585, %v2585
      %v2602 = vpack.c.bf16 %v2586, %v2586
      %v2603 = vpack.c.bf16 %v2587, %v2587
      %v2604 = vpack.c.bf16 %v2588, %v2588
      %v2605 = vpack.c.bf16 %v2589, %v2589
      %v2606 = vpack.c.bf16 %v2590, %v2590
      %v2607 = vpack.c.bf16 %v2591, %v2591
      %v2608 = vpack.c.bf16 %v2592, %v2592
      %v2609 = vpack.c.bf16 %v2593, %v2593
      %v2610 = vpack.c.bf16 %v2594, %v2594
      %v2611 = vld [vmem:[%s13] sm:$0xf]
      %v2612 = vld [vmem:[%s13 + $0x4] sm:$0xf]
      %v2613 = vld [vmem:[%s13 + $0x8] sm:$0xf]
      %v2614 = vld [vmem:[%s13 + $0xc] sm:$0xf]
      %v2615 = vld [vmem:[%s13 + $0x10] sm:$0xf]
      %v2616 = vld [vmem:[%s13 + $0x14] sm:$0xf]
      %v2617 = vld [vmem:[%s13 + $0x18] sm:$0xf]
      %v2618 = vld [vmem:[%s13 + $0x1c] sm:$0xf]
      %v2619 = vld [vmem:[%s13 + $0x20] sm:$0xf]
      %v2620 = vld [vmem:[%s13 + $0x24] sm:$0xf]
      %v2621 = vld [vmem:[%s13 + $0x28] sm:$0xf]
      %v2622 = vld [vmem:[%s13 + $0x2c] sm:$0xf]
      %v2623 = vld [vmem:[%s13 + $0x30] sm:$0xf]
      %v2624 = vld [vmem:[%s13 + $0x34] sm:$0xf]
      %v2625 = vld [vmem:[%s13 + $0x38] sm:$0xf]
      %v2626 = vld [vmem:[%s13 + $0x3c] sm:$0xf]
      %v2627 = vld [vmem:[%s13 + $0x40] sm:$0xf]
      %v2628 = vld [vmem:[%s13 + $0x44] sm:$0xf]
      %v2629 = vld [vmem:[%s13 + $0x48] sm:$0xf]
      %v2630 = vld [vmem:[%s13 + $0x4c] sm:$0xf]
      %v2631 = vld [vmem:[%s13 + $0x50] sm:$0xf]
      %v2632 = vld [vmem:[%s13 + $0x54] sm:$0xf]
      %v2633 = vld [vmem:[%s13 + $0x58] sm:$0xf]
      %v2634 = vld [vmem:[%s13 + $0x5c] sm:$0xf]
      %v2635 = vld [vmem:[%s13 + $0x60] sm:$0xf]
      %v2636 = vld [vmem:[%s13 + $0x64] sm:$0xf]
      %v2637 = vld [vmem:[%s13 + $0x68] sm:$0xf]
      %v2638 = vld [vmem:[%s13 + $0x6c] sm:$0xf]
      %v2639 = vld [vmem:[%s13 + $0x70] sm:$0xf]
      %v2640 = vld [vmem:[%s13 + $0x74] sm:$0xf]
      %v2641 = vld [vmem:[%s13 + $0x78] sm:$0xf]
      %v2642 = vld [vmem:[%s13 + $0x7c] sm:$0xf]
      %v2643 = vld [vmem:[%s13 + $0x80] sm:$0xf]
      %v2644 = vld [vmem:[%s13 + $0x84] sm:$0xf]
      %v2645 = vld [vmem:[%s13 + $0x88] sm:$0xf]
      %v2646 = vld [vmem:[%s13 + $0x8c] sm:$0xf]
      %v2647 = vld [vmem:[%s13 + $0x90] sm:$0xf]
      %v2648 = vld [vmem:[%s13 + $0x94] sm:$0xf]
      %v2649 = vld [vmem:[%s13 + $0x98] sm:$0xf]
      %v2650 = vld [vmem:[%s13 + $0x9c] sm:$0xf]
      %v2651 = vld [vmem:[%s13 + $0xa0] sm:$0xf]
      %v2652 = vld [vmem:[%s13 + $0xa4] sm:$0xf]
      %v2653 = vld [vmem:[%s13 + $0xa8] sm:$0xf]
      %v2654 = vld [vmem:[%s13 + $0xac] sm:$0xf]
      %v2655 = vld [vmem:[%s13 + $0xb0] sm:$0xf]
      %v2656 = vld [vmem:[%s13 + $0xb4] sm:$0xf]
      %v2657 = vld [vmem:[%s13 + $0xb8] sm:$0xf]
      %v2658 = vld [vmem:[%s13 + $0xbc] sm:$0xf]
      %v2659 = vld [vmem:[%s13 + $0xc0] sm:$0xf]
      %v2660 = vld [vmem:[%s13 + $0xc4] sm:$0xf]
      %v2661 = vld [vmem:[%s13 + $0xc8] sm:$0xf]
      %v2662 = vld [vmem:[%s13 + $0xcc] sm:$0xf]
      %v2663 = vld [vmem:[%s13 + $0xd0] sm:$0xf]
      %v2664 = vld [vmem:[%s13 + $0xd4] sm:$0xf]
      %v2665 = vld [vmem:[%s13 + $0xd8] sm:$0xf]
      %v2666 = vld [vmem:[%s13 + $0xdc] sm:$0xf]
      %v2667 = vld [vmem:[%s13 + $0xe0] sm:$0xf]
      %v2668 = vld [vmem:[%s13 + $0xe4] sm:$0xf]
      %v2669 = vld [vmem:[%s13 + $0xe8] sm:$0xf]
      %v2670 = vld [vmem:[%s13 + $0xec] sm:$0xf]
      %v2671 = vld [vmem:[%s13 + $0xf0] sm:$0xf]
      %v2672 = vld [vmem:[%s13 + $0xf4] sm:$0xf]
      %v2673 = vld [vmem:[%s13 + $0xf8] sm:$0xf]
      %v2674 = vld [vmem:[%s13 + $0xfc] sm:$0xf]
      %v2675 = vld [vmem:[%s13 + $0x100] sm:$0xf]
      %v2676 = vld [vmem:[%s13 + $0x104] sm:$0xf]
      %v2677 = vld [vmem:[%s13 + $0x108] sm:$0xf]
      %v2678 = vld [vmem:[%s13 + $0x10c] sm:$0xf]
      %v2679 = vld [vmem:[%s13 + $0x110] sm:$0xf]
      %v2680 = vld [vmem:[%s13 + $0x114] sm:$0xf]
      %v2681 = vld [vmem:[%s13 + $0x118] sm:$0xf]
      %v2682 = vld [vmem:[%s13 + $0x11c] sm:$0xf]
      %v2683 = vld [vmem:[%s13 + $0x120] sm:$0xf]
      %v2684 = vld [vmem:[%s13 + $0x124] sm:$0xf]
      %v2685 = vld [vmem:[%s13 + $0x128] sm:$0xf]
      %v2686 = vld [vmem:[%s13 + $0x12c] sm:$0xf]
      %v2687 = vld [vmem:[%s13 + $0x130] sm:$0xf]
      %v2688 = vld [vmem:[%s13 + $0x134] sm:$0xf]
      %v2689 = vld [vmem:[%s13 + $0x138] sm:$0xf]
      %v2690 = vld [vmem:[%s13 + $0x13c] sm:$0xf]
      %v2691 = vld [vmem:[%s13 + $0x140] sm:$0xf]
      %v2692 = vld [vmem:[%s13 + $0x144] sm:$0xf]
      %v2693 = vld [vmem:[%s13 + $0x148] sm:$0xf]
      %v2694 = vld [vmem:[%s13 + $0x14c] sm:$0xf]
      %v2695 = vld [vmem:[%s13 + $0x150] sm:$0xf]
      %v2696 = vld [vmem:[%s13 + $0x154] sm:$0xf]
      %v2697 = vld [vmem:[%s13 + $0x158] sm:$0xf]
      %v2698 = vld [vmem:[%s13 + $0x15c] sm:$0xf]
      %v2699 = vld [vmem:[%s13 + $0x160] sm:$0xf]
      %v2700 = vld [vmem:[%s13 + $0x164] sm:$0xf]
      %v2701 = vld [vmem:[%s13 + $0x168] sm:$0xf]
      %v2702 = vld [vmem:[%s13 + $0x16c] sm:$0xf]
      %v2703 = vld [vmem:[%s13 + $0x170] sm:$0xf]
      %v2704 = vld [vmem:[%s13 + $0x174] sm:$0xf]
      %v2705 = vld [vmem:[%s13 + $0x178] sm:$0xf]
      %v2706 = vld [vmem:[%s13 + $0x17c] sm:$0xf]
      %v2707 = vld [vmem:[%s13 + $0x180] sm:$0xf]
      %v2708 = vld [vmem:[%s13 + $0x184] sm:$0xf]
      %v2709 = vld [vmem:[%s13 + $0x188] sm:$0xf]
      %v2710 = vld [vmem:[%s13 + $0x18c] sm:$0xf]
      %v2711 = vld [vmem:[%s13 + $0x190] sm:$0xf]
      %v2712 = vld [vmem:[%s13 + $0x194] sm:$0xf]
      %v2713 = vld [vmem:[%s13 + $0x198] sm:$0xf]
      %v2714 = vld [vmem:[%s13 + $0x19c] sm:$0xf]
      %v2715 = vld [vmem:[%s13 + $0x1a0] sm:$0xf]
      %v2716 = vld [vmem:[%s13 + $0x1a4] sm:$0xf]
      %v2717 = vld [vmem:[%s13 + $0x1a8] sm:$0xf]
      %v2718 = vld [vmem:[%s13 + $0x1ac] sm:$0xf]
      %v2719 = vld [vmem:[%s13 + $0x1b0] sm:$0xf]
      %v2720 = vld [vmem:[%s13 + $0x1b4] sm:$0xf]
      %v2721 = vld [vmem:[%s13 + $0x1b8] sm:$0xf]
      %v2722 = vld [vmem:[%s13 + $0x1bc] sm:$0xf]
      %v2723 = vld [vmem:[%s13 + $0x1c0] sm:$0xf]
      %v2724 = vld [vmem:[%s13 + $0x1c4] sm:$0xf]
      %v2725 = vld [vmem:[%s13 + $0x1c8] sm:$0xf]
      %v2726 = vld [vmem:[%s13 + $0x1cc] sm:$0xf]
      %v2727 = vld [vmem:[%s13 + $0x1d0] sm:$0xf]
      %v2728 = vld [vmem:[%s13 + $0x1d4] sm:$0xf]
      %v2729 = vld [vmem:[%s13 + $0x1d8] sm:$0xf]
      %v2730 = vld [vmem:[%s13 + $0x1dc] sm:$0xf]
      %v2731 = vld [vmem:[%s13 + $0x1e0] sm:$0xf]
      %v2732 = vld [vmem:[%s13 + $0x1e4] sm:$0xf]
      %v2733 = vld [vmem:[%s13 + $0x1e8] sm:$0xf]
      %v2734 = vld [vmem:[%s13 + $0x1ec] sm:$0xf]
      %v2735 = vld [vmem:[%s13 + $0x1f0] sm:$0xf]
      %v2736 = vld [vmem:[%s13 + $0x1f4] sm:$0xf]
      %v2737 = vld [vmem:[%s13 + $0x1f8] sm:$0xf]
      %v2738 = vld [vmem:[%s13 + $0x1fc] sm:$0xf]
      %v2739 = vld [vmem:[%s13 + $0x200] sm:$0xf]
      %v2740 = vld [vmem:[%s13 + $0x204] sm:$0xf]
      %v2741 = vld [vmem:[%s13 + $0x208] sm:$0xf]
      %v2742 = vld [vmem:[%s13 + $0x20c] sm:$0xf]
      %v2743 = vld [vmem:[%s13 + $0x210] sm:$0xf]
      %v2744 = vld [vmem:[%s13 + $0x214] sm:$0xf]
      %v2745 = vld [vmem:[%s13 + $0x218] sm:$0xf]
      %v2746 = vld [vmem:[%s13 + $0x21c] sm:$0xf]
      %v2747 = vld [vmem:[%s13 + $0x220] sm:$0xf]
      %v2748 = vld [vmem:[%s13 + $0x224] sm:$0xf]
      %v2749 = vld [vmem:[%s13 + $0x228] sm:$0xf]
      %v2750 = vld [vmem:[%s13 + $0x22c] sm:$0xf]
      %v2751 = vld [vmem:[%s13 + $0x230] sm:$0xf]
      %v2752 = vld [vmem:[%s13 + $0x234] sm:$0xf]
      %v2753 = vld [vmem:[%s13 + $0x238] sm:$0xf]
      %v2754 = vld [vmem:[%s13 + $0x23c] sm:$0xf]
      %v2755 = vld [vmem:[%s13 + $0x240] sm:$0xf]
      %v2756 = vld [vmem:[%s13 + $0x244] sm:$0xf]
      %v2757 = vld [vmem:[%s13 + $0x248] sm:$0xf]
      %v2758 = vld [vmem:[%s13 + $0x24c] sm:$0xf]
      %v2759 = vld [vmem:[%s13 + $0x250] sm:$0xf]
      %v2760 = vld [vmem:[%s13 + $0x254] sm:$0xf]
      %v2761 = vld [vmem:[%s13 + $0x258] sm:$0xf]
      %v2762 = vld [vmem:[%s13 + $0x25c] sm:$0xf]
      %v2763 = vld [vmem:[%s13 + $0x260] sm:$0xf]
      %v2764 = vld [vmem:[%s13 + $0x264] sm:$0xf]
      %v2765 = vld [vmem:[%s13 + $0x268] sm:$0xf]
      %v2766 = vld [vmem:[%s13 + $0x26c] sm:$0xf]
      %v2767 = vld [vmem:[%s13 + $0x270] sm:$0xf]
      %v2768 = vld [vmem:[%s13 + $0x274] sm:$0xf]
      %v2769 = vld [vmem:[%s13 + $0x278] sm:$0xf]
      %v2770 = vld [vmem:[%s13 + $0x27c] sm:$0xf]
      %v2771 = vld [vmem:[%s13 + $0x280] sm:$0xf]
      %v2772 = vld [vmem:[%s13 + $0x284] sm:$0xf]
      %v2773 = vld [vmem:[%s13 + $0x288] sm:$0xf]
      %v2774 = vld [vmem:[%s13 + $0x28c] sm:$0xf]
      %v2775 = vld [vmem:[%s13 + $0x290] sm:$0xf]
      %v2776 = vld [vmem:[%s13 + $0x294] sm:$0xf]
      %v2777 = vld [vmem:[%s13 + $0x298] sm:$0xf]
      %v2778 = vld [vmem:[%s13 + $0x29c] sm:$0xf]
      %v2779 = vld [vmem:[%s13 + $0x2a0] sm:$0xf]
      %v2780 = vld [vmem:[%s13 + $0x2a4] sm:$0xf]
      %v2781 = vld [vmem:[%s13 + $0x2a8] sm:$0xf]
      %v2782 = vld [vmem:[%s13 + $0x2ac] sm:$0xf]
      %v2783 = vld [vmem:[%s13 + $0x2b0] sm:$0xf]
      %v2784 = vld [vmem:[%s13 + $0x2b4] sm:$0xf]
      %v2785 = vld [vmem:[%s13 + $0x2b8] sm:$0xf]
      %v2786 = vld [vmem:[%s13 + $0x2bc] sm:$0xf]
      %v2787 = vld [vmem:[%s13 + $0x2c0] sm:$0xf]
      %v2788 = vld [vmem:[%s13 + $0x2c4] sm:$0xf]
      %v2789 = vld [vmem:[%s13 + $0x2c8] sm:$0xf]
      %v2790 = vld [vmem:[%s13 + $0x2cc] sm:$0xf]
      %v2791 = vld [vmem:[%s13 + $0x2d0] sm:$0xf]
      %v2792 = vld [vmem:[%s13 + $0x2d4] sm:$0xf]
      %v2793 = vld [vmem:[%s13 + $0x2d8] sm:$0xf]
      %v2794 = vld [vmem:[%s13 + $0x2dc] sm:$0xf]
      %v2795 = vld [vmem:[%s13 + $0x2e0] sm:$0xf]
      %v2796 = vld [vmem:[%s13 + $0x2e4] sm:$0xf]
      %v2797 = vld [vmem:[%s13 + $0x2e8] sm:$0xf]
      %v2798 = vld [vmem:[%s13 + $0x2ec] sm:$0xf]
      %v2799 = vld [vmem:[%s13 + $0x2f0] sm:$0xf]
      %v2800 = vld [vmem:[%s13 + $0x2f4] sm:$0xf]
      %v2801 = vld [vmem:[%s13 + $0x2f8] sm:$0xf]
      %v2802 = vld [vmem:[%s13 + $0x2fc] sm:$0xf]
      %v2803 = vld [vmem:[%s13 + $0x300] sm:$0xf]
      %v2804 = vld [vmem:[%s13 + $0x304] sm:$0xf]
      %v2805 = vld [vmem:[%s13 + $0x308] sm:$0xf]
      %v2806 = vld [vmem:[%s13 + $0x30c] sm:$0xf]
      %v2807 = vld [vmem:[%s13 + $0x310] sm:$0xf]
      %v2808 = vld [vmem:[%s13 + $0x314] sm:$0xf]
      %v2809 = vld [vmem:[%s13 + $0x318] sm:$0xf]
      %v2810 = vld [vmem:[%s13 + $0x31c] sm:$0xf]
      %v2811 = vld [vmem:[%s13 + $0x320] sm:$0xf]
      %v2812 = vld [vmem:[%s13 + $0x324] sm:$0xf]
      %v2813 = vld [vmem:[%s13 + $0x328] sm:$0xf]
      %v2814 = vld [vmem:[%s13 + $0x32c] sm:$0xf]
      %v2815 = vld [vmem:[%s13 + $0x330] sm:$0xf]
      %v2816 = vld [vmem:[%s13 + $0x334] sm:$0xf]
      %v2817 = vld [vmem:[%s13 + $0x338] sm:$0xf]
      %v2818 = vld [vmem:[%s13 + $0x33c] sm:$0xf]
      %v2819 = vld [vmem:[%s13 + $0x340] sm:$0xf]
      %v2820 = vld [vmem:[%s13 + $0x344] sm:$0xf]
      %v2821 = vld [vmem:[%s13 + $0x348] sm:$0xf]
      %v2822 = vld [vmem:[%s13 + $0x34c] sm:$0xf]
      %v2823 = vld [vmem:[%s13 + $0x350] sm:$0xf]
      %v2824 = vld [vmem:[%s13 + $0x354] sm:$0xf]
      %v2825 = vld [vmem:[%s13 + $0x358] sm:$0xf]
      %v2826 = vld [vmem:[%s13 + $0x35c] sm:$0xf]
      %v2827 = vld [vmem:[%s13 + $0x360] sm:$0xf]
      %v2828 = vld [vmem:[%s13 + $0x364] sm:$0xf]
      %v2829 = vld [vmem:[%s13 + $0x368] sm:$0xf]
      %v2830 = vld [vmem:[%s13 + $0x36c] sm:$0xf]
      %v2831 = vld [vmem:[%s13 + $0x370] sm:$0xf]
      %v2832 = vld [vmem:[%s13 + $0x374] sm:$0xf]
      %v2833 = vld [vmem:[%s13 + $0x378] sm:$0xf]
      %v2834 = vld [vmem:[%s13 + $0x37c] sm:$0xf]
      %v2835 = vld [vmem:[%s13 + $0x380] sm:$0xf]
      %v2836 = vld [vmem:[%s13 + $0x384] sm:$0xf]
      %v2837 = vld [vmem:[%s13 + $0x388] sm:$0xf]
      %v2838 = vld [vmem:[%s13 + $0x38c] sm:$0xf]
      %v2839 = vld [vmem:[%s13 + $0x390] sm:$0xf]
      %v2840 = vld [vmem:[%s13 + $0x394] sm:$0xf]
      %v2841 = vld [vmem:[%s13 + $0x398] sm:$0xf]
      %v2842 = vld [vmem:[%s13 + $0x39c] sm:$0xf]
      %v2843 = vld [vmem:[%s13 + $0x3a0] sm:$0xf]
      %v2844 = vld [vmem:[%s13 + $0x3a4] sm:$0xf]
      %v2845 = vld [vmem:[%s13 + $0x3a8] sm:$0xf]
      %v2846 = vld [vmem:[%s13 + $0x3ac] sm:$0xf]
      %v2847 = vld [vmem:[%s13 + $0x3b0] sm:$0xf]
      %v2848 = vld [vmem:[%s13 + $0x3b4] sm:$0xf]
      %v2849 = vld [vmem:[%s13 + $0x3b8] sm:$0xf]
      %v2850 = vld [vmem:[%s13 + $0x3bc] sm:$0xf]
      %v2851 = vld [vmem:[%s13 + $0x3c0] sm:$0xf]
      %v2852 = vld [vmem:[%s13 + $0x3c4] sm:$0xf]
      %v2853 = vld [vmem:[%s13 + $0x3c8] sm:$0xf]
      %v2854 = vld [vmem:[%s13 + $0x3cc] sm:$0xf]
      %v2855 = vld [vmem:[%s13 + $0x3d0] sm:$0xf]
      %v2856 = vld [vmem:[%s13 + $0x3d4] sm:$0xf]
      %v2857 = vld [vmem:[%s13 + $0x3d8] sm:$0xf]
      %v2858 = vld [vmem:[%s13 + $0x3dc] sm:$0xf]
      %v2859 = vld [vmem:[%s13 + $0x3e0] sm:$0xf]
      %v2860 = vld [vmem:[%s13 + $0x3e4] sm:$0xf]
      %v2861 = vld [vmem:[%s13 + $0x3e8] sm:$0xf]
      %v2862 = vld [vmem:[%s13 + $0x3ec] sm:$0xf]
      %v2863 = vld [vmem:[%s13 + $0x3f0] sm:$0xf]
      %v2864 = vld [vmem:[%s13 + $0x3f4] sm:$0xf]
      %v2865 = vld [vmem:[%s13 + $0x3f8] sm:$0xf]
      %v2866 = vld [vmem:[%s13 + $0x3fc] sm:$0xf]
      %v2867 = vld [vmem:[%s14] sm:$0x1]
      %v2869 = vperm.slane %v2867, 0
      %v3127 = vunpack.c.l.b16 %v2611
      %v3128 = vunpack.c.l.b16 %v2612
      %v3129 = vunpack.c.l.b16 %v2613
      %v3130 = vunpack.c.l.b16 %v2614
      %v3131 = vunpack.c.l.b16 %v2615
      %v3132 = vunpack.c.l.b16 %v2616
      %v3133 = vunpack.c.l.b16 %v2617
      %v3134 = vunpack.c.l.b16 %v2618
      %v3135 = vunpack.c.l.b16 %v2619
      %v3136 = vunpack.c.l.b16 %v2620
      %v3137 = vunpack.c.l.b16 %v2621
      %v3138 = vunpack.c.l.b16 %v2622
      %v3139 = vunpack.c.l.b16 %v2623
      %v3140 = vunpack.c.l.b16 %v2624
      %v3141 = vunpack.c.l.b16 %v2625
      %v3142 = vunpack.c.l.b16 %v2626
      %v3143 = vunpack.c.l.b16 %v2627
      %v3144 = vunpack.c.l.b16 %v2628
      %v3145 = vunpack.c.l.b16 %v2629
      %v3146 = vunpack.c.l.b16 %v2630
      %v3147 = vunpack.c.l.b16 %v2631
      %v3148 = vunpack.c.l.b16 %v2632
      %v3149 = vunpack.c.l.b16 %v2633
      %v3150 = vunpack.c.l.b16 %v2634
      %v3151 = vunpack.c.l.b16 %v2635
      %v3152 = vunpack.c.l.b16 %v2636
      %v3153 = vunpack.c.l.b16 %v2637
      %v3154 = vunpack.c.l.b16 %v2638
      %v3155 = vunpack.c.l.b16 %v2639
      %v3156 = vunpack.c.l.b16 %v2640
      %v3157 = vunpack.c.l.b16 %v2641
      %v3158 = vunpack.c.l.b16 %v2642
      %v3159 = vunpack.c.l.b16 %v2643
      %v3160 = vunpack.c.l.b16 %v2644
      %v3161 = vunpack.c.l.b16 %v2645
      %v3162 = vunpack.c.l.b16 %v2646
      %v3163 = vunpack.c.l.b16 %v2647
      %v3164 = vunpack.c.l.b16 %v2648
      %v3165 = vunpack.c.l.b16 %v2649
      %v3166 = vunpack.c.l.b16 %v2650
      %v3167 = vunpack.c.l.b16 %v2651
      %v3168 = vunpack.c.l.b16 %v2652
      %v3169 = vunpack.c.l.b16 %v2653
      %v3170 = vunpack.c.l.b16 %v2654
      %v3171 = vunpack.c.l.b16 %v2655
      %v3172 = vunpack.c.l.b16 %v2656
      %v3173 = vunpack.c.l.b16 %v2657
      %v3174 = vunpack.c.l.b16 %v2658
      %v3175 = vunpack.c.l.b16 %v2659
      %v3176 = vunpack.c.l.b16 %v2660
      %v3177 = vunpack.c.l.b16 %v2661
      %v3178 = vunpack.c.l.b16 %v2662
      %v3179 = vunpack.c.l.b16 %v2663
      %v3180 = vunpack.c.l.b16 %v2664
      %v3181 = vunpack.c.l.b16 %v2665
      %v3182 = vunpack.c.l.b16 %v2666
      %v3183 = vunpack.c.l.b16 %v2667
      %v3184 = vunpack.c.l.b16 %v2668
      %v3185 = vunpack.c.l.b16 %v2669
      %v3186 = vunpack.c.l.b16 %v2670
      %v3187 = vunpack.c.l.b16 %v2671
      %v3188 = vunpack.c.l.b16 %v2672
      %v3189 = vunpack.c.l.b16 %v2673
      %v3190 = vunpack.c.l.b16 %v2674
      %v3191 = vunpack.c.l.b16 %v2675
      %v3192 = vunpack.c.l.b16 %v2676
      %v3193 = vunpack.c.l.b16 %v2677
      %v3194 = vunpack.c.l.b16 %v2678
      %v3195 = vunpack.c.l.b16 %v2679
      %v3196 = vunpack.c.l.b16 %v2680
      %v3197 = vunpack.c.l.b16 %v2681
      %v3198 = vunpack.c.l.b16 %v2682
      %v3199 = vunpack.c.l.b16 %v2683
      %v3200 = vunpack.c.l.b16 %v2684
      %v3201 = vunpack.c.l.b16 %v2685
      %v3202 = vunpack.c.l.b16 %v2686
      %v3203 = vunpack.c.l.b16 %v2687
      %v3204 = vunpack.c.l.b16 %v2688
      %v3205 = vunpack.c.l.b16 %v2689
      %v3206 = vunpack.c.l.b16 %v2690
      %v3207 = vunpack.c.l.b16 %v2691
      %v3208 = vunpack.c.l.b16 %v2692
      %v3209 = vunpack.c.l.b16 %v2693
      %v3210 = vunpack.c.l.b16 %v2694
      %v3211 = vunpack.c.l.b16 %v2695
      %v3212 = vunpack.c.l.b16 %v2696
      %v3213 = vunpack.c.l.b16 %v2697
      %v3214 = vunpack.c.l.b16 %v2698
      %v3215 = vunpack.c.l.b16 %v2699
      %v3216 = vunpack.c.l.b16 %v2700
      %v3217 = vunpack.c.l.b16 %v2701
      %v3218 = vunpack.c.l.b16 %v2702
      %v3219 = vunpack.c.l.b16 %v2703
      %v3220 = vunpack.c.l.b16 %v2704
      %v3221 = vunpack.c.l.b16 %v2705
      %v3222 = vunpack.c.l.b16 %v2706
      %v3223 = vunpack.c.l.b16 %v2707
      %v3224 = vunpack.c.l.b16 %v2708
      %v3225 = vunpack.c.l.b16 %v2709
      %v3226 = vunpack.c.l.b16 %v2710
      %v3227 = vunpack.c.l.b16 %v2711
      %v3228 = vunpack.c.l.b16 %v2712
      %v3229 = vunpack.c.l.b16 %v2713
      %v3230 = vunpack.c.l.b16 %v2714
      %v3231 = vunpack.c.l.b16 %v2715
      %v3232 = vunpack.c.l.b16 %v2716
      %v3233 = vunpack.c.l.b16 %v2717
      %v3234 = vunpack.c.l.b16 %v2718
      %v3235 = vunpack.c.l.b16 %v2719
      %v3236 = vunpack.c.l.b16 %v2720
      %v3237 = vunpack.c.l.b16 %v2721
      %v3238 = vunpack.c.l.b16 %v2722
      %v3239 = vunpack.c.l.b16 %v2723
      %v3240 = vunpack.c.l.b16 %v2724
      %v3241 = vunpack.c.l.b16 %v2725
      %v3242 = vunpack.c.l.b16 %v2726
      %v3243 = vunpack.c.l.b16 %v2727
      %v3244 = vunpack.c.l.b16 %v2728
      %v3245 = vunpack.c.l.b16 %v2729
      %v3246 = vunpack.c.l.b16 %v2730
      %v3247 = vunpack.c.l.b16 %v2731
      %v3248 = vunpack.c.l.b16 %v2732
      %v3249 = vunpack.c.l.b16 %v2733
      %v3250 = vunpack.c.l.b16 %v2734
      %v3251 = vunpack.c.l.b16 %v2735
      %v3252 = vunpack.c.l.b16 %v2736
      %v3253 = vunpack.c.l.b16 %v2737
      %v3254 = vunpack.c.l.b16 %v2738
      %v3255 = vunpack.c.l.b16 %v2739
      %v3256 = vunpack.c.l.b16 %v2740
      %v3257 = vunpack.c.l.b16 %v2741
      %v3258 = vunpack.c.l.b16 %v2742
      %v3259 = vunpack.c.l.b16 %v2743
      %v3260 = vunpack.c.l.b16 %v2744
      %v3261 = vunpack.c.l.b16 %v2745
      %v3262 = vunpack.c.l.b16 %v2746
      %v3263 = vunpack.c.l.b16 %v2747
      %v3264 = vunpack.c.l.b16 %v2748
      %v3265 = vunpack.c.l.b16 %v2749
      %v3266 = vunpack.c.l.b16 %v2750
      %v3267 = vunpack.c.l.b16 %v2751
      %v3268 = vunpack.c.l.b16 %v2752
      %v3269 = vunpack.c.l.b16 %v2753
      %v3270 = vunpack.c.l.b16 %v2754
      %v3271 = vunpack.c.l.b16 %v2755
      %v3272 = vunpack.c.l.b16 %v2756
      %v3273 = vunpack.c.l.b16 %v2757
      %v3274 = vunpack.c.l.b16 %v2758
      %v3275 = vunpack.c.l.b16 %v2759
      %v3276 = vunpack.c.l.b16 %v2760
      %v3277 = vunpack.c.l.b16 %v2761
      %v3278 = vunpack.c.l.b16 %v2762
      %v3279 = vunpack.c.l.b16 %v2763
      %v3280 = vunpack.c.l.b16 %v2764
      %v3281 = vunpack.c.l.b16 %v2765
      %v3282 = vunpack.c.l.b16 %v2766
      %v3283 = vunpack.c.l.b16 %v2767
      %v3284 = vunpack.c.l.b16 %v2768
      %v3285 = vunpack.c.l.b16 %v2769
      %v3286 = vunpack.c.l.b16 %v2770
      %v3287 = vunpack.c.l.b16 %v2771
      %v3288 = vunpack.c.l.b16 %v2772
      %v3289 = vunpack.c.l.b16 %v2773
      %v3290 = vunpack.c.l.b16 %v2774
      %v3291 = vunpack.c.l.b16 %v2775
      %v3292 = vunpack.c.l.b16 %v2776
      %v3293 = vunpack.c.l.b16 %v2777
      %v3294 = vunpack.c.l.b16 %v2778
      %v3295 = vunpack.c.l.b16 %v2779
      %v3296 = vunpack.c.l.b16 %v2780
      %v3297 = vunpack.c.l.b16 %v2781
      %v3298 = vunpack.c.l.b16 %v2782
      %v3299 = vunpack.c.l.b16 %v2783
      %v3300 = vunpack.c.l.b16 %v2784
      %v3301 = vunpack.c.l.b16 %v2785
      %v3302 = vunpack.c.l.b16 %v2786
      %v3303 = vunpack.c.l.b16 %v2787
      %v3304 = vunpack.c.l.b16 %v2788
      %v3305 = vunpack.c.l.b16 %v2789
      %v3306 = vunpack.c.l.b16 %v2790
      %v3307 = vunpack.c.l.b16 %v2791
      %v3308 = vunpack.c.l.b16 %v2792
      %v3309 = vunpack.c.l.b16 %v2793
      %v3310 = vunpack.c.l.b16 %v2794
      %v3311 = vunpack.c.l.b16 %v2795
      %v3312 = vunpack.c.l.b16 %v2796
      %v3313 = vunpack.c.l.b16 %v2797
      %v3314 = vunpack.c.l.b16 %v2798
      %v3315 = vunpack.c.l.b16 %v2799
      %v3316 = vunpack.c.l.b16 %v2800
      %v3317 = vunpack.c.l.b16 %v2801
      %v3318 = vunpack.c.l.b16 %v2802
      %v3319 = vunpack.c.l.b16 %v2803
      %v3320 = vunpack.c.l.b16 %v2804
      %v3321 = vunpack.c.l.b16 %v2805
      %v3322 = vunpack.c.l.b16 %v2806
      %v3323 = vunpack.c.l.b16 %v2807
      %v3324 = vunpack.c.l.b16 %v2808
      %v3325 = vunpack.c.l.b16 %v2809
      %v3326 = vunpack.c.l.b16 %v2810
      %v3327 = vunpack.c.l.b16 %v2811
      %v3328 = vunpack.c.l.b16 %v2812
      %v3329 = vunpack.c.l.b16 %v2813
      %v3330 = vunpack.c.l.b16 %v2814
      %v3331 = vunpack.c.l.b16 %v2815
      %v3332 = vunpack.c.l.b16 %v2816
      %v3333 = vunpack.c.l.b16 %v2817
      %v3334 = vunpack.c.l.b16 %v2818
      %v3335 = vunpack.c.l.b16 %v2819
      %v3336 = vunpack.c.l.b16 %v2820
      %v3337 = vunpack.c.l.b16 %v2821
      %v3338 = vunpack.c.l.b16 %v2822
      %v3339 = vunpack.c.l.b16 %v2823
      %v3340 = vunpack.c.l.b16 %v2824
      %v3341 = vunpack.c.l.b16 %v2825
      %v3342 = vunpack.c.l.b16 %v2826
      %v3343 = vunpack.c.l.b16 %v2827
      %v3344 = vunpack.c.l.b16 %v2828
      %v3345 = vunpack.c.l.b16 %v2829
      %v3346 = vunpack.c.l.b16 %v2830
      %v3347 = vunpack.c.l.b16 %v2831
      %v3348 = vunpack.c.l.b16 %v2832
      %v3349 = vunpack.c.l.b16 %v2833
      %v3350 = vunpack.c.l.b16 %v2834
      %v3351 = vunpack.c.l.b16 %v2835
      %v3352 = vunpack.c.l.b16 %v2836
      %v3353 = vunpack.c.l.b16 %v2837
      %v3354 = vunpack.c.l.b16 %v2838
      %v3355 = vunpack.c.l.b16 %v2839
      %v3356 = vunpack.c.l.b16 %v2840
      %v3357 = vunpack.c.l.b16 %v2841
      %v3358 = vunpack.c.l.b16 %v2842
      %v3359 = vunpack.c.l.b16 %v2843
      %v3360 = vunpack.c.l.b16 %v2844
      %v3361 = vunpack.c.l.b16 %v2845
      %v3362 = vunpack.c.l.b16 %v2846
      %v3363 = vunpack.c.l.b16 %v2847
      %v3364 = vunpack.c.l.b16 %v2848
      %v3365 = vunpack.c.l.b16 %v2849
      %v3366 = vunpack.c.l.b16 %v2850
      %v3367 = vunpack.c.l.b16 %v2851
      %v3368 = vunpack.c.l.b16 %v2852
      %v3369 = vunpack.c.l.b16 %v2853
      %v3370 = vunpack.c.l.b16 %v2854
      %v3371 = vunpack.c.l.b16 %v2855
      %v3372 = vunpack.c.l.b16 %v2856
      %v3373 = vunpack.c.l.b16 %v2857
      %v3374 = vunpack.c.l.b16 %v2858
      %v3375 = vunpack.c.l.b16 %v2859
      %v3376 = vunpack.c.l.b16 %v2860
      %v3377 = vunpack.c.l.b16 %v2861
      %v3378 = vunpack.c.l.b16 %v2862
      %v3379 = vunpack.c.l.b16 %v2863
      %v3380 = vunpack.c.l.b16 %v2864
      %v3381 = vunpack.c.l.b16 %v2865
      %v3382 = vunpack.c.l.b16 %v2866
      %v3383 = vpack.c.b16 %v3128, %v3127
      %v3384 = vpack.c.b16 %v3130, %v3129
      %v3385 = vpack.c.b16 %v3132, %v3131
      %v3386 = vpack.c.b16 %v3134, %v3133
      %v3387 = vpack.c.b16 %v3136, %v3135
      %v3388 = vpack.c.b16 %v3138, %v3137
      %v3389 = vpack.c.b16 %v3140, %v3139
      %v3390 = vpack.c.b16 %v3142, %v3141
      %v3391 = vpack.c.b16 %v3144, %v3143
      %v3392 = vpack.c.b16 %v3146, %v3145
      %v3393 = vpack.c.b16 %v3148, %v3147
      %v3394 = vpack.c.b16 %v3150, %v3149
      %v3395 = vpack.c.b16 %v3152, %v3151
      %v3396 = vpack.c.b16 %v3154, %v3153
      %v3397 = vpack.c.b16 %v3156, %v3155
      %v3398 = vpack.c.b16 %v3158, %v3157
      %v3399 = vpack.c.b16 %v3160, %v3159
      %v3400 = vpack.c.b16 %v3162, %v3161
      %v3401 = vpack.c.b16 %v3164, %v3163
      %v3402 = vpack.c.b16 %v3166, %v3165
      %v3403 = vpack.c.b16 %v3168, %v3167
      %v3404 = vpack.c.b16 %v3170, %v3169
      %v3405 = vpack.c.b16 %v3172, %v3171
      %v3406 = vpack.c.b16 %v3174, %v3173
      %v3407 = vpack.c.b16 %v3176, %v3175
      %v3408 = vpack.c.b16 %v3178, %v3177
      %v3409 = vpack.c.b16 %v3180, %v3179
      %v3410 = vpack.c.b16 %v3182, %v3181
      %v3411 = vpack.c.b16 %v3184, %v3183
      %v3412 = vpack.c.b16 %v3186, %v3185
      %v3413 = vpack.c.b16 %v3188, %v3187
      %v3414 = vpack.c.b16 %v3190, %v3189
      %v3415 = vpack.c.b16 %v3192, %v3191
      %v3416 = vpack.c.b16 %v3194, %v3193
      %v3417 = vpack.c.b16 %v3196, %v3195
      %v3418 = vpack.c.b16 %v3198, %v3197
      %v3419 = vpack.c.b16 %v3200, %v3199
      %v3420 = vpack.c.b16 %v3202, %v3201
      %v3421 = vpack.c.b16 %v3204, %v3203
      %v3422 = vpack.c.b16 %v3206, %v3205
      %v3423 = vpack.c.b16 %v3208, %v3207
      %v3424 = vpack.c.b16 %v3210, %v3209
      %v3425 = vpack.c.b16 %v3212, %v3211
      %v3426 = vpack.c.b16 %v3214, %v3213
      %v3427 = vpack.c.b16 %v3216, %v3215
      %v3428 = vpack.c.b16 %v3218, %v3217
      %v3429 = vpack.c.b16 %v3220, %v3219
      %v3430 = vpack.c.b16 %v3222, %v3221
      %v3431 = vpack.c.b16 %v3224, %v3223
      %v3432 = vpack.c.b16 %v3226, %v3225
      %v3433 = vpack.c.b16 %v3228, %v3227
      %v3434 = vpack.c.b16 %v3230, %v3229
      %v3435 = vpack.c.b16 %v3232, %v3231
      %v3436 = vpack.c.b16 %v3234, %v3233
      %v3437 = vpack.c.b16 %v3236, %v3235
      %v3438 = vpack.c.b16 %v3238, %v3237
      %v3439 = vpack.c.b16 %v3240, %v3239
      %v3440 = vpack.c.b16 %v3242, %v3241
      %v3441 = vpack.c.b16 %v3244, %v3243
      %v3442 = vpack.c.b16 %v3246, %v3245
      %v3443 = vpack.c.b16 %v3248, %v3247
      %v3444 = vpack.c.b16 %v3250, %v3249
      %v3445 = vpack.c.b16 %v3252, %v3251
      %v3446 = vpack.c.b16 %v3254, %v3253
      %v3447 = vpack.c.b16 %v3256, %v3255
      %v3448 = vpack.c.b16 %v3258, %v3257
      %v3449 = vpack.c.b16 %v3260, %v3259
      %v3450 = vpack.c.b16 %v3262, %v3261
      %v3451 = vpack.c.b16 %v3264, %v3263
      %v3452 = vpack.c.b16 %v3266, %v3265
      %v3453 = vpack.c.b16 %v3268, %v3267
      %v3454 = vpack.c.b16 %v3270, %v3269
      %v3455 = vpack.c.b16 %v3272, %v3271
      %v3456 = vpack.c.b16 %v3274, %v3273
      %v3457 = vpack.c.b16 %v3276, %v3275
      %v3458 = vpack.c.b16 %v3278, %v3277
      %v3459 = vpack.c.b16 %v3280, %v3279
      %v3460 = vpack.c.b16 %v3282, %v3281
      %v3461 = vpack.c.b16 %v3284, %v3283
      %v3462 = vpack.c.b16 %v3286, %v3285
      %v3463 = vpack.c.b16 %v3288, %v3287
      %v3464 = vpack.c.b16 %v3290, %v3289
      %v3465 = vpack.c.b16 %v3292, %v3291
      %v3466 = vpack.c.b16 %v3294, %v3293
      %v3467 = vpack.c.b16 %v3296, %v3295
      %v3468 = vpack.c.b16 %v3298, %v3297
      %v3469 = vpack.c.b16 %v3300, %v3299
      %v3470 = vpack.c.b16 %v3302, %v3301
      %v3471 = vpack.c.b16 %v3304, %v3303
      %v3472 = vpack.c.b16 %v3306, %v3305
      %v3473 = vpack.c.b16 %v3308, %v3307
      %v3474 = vpack.c.b16 %v3310, %v3309
      %v3475 = vpack.c.b16 %v3312, %v3311
      %v3476 = vpack.c.b16 %v3314, %v3313
      %v3477 = vpack.c.b16 %v3316, %v3315
      %v3478 = vpack.c.b16 %v3318, %v3317
      %v3479 = vpack.c.b16 %v3320, %v3319
      %v3480 = vpack.c.b16 %v3322, %v3321
      %v3481 = vpack.c.b16 %v3324, %v3323
      %v3482 = vpack.c.b16 %v3326, %v3325
      %v3483 = vpack.c.b16 %v3328, %v3327
      %v3484 = vpack.c.b16 %v3330, %v3329
      %v3485 = vpack.c.b16 %v3332, %v3331
      %v3486 = vpack.c.b16 %v3334, %v3333
      %v3487 = vpack.c.b16 %v3336, %v3335
      %v3488 = vpack.c.b16 %v3338, %v3337
      %v3489 = vpack.c.b16 %v3340, %v3339
      %v3490 = vpack.c.b16 %v3342, %v3341
      %v3491 = vpack.c.b16 %v3344, %v3343
      %v3492 = vpack.c.b16 %v3346, %v3345
      %v3493 = vpack.c.b16 %v3348, %v3347
      %v3494 = vpack.c.b16 %v3350, %v3349
      %v3495 = vpack.c.b16 %v3352, %v3351
      %v3496 = vpack.c.b16 %v3354, %v3353
      %v3497 = vpack.c.b16 %v3356, %v3355
      %v3498 = vpack.c.b16 %v3358, %v3357
      %v3499 = vpack.c.b16 %v3360, %v3359
      %v3500 = vpack.c.b16 %v3362, %v3361
      %v3501 = vpack.c.b16 %v3364, %v3363
      %v3502 = vpack.c.b16 %v3366, %v3365
      %v3503 = vpack.c.b16 %v3368, %v3367
      %v3504 = vpack.c.b16 %v3370, %v3369
      %v3505 = vpack.c.b16 %v3372, %v3371
      %v3506 = vpack.c.b16 %v3374, %v3373
      %v3507 = vpack.c.b16 %v3376, %v3375
      %v3508 = vpack.c.b16 %v3378, %v3377
      %v3509 = vpack.c.b16 %v3380, %v3379
      %v3510 = vpack.c.b16 %v3382, %v3381
      %3639 = vmatpush.bf16.msra.mxu0 %v3390
      %3640 = vmatpush.bf16.msra.mxu0 %v3389
      %3641 = vmatpush.bf16.msra.mxu0 %v3388
      %3642 = vmatpush.bf16.msra.mxu0 %v3387
      %3643 = vmatpush.bf16.msra.mxu0 %v3386
      %3644 = vmatpush.bf16.msra.mxu0 %v3385
      %3645 = vmatpush.bf16.msra.mxu0 %v3384
      %3646 = vmatpush.bf16.msra.mxu0 %v3383
      %3647 = vmatmul.bf16.gmra.mxu0 %v2595
      %v3648 = vpop.f32.mrf.mxu0
      %v3649 = vadd.f32 %v2869, %v3648
      %v3650 = vpop.f32.mrf.mxu0
      %3651 = vdwg.mxu0
      %3652 = vmatpush.bf16.msra.mxu0 %v3398
      %3653 = vmatpush.bf16.msra.mxu0 %v3397
      %3654 = vmatpush.bf16.msra.mxu0 %v3396
      %3655 = vmatpush.bf16.msra.mxu0 %v3395
      %3656 = vmatpush.bf16.msra.mxu0 %v3394
      %3657 = vmatpush.bf16.msra.mxu0 %v3393
      %3658 = vmatpush.bf16.msra.mxu0 %v3392
      %3659 = vmatpush.bf16.msra.mxu0 %v3391
      %3660 = vmatmul.bf16.gmra.mxu0 %v2596
      %v3661 = vpop.f32.mrf.mxu0
      %v3662 = vadd.f32 %v3649, %v3661
      %v3663 = vpop.f32.mrf.mxu0
      %3664 = vdwg.mxu0
      %3665 = vmatpush.bf16.msra.mxu0 %v3406
      %3666 = vmatpush.bf16.msra.mxu0 %v3405
      %3667 = vmatpush.bf16.msra.mxu0 %v3404
      %3668 = vmatpush.bf16.msra.mxu0 %v3403
      %3669 = vmatpush.bf16.msra.mxu0 %v3402
      %3670 = vmatpush.bf16.msra.mxu0 %v3401
      %3671 = vmatpush.bf16.msra.mxu0 %v3400
      %3672 = vmatpush.bf16.msra.mxu0 %v3399
      %3673 = vmatmul.bf16.gmra.mxu0 %v2597
      %v3674 = vpop.f32.mrf.mxu0
      %v3675 = vadd.f32 %v3662, %v3674
      %v3676 = vpop.f32.mrf.mxu0
      %3677 = vdwg.mxu0
      %3678 = vmatpush.bf16.msra.mxu0 %v3414
      %3679 = vmatpush.bf16.msra.mxu0 %v3413
      %3680 = vmatpush.bf16.msra.mxu0 %v3412
      %3681 = vmatpush.bf16.msra.mxu0 %v3411
      %3682 = vmatpush.bf16.msra.mxu0 %v3410
      %3683 = vmatpush.bf16.msra.mxu0 %v3409
      %3684 = vmatpush.bf16.msra.mxu0 %v3408
      %3685 = vmatpush.bf16.msra.mxu0 %v3407
      %3686 = vmatmul.bf16.gmra.mxu0 %v2598
      %v3687 = vpop.f32.mrf.mxu0
      %v3688 = vadd.f32 %v3675, %v3687
      %v3689 = vpop.f32.mrf.mxu0
      %3690 = vdwg.mxu0
      %3691 = vmatpush.bf16.msra.mxu0 %v3422
      %3692 = vmatpush.bf16.msra.mxu0 %v3421
      %3693 = vmatpush.bf16.msra.mxu0 %v3420
      %3694 = vmatpush.bf16.msra.mxu0 %v3419
      %3695 = vmatpush.bf16.msra.mxu0 %v3418
      %3696 = vmatpush.bf16.msra.mxu0 %v3417
      %3697 = vmatpush.bf16.msra.mxu0 %v3416
      %3698 = vmatpush.bf16.msra.mxu0 %v3415
      %3699 = vmatmul.bf16.gmra.mxu0 %v2599
      %v3700 = vpop.f32.mrf.mxu0
      %v3701 = vadd.f32 %v3688, %v3700
      %v3702 = vpop.f32.mrf.mxu0
      %3703 = vdwg.mxu0
      %3704 = vmatpush.bf16.msra.mxu0 %v3430
      %3705 = vmatpush.bf16.msra.mxu0 %v3429
      %3706 = vmatpush.bf16.msra.mxu0 %v3428
      %3707 = vmatpush.bf16.msra.mxu0 %v3427
      %3708 = vmatpush.bf16.msra.mxu0 %v3426
      %3709 = vmatpush.bf16.msra.mxu0 %v3425
      %3710 = vmatpush.bf16.msra.mxu0 %v3424
      %3711 = vmatpush.bf16.msra.mxu0 %v3423
      %3712 = vmatmul.bf16.gmra.mxu0 %v2600
      %v3713 = vpop.f32.mrf.mxu0
      %v3714 = vadd.f32 %v3701, %v3713
      %v3715 = vpop.f32.mrf.mxu0
      %3716 = vdwg.mxu0
      %3717 = vmatpush.bf16.msra.mxu0 %v3438
      %3718 = vmatpush.bf16.msra.mxu0 %v3437
      %3719 = vmatpush.bf16.msra.mxu0 %v3436
      %3720 = vmatpush.bf16.msra.mxu0 %v3435
      %3721 = vmatpush.bf16.msra.mxu0 %v3434
      %3722 = vmatpush.bf16.msra.mxu0 %v3433
      %3723 = vmatpush.bf16.msra.mxu0 %v3432
      %3724 = vmatpush.bf16.msra.mxu0 %v3431
      %3725 = vmatmul.bf16.gmra.mxu0 %v2601
      %v3726 = vpop.f32.mrf.mxu0
      %v3727 = vadd.f32 %v3714, %v3726
      %v3728 = vpop.f32.mrf.mxu0
      %3729 = vdwg.mxu0
      %3730 = vmatpush.bf16.msra.mxu0 %v3446
      %3731 = vmatpush.bf16.msra.mxu0 %v3445
      %3732 = vmatpush.bf16.msra.mxu0 %v3444
      %3733 = vmatpush.bf16.msra.mxu0 %v3443
      %3734 = vmatpush.bf16.msra.mxu0 %v3442
      %3735 = vmatpush.bf16.msra.mxu0 %v3441
      %3736 = vmatpush.bf16.msra.mxu0 %v3440
      %3737 = vmatpush.bf16.msra.mxu0 %v3439
      %3738 = vmatmul.bf16.gmra.mxu0 %v2602
      %v3739 = vpop.f32.mrf.mxu0
      %v3740 = vadd.f32 %v3727, %v3739
      %v3741 = vpop.f32.mrf.mxu0
      %3742 = vdwg.mxu0
      %3743 = vmatpush.bf16.msra.mxu0 %v3454
      %3744 = vmatpush.bf16.msra.mxu0 %v3453
      %3745 = vmatpush.bf16.msra.mxu0 %v3452
      %3746 = vmatpush.bf16.msra.mxu0 %v3451
      %3747 = vmatpush.bf16.msra.mxu0 %v3450
      %3748 = vmatpush.bf16.msra.mxu0 %v3449
      %3749 = vmatpush.bf16.msra.mxu0 %v3448
      %3750 = vmatpush.bf16.msra.mxu0 %v3447
      %3751 = vmatmul.bf16.gmra.mxu0 %v2603
      %v3752 = vpop.f32.mrf.mxu0
      %v3753 = vadd.f32 %v3740, %v3752
      %v3754 = vpop.f32.mrf.mxu0
      %3755 = vdwg.mxu0
      %3756 = vmatpush.bf16.msra.mxu0 %v3462
      %3757 = vmatpush.bf16.msra.mxu0 %v3461
      %3758 = vmatpush.bf16.msra.mxu0 %v3460
      %3759 = vmatpush.bf16.msra.mxu0 %v3459
      %3760 = vmatpush.bf16.msra.mxu0 %v3458
      %3761 = vmatpush.bf16.msra.mxu0 %v3457
      %3762 = vmatpush.bf16.msra.mxu0 %v3456
      %3763 = vmatpush.bf16.msra.mxu0 %v3455
      %3764 = vmatmul.bf16.gmra.mxu0 %v2604
      %v3765 = vpop.f32.mrf.mxu0
      %v3766 = vadd.f32 %v3753, %v3765
      %v3767 = vpop.f32.mrf.mxu0
      %3768 = vdwg.mxu0
      %3769 = vmatpush.bf16.msra.mxu0 %v3470
      %3770 = vmatpush.bf16.msra.mxu0 %v3469
      %3771 = vmatpush.bf16.msra.mxu0 %v3468
      %3772 = vmatpush.bf16.msra.mxu0 %v3467
      %3773 = vmatpush.bf16.msra.mxu0 %v3466
      %3774 = vmatpush.bf16.msra.mxu0 %v3465
      %3775 = vmatpush.bf16.msra.mxu0 %v3464
      %3776 = vmatpush.bf16.msra.mxu0 %v3463
      %3777 = vmatmul.bf16.gmra.mxu0 %v2605
      %v3778 = vpop.f32.mrf.mxu0
      %v3779 = vadd.f32 %v3766, %v3778
      %v3780 = vpop.f32.mrf.mxu0
      %3781 = vdwg.mxu0
      %3782 = vmatpush.bf16.msra.mxu0 %v3478
      %3783 = vmatpush.bf16.msra.mxu0 %v3477
      %3784 = vmatpush.bf16.msra.mxu0 %v3476
      %3785 = vmatpush.bf16.msra.mxu0 %v3475
      %3786 = vmatpush.bf16.msra.mxu0 %v3474
      %3787 = vmatpush.bf16.msra.mxu0 %v3473
      %3788 = vmatpush.bf16.msra.mxu0 %v3472
      %3789 = vmatpush.bf16.msra.mxu0 %v3471
      %3790 = vmatmul.bf16.gmra.mxu0 %v2606
      %v3791 = vpop.f32.mrf.mxu0
      %v3792 = vadd.f32 %v3779, %v3791
      %v3793 = vpop.f32.mrf.mxu0
      %3794 = vdwg.mxu0
      %3795 = vmatpush.bf16.msra.mxu0 %v3486
      %3796 = vmatpush.bf16.msra.mxu0 %v3485
      %3797 = vmatpush.bf16.msra.mxu0 %v3484
      %3798 = vmatpush.bf16.msra.mxu0 %v3483
      %3799 = vmatpush.bf16.msra.mxu0 %v3482
      %3800 = vmatpush.bf16.msra.mxu0 %v3481
      %3801 = vmatpush.bf16.msra.mxu0 %v3480
      %3802 = vmatpush.bf16.msra.mxu0 %v3479
      %3803 = vmatmul.bf16.gmra.mxu0 %v2607
      %v3804 = vpop.f32.mrf.mxu0
      %v3805 = vadd.f32 %v3792, %v3804
      %v3806 = vpop.f32.mrf.mxu0
      %3807 = vdwg.mxu0
      %3808 = vmatpush.bf16.msra.mxu0 %v3494
      %3809 = vmatpush.bf16.msra.mxu0 %v3493
      %3810 = vmatpush.bf16.msra.mxu0 %v3492
      %3811 = vmatpush.bf16.msra.mxu0 %v3491
      %3812 = vmatpush.bf16.msra.mxu0 %v3490
      %3813 = vmatpush.bf16.msra.mxu0 %v3489
      %3814 = vmatpush.bf16.msra.mxu0 %v3488
      %3815 = vmatpush.bf16.msra.mxu0 %v3487
      %3816 = vmatmul.bf16.gmra.mxu0 %v2608
      %v3817 = vpop.f32.mrf.mxu0
      %v3818 = vadd.f32 %v3805, %v3817
      %v3819 = vpop.f32.mrf.mxu0
      %3820 = vdwg.mxu0
      %3821 = vmatpush.bf16.msra.mxu0 %v3502
      %3822 = vmatpush.bf16.msra.mxu0 %v3501
      %3823 = vmatpush.bf16.msra.mxu0 %v3500
      %3824 = vmatpush.bf16.msra.mxu0 %v3499
      %3825 = vmatpush.bf16.msra.mxu0 %v3498
      %3826 = vmatpush.bf16.msra.mxu0 %v3497
      %3827 = vmatpush.bf16.msra.mxu0 %v3496
      %3828 = vmatpush.bf16.msra.mxu0 %v3495
      %3829 = vmatmul.bf16.gmra.mxu0 %v2609
      %v3830 = vpop.f32.mrf.mxu0
      %v3831 = vadd.f32 %v3818, %v3830
      %v3832 = vpop.f32.mrf.mxu0
      %3833 = vdwg.mxu0
      %3834 = vmatpush.bf16.msra.mxu0 %v3510
      %3835 = vmatpush.bf16.msra.mxu0 %v3509
      %3836 = vmatpush.bf16.msra.mxu0 %v3508
      %3837 = vmatpush.bf16.msra.mxu0 %v3507
      %3838 = vmatpush.bf16.msra.mxu0 %v3506
      %3839 = vmatpush.bf16.msra.mxu0 %v3505
      %3840 = vmatpush.bf16.msra.mxu0 %v3504
      %3841 = vmatpush.bf16.msra.mxu0 %v3503
      %3842 = vmatmul.bf16.gmra.mxu0 %v2610
      %v3843 = vpop.f32.mrf.mxu0
      %v3844 = vadd.f32 %v3831, %v3843
      %v3845 = vpop.f32.mrf.mxu0
      %3846 = vdwg.mxu0
      %v3847 = vadd.f32 %v2138, %v3844
      %s3848 = scalar_lea.vmem %s15, 2
      %v3849 = vld [vmem:[%s3848] sm:$0x1]
      %s3850 = scalar_lea.vmem %s16, 2
      %v3851 = vld [vmem:[%s3850] sm:$0x1]
      %v3852 = vsel %vm610, %v3847, 0.0
      %3853 = vadd.xlane.f32.xlu0 %v3852
      %v3854 = vpop.xlane.xlu0 %3853
      %v3855 = vmul.f32 %v3854, %v1328
      %v3856 = vsub.f32 %v3847, %v3855
      %v3857 = vmul.f32 %v3856, %v3856
      %v3858 = vsel %vm610, %v3857, 0.0
      %3859 = vadd.xlane.f32.xlu0 %v3858
      %v3860 = vpop.xlane.xlu0 %3859
      %v3861 = vmul.f32 %v3860, %v1328
      %v3862 = vadd.f32 %v3861, 1e-05
      %v3863 = vrsqrt.pop %v3862
      %v3864 = vmul.f32 %v3863, %v3862
      %v3865 = vmul.f32 %v3864, %v3863
      %v3866 = vmul.f32 0.5, %v3865
      %v3867 = vsub.f32 1.5, %v3866
      %v3868 = vmul.f32 %v3863, %v3867
      %vm3869 = vweird.f32 %v3862
      %vm3870 = vweird.f32 %v3863
      %vm3871 = vmor %vm3869, %vm3870
      %v3872 = vsel %vm3871, %v3863, %v3868
      %v3873 = vmul.f32 %v3856, %v3872
      %v3875 = vperm.slane %v3849, 0
      %v3877 = vmul.f32 %v3873, %v3875
      %v3879 = vperm.slane %v3851, 0
      %v3881 = vadd.f32 %v3877, %v3879
      %3882 = vst.msk [vmem:[%s560] sm:$0xff] %vm610, %v3881
      %p3883 = scmp.lt.s32.totalorder %s28, 1
      %s3884 = scalar_select %p3883, %s28, 1
      %s3885 = smul.addr %s3884, 8
      %s3886 = scalar_lea.vmem %s17, %s3885
      // Predicated region
      $region89: #{transformer_forward.6} parent=87 // pred_check
        %p3887 = pneg %p413
      $region90: #{transformer_forward.6} parent=87 // pred_check_branch
        %3889 = sbr.rel (%p3887) target = $region92
      $region91: #{transformer_forward.6} parent=87 // pred_region
        _
      $region92: #{transformer_forward.6} parent=87 // pred_fallthru
        _
    $region88: #{transformer_forward.6} parent=5 // pred_fallthru
      _
    %p3890 = scmp.le.s32.totalorder 2, %s23
    // Predicated region
    $region93: #{transformer_forward.6} parent=5 // pred_check
      %p3891 = pneg %p3890
    $region94: #{transformer_forward.6} parent=5 // pred_check_branch
      %3893 = sbr.rel (%p3891) target = $region96
    $region95: #{transformer_forward.6} parent=5 // pred_region
      %s3894 = ssub.s32 %s23, 2
      // Predicated region
      $region97: #{transformer_forward.6} parent=95 // pred_check
        %p3895 = pneg %p419
      $region98: #{transformer_forward.6} parent=95 // pred_check_branch
        %3897 = sbr.rel (%p3895) target = $region100
      $region99: #{transformer_forward.6} parent=95 // pred_region
        %p3898 = scmp.lt.s32.totalorder %s29, 1
        %s3899 = scalar_select %p3898, %s29, 1
        %s3900 = smul.addr %s3899, 8
        %s3901 = scalar_lea.vmem %s17, %s3900
      $region100: #{transformer_forward.6} parent=95 // pred_fallthru
        _
    $region96: #{transformer_forward.6} parent=5 // pred_fallthru
      _
  $region6: #{transformer_forward.6} parent=0 // loop_footer
    %s27 = sadd.s32 1, %s23
  $region7: #{transformer_forward.6} parent=0 // loop_footer_branch
    %22 = sbr.rel target = $region3
  $region8: #{transformer_forward.6} parent=0 // loop_exit
    _

</llo_original>
